<compile_context>
chip_gen: v7x
topology: tpu7x:2x2x1
jax: 0.10.0
libtpu: 0.0.40
codegen_flags: <defaults>
</compile_context>

<pallas_src>
import functools

import numpy as np
import jax
import jax.numpy as jnp
from jax.experimental import pallas as pl
from jax.experimental.pallas import tpu as pltpu


# ----------------------------------------------------------------------------
# Pallas kernel: fused  out(N, M) = act(W(N, K) @ patchesT(K, M) + b(N, 1))
# M = B*Ho*Wo lives in the lane dimension (lane-dense for the large layers).
# ----------------------------------------------------------------------------
def _gemm_bias_act_kernel(w_ref, x_ref, b_ref, o_ref, *, act):
    acc = jnp.dot(w_ref[...], x_ref[...], preferred_element_type=jnp.float32)
    acc = acc + b_ref[...]                      # (N, 1) broadcast over lanes
    if act == "relu":
        acc = jnp.maximum(acc, 0.0)
    elif act == "sigmoid":
        acc = jax.nn.sigmoid(acc)
    o_ref[...] = acc.astype(o_ref.dtype)


def gemm_bias_act(wmat, patches_t, bias, act, tm=512):
    """wmat: (N, K), patches_t: (K, M), bias: (N,) -> (N, M) f32."""
    N, K = wmat.shape
    K2, M = patches_t.shape
    assert K == K2, (K, K2)

    tm = min(tm, M)
    n_blk = -(-M // tm)                          # cdiv
    Mp = n_blk * tm
    if Mp != M:                                  # pad pixel axis to a tile multiple
        patches_t = jnp.pad(patches_t, ((0, 0), (0, Mp - M)))

    out = pl.pallas_call(
        functools.partial(_gemm_bias_act_kernel, act=act),
        out_shape=jax.ShapeDtypeStruct((N, Mp), jnp.float32),
        grid=(n_blk,),
        in_specs=[
            pl.BlockSpec((N, K), lambda i: (0, 0)),    # weights (resident)
            pl.BlockSpec((K, tm), lambda i: (0, i)),   # pixel tile
            pl.BlockSpec((N, 1), lambda i: (0, 0)),    # bias
        ],
        out_specs=pl.BlockSpec((N, tm), lambda i: (0, i)),
        compiler_params=pltpu.CompilerParams(
            dimension_semantics=("parallel",)),        # v7x: shard M over 2 TCs
    )(wmat, patches_t, bias.reshape(N, 1))
    if Mp != M:
        out = out[:, :M]
    return out


# ----------------------------------------------------------------------------
# im2col in channel-major layout (XLA glue feeding the Pallas GEMM)
# ----------------------------------------------------------------------------
def _im2col_cm(x_cm, k, stride, pad):
    """x_cm: (C, B, H, W) -> patchesT (C*k*k, B*Ho*Wo); rows ordered (c, i, j)."""
    C, B, H, W = x_cm.shape
    xp = jnp.pad(x_cm, ((0, 0), (0, 0), (pad, pad), (pad, pad)))
    Ho = (H + 2 * pad - k) // stride + 1
    Wo = (W + 2 * pad - k) // stride + 1
    taps = []
    for i in range(k):
        for j in range(k):
            taps.append(jax.lax.slice(
                xp, (0, 0, i, j),
                (C, B, i + stride * (Ho - 1) + 1, j + stride * (Wo - 1) + 1),
                (1, 1, stride, stride)))
    p = jnp.stack(taps, axis=1)                  # (C, k*k, B, Ho, Wo)
    return p.reshape(C * k * k, B * Ho * Wo), Ho, Wo


def conv2d_cm(x_cm, wmat, bias, act, k, stride, pad):
    """nn.Conv2d in CNHW. x_cm: (Cin,B,H,W); wmat: (Cout, Cin*k*k)."""
    B = x_cm.shape[1]
    patches_t, Ho, Wo = _im2col_cm(x_cm, k, stride, pad)
    out = gemm_bias_act(wmat, patches_t, bias, act)
    return out.reshape(wmat.shape[0], B, Ho, Wo)


def conv_transpose2d_cm(x_cm, wmat4, bias4, act):
    """nn.ConvTranspose2d(k=4,s=2,p=1) via 3x3 s=1 conv + pixel shuffle.

    x_cm: (Cin, B, H, W); wmat4: (4*Cout, Cin*9) -> (Cout, B, 2H, 2W).
    """
    Cin, B, H, W = x_cm.shape
    Cout = wmat4.shape[0] // 4
    patches_t, _, _ = _im2col_cm(x_cm, 3, 1, 1)          # Ho = H, Wo = W
    out4 = gemm_bias_act(wmat4, patches_t, bias4, act)    # (4*Cout, B*H*W)
    out4 = out4.reshape(2, 2, Cout, B, H, W)              # (di, dj, co, b, h, w)
    out = jnp.transpose(out4, (2, 3, 4, 0, 5, 1))         # (co, b, h, di, w, dj)
    return out.reshape(Cout, B, 2 * H, 2 * W)


# ----------------------------------------------------------------------------
# Parameters (PyTorch layout) and one-time GEMM-layout preparation
# ----------------------------------------------------------------------------
ENC_CH = [(None, 8), (8, 16), (16, 32), (32, 64), (64, 64), (64, 64)]
DEC_CH = [(64, 64), (64, 64), (64, 32), (32, 16), (16, 8), (8, None)]
K = 4


def init_params(key, in_dim, chs):
    enc_ch = [(in_dim if c is None else c, o) for (c, o) in ENC_CH]
    dec_ch = [(c, chs if o is None else o) for (c, o) in DEC_CH]
    params = {"enc": [], "dec": []}
    for cin, cout in enc_ch:
        key, kw, kb = jax.random.split(key, 3)
        bound = 1.0 / float(np.sqrt(cin * K * K))
        w = jax.random.uniform(kw, (cout, cin, K, K), jnp.float32, -bound, bound)
        b = jax.random.uniform(kb, (cout,), jnp.float32, -bound, bound)
        params["enc"].append((w, b))
    for cin, cout in dec_ch:
        key, kw, kb = jax.random.split(key, 3)
        bound = 1.0 / float(np.sqrt(cin * K * K))
        w = jax.random.uniform(kw, (cin, cout, K, K), jnp.float32, -bound, bound)
        b = jax.random.uniform(kb, (cout,), jnp.float32, -bound, bound)
        params["dec"].append((w, b))
    return params


def _convt_as_conv3x3(w, b):
    """Rewrite ConvTranspose2d(k=4,s=2,p=1) weights as a 3x3 s=1 p=1 conv with
    4*Cout output channels (one per output sub-pixel phase).

    For output phase (di, dj) in {0,1}^2 and window offset (ri, rj) in {0,1,2}^2
    over the 1-padded input, the contributing transposed-conv tap is
    (3 + di - 2*ri, 3 + dj - 2*rj) when it lies in [0, 4); other combos are 0.
    """
    w = np.asarray(jax.device_get(w))            # (Cin, Cout, 4, 4)
    Cin, Cout, k, _ = w.shape
    bw = np.zeros((2, 2, Cout, Cin, 3, 3), np.float32)
    for di in range(2):
        for dj in range(2):
            for ri in range(3):
                ii = 3 + di - 2 * ri
                if not 0 <= ii < k:
                    continue
                for rj in range(3):
                    jj = 3 + dj - 2 * rj
                    if not 0 <= jj < k:
                        continue
                    bw[di, dj, :, :, ri, rj] = w[:, :, ii, jj].T
    wmat4 = jnp.asarray(bw.reshape(4 * Cout, Cin * 9))   # rows (di, dj, co)
    bias4 = jnp.tile(b, 4)
    return wmat4, bias4


def prepare_params(params):
    """One-time rearrangement into GEMM-ready (N, K) matrices (outside jit)."""
    prepped = {"enc": [], "dec": []}
    for (w, b) in params["enc"]:
        cout, cin, k, _ = w.shape
        prepped["enc"].append((w.reshape(cout, cin * k * k), b))   # cols (ci,i,j)
    for (w, b) in params["dec"]:
        prepped["dec"].append(_convt_as_conv3x3(w, b))
    return prepped


# ----------------------------------------------------------------------------
# Pyramid2 forward (NCHW in / NCHW out, CNHW internally)
# ----------------------------------------------------------------------------
def pyramid2_forward(prepped, x, time=None):
    if time is not None:
        x = jnp.concatenate([x, time], axis=1)   # cat along channel dim (NCHW)
    x = jnp.transpose(x, (1, 0, 2, 3))           # NCHW -> CNHW, once
    for (wmat, b) in prepped["enc"]:
        x = conv2d_cm(x, wmat, b, "relu", k=4, stride=2, pad=1)
    n_dec = len(prepped["dec"])
    for i, (wmat4, b4) in enumerate(prepped["dec"]):
        act = "sigmoid" if i == n_dec - 1 else "relu"
        x = conv_transpose2d_cm(x, wmat4, b4, act)
    return jnp.transpose(x, (1, 0, 2, 3))        # CNHW -> NCHW, once


# ----------------------------------------------------------------------------
# Pure-JAX reference (PyTorch Conv2d / ConvTranspose2d semantics) for checking
# ----------------------------------------------------------------------------
def _ref_conv(x, w, b, stride, pad):
    out = jax.lax.conv_general_dilated(
        x, w, window_strides=(stride, stride), padding=[(pad, pad), (pad, pad)],
        dimension_numbers=("NCHW", "OIHW", "NCHW"),
        precision=jax.lax.Precision.HIGHEST)
    return out + b.reshape(1, -1, 1, 1)


def _ref_convt(x, w, b, stride, pad):
    k = w.shape[2]
    wf = jnp.transpose(w[:, :, ::-1, ::-1], (1, 0, 2, 3))   # flip + swap io
    out = jax.lax.conv_general_dilated(
        x, wf, window_strides=(1, 1),
        padding=[(k - 1 - pad,) * 2, (k - 1 - pad,) * 2],
        lhs_dilation=(stride, stride),
        dimension_numbers=("NCHW", "OIHW", "NCHW"),
        precision=jax.lax.Precision.HIGHEST)
    return out + b.reshape(1, -1, 1, 1)


def reference_forward(params, x, time=None):
    if time is not None:
        x = jnp.concatenate([x, time], axis=1)
    for (w, b) in params["enc"]:
        x = jax.nn.relu(_ref_conv(x, w, b, 2, 1))
    n_dec = len(params["dec"])
    for i, (w, b) in enumerate(params["dec"]):
        y = _ref_convt(x, w, b, 2, 1)
        x = jax.nn.sigmoid(y) if i == n_dec - 1 else jax.nn.relu(y)
    return x


if __name__ == "__main__":
    in_dim, chs = 4, 3
    B, H, W = 2, 64, 64   # 6 stride-2 stages => spatial must be divisible by 64

    key = jax.random.PRNGKey(0)
    kx, kt, kp = jax.random.split(key, 3)
    x = jax.random.normal(kx, (B, in_dim - 1, H, W), jnp.float32)
    time = jax.random.normal(kt, (B, 1, H, W), jnp.float32)
    params = init_params(kp, in_dim, chs)
    prepped = prepare_params(params)

    fwd = jax.jit(pyramid2_forward)
    out = jax.block_until_ready(fwd(prepped, x, time))

    assert out.shape == (B, chs, H, W), out.shape
    assert bool(jnp.all(jnp.isfinite(out)))
    assert bool(jnp.all((out >= 0.0) & (out <= 1.0)))   # sigmoid output range

    # Numerical check against a pure-JAX (XLA conv) reference of the PyTorch
    # module; loose tolerance to allow for MXU f32 pass differences.
    ref = reference_forward(params, x, time)
    np.testing.assert_allclose(np.asarray(out), np.asarray(ref),
                               atol=2e-2, rtol=0.0)
    print("KERNEL_OK")
</pallas_src>

<mosaic_0001>
module attributes {stable_mosaic.version = 11 : i64} {
  func.func @_gemm_bias_act_kernel(%arg0: i32, %arg1: memref<8x64xf32, #tpu.memory_space<vmem>>, %arg2: memref<64x512xf32, #tpu.memory_space<vmem>>, %arg3: memref<8x1xf32, #tpu.memory_space<vmem>>, %arg4: memref<8x512xf32, #tpu.memory_space<vmem>>) attributes {dimension_semantics = [#tpu.dimension_semantics<parallel>], iteration_bounds = array<i64: 4>, scalar_prefetch = 0 : i64, scratch_operands = 0 : i64, tpu.core_type = #tpu.core_type<tc>, window_params = [{pipeline_mode = #tpu.pipeline_mode<synchronous>, transform_indices = @transform_0, window_bounds = array<i64: 8, 64>}, {transform_indices = @transform_1, window_bounds = array<i64: 64, 512>}, {pipeline_mode = #tpu.pipeline_mode<synchronous>, transform_indices = @transform_2, window_bounds = array<i64: 8, 1>}, {transform_indices = @transform_3, window_bounds = array<i64: 8, 512>}]} {
    %c0 = arith.constant 0 : index
    %c0_0 = arith.constant 0 : index
    %0 = vector.load %arg1[%c0, %c0_0] : memref<8x64xf32, #tpu.memory_space<vmem>>, vector<8x64xf32>
    %c0_1 = arith.constant 0 : index
    %c0_2 = arith.constant 0 : index
    %1 = vector.load %arg2[%c0_1, %c0_2] : memref<64x512xf32, #tpu.memory_space<vmem>>, vector<64x512xf32>
    %cst = arith.constant dense<0.000000e+00> : vector<8x512xf32>
    %2 = tpu.matmul %0, %1, %cst {dimension_numbers = #tpu.dot_dimension_numbers<[1], [0], [0], [1], [0, 0, 1, 1], [], []>} : vector<8x64xf32>, vector<64x512xf32>, vector<8x512xf32> -> vector<8x512xf32>
    %c0_3 = arith.constant 0 : index
    %c0_4 = arith.constant 0 : index
    %3 = vector.load %arg3[%c0_3, %c0_4] : memref<8x1xf32, #tpu.memory_space<vmem>>, vector<8x1xf32>
    %4 = vector.broadcast %3 : vector<8x1xf32> to vector<8x512xf32>
    %5 = arith.addf %2, %4 : vector<8x512xf32>
    %cst_5 = arith.constant 0.000000e+00 : f32
    %6 = vector.broadcast %cst_5 : f32 to vector<8x512xf32>
    %7 = arith.maximumf %5, %6 : vector<8x512xf32>
    %c0_6 = arith.constant 0 : index
    %c0_7 = arith.constant 0 : index
    %8 = vector.load %arg4[%c0_6, %c0_7] : memref<8x512xf32, #tpu.memory_space<vmem>>, vector<8x512xf32>
    tpu.vector_store %arg4[%c0_6, %c0_7], %7 {strides = array<i32>} : memref<8x512xf32, #tpu.memory_space<vmem>>, vector<8x512xf32>,
    return
  }
  func.func @transform_0(%arg0: i32) -> (i32, i32) {
    %c0_i32 = arith.constant 0 : i32
    %c0_i32_0 = arith.constant 0 : i32
    %c0_i32_1 = arith.constant 0 : i32
    return %c0_i32, %c0_i32_0 : i32, i32
  }
  func.func @transform_1(%arg0: i32) -> (i32, i32) {
    %c0_i32 = arith.constant 0 : i32
    %c0_i32_0 = arith.constant 0 : i32
    return %c0_i32, %arg0 : i32, i32
  }
  func.func @transform_2(%arg0: i32) -> (i32, i32) {
    %c0_i32 = arith.constant 0 : i32
    %c0_i32_0 = arith.constant 0 : i32
    %c0_i32_1 = arith.constant 0 : i32
    return %c0_i32, %c0_i32_0 : i32, i32
  }
  func.func @transform_3(%arg0: i32) -> (i32, i32) {
    %c0_i32 = arith.constant 0 : i32
    %c0_i32_0 = arith.constant 0 : i32
    return %c0_i32, %arg0 : i32, i32
  }
}

module attributes {stable_mosaic.version = 11 : i64} {
  func.func @_gemm_bias_act_kernel(%arg0: i32, %arg1: memref<16x128xf32, #tpu.memory_space<vmem>>, %arg2: memref<128x512xf32, #tpu.memory_space<vmem>>, %arg3: memref<16x1xf32, #tpu.memory_space<vmem>>, %arg4: memref<16x512xf32, #tpu.memory_space<vmem>>) attributes {dimension_semantics = [#tpu.dimension_semantics<parallel>], iteration_bounds = array<i64: 1>, scalar_prefetch = 0 : i64, scratch_operands = 0 : i64, tpu.core_type = #tpu.core_type<tc>, window_params = [{pipeline_mode = #tpu.pipeline_mode<synchronous>, transform_indices = @transform_0, window_bounds = array<i64: 16, 128>}, {transform_indices = @transform_1, window_bounds = array<i64: 128, 512>}, {pipeline_mode = #tpu.pipeline_mode<synchronous>, transform_indices = @transform_2, window_bounds = array<i64: 16, 1>}, {transform_indices = @transform_3, window_bounds = array<i64: 16, 512>}]} {
    %c0 = arith.constant 0 : index
    %c0_0 = arith.constant 0 : index
    %0 = vector.load %arg1[%c0, %c0_0] : memref<16x128xf32, #tpu.memory_space<vmem>>, vector<16x128xf32>
    %c0_1 = arith.constant 0 : index
    %c0_2 = arith.constant 0 : index
    %1 = vector.load %arg2[%c0_1, %c0_2] : memref<128x512xf32, #tpu.memory_space<vmem>>, vector<128x512xf32>
    %cst = arith.constant dense<0.000000e+00> : vector<16x512xf32>
    %2 = tpu.matmul %0, %1, %cst {dimension_numbers = #tpu.dot_dimension_numbers<[1], [0], [0], [1], [0, 0, 1, 1], [], []>} : vector<16x128xf32>, vector<128x512xf32>, vector<16x512xf32> -> vector<16x512xf32>
    %c0_3 = arith.constant 0 : index
    %c0_4 = arith.constant 0 : index
    %3 = vector.load %arg3[%c0_3, %c0_4] : memref<16x1xf32, #tpu.memory_space<vmem>>, vector<16x1xf32>
    %4 = vector.broadcast %3 : vector<16x1xf32> to vector<16x512xf32>
    %5 = arith.addf %2, %4 : vector<16x512xf32>
    %cst_5 = arith.constant 0.000000e+00 : f32
    %6 = vector.broadcast %cst_5 : f32 to vector<16x512xf32>
    %7 = arith.maximumf %5, %6 : vector<16x512xf32>
    %c0_6 = arith.constant 0 : index
    %c0_7 = arith.constant 0 : index
    %8 = vector.load %arg4[%c0_6, %c0_7] : memref<16x512xf32, #tpu.memory_space<vmem>>, vector<16x512xf32>
    tpu.vector_store %arg4[%c0_6, %c0_7], %7 {strides = array<i32>} : memref<16x512xf32, #tpu.memory_space<vmem>>, vector<16x512xf32>,
    return
  }
  func.func @transform_0(%arg0: i32) -> (i32, i32) {
    %c0_i32 = arith.constant 0 : i32
    %c0_i32_0 = arith.constant 0 : i32
    %c0_i32_1 = arith.constant 0 : i32
    return %c0_i32, %c0_i32_0 : i32, i32
  }
  func.func @transform_1(%arg0: i32) -> (i32, i32) {
    %c0_i32 = arith.constant 0 : i32
    %c0_i32_0 = arith.constant 0 : i32
    return %c0_i32, %arg0 : i32, i32
  }
  func.func @transform_2(%arg0: i32) -> (i32, i32) {
    %c0_i32 = arith.constant 0 : i32
    %c0_i32_0 = arith.constant 0 : i32
    %c0_i32_1 = arith.constant 0 : i32
    return %c0_i32, %c0_i32_0 : i32, i32
  }
  func.func @transform_3(%arg0: i32) -> (i32, i32) {
    %c0_i32 = arith.constant 0 : i32
    %c0_i32_0 = arith.constant 0 : i32
    return %c0_i32, %arg0 : i32, i32
  }
}

module attributes {stable_mosaic.version = 11 : i64} {
  func.func @_gemm_bias_act_kernel(%arg0: i32, %arg1: memref<32x256xf32, #tpu.memory_space<vmem>>, %arg2: memref<256x128xf32, #tpu.memory_space<vmem>>, %arg3: memref<32x1xf32, #tpu.memory_space<vmem>>, %arg4: memref<32x128xf32, #tpu.memory_space<vmem>>) attributes {dimension_semantics = [#tpu.dimension_semantics<parallel>], iteration_bounds = array<i64: 1>, scalar_prefetch = 0 : i64, scratch_operands = 0 : i64, tpu.core_type = #tpu.core_type<tc>, window_params = [{pipeline_mode = #tpu.pipeline_mode<synchronous>, transform_indices = @transform_0, window_bounds = array<i64: 32, 256>}, {transform_indices = @transform_1, window_bounds = array<i64: 256, 128>}, {pipeline_mode = #tpu.pipeline_mode<synchronous>, transform_indices = @transform_2, window_bounds = array<i64: 32, 1>}, {transform_indices = @transform_3, window_bounds = array<i64: 32, 128>}]} {
    %c0 = arith.constant 0 : index
    %c0_0 = arith.constant 0 : index
    %0 = vector.load %arg1[%c0, %c0_0] : memref<32x256xf32, #tpu.memory_space<vmem>>, vector<32x256xf32>
    %c0_1 = arith.constant 0 : index
    %c0_2 = arith.constant 0 : index
    %1 = vector.load %arg2[%c0_1, %c0_2] : memref<256x128xf32, #tpu.memory_space<vmem>>, vector<256x128xf32>
    %cst = arith.constant dense<0.000000e+00> : vector<32x128xf32>
    %2 = tpu.matmul %0, %1, %cst {dimension_numbers = #tpu.dot_dimension_numbers<[1], [0], [0], [1], [0, 0, 1, 1], [], []>} : vector<32x256xf32>, vector<256x128xf32>, vector<32x128xf32> -> vector<32x128xf32>
    %c0_3 = arith.constant 0 : index
    %c0_4 = arith.constant 0 : index
    %3 = vector.load %arg3[%c0_3, %c0_4] : memref<32x1xf32, #tpu.memory_space<vmem>>, vector<32x1xf32>
    %4 = vector.broadcast %3 : vector<32x1xf32> to vector<32x128xf32>
    %5 = arith.addf %2, %4 : vector<32x128xf32>
    %cst_5 = arith.constant 0.000000e+00 : f32
    %6 = vector.broadcast %cst_5 : f32 to vector<32x128xf32>
    %7 = arith.maximumf %5, %6 : vector<32x128xf32>
    %c0_6 = arith.constant 0 : index
    %c0_7 = arith.constant 0 : index
    %8 = vector.load %arg4[%c0_6, %c0_7] : memref<32x128xf32, #tpu.memory_space<vmem>>, vector<32x128xf32>
    tpu.vector_store %arg4[%c0_6, %c0_7], %7 {strides = array<i32>} : memref<32x128xf32, #tpu.memory_space<vmem>>, vector<32x128xf32>,
    return
  }
  func.func @transform_0(%arg0: i32) -> (i32, i32) {
    %c0_i32 = arith.constant 0 : i32
    %c0_i32_0 = arith.constant 0 : i32
    %c0_i32_1 = arith.constant 0 : i32
    return %c0_i32, %c0_i32_0 : i32, i32
  }
  func.func @transform_1(%arg0: i32) -> (i32, i32) {
    %c0_i32 = arith.constant 0 : i32
    %c0_i32_0 = arith.constant 0 : i32
    return %c0_i32, %arg0 : i32, i32
  }
  func.func @transform_2(%arg0: i32) -> (i32, i32) {
    %c0_i32 = arith.constant 0 : i32
    %c0_i32_0 = arith.constant 0 : i32
    %c0_i32_1 = arith.constant 0 : i32
    return %c0_i32, %c0_i32_0 : i32, i32
  }
  func.func @transform_3(%arg0: i32) -> (i32, i32) {
    %c0_i32 = arith.constant 0 : i32
    %c0_i32_0 = arith.constant 0 : i32
    return %c0_i32, %arg0 : i32, i32
  }
}

module attributes {stable_mosaic.version = 11 : i64} {
  func.func @_gemm_bias_act_kernel(%arg0: i32, %arg1: memref<64x512xf32, #tpu.memory_space<vmem>>, %arg2: memref<512x32xf32, #tpu.memory_space<vmem>>, %arg3: memref<64x1xf32, #tpu.memory_space<vmem>>, %arg4: memref<64x32xf32, #tpu.memory_space<vmem>>) attributes {dimension_semantics = [#tpu.dimension_semantics<parallel>], iteration_bounds = array<i64: 1>, scalar_prefetch = 0 : i64, scratch_operands = 0 : i64, tpu.core_type = #tpu.core_type<tc>, window_params = [{pipeline_mode = #tpu.pipeline_mode<synchronous>, transform_indices = @transform_0, window_bounds = array<i64: 64, 512>}, {transform_indices = @transform_1, window_bounds = array<i64: 512, 32>}, {pipeline_mode = #tpu.pipeline_mode<synchronous>, transform_indices = @transform_2, window_bounds = array<i64: 64, 1>}, {transform_indices = @transform_3, window_bounds = array<i64: 64, 32>}]} {
    %c0 = arith.constant 0 : index
    %c0_0 = arith.constant 0 : index
    %0 = vector.load %arg1[%c0, %c0_0] : memref<64x512xf32, #tpu.memory_space<vmem>>, vector<64x512xf32>
    %c0_1 = arith.constant 0 : index
    %c0_2 = arith.constant 0 : index
    %1 = vector.load %arg2[%c0_1, %c0_2] : memref<512x32xf32, #tpu.memory_space<vmem>>, vector<512x32xf32>
    %cst = arith.constant dense<0.000000e+00> : vector<64x32xf32>
    %2 = tpu.matmul %0, %1, %cst {dimension_numbers = #tpu.dot_dimension_numbers<[1], [0], [0], [1], [0, 0, 1, 1], [], []>} : vector<64x512xf32>, vector<512x32xf32>, vector<64x32xf32> -> vector<64x32xf32>
    %c0_3 = arith.constant 0 : index
    %c0_4 = arith.constant 0 : index
    %3 = vector.load %arg3[%c0_3, %c0_4] : memref<64x1xf32, #tpu.memory_space<vmem>>, vector<64x1xf32>
    %4 = vector.broadcast %3 : vector<64x1xf32> to vector<64x32xf32>
    %5 = arith.addf %2, %4 : vector<64x32xf32>
    %cst_5 = arith.constant 0.000000e+00 : f32
    %6 = vector.broadcast %cst_5 : f32 to vector<64x32xf32>
    %7 = arith.maximumf %5, %6 : vector<64x32xf32>
    %c0_6 = arith.constant 0 : index
    %c0_7 = arith.constant 0 : index
    %8 = vector.load %arg4[%c0_6, %c0_7] : memref<64x32xf32, #tpu.memory_space<vmem>>, vector<64x32xf32>
    tpu.vector_store %arg4[%c0_6, %c0_7], %7 {strides = array<i32>} : memref<64x32xf32, #tpu.memory_space<vmem>>, vector<64x32xf32>,
    return
  }
  func.func @transform_0(%arg0: i32) -> (i32, i32) {
    %c0_i32 = arith.constant 0 : i32
    %c0_i32_0 = arith.constant 0 : i32
    %c0_i32_1 = arith.constant 0 : i32
    return %c0_i32, %c0_i32_0 : i32, i32
  }
  func.func @transform_1(%arg0: i32) -> (i32, i32) {
    %c0_i32 = arith.constant 0 : i32
    %c0_i32_0 = arith.constant 0 : i32
    return %c0_i32, %arg0 : i32, i32
  }
  func.func @transform_2(%arg0: i32) -> (i32, i32) {
    %c0_i32 = arith.constant 0 : i32
    %c0_i32_0 = arith.constant 0 : i32
    %c0_i32_1 = arith.constant 0 : i32
    return %c0_i32, %c0_i32_0 : i32, i32
  }
  func.func @transform_3(%arg0: i32) -> (i32, i32) {
    %c0_i32 = arith.constant 0 : i32
    %c0_i32_0 = arith.constant 0 : i32
    return %c0_i32, %arg0 : i32, i32
  }
}

module attributes {stable_mosaic.version = 11 : i64} {
  func.func @_gemm_bias_act_kernel(%arg0: i32, %arg1: memref<64x1024xf32, #tpu.memory_space<vmem>>, %arg2: memref<1024x8xf32, #tpu.memory_space<vmem>>, %arg3: memref<64x1xf32, #tpu.memory_space<vmem>>, %arg4: memref<64x8xf32, #tpu.memory_space<vmem>>) attributes {dimension_semantics = [#tpu.dimension_semantics<parallel>], iteration_bounds = array<i64: 1>, scalar_prefetch = 0 : i64, scratch_operands = 0 : i64, tpu.core_type = #tpu.core_type<tc>, window_params = [{pipeline_mode = #tpu.pipeline_mode<synchronous>, transform_indices = @transform_0, window_bounds = array<i64: 64, 1024>}, {transform_indices = @transform_1, window_bounds = array<i64: 1024, 8>}, {pipeline_mode = #tpu.pipeline_mode<synchronous>, transform_indices = @transform_2, window_bounds = array<i64: 64, 1>}, {transform_indices = @transform_3, window_bounds = array<i64: 64, 8>}]} {
    %c0 = arith.constant 0 : index
    %c0_0 = arith.constant 0 : index
    %0 = vector.load %arg1[%c0, %c0_0] : memref<64x1024xf32, #tpu.memory_space<vmem>>, vector<64x1024xf32>
    %c0_1 = arith.constant 0 : index
    %c0_2 = arith.constant 0 : index
    %1 = vector.load %arg2[%c0_1, %c0_2] : memref<1024x8xf32, #tpu.memory_space<vmem>>, vector<1024x8xf32>
    %cst = arith.constant dense<0.000000e+00> : vector<64x8xf32>
    %2 = tpu.matmul %0, %1, %cst {dimension_numbers = #tpu.dot_dimension_numbers<[1], [0], [0], [1], [0, 0, 1, 1], [], []>} : vector<64x1024xf32>, vector<1024x8xf32>, vector<64x8xf32> -> vector<64x8xf32>
    %c0_3 = arith.constant 0 : index
    %c0_4 = arith.constant 0 : index
    %3 = vector.load %arg3[%c0_3, %c0_4] : memref<64x1xf32, #tpu.memory_space<vmem>>, vector<64x1xf32>
    %4 = vector.broadcast %3 : vector<64x1xf32> to vector<64x8xf32>
    %5 = arith.addf %2, %4 : vector<64x8xf32>
    %cst_5 = arith.constant 0.000000e+00 : f32
    %6 = vector.broadcast %cst_5 : f32 to vector<64x8xf32>
    %7 = arith.maximumf %5, %6 : vector<64x8xf32>
    %c0_6 = arith.constant 0 : index
    %c0_7 = arith.constant 0 : index
    %8 = vector.load %arg4[%c0_6, %c0_7] : memref<64x8xf32, #tpu.memory_space<vmem>>, vector<64x8xf32>
    tpu.vector_store %arg4[%c0_6, %c0_7], %7 {strides = array<i32>} : memref<64x8xf32, #tpu.memory_space<vmem>>, vector<64x8xf32>,
    return
  }
  func.func @transform_0(%arg0: i32) -> (i32, i32) {
    %c0_i32 = arith.constant 0 : i32
    %c0_i32_0 = arith.constant 0 : i32
    %c0_i32_1 = arith.constant 0 : i32
    return %c0_i32, %c0_i32_0 : i32, i32
  }
  func.func @transform_1(%arg0: i32) -> (i32, i32) {
    %c0_i32 = arith.constant 0 : i32
    %c0_i32_0 = arith.constant 0 : i32
    return %c0_i32, %arg0 : i32, i32
  }
  func.func @transform_2(%arg0: i32) -> (i32, i32) {
    %c0_i32 = arith.constant 0 : i32
    %c0_i32_0 = arith.constant 0 : i32
    %c0_i32_1 = arith.constant 0 : i32
    return %c0_i32, %c0_i32_0 : i32, i32
  }
  func.func @transform_3(%arg0: i32) -> (i32, i32) {
    %c0_i32 = arith.constant 0 : i32
    %c0_i32_0 = arith.constant 0 : i32
    return %c0_i32, %arg0 : i32, i32
  }
}

module attributes {stable_mosaic.version = 11 : i64} {
  func.func @_gemm_bias_act_kernel(%arg0: i32, %arg1: memref<64x1024xf32, #tpu.memory_space<vmem>>, %arg2: memref<1024x2xf32, #tpu.memory_space<vmem>>, %arg3: memref<64x1xf32, #tpu.memory_space<vmem>>, %arg4: memref<64x2xf32, #tpu.memory_space<vmem>>) attributes {dimension_semantics = [#tpu.dimension_semantics<parallel>], iteration_bounds = array<i64: 1>, scalar_prefetch = 0 : i64, scratch_operands = 0 : i64, tpu.core_type = #tpu.core_type<tc>, window_params = [{pipeline_mode = #tpu.pipeline_mode<synchronous>, transform_indices = @transform_0, window_bounds = array<i64: 64, 1024>}, {transform_indices = @transform_1, window_bounds = array<i64: 1024, 2>}, {pipeline_mode = #tpu.pipeline_mode<synchronous>, transform_indices = @transform_2, window_bounds = array<i64: 64, 1>}, {transform_indices = @transform_3, window_bounds = array<i64: 64, 2>}]} {
    %c0 = arith.constant 0 : index
    %c0_0 = arith.constant 0 : index
    %0 = vector.load %arg1[%c0, %c0_0] : memref<64x1024xf32, #tpu.memory_space<vmem>>, vector<64x1024xf32>
    %c0_1 = arith.constant 0 : index
    %c0_2 = arith.constant 0 : index
    %1 = vector.load %arg2[%c0_1, %c0_2] : memref<1024x2xf32, #tpu.memory_space<vmem>>, vector<1024x2xf32>
    %cst = arith.constant dense<0.000000e+00> : vector<64x2xf32>
    %2 = tpu.matmul %0, %1, %cst {dimension_numbers = #tpu.dot_dimension_numbers<[1], [0], [0], [1], [0, 0, 1, 1], [], []>} : vector<64x1024xf32>, vector<1024x2xf32>, vector<64x2xf32> -> vector<64x2xf32>
    %c0_3 = arith.constant 0 : index
    %c0_4 = arith.constant 0 : index
    %3 = vector.load %arg3[%c0_3, %c0_4] : memref<64x1xf32, #tpu.memory_space<vmem>>, vector<64x1xf32>
    %4 = vector.broadcast %3 : vector<64x1xf32> to vector<64x2xf32>
    %5 = arith.addf %2, %4 : vector<64x2xf32>
    %cst_5 = arith.constant 0.000000e+00 : f32
    %6 = vector.broadcast %cst_5 : f32 to vector<64x2xf32>
    %7 = arith.maximumf %5, %6 : vector<64x2xf32>
    %c0_6 = arith.constant 0 : index
    %c0_7 = arith.constant 0 : index
    %8 = vector.load %arg4[%c0_6, %c0_7] : memref<64x2xf32, #tpu.memory_space<vmem>>, vector<64x2xf32>
    tpu.vector_store %arg4[%c0_6, %c0_7], %7 {strides = array<i32>} : memref<64x2xf32, #tpu.memory_space<vmem>>, vector<64x2xf32>,
    return
  }
  func.func @transform_0(%arg0: i32) -> (i32, i32) {
    %c0_i32 = arith.constant 0 : i32
    %c0_i32_0 = arith.constant 0 : i32
    %c0_i32_1 = arith.constant 0 : i32
    return %c0_i32, %c0_i32_0 : i32, i32
  }
  func.func @transform_1(%arg0: i32) -> (i32, i32) {
    %c0_i32 = arith.constant 0 : i32
    %c0_i32_0 = arith.constant 0 : i32
    return %c0_i32, %arg0 : i32, i32
  }
  func.func @transform_2(%arg0: i32) -> (i32, i32) {
    %c0_i32 = arith.constant 0 : i32
    %c0_i32_0 = arith.constant 0 : i32
    %c0_i32_1 = arith.constant 0 : i32
    return %c0_i32, %c0_i32_0 : i32, i32
  }
  func.func @transform_3(%arg0: i32) -> (i32, i32) {
    %c0_i32 = arith.constant 0 : i32
    %c0_i32_0 = arith.constant 0 : i32
    return %c0_i32, %arg0 : i32, i32
  }
}

module attributes {stable_mosaic.version = 11 : i64} {
  func.func @_gemm_bias_act_kernel(%arg0: i32, %arg1: memref<256x576xf32, #tpu.memory_space<vmem>>, %arg2: memref<576x2xf32, #tpu.memory_space<vmem>>, %arg3: memref<256x1xf32, #tpu.memory_space<vmem>>, %arg4: memref<256x2xf32, #tpu.memory_space<vmem>>) attributes {dimension_semantics = [#tpu.dimension_semantics<parallel>], iteration_bounds = array<i64: 1>, scalar_prefetch = 0 : i64, scratch_operands = 0 : i64, tpu.core_type = #tpu.core_type<tc>, window_params = [{pipeline_mode = #tpu.pipeline_mode<synchronous>, transform_indices = @transform_0, window_bounds = array<i64: 256, 576>}, {transform_indices = @transform_1, window_bounds = array<i64: 576, 2>}, {pipeline_mode = #tpu.pipeline_mode<synchronous>, transform_indices = @transform_2, window_bounds = array<i64: 256, 1>}, {transform_indices = @transform_3, window_bounds = array<i64: 256, 2>}]} {
    %c0 = arith.constant 0 : index
    %c0_0 = arith.constant 0 : index
    %0 = vector.load %arg1[%c0, %c0_0] : memref<256x576xf32, #tpu.memory_space<vmem>>, vector<256x576xf32>
    %c0_1 = arith.constant 0 : index
    %c0_2 = arith.constant 0 : index
    %1 = vector.load %arg2[%c0_1, %c0_2] : memref<576x2xf32, #tpu.memory_space<vmem>>, vector<576x2xf32>
    %cst = arith.constant dense<0.000000e+00> : vector<256x2xf32>
    %2 = tpu.matmul %0, %1, %cst {dimension_numbers = #tpu.dot_dimension_numbers<[1], [0], [0], [1], [0, 0, 1, 1], [], []>} : vector<256x576xf32>, vector<576x2xf32>, vector<256x2xf32> -> vector<256x2xf32>
    %c0_3 = arith.constant 0 : index
    %c0_4 = arith.constant 0 : index
    %3 = vector.load %arg3[%c0_3, %c0_4] : memref<256x1xf32, #tpu.memory_space<vmem>>, vector<256x1xf32>
    %4 = vector.broadcast %3 : vector<256x1xf32> to vector<256x2xf32>
    %5 = arith.addf %2, %4 : vector<256x2xf32>
    %cst_5 = arith.constant 0.000000e+00 : f32
    %6 = vector.broadcast %cst_5 : f32 to vector<256x2xf32>
    %7 = arith.maximumf %5, %6 : vector<256x2xf32>
    %c0_6 = arith.constant 0 : index
    %c0_7 = arith.constant 0 : index
    %8 = vector.load %arg4[%c0_6, %c0_7] : memref<256x2xf32, #tpu.memory_space<vmem>>, vector<256x2xf32>
    tpu.vector_store %arg4[%c0_6, %c0_7], %7 {strides = array<i32>} : memref<256x2xf32, #tpu.memory_space<vmem>>, vector<256x2xf32>,
    return
  }
  func.func @transform_0(%arg0: i32) -> (i32, i32) {
    %c0_i32 = arith.constant 0 : i32
    %c0_i32_0 = arith.constant 0 : i32
    %c0_i32_1 = arith.constant 0 : i32
    return %c0_i32, %c0_i32_0 : i32, i32
  }
  func.func @transform_1(%arg0: i32) -> (i32, i32) {
    %c0_i32 = arith.constant 0 : i32
    %c0_i32_0 = arith.constant 0 : i32
    return %c0_i32, %arg0 : i32, i32
  }
  func.func @transform_2(%arg0: i32) -> (i32, i32) {
    %c0_i32 = arith.constant 0 : i32
    %c0_i32_0 = arith.constant 0 : i32
    %c0_i32_1 = arith.constant 0 : i32
    return %c0_i32, %c0_i32_0 : i32, i32
  }
  func.func @transform_3(%arg0: i32) -> (i32, i32) {
    %c0_i32 = arith.constant 0 : i32
    %c0_i32_0 = arith.constant 0 : i32
    return %c0_i32, %arg0 : i32, i32
  }
}

module attributes {stable_mosaic.version = 11 : i64} {
  func.func @_gemm_bias_act_kernel(%arg0: i32, %arg1: memref<256x576xf32, #tpu.memory_space<vmem>>, %arg2: memref<576x8xf32, #tpu.memory_space<vmem>>, %arg3: memref<256x1xf32, #tpu.memory_space<vmem>>, %arg4: memref<256x8xf32, #tpu.memory_space<vmem>>) attributes {dimension_semantics = [#tpu.dimension_semantics<parallel>], iteration_bounds = array<i64: 1>, scalar_prefetch = 0 : i64, scratch_operands = 0 : i64, tpu.core_type = #tpu.core_type<tc>, window_params = [{pipeline_mode = #tpu.pipeline_mode<synchronous>, transform_indices = @transform_0, window_bounds = array<i64: 256, 576>}, {transform_indices = @transform_1, window_bounds = array<i64: 576, 8>}, {pipeline_mode = #tpu.pipeline_mode<synchronous>, transform_indices = @transform_2, window_bounds = array<i64: 256, 1>}, {transform_indices = @transform_3, window_bounds = array<i64: 256, 8>}]} {
    %c0 = arith.constant 0 : index
    %c0_0 = arith.constant 0 : index
    %0 = vector.load %arg1[%c0, %c0_0] : memref<256x576xf32, #tpu.memory_space<vmem>>, vector<256x576xf32>
    %c0_1 = arith.constant 0 : index
    %c0_2 = arith.constant 0 : index
    %1 = vector.load %arg2[%c0_1, %c0_2] : memref<576x8xf32, #tpu.memory_space<vmem>>, vector<576x8xf32>
    %cst = arith.constant dense<0.000000e+00> : vector<256x8xf32>
    %2 = tpu.matmul %0, %1, %cst {dimension_numbers = #tpu.dot_dimension_numbers<[1], [0], [0], [1], [0, 0, 1, 1], [], []>} : vector<256x576xf32>, vector<576x8xf32>, vector<256x8xf32> -> vector<256x8xf32>
    %c0_3 = arith.constant 0 : index
    %c0_4 = arith.constant 0 : index
    %3 = vector.load %arg3[%c0_3, %c0_4] : memref<256x1xf32, #tpu.memory_space<vmem>>, vector<256x1xf32>
    %4 = vector.broadcast %3 : vector<256x1xf32> to vector<256x8xf32>
    %5 = arith.addf %2, %4 : vector<256x8xf32>
    %cst_5 = arith.constant 0.000000e+00 : f32
    %6 = vector.broadcast %cst_5 : f32 to vector<256x8xf32>
    %7 = arith.maximumf %5, %6 : vector<256x8xf32>
    %c0_6 = arith.constant 0 : index
    %c0_7 = arith.constant 0 : index
    %8 = vector.load %arg4[%c0_6, %c0_7] : memref<256x8xf32, #tpu.memory_space<vmem>>, vector<256x8xf32>
    tpu.vector_store %arg4[%c0_6, %c0_7], %7 {strides = array<i32>} : memref<256x8xf32, #tpu.memory_space<vmem>>, vector<256x8xf32>,
    return
  }
  func.func @transform_0(%arg0: i32) -> (i32, i32) {
    %c0_i32 = arith.constant 0 : i32
    %c0_i32_0 = arith.constant 0 : i32
    %c0_i32_1 = arith.constant 0 : i32
    return %c0_i32, %c0_i32_0 : i32, i32
  }
  func.func @transform_1(%arg0: i32) -> (i32, i32) {
    %c0_i32 = arith.constant 0 : i32
    %c0_i32_0 = arith.constant 0 : i32
    return %c0_i32, %arg0 : i32, i32
  }
  func.func @transform_2(%arg0: i32) -> (i32, i32) {
    %c0_i32 = arith.constant 0 : i32
    %c0_i32_0 = arith.constant 0 : i32
    %c0_i32_1 = arith.constant 0 : i32
    return %c0_i32, %c0_i32_0 : i32, i32
  }
  func.func @transform_3(%arg0: i32) -> (i32, i32) {
    %c0_i32 = arith.constant 0 : i32
    %c0_i32_0 = arith.constant 0 : i32
    return %c0_i32, %arg0 : i32, i32
  }
}

module attributes {stable_mosaic.version = 11 : i64} {
  func.func @_gemm_bias_act_kernel(%arg0: i32, %arg1: memref<128x576xf32, #tpu.memory_space<vmem>>, %arg2: memref<576x32xf32, #tpu.memory_space<vmem>>, %arg3: memref<128x1xf32, #tpu.memory_space<vmem>>, %arg4: memref<128x32xf32, #tpu.memory_space<vmem>>) attributes {dimension_semantics = [#tpu.dimension_semantics<parallel>], iteration_bounds = array<i64: 1>, scalar_prefetch = 0 : i64, scratch_operands = 0 : i64, tpu.core_type = #tpu.core_type<tc>, window_params = [{pipeline_mode = #tpu.pipeline_mode<synchronous>, transform_indices = @transform_0, window_bounds = array<i64: 128, 576>}, {transform_indices = @transform_1, window_bounds = array<i64: 576, 32>}, {pipeline_mode = #tpu.pipeline_mode<synchronous>, transform_indices = @transform_2, window_bounds = array<i64: 128, 1>}, {transform_indices = @transform_3, window_bounds = array<i64: 128, 32>}]} {
    %c0 = arith.constant 0 : index
    %c0_0 = arith.constant 0 : index
    %0 = vector.load %arg1[%c0, %c0_0] : memref<128x576xf32, #tpu.memory_space<vmem>>, vector<128x576xf32>
    %c0_1 = arith.constant 0 : index
    %c0_2 = arith.constant 0 : index
    %1 = vector.load %arg2[%c0_1, %c0_2] : memref<576x32xf32, #tpu.memory_space<vmem>>, vector<576x32xf32>
    %cst = arith.constant dense<0.000000e+00> : vector<128x32xf32>
    %2 = tpu.matmul %0, %1, %cst {dimension_numbers = #tpu.dot_dimension_numbers<[1], [0], [0], [1], [0, 0, 1, 1], [], []>} : vector<128x576xf32>, vector<576x32xf32>, vector<128x32xf32> -> vector<128x32xf32>
    %c0_3 = arith.constant 0 : index
    %c0_4 = arith.constant 0 : index
    %3 = vector.load %arg3[%c0_3, %c0_4] : memref<128x1xf32, #tpu.memory_space<vmem>>, vector<128x1xf32>
    %4 = vector.broadcast %3 : vector<128x1xf32> to vector<128x32xf32>
    %5 = arith.addf %2, %4 : vector<128x32xf32>
    %cst_5 = arith.constant 0.000000e+00 : f32
    %6 = vector.broadcast %cst_5 : f32 to vector<128x32xf32>
    %7 = arith.maximumf %5, %6 : vector<128x32xf32>
    %c0_6 = arith.constant 0 : index
    %c0_7 = arith.constant 0 : index
    %8 = vector.load %arg4[%c0_6, %c0_7] : memref<128x32xf32, #tpu.memory_space<vmem>>, vector<128x32xf32>
    tpu.vector_store %arg4[%c0_6, %c0_7], %7 {strides = array<i32>} : memref<128x32xf32, #tpu.memory_space<vmem>>, vector<128x32xf32>,
    return
  }
  func.func @transform_0(%arg0: i32) -> (i32, i32) {
    %c0_i32 = arith.constant 0 : i32
    %c0_i32_0 = arith.constant 0 : i32
    %c0_i32_1 = arith.constant 0 : i32
    return %c0_i32, %c0_i32_0 : i32, i32
  }
  func.func @transform_1(%arg0: i32) -> (i32, i32) {
    %c0_i32 = arith.constant 0 : i32
    %c0_i32_0 = arith.constant 0 : i32
    return %c0_i32, %arg0 : i32, i32
  }
  func.func @transform_2(%arg0: i32) -> (i32, i32) {
    %c0_i32 = arith.constant 0 : i32
    %c0_i32_0 = arith.constant 0 : i32
    %c0_i32_1 = arith.constant 0 : i32
    return %c0_i32, %c0_i32_0 : i32, i32
  }
  func.func @transform_3(%arg0: i32) -> (i32, i32) {
    %c0_i32 = arith.constant 0 : i32
    %c0_i32_0 = arith.constant 0 : i32
    return %c0_i32, %arg0 : i32, i32
  }
}

module attributes {stable_mosaic.version = 11 : i64} {
  func.func @_gemm_bias_act_kernel(%arg0: i32, %arg1: memref<64x288xf32, #tpu.memory_space<vmem>>, %arg2: memref<288x128xf32, #tpu.memory_space<vmem>>, %arg3: memref<64x1xf32, #tpu.memory_space<vmem>>, %arg4: memref<64x128xf32, #tpu.memory_space<vmem>>) attributes {dimension_semantics = [#tpu.dimension_semantics<parallel>], iteration_bounds = array<i64: 1>, scalar_prefetch = 0 : i64, scratch_operands = 0 : i64, tpu.core_type = #tpu.core_type<tc>, window_params = [{pipeline_mode = #tpu.pipeline_mode<synchronous>, transform_indices = @transform_0, window_bounds = array<i64: 64, 288>}, {transform_indices = @transform_1, window_bounds = array<i64: 288, 128>}, {pipeline_mode = #tpu.pipeline_mode<synchronous>, transform_indices = @transform_2, window_bounds = array<i64: 64, 1>}, {transform_indices = @transform_3, window_bounds = array<i64: 64, 128>}]} {
    %c0 = arith.constant 0 : index
    %c0_0 = arith.constant 0 : index
    %0 = vector.load %arg1[%c0, %c0_0] : memref<64x288xf32, #tpu.memory_space<vmem>>, vector<64x288xf32>
    %c0_1 = arith.constant 0 : index
    %c0_2 = arith.constant 0 : index
    %1 = vector.load %arg2[%c0_1, %c0_2] : memref<288x128xf32, #tpu.memory_space<vmem>>, vector<288x128xf32>
    %cst = arith.constant dense<0.000000e+00> : vector<64x128xf32>
    %2 = tpu.matmul %0, %1, %cst {dimension_numbers = #tpu.dot_dimension_numbers<[1], [0], [0], [1], [0, 0, 1, 1], [], []>} : vector<64x288xf32>, vector<288x128xf32>, vector<64x128xf32> -> vector<64x128xf32>
    %c0_3 = arith.constant 0 : index
    %c0_4 = arith.constant 0 : index
    %3 = vector.load %arg3[%c0_3, %c0_4] : memref<64x1xf32, #tpu.memory_space<vmem>>, vector<64x1xf32>
    %4 = vector.broadcast %3 : vector<64x1xf32> to vector<64x128xf32>
    %5 = arith.addf %2, %4 : vector<64x128xf32>
    %cst_5 = arith.constant 0.000000e+00 : f32
    %6 = vector.broadcast %cst_5 : f32 to vector<64x128xf32>
    %7 = arith.maximumf %5, %6 : vector<64x128xf32>
    %c0_6 = arith.constant 0 : index
    %c0_7 = arith.constant 0 : index
    %8 = vector.load %arg4[%c0_6, %c0_7] : memref<64x128xf32, #tpu.memory_space<vmem>>, vector<64x128xf32>
    tpu.vector_store %arg4[%c0_6, %c0_7], %7 {strides = array<i32>} : memref<64x128xf32, #tpu.memory_space<vmem>>, vector<64x128xf32>,
    return
  }
  func.func @transform_0(%arg0: i32) -> (i32, i32) {
    %c0_i32 = arith.constant 0 : i32
    %c0_i32_0 = arith.constant 0 : i32
    %c0_i32_1 = arith.constant 0 : i32
    return %c0_i32, %c0_i32_0 : i32, i32
  }
  func.func @transform_1(%arg0: i32) -> (i32, i32) {
    %c0_i32 = arith.constant 0 : i32
    %c0_i32_0 = arith.constant 0 : i32
    return %c0_i32, %arg0 : i32, i32
  }
  func.func @transform_2(%arg0: i32) -> (i32, i32) {
    %c0_i32 = arith.constant 0 : i32
    %c0_i32_0 = arith.constant 0 : i32
    %c0_i32_1 = arith.constant 0 : i32
    return %c0_i32, %c0_i32_0 : i32, i32
  }
  func.func @transform_3(%arg0: i32) -> (i32, i32) {
    %c0_i32 = arith.constant 0 : i32
    %c0_i32_0 = arith.constant 0 : i32
    return %c0_i32, %arg0 : i32, i32
  }
}

module attributes {stable_mosaic.version = 11 : i64} {
  func.func @_gemm_bias_act_kernel(%arg0: i32, %arg1: memref<32x144xf32, #tpu.memory_space<vmem>>, %arg2: memref<144x512xf32, #tpu.memory_space<vmem>>, %arg3: memref<32x1xf32, #tpu.memory_space<vmem>>, %arg4: memref<32x512xf32, #tpu.memory_space<vmem>>) attributes {dimension_semantics = [#tpu.dimension_semantics<parallel>], iteration_bounds = array<i64: 1>, scalar_prefetch = 0 : i64, scratch_operands = 0 : i64, tpu.core_type = #tpu.core_type<tc>, window_params = [{pipeline_mode = #tpu.pipeline_mode<synchronous>, transform_indices = @transform_0, window_bounds = array<i64: 32, 144>}, {transform_indices = @transform_1, window_bounds = array<i64: 144, 512>}, {pipeline_mode = #tpu.pipeline_mode<synchronous>, transform_indices = @transform_2, window_bounds = array<i64: 32, 1>}, {transform_indices = @transform_3, window_bounds = array<i64: 32, 512>}]} {
    %c0 = arith.constant 0 : index
    %c0_0 = arith.constant 0 : index
    %0 = vector.load %arg1[%c0, %c0_0] : memref<32x144xf32, #tpu.memory_space<vmem>>, vector<32x144xf32>
    %c0_1 = arith.constant 0 : index
    %c0_2 = arith.constant 0 : index
    %1 = vector.load %arg2[%c0_1, %c0_2] : memref<144x512xf32, #tpu.memory_space<vmem>>, vector<144x512xf32>
    %cst = arith.constant dense<0.000000e+00> : vector<32x512xf32>
    %2 = tpu.matmul %0, %1, %cst {dimension_numbers = #tpu.dot_dimension_numbers<[1], [0], [0], [1], [0, 0, 1, 1], [], []>} : vector<32x144xf32>, vector<144x512xf32>, vector<32x512xf32> -> vector<32x512xf32>
    %c0_3 = arith.constant 0 : index
    %c0_4 = arith.constant 0 : index
    %3 = vector.load %arg3[%c0_3, %c0_4] : memref<32x1xf32, #tpu.memory_space<vmem>>, vector<32x1xf32>
    %4 = vector.broadcast %3 : vector<32x1xf32> to vector<32x512xf32>
    %5 = arith.addf %2, %4 : vector<32x512xf32>
    %cst_5 = arith.constant 0.000000e+00 : f32
    %6 = vector.broadcast %cst_5 : f32 to vector<32x512xf32>
    %7 = arith.maximumf %5, %6 : vector<32x512xf32>
    %c0_6 = arith.constant 0 : index
    %c0_7 = arith.constant 0 : index
    %8 = vector.load %arg4[%c0_6, %c0_7] : memref<32x512xf32, #tpu.memory_space<vmem>>, vector<32x512xf32>
    tpu.vector_store %arg4[%c0_6, %c0_7], %7 {strides = array<i32>} : memref<32x512xf32, #tpu.memory_space<vmem>>, vector<32x512xf32>,
    return
  }
  func.func @transform_0(%arg0: i32) -> (i32, i32) {
    %c0_i32 = arith.constant 0 : i32
    %c0_i32_0 = arith.constant 0 : i32
    %c0_i32_1 = arith.constant 0 : i32
    return %c0_i32, %c0_i32_0 : i32, i32
  }
  func.func @transform_1(%arg0: i32) -> (i32, i32) {
    %c0_i32 = arith.constant 0 : i32
    %c0_i32_0 = arith.constant 0 : i32
    return %c0_i32, %arg0 : i32, i32
  }
  func.func @transform_2(%arg0: i32) -> (i32, i32) {
    %c0_i32 = arith.constant 0 : i32
    %c0_i32_0 = arith.constant 0 : i32
    %c0_i32_1 = arith.constant 0 : i32
    return %c0_i32, %c0_i32_0 : i32, i32
  }
  func.func @transform_3(%arg0: i32) -> (i32, i32) {
    %c0_i32 = arith.constant 0 : i32
    %c0_i32_0 = arith.constant 0 : i32
    return %c0_i32, %arg0 : i32, i32
  }
}

module attributes {stable_mosaic.version = 11 : i64} {
  func.func @_gemm_bias_act_kernel(%arg0: i32, %arg1: memref<12x72xf32, #tpu.memory_space<vmem>>, %arg2: memref<72x512xf32, #tpu.memory_space<vmem>>, %arg3: memref<12x1xf32, #tpu.memory_space<vmem>>, %arg4: memref<12x512xf32, #tpu.memory_space<vmem>>) attributes {dimension_semantics = [#tpu.dimension_semantics<parallel>], iteration_bounds = array<i64: 4>, scalar_prefetch = 0 : i64, scratch_operands = 0 : i64, tpu.core_type = #tpu.core_type<tc>, window_params = [{pipeline_mode = #tpu.pipeline_mode<synchronous>, transform_indices = @transform_0, window_bounds = array<i64: 12, 72>}, {transform_indices = @transform_1, window_bounds = array<i64: 72, 512>}, {pipeline_mode = #tpu.pipeline_mode<synchronous>, transform_indices = @transform_2, window_bounds = array<i64: 12, 1>}, {transform_indices = @transform_3, window_bounds = array<i64: 12, 512>}]} {
    %c0 = arith.constant 0 : index
    %c0_0 = arith.constant 0 : index
    %0 = vector.load %arg1[%c0, %c0_0] : memref<12x72xf32, #tpu.memory_space<vmem>>, vector<12x72xf32>
    %c0_1 = arith.constant 0 : index
    %c0_2 = arith.constant 0 : index
    %1 = vector.load %arg2[%c0_1, %c0_2] : memref<72x512xf32, #tpu.memory_space<vmem>>, vector<72x512xf32>
    %cst = arith.constant dense<0.000000e+00> : vector<12x512xf32>
    %2 = tpu.matmul %0, %1, %cst {dimension_numbers = #tpu.dot_dimension_numbers<[1], [0], [0], [1], [0, 0, 1, 1], [], []>} : vector<12x72xf32>, vector<72x512xf32>, vector<12x512xf32> -> vector<12x512xf32>
    %c0_3 = arith.constant 0 : index
    %c0_4 = arith.constant 0 : index
    %3 = vector.load %arg3[%c0_3, %c0_4] : memref<12x1xf32, #tpu.memory_space<vmem>>, vector<12x1xf32>
    %4 = vector.broadcast %3 : vector<12x1xf32> to vector<12x512xf32>
    %5 = arith.addf %2, %4 : vector<12x512xf32>
    %6 = arith.negf %5 : vector<12x512xf32>
    %7 = math.exp %6 : vector<12x512xf32>
    %cst_5 = arith.constant 1.000000e+00 : f32
    %8 = vector.broadcast %cst_5 : f32 to vector<12x512xf32>
    %9 = arith.addf %8, %7 : vector<12x512xf32>
    %10 = arith.divf %8, %9 : vector<12x512xf32>
    %c0_6 = arith.constant 0 : index
    %c0_7 = arith.constant 0 : index
    %11 = vector.load %arg4[%c0_6, %c0_7] : memref<12x512xf32, #tpu.memory_space<vmem>>, vector<12x512xf32>
    tpu.vector_store %arg4[%c0_6, %c0_7], %10 {strides = array<i32>} : memref<12x512xf32, #tpu.memory_space<vmem>>, vector<12x512xf32>,
    return
  }
  func.func @transform_0(%arg0: i32) -> (i32, i32) {
    %c0_i32 = arith.constant 0 : i32
    %c0_i32_0 = arith.constant 0 : i32
    %c0_i32_1 = arith.constant 0 : i32
    return %c0_i32, %c0_i32_0 : i32, i32
  }
  func.func @transform_1(%arg0: i32) -> (i32, i32) {
    %c0_i32 = arith.constant 0 : i32
    %c0_i32_0 = arith.constant 0 : i32
    return %c0_i32, %arg0 : i32, i32
  }
  func.func @transform_2(%arg0: i32) -> (i32, i32) {
    %c0_i32 = arith.constant 0 : i32
    %c0_i32_0 = arith.constant 0 : i32
    %c0_i32_1 = arith.constant 0 : i32
    return %c0_i32, %c0_i32_0 : i32, i32
  }
  func.func @transform_3(%arg0: i32) -> (i32, i32) {
    %c0_i32 = arith.constant 0 : i32
    %c0_i32_0 = arith.constant 0 : i32
    return %c0_i32, %arg0 : i32, i32
  }
}

</mosaic_0001>

<llo_original>
// kernel: pyramid2_forward.12
$region0: #{pyramid2_forward.12}
  #allocation0 [shape = 'u32[]', space=smem, size = 0x4, offset = 0x4, fixed_abs, tag = 'smem constant byte address 0x4 - core index']
  #allocation1 [shape = 'u32[144,128]{1,0:T(1,128)}', space=vmem, size = 0x12000, scoped, tag = 'internal scratch']
  %s0 = inlined_call_operand.vmem [shape: f32[8,64], index: 0, kind: input, shape index: {}]
  %s1 = inlined_call_operand.vmem [shape: f32[64,2048], index: 1, kind: input, shape index: {}]
  %s2 = inlined_call_operand.vmem [shape: f32[8,1], index: 2, kind: input, shape index: {}]
  %s3 = inlined_call_operand.vmem [shape: f32[8,2048], index: 3, kind: output, shape index: {}]
  %s4 = sld [smem:[#allocation0]]
  $region68: #{pyramid2_forward.12} parent=0
    _
  %s6 = ssub.s32 1, %s4
  %s7 = scalar_select 0, %s6, %s4
  $region1: #{pyramid2_forward.12} parent=0
    #allocation2 [shape = 'u8[262144]{0}', space=vmem, size = 0x40000, scoped, tag = 'input window, operand 1']
    loop: start=0, step=1, limit=6
    $region2: #{pyramid2_forward.12} parent=1 // loop_pre_header
      _
    $region3: #{pyramid2_forward.12} parent=1 // loop_header
      %s9 = sphi 0, %s13
      %p10 = scmp.ge.s32.totalorder %s9, 6
      %s17 = sphi 0, %s17
      %s19 = sphi 0, %s17
      %s20 = sphi 0, %s19
      %s34 = sphi 0, %s20
      %s40 = sphi 0, %s42
      %s43 = sphi 0, %s40
      %s44 = sphi 0, %s43
      %s60 = sphi 0, %s44
      %s64 = sphi 0, %s64
      %s66 = sphi 0, %s64
      %s67 = sphi 0, %s66
      %s81 = sphi 0, %s67
      %s87 = sphi 0, %s89
      %s90 = sphi 0, %s87
      %s91 = sphi 0, %s90
      %s107 = sphi 0, %s91
    $region4: #{pyramid2_forward.12} parent=1 // loop_header_branch
      %12 = sbr.rel (%p10) target = $region8
    $region5: #{pyramid2_forward.12} parent=1 // loop_body
      %s14 = ssub.s32 %s9, 1
      %s15 = ssub.s32 %s9, 2
      %s16 = sadd.s32 %s9, 1
      %s18 = sadd.s32 %s17, 1
      %p21 = scmp.eq.s32.totalorder %s9, 3
      %p22 = scmp.ne.s32.totalorder %s17, %s19
      %p23 = scmp.eq.s32.totalorder %s9, 0
      %p24 = por %p22, %p23
      %p25 = scmp.ne.s32.totalorder %s17, %s19
      %p26 = scmp.eq.s32.totalorder %s14, 3
      %p27 = por %p25, %p26
      %p28 = scmp.ne.s32.totalorder %s19, %s20
      %p29 = scmp.eq.s32.totalorder %s14, 0
      %p30 = por %p28, %p29
      %p31 = scmp.ne.s32.totalorder %s19, %s20
      %p32 = scmp.eq.s32.totalorder %s15, 3
      %p33 = por %p31, %p32
      %p35 = scmp.ne.s32.totalorder %s20, %s34
      %p36 = scmp.eq.s32.totalorder %s15, 0
      %p37 = por %p35, %p36
      %s38 = ssub.s32 %s9, %s16
      %p39 = scmp.eq.s32.totalorder %s38, 0
      %s41 = sadd.s32 %s40, 1
      %s42 = scalar_select %p39, %s40, %s41
      %p45 = pneg %p39
      %p46 = scmp.eq.s32.totalorder %s9, 3
      %p47 = por %p45, %p46
      %p48 = scmp.ne.s32.totalorder %s40, %s43
      %p49 = scmp.eq.s32.totalorder %s9, 0
      %p50 = por %p48, %p49
      %p51 = scmp.ne.s32.totalorder %s40, %s43
      %p52 = scmp.eq.s32.totalorder %s14, 3
      %p53 = por %p51, %p52
      %p54 = scmp.ne.s32.totalorder %s43, %s44
      %p55 = scmp.eq.s32.totalorder %s14, 0
      %p56 = por %p54, %p55
      %p57 = scmp.ne.s32.totalorder %s43, %s44
      %p58 = scmp.eq.s32.totalorder %s15, 3
      %p59 = por %p57, %p58
      %p61 = scmp.ne.s32.totalorder %s44, %s60
      %p62 = scmp.eq.s32.totalorder %s15, 0
      %p63 = por %p61, %p62
      %s65 = sadd.s32 %s64, 1
      %p68 = scmp.eq.s32.totalorder %s9, 3
      %p69 = scmp.ne.s32.totalorder %s64, %s66
      %p70 = scmp.eq.s32.totalorder %s9, 0
      %p71 = por %p69, %p70
      %p72 = scmp.ne.s32.totalorder %s64, %s66
      %p73 = scmp.eq.s32.totalorder %s14, 3
      %p74 = por %p72, %p73
      %p75 = scmp.ne.s32.totalorder %s66, %s67
      %p76 = scmp.eq.s32.totalorder %s14, 0
      %p77 = por %p75, %p76
      %p78 = scmp.ne.s32.totalorder %s66, %s67
      %p79 = scmp.eq.s32.totalorder %s15, 3
      %p80 = por %p78, %p79
      %p82 = scmp.ne.s32.totalorder %s67, %s81
      %p83 = scmp.eq.s32.totalorder %s15, 0
      %p84 = por %p82, %p83
      %s85 = ssub.s32 %s9, %s16
      %p86 = scmp.eq.s32.totalorder %s85, 0
      %s88 = sadd.s32 %s87, 1
      %s89 = scalar_select %p86, %s87, %s88
      %p92 = pneg %p86
      %p93 = scmp.eq.s32.totalorder %s9, 3
      %p94 = por %p92, %p93
      %p95 = scmp.ne.s32.totalorder %s87, %s90
      %p96 = scmp.eq.s32.totalorder %s9, 0
      %p97 = por %p95, %p96
      %p98 = scmp.ne.s32.totalorder %s87, %s90
      %p99 = scmp.eq.s32.totalorder %s14, 3
      %p100 = por %p98, %p99
      %p101 = scmp.ne.s32.totalorder %s90, %s91
      %p102 = scmp.eq.s32.totalorder %s14, 0
      %p103 = por %p101, %p102
      %p104 = scmp.ne.s32.totalorder %s90, %s91
      %p105 = scmp.eq.s32.totalorder %s15, 3
      %p106 = por %p104, %p105
      %p108 = scmp.ne.s32.totalorder %s91, %s107
      %p109 = scmp.eq.s32.totalorder %s15, 0
      %p110 = por %p108, %p109
      %p111 = scmp.le.s32.totalorder 1, %s9
      %p112 = scmp.lt.s32.totalorder %s9, 5
      %p113 = pnand %p111, %p112
      %p114 = pneg %p113
      // Predicated region
      $region9: #{pyramid2_forward.12} parent=5 // pred_check
        _
      $region10: #{pyramid2_forward.12} parent=5 // pred_check_branch
        %116 = sbr.rel (%p113) target = $region12
      $region11: #{pyramid2_forward.12} parent=5 // pred_region
        %s117 = ssub.s32 %s9, 1
        // Predicated region
        $region13: #{pyramid2_forward.12} parent=11 // pred_check
          %p118 = pneg %p30
        $region14: #{pyramid2_forward.12} parent=11 // pred_check_branch
          %120 = sbr.rel (%p118) target = $region16
        $region15: #{pyramid2_forward.12} parent=11 // pred_region
          _
        $region16: #{pyramid2_forward.12} parent=11 // pred_fallthru
          _
        // Predicated region
        $region17: #{pyramid2_forward.12} parent=11 // pred_check
          %p121 = pneg %p77
        $region18: #{pyramid2_forward.12} parent=11 // pred_check_branch
          %123 = sbr.rel (%p121) target = $region20
        $region19: #{pyramid2_forward.12} parent=11 // pred_region
          _
        $region20: #{pyramid2_forward.12} parent=11 // pred_fallthru
          _
      $region12: #{pyramid2_forward.12} parent=5 // pred_fallthru
        _
      %p124 = scmp.lt.s32.totalorder %s9, 4
      // Predicated region
      $region21: #{pyramid2_forward.12} parent=5 // pred_check
        %p125 = pneg %p124
      $region22: #{pyramid2_forward.12} parent=5 // pred_check_branch
        %127 = sbr.rel (%p125) target = $region24
      $region23: #{pyramid2_forward.12} parent=5 // pred_region
        // Predicated region
        $region25: #{pyramid2_forward.12} parent=23 // pred_check
          %p128 = pneg %p50
        $region26: #{pyramid2_forward.12} parent=23 // pred_check_branch
          %130 = sbr.rel (%p128) target = $region28
        $region27: #{pyramid2_forward.12} parent=23 // pred_region
          %s131 = sand.u32 %s40, 1
          %s132 = sand.u32 %s40, 1
          %s133 = smul.addr %s132, 256
          %s134 = scalar_lea.vmem [#allocation2], %s133
          %s135 = smul.u32 4, %s9
          %s136 = smul.addr %s135, 8
          %s137 = scalar_lea.vmem %s1, %s136
          // Predicated region
          $region29: #{pyramid2_forward.12} parent=27 // pred_check
            _
          $region30: #{pyramid2_forward.12} parent=27 // pred_check_branch
            %139 = sbr.rel (0) target = $region32
          $region31: #{pyramid2_forward.12} parent=27 // pred_region
            // Predicated region
            $region33: #{pyramid2_forward.12} parent=31 // pred_check
              _
            $region34: #{pyramid2_forward.12} parent=31 // pred_check_branch
              %141 = sbr.rel (0) target = $region36
            $region35: #{pyramid2_forward.12} parent=31 // pred_region
              loop: start=0, step=1, limit=1
              $region37: #{pyramid2_forward.12} parent=35 // loop_pre_header
                _
              $region38: #{pyramid2_forward.12} parent=35 // loop_header
                %s143 = sphi 0, %s147
                %p144 = scmp.ge.s32.totalorder %s143, 1
                %s148 = sphi %s137, %s137
                %s149 = sphi %s134, %s134
              $region39: #{pyramid2_forward.12} parent=35 // loop_header_branch
                %146 = sbr.rel (%p144) target = $region43
              $region40: #{pyramid2_forward.12} parent=35 // loop_body
                %v150 = vld [vmem:[%s148] sm:$0xff]
                %151 = vst [vmem:[%s149] sm:$0xff] %v150
                %v152 = vld [vmem:[%s148 + $0x8] sm:$0xff]
                %153 = vst [vmem:[%s149 + $0x8] sm:$0xff] %v152
                %v154 = vld [vmem:[%s148 + $0x10] sm:$0xff]
                %155 = vst [vmem:[%s149 + $0x10] sm:$0xff] %v154
                %v156 = vld [vmem:[%s148 + $0x18] sm:$0xff]
                %157 = vst [vmem:[%s149 + $0x18] sm:$0xff] %v156
                %v158 = vld [vmem:[%s148 + $0x80] sm:$0xff]
                %159 = vst [vmem:[%s149 + $0x20] sm:$0xff] %v158
                %v160 = vld [vmem:[%s148 + $0x88] sm:$0xff]
                %161 = vst [vmem:[%s149 + $0x28] sm:$0xff] %v160
                %v162 = vld [vmem:[%s148 + $0x90] sm:$0xff]
                %163 = vst [vmem:[%s149 + $0x30] sm:$0xff] %v162
                %v164 = vld [vmem:[%s148 + $0x98] sm:$0xff]
                %165 = vst [vmem:[%s149 + $0x38] sm:$0xff] %v164
                %v166 = vld [vmem:[%s148 + $0x100] sm:$0xff]
                %167 = vst [vmem:[%s149 + $0x40] sm:$0xff] %v166
                %v168 = vld [vmem:[%s148 + $0x108] sm:$0xff]
                %169 = vst [vmem:[%s149 + $0x48] sm:$0xff] %v168
                %v170 = vld [vmem:[%s148 + $0x110] sm:$0xff]
                %171 = vst [vmem:[%s149 + $0x50] sm:$0xff] %v170
                %v172 = vld [vmem:[%s148 + $0x118] sm:$0xff]
                %173 = vst [vmem:[%s149 + $0x58] sm:$0xff] %v172
                %v174 = vld [vmem:[%s148 + $0x180] sm:$0xff]
                %175 = vst [vmem:[%s149 + $0x60] sm:$0xff] %v174
                %v176 = vld [vmem:[%s148 + $0x188] sm:$0xff]
                %177 = vst [vmem:[%s149 + $0x68] sm:$0xff] %v176
                %v178 = vld [vmem:[%s148 + $0x190] sm:$0xff]
                %179 = vst [vmem:[%s149 + $0x70] sm:$0xff] %v178
                %v180 = vld [vmem:[%s148 + $0x198] sm:$0xff]
                %181 = vst [vmem:[%s149 + $0x78] sm:$0xff] %v180
                %v182 = vld [vmem:[%s148 + $0x200] sm:$0xff]
                %183 = vst [vmem:[%s149 + $0x80] sm:$0xff] %v182
                %v184 = vld [vmem:[%s148 + $0x208] sm:$0xff]
                %185 = vst [vmem:[%s149 + $0x88] sm:$0xff] %v184
                %v186 = vld [vmem:[%s148 + $0x210] sm:$0xff]
                %187 = vst [vmem:[%s149 + $0x90] sm:$0xff] %v186
                %v188 = vld [vmem:[%s148 + $0x218] sm:$0xff]
                %189 = vst [vmem:[%s149 + $0x98] sm:$0xff] %v188
                %v190 = vld [vmem:[%s148 + $0x280] sm:$0xff]
                %191 = vst [vmem:[%s149 + $0xa0] sm:$0xff] %v190
                %v192 = vld [vmem:[%s148 + $0x288] sm:$0xff]
                %193 = vst [vmem:[%s149 + $0xa8] sm:$0xff] %v192
                %v194 = vld [vmem:[%s148 + $0x290] sm:$0xff]
                %195 = vst [vmem:[%s149 + $0xb0] sm:$0xff] %v194
                %v196 = vld [vmem:[%s148 + $0x298] sm:$0xff]
                %197 = vst [vmem:[%s149 + $0xb8] sm:$0xff] %v196
                %v198 = vld [vmem:[%s148 + $0x300] sm:$0xff]
                %199 = vst [vmem:[%s149 + $0xc0] sm:$0xff] %v198
                %v200 = vld [vmem:[%s148 + $0x308] sm:$0xff]
                %201 = vst [vmem:[%s149 + $0xc8] sm:$0xff] %v200
                %v202 = vld [vmem:[%s148 + $0x310] sm:$0xff]
                %203 = vst [vmem:[%s149 + $0xd0] sm:$0xff] %v202
                %v204 = vld [vmem:[%s148 + $0x318] sm:$0xff]
                %205 = vst [vmem:[%s149 + $0xd8] sm:$0xff] %v204
                %v206 = vld [vmem:[%s148 + $0x380] sm:$0xff]
                %207 = vst [vmem:[%s149 + $0xe0] sm:$0xff] %v206
                %v208 = vld [vmem:[%s148 + $0x388] sm:$0xff]
                %209 = vst [vmem:[%s149 + $0xe8] sm:$0xff] %v208
                %v210 = vld [vmem:[%s148 + $0x390] sm:$0xff]
                %211 = vst [vmem:[%s149 + $0xf0] sm:$0xff] %v210
                %v212 = vld [vmem:[%s148 + $0x398] sm:$0xff]
                %213 = vst [vmem:[%s149 + $0xf8] sm:$0xff] %v212
              $region41: #{pyramid2_forward.12} parent=35 // loop_footer
                %s147 = sadd.s32 1, %s143
              $region42: #{pyramid2_forward.12} parent=35 // loop_footer_branch
                %142 = sbr.rel target = $region38
              $region43: #{pyramid2_forward.12} parent=35 // loop_exit
                _
            $region36: #{pyramid2_forward.12} parent=31 // pred_fallthru
              _
            // Predicated region
            $region44: #{pyramid2_forward.12} parent=31 // pred_check
              _
            $region45: #{pyramid2_forward.12} parent=31 // pred_check_branch
              %215 = sbr.rel target = $region47
            $region46: #{pyramid2_forward.12} parent=31 // pred_region
              _
            $region47: #{pyramid2_forward.12} parent=31 // pred_fallthru
              _
          $region32: #{pyramid2_forward.12} parent=27 // pred_fallthru
            _
          %216 = vnop
        $region28: #{pyramid2_forward.12} parent=23 // pred_fallthru
          _
      $region24: #{pyramid2_forward.12} parent=5 // pred_fallthru
        _
      %p217 = scmp.le.s32.totalorder 1, %s9
      %p218 = scmp.lt.s32.totalorder %s9, 5
      %p219 = pnand %p217, %p218
      %p220 = pneg %p219
      // Predicated region
      $region48: #{pyramid2_forward.12} parent=5 // pred_check
        _
      $region49: #{pyramid2_forward.12} parent=5 // pred_check_branch
        %222 = sbr.rel (%p219) target = $region51
      $region50: #{pyramid2_forward.12} parent=5 // pred_region
        %s223 = ssub.s32 %s9, 1
        %s224 = sand.u32 %s43, 1
        %s225 = sand.u32 %s43, 1
        %s226 = smul.addr %s225, 256
        %s227 = scalar_lea.vmem [#allocation2], %s226
        // Predicated region
        $region52: #{pyramid2_forward.12} parent=50 // pred_check
          %p228 = pneg %p56
        $region53: #{pyramid2_forward.12} parent=50 // pred_check_branch
          %230 = sbr.rel (%p228) target = $region55
        $region54: #{pyramid2_forward.12} parent=50 // pred_region
          _
        $region55: #{pyramid2_forward.12} parent=50 // pred_fallthru
          _
        %p231 = pneg %p30
        %p232 = pneg %p27
        %s233 = sand.u32 %s43, 1
        %s234 = sand.u32 %s43, 1
        %s235 = smul.addr %s234, 256
        %s236 = scalar_lea.vmem [#allocation2], %s235
        %p237 = pneg %p56
        %p238 = pneg %p53
        %p239 = pneg %p77
        %p240 = pneg %p74
        %p241 = pneg %p103
        %p242 = pneg %p100
        %s243 = smul.u32 4, %s14
        %p244 = scmp.lt.s32.totalorder %s243, 15
        %s245 = scalar_select %p244, %s243, 15
        %s246 = smul.addr %s245, 8
        %s247 = scalar_lea.vmem %s3, %s246
        %s248 = smul.u32 4, %s14
        %s249 = smul.u32 4, %s14
        %p250 = scmp.lt.s32.totalorder %s249, 15
        %s251 = scalar_select %p250, %s249, 15
        %s252 = smul.addr %s251, 8
        %s253 = scalar_lea.vmem %s3, %s252
        %s254 = smul.u32 4, %s14
        %v255 = vld [vmem:[%s0] sm:$0xff]
        %v256 = vld [vmem:[%s227] sm:$0xff]
        %v257 = vld [vmem:[%s227 + $0x8] sm:$0xff]
        %v258 = vld [vmem:[%s227 + $0x10] sm:$0xff]
        %v259 = vld [vmem:[%s227 + $0x18] sm:$0xff]
        %v260 = vld [vmem:[%s227 + $0x20] sm:$0xff]
        %v261 = vld [vmem:[%s227 + $0x28] sm:$0xff]
        %v262 = vld [vmem:[%s227 + $0x30] sm:$0xff]
        %v263 = vld [vmem:[%s227 + $0x38] sm:$0xff]
        %v264 = vld [vmem:[%s227 + $0x40] sm:$0xff]
        %v265 = vld [vmem:[%s227 + $0x48] sm:$0xff]
        %v266 = vld [vmem:[%s227 + $0x50] sm:$0xff]
        %v267 = vld [vmem:[%s227 + $0x58] sm:$0xff]
        %v268 = vld [vmem:[%s227 + $0x60] sm:$0xff]
        %v269 = vld [vmem:[%s227 + $0x68] sm:$0xff]
        %v270 = vld [vmem:[%s227 + $0x70] sm:$0xff]
        %v271 = vld [vmem:[%s227 + $0x78] sm:$0xff]
        %v272 = vld [vmem:[%s227 + $0x80] sm:$0xff]
        %v273 = vld [vmem:[%s227 + $0x88] sm:$0xff]
        %v274 = vld [vmem:[%s227 + $0x90] sm:$0xff]
        %v275 = vld [vmem:[%s227 + $0x98] sm:$0xff]
        %v276 = vld [vmem:[%s227 + $0xa0] sm:$0xff]
        %v277 = vld [vmem:[%s227 + $0xa8] sm:$0xff]
        %v278 = vld [vmem:[%s227 + $0xb0] sm:$0xff]
        %v279 = vld [vmem:[%s227 + $0xb8] sm:$0xff]
        %v280 = vld [vmem:[%s227 + $0xc0] sm:$0xff]
        %v281 = vld [vmem:[%s227 + $0xc8] sm:$0xff]
        %v282 = vld [vmem:[%s227 + $0xd0] sm:$0xff]
        %v283 = vld [vmem:[%s227 + $0xd8] sm:$0xff]
        %v284 = vld [vmem:[%s227 + $0xe0] sm:$0xff]
        %v285 = vld [vmem:[%s227 + $0xe8] sm:$0xff]
        %v286 = vld [vmem:[%s227 + $0xf0] sm:$0xff]
        %v287 = vld [vmem:[%s227 + $0xf8] sm:$0xff]
        %v288 = vld [vmem:[%s2] sm:$0xff]
        %290 = vset.pattern.permute.xlu0 0
        %291 = vperm.xlu0 %290, %v288
        %v292 = vpop.permute.xlu0 %291
        %vm294 = vcmask 523264
        %v296 = vsel %vm294, %v255, 0
        %298 = vmatprep.subr.mxu0 %v257
        %299 = vmatpush1.msra.mxu0 %v256
        %300 = vmatprep.subr.mxu0 %v261
        %301 = vmatpush1.msra.mxu0 %v260
        %302 = vmatprep.subr.mxu0 %v265
        %303 = vmatpush1.msra.mxu0 %v264
        %304 = vmatprep.subr.mxu0 %v269
        %305 = vmatpush1.msra.mxu0 %v268
        %306 = vmatprep.subr.mxu0 %v273
        %307 = vmatpush1.msra.mxu0 %v272
        %308 = vmatprep.subr.mxu0 %v277
        %309 = vmatpush1.msra.mxu0 %v276
        %310 = vmatprep.subr.mxu0 %v281
        %311 = vmatpush1.msra.mxu0 %v280
        %312 = vmatprep.subr.mxu0 %v285
        %313 = vmatpush1.msra.mxu0 %v284
        %314 = vmatprep.subr.mxu0 0.0
        %315 = vmatpush1.msra.mxu0 0.0
        %316 = vmatprep.subr.mxu0 0.0
        %317 = vmatpush1.msra.mxu0 0.0
        %318 = vmatprep.subr.mxu0 0.0
        %319 = vmatpush1.msra.mxu0 0.0
        %320 = vmatprep.subr.mxu0 0.0
        %321 = vmatpush1.msra.mxu0 0.0
        %322 = vmatprep.subr.mxu0 0.0
        %323 = vmatpush1.msra.mxu0 0.0
        %324 = vmatprep.subr.mxu0 0.0
        %325 = vmatpush1.msra.mxu0 0.0
        %326 = vmatprep.subr.mxu0 0.0
        %327 = vmatpush1.msra.mxu0 0.0
        %328 = vmatprep.subr.mxu0 0.0
        %329 = vmatpush1.msra.mxu0 0.0
        %330 = vmatprep.subr.mxu0 0.0
        %331 = vmatpush1.msra.mxu0 0.0
        %332 = vmatprep.subr.mxu0 0.0
        %333 = vmatpush1.msra.mxu0 0.0
        %334 = vmatprep.subr.mxu0 0.0
        %335 = vmatpush1.msra.mxu0 0.0
        %336 = vmatprep.subr.mxu0 0.0
        %337 = vmatpush1.msra.mxu0 0.0
        %338 = vmatprep.subr.mxu0 0.0
        %339 = vmatpush1.msra.mxu0 0.0
        %340 = vmatprep.subr.mxu0 0.0
        %341 = vmatpush1.msra.mxu0 0.0
        %342 = vmatprep.subr.mxu0 0.0
        %343 = vmatpush1.msra.mxu0 0.0
        %344 = vmatprep.subr.mxu0 0.0
        %345 = vmatpush1.msra.mxu0 0.0
        %346 = vmatprep.subr.mxu0 0.0
        %347 = vmatpush1.msra.mxu0 0.0
        %348 = vmatprep.subr.mxu0 0.0
        %349 = vmatpush1.msra.mxu0 0.0
        %350 = vmatprep.subr.mxu0 0.0
        %351 = vmatpush1.msra.mxu0 0.0
        %352 = vmatprep.subr.mxu0 0.0
        %353 = vmatpush1.msra.mxu0 0.0
        %354 = vmatprep.subr.mxu0 0.0
        %355 = vmatpush1.msra.mxu0 0.0
        %356 = vmatprep.subr.mxu0 0.0
        %357 = vmatpush1.msra.mxu0 0.0
        %358 = vmatprep.subr.mxu0 0.0
        %359 = vmatpush1.msra.mxu0 0.0
        %360 = vmatprep.subr.mxu0 0.0
        %361 = vmatpush1.msra.mxu0 0.0
        %362 = vmatprep.mubr.f32.mxu0 0.0
        %363 = vmatmul.mubr.f32.gmra.mrb[0].mxu0 %v296
        %v364 = vpop.f32.mrb[0].mxu0
        %v365 = vadd.f32 %v292, %v364
        %v366 = vpop.f32.mrb[0].mxu0
        %v367 = vadd.f32 %v292, %v366
        %368 = vdwg.mxu0
        %369 = vmatprep.subr.mxu0 %v259
        %370 = vmatpush1.msra.mxu0 %v258
        %371 = vmatprep.subr.mxu0 %v263
        %372 = vmatpush1.msra.mxu0 %v262
        %373 = vmatprep.subr.mxu0 %v267
        %374 = vmatpush1.msra.mxu0 %v266
        %375 = vmatprep.subr.mxu0 %v271
        %376 = vmatpush1.msra.mxu0 %v270
        %377 = vmatprep.subr.mxu0 %v275
        %378 = vmatpush1.msra.mxu0 %v274
        %379 = vmatprep.subr.mxu0 %v279
        %380 = vmatpush1.msra.mxu0 %v278
        %381 = vmatprep.subr.mxu0 %v283
        %382 = vmatpush1.msra.mxu0 %v282
        %383 = vmatprep.subr.mxu0 %v287
        %384 = vmatpush1.msra.mxu0 %v286
        %385 = vmatprep.subr.mxu0 0.0
        %386 = vmatpush1.msra.mxu0 0.0
        %387 = vmatprep.subr.mxu0 0.0
        %388 = vmatpush1.msra.mxu0 0.0
        %389 = vmatprep.subr.mxu0 0.0
        %390 = vmatpush1.msra.mxu0 0.0
        %391 = vmatprep.subr.mxu0 0.0
        %392 = vmatpush1.msra.mxu0 0.0
        %393 = vmatprep.subr.mxu0 0.0
        %394 = vmatpush1.msra.mxu0 0.0
        %395 = vmatprep.subr.mxu0 0.0
        %396 = vmatpush1.msra.mxu0 0.0
        %397 = vmatprep.subr.mxu0 0.0
        %398 = vmatpush1.msra.mxu0 0.0
        %399 = vmatprep.subr.mxu0 0.0
        %400 = vmatpush1.msra.mxu0 0.0
        %401 = vmatprep.subr.mxu0 0.0
        %402 = vmatpush1.msra.mxu0 0.0
        %403 = vmatprep.subr.mxu0 0.0
        %404 = vmatpush1.msra.mxu0 0.0
        %405 = vmatprep.subr.mxu0 0.0
        %406 = vmatpush1.msra.mxu0 0.0
        %407 = vmatprep.subr.mxu0 0.0
        %408 = vmatpush1.msra.mxu0 0.0
        %409 = vmatprep.subr.mxu0 0.0
        %410 = vmatpush1.msra.mxu0 0.0
        %411 = vmatprep.subr.mxu0 0.0
        %412 = vmatpush1.msra.mxu0 0.0
        %413 = vmatprep.subr.mxu0 0.0
        %414 = vmatpush1.msra.mxu0 0.0
        %415 = vmatprep.subr.mxu0 0.0
        %416 = vmatpush1.msra.mxu0 0.0
        %417 = vmatprep.subr.mxu0 0.0
        %418 = vmatpush1.msra.mxu0 0.0
        %419 = vmatprep.subr.mxu0 0.0
        %420 = vmatpush1.msra.mxu0 0.0
        %421 = vmatprep.subr.mxu0 0.0
        %422 = vmatpush1.msra.mxu0 0.0
        %423 = vmatprep.subr.mxu0 0.0
        %424 = vmatpush1.msra.mxu0 0.0
        %425 = vmatprep.subr.mxu0 0.0
        %426 = vmatpush1.msra.mxu0 0.0
        %427 = vmatprep.subr.mxu0 0.0
        %428 = vmatpush1.msra.mxu0 0.0
        %429 = vmatprep.subr.mxu0 0.0
        %430 = vmatpush1.msra.mxu0 0.0
        %431 = vmatprep.subr.mxu0 0.0
        %432 = vmatpush1.msra.mxu0 0.0
        %433 = vmatprep.mubr.f32.mxu0 0.0
        %434 = vmatmul.mubr.f32.gmra.mrb[0].mxu0 %v296
        %v435 = vpop.f32.mrb[0].mxu0
        %v436 = vadd.f32 %v292, %v435
        %v437 = vpop.f32.mrb[0].mxu0
        %v438 = vadd.f32 %v292, %v437
        %439 = vdwg.mxu0
        %v440 = vmax.f32 %v365, 0.0
        %v441 = vmax.f32 %v367, 0.0
        %v442 = vmax.f32 %v436, 0.0
        %v443 = vmax.f32 %v438, 0.0
        %444 = vst [vmem:[%s253] sm:$0xff] %v440
        %445 = vst [vmem:[%s253 + $0x8] sm:$0xff] %v441
        %446 = vst [vmem:[%s253 + $0x10] sm:$0xff] %v442
        %447 = vst [vmem:[%s253 + $0x18] sm:$0xff] %v443
        %s448 = smul.u32 4, %s14
        %p449 = scmp.lt.s32.totalorder %s448, 15
        %s450 = scalar_select %p449, %s448, 15
        %s451 = smul.addr %s450, 8
        %s452 = scalar_lea.vmem %s3, %s451
        // Predicated region
        $region56: #{pyramid2_forward.12} parent=50 // pred_check
          %p453 = pneg %p100
        $region57: #{pyramid2_forward.12} parent=50 // pred_check_branch
          %455 = sbr.rel (%p453) target = $region59
        $region58: #{pyramid2_forward.12} parent=50 // pred_region
          %s456 = smul.u32 4, %s14
        $region59: #{pyramid2_forward.12} parent=50 // pred_fallthru
          _
      $region51: #{pyramid2_forward.12} parent=5 // pred_fallthru
        _
      %p457 = scmp.le.s32.totalorder 2, %s9
      // Predicated region
      $region60: #{pyramid2_forward.12} parent=5 // pred_check
        %p458 = pneg %p457
      $region61: #{pyramid2_forward.12} parent=5 // pred_check_branch
        %460 = sbr.rel (%p458) target = $region63
      $region62: #{pyramid2_forward.12} parent=5 // pred_region
        %s461 = ssub.s32 %s9, 2
        // Predicated region
        $region64: #{pyramid2_forward.12} parent=62 // pred_check
          %p462 = pneg %p106
        $region65: #{pyramid2_forward.12} parent=62 // pred_check_branch
          %464 = sbr.rel (%p462) target = $region67
        $region66: #{pyramid2_forward.12} parent=62 // pred_region
          %s465 = smul.u32 4, %s15
          %p466 = scmp.lt.s32.totalorder %s465, 15
          %s467 = scalar_select %p466, %s465, 15
          %s468 = smul.addr %s467, 8
          %s469 = scalar_lea.vmem %s3, %s468
        $region67: #{pyramid2_forward.12} parent=62 // pred_fallthru
          _
      $region63: #{pyramid2_forward.12} parent=5 // pred_fallthru
        _
    $region6: #{pyramid2_forward.12} parent=1 // loop_footer
      %s13 = sadd.s32 1, %s9
    $region7: #{pyramid2_forward.12} parent=1 // loop_footer_branch
      %8 = sbr.rel target = $region3
    $region8: #{pyramid2_forward.12} parent=1 // loop_exit
      _

// kernel: pyramid2_forward.13
$region0: #{pyramid2_forward.13}
  #allocation0 [shape = 'u32[]', space=smem, size = 0x4, offset = 0x4, fixed_abs, tag = 'smem constant byte address 0x4 - core index']
  #allocation1 [shape = 'u32[144,128]{1,0:T(1,128)}', space=vmem, size = 0x12000, scoped, tag = 'internal scratch']
  %s0 = inlined_call_operand.vmem [shape: f32[16,128], index: 0, kind: input, shape index: {}]
  %s1 = inlined_call_operand.vmem [shape: f32[128,512], index: 1, kind: input, shape index: {}]
  %s2 = inlined_call_operand.vmem [shape: f32[16,1], index: 2, kind: input, shape index: {}]
  %s3 = inlined_call_operand.vmem [shape: f32[16,512], index: 3, kind: output, shape index: {}]
  %s4 = sld [smem:[#allocation0]]
  $region22: #{pyramid2_forward.13} parent=0
    _
  %s6 = ssub.s32 1, %s4
  %s7 = scalar_select 0, %s6, %s4
  // Predicated region
  $region2: #{pyramid2_forward.13} parent=0 // pred_check
    _
  $region3: #{pyramid2_forward.13} parent=0 // pred_check_branch
    %9 = sbr.rel (0) target = $region5
  $region4: #{pyramid2_forward.13} parent=0 // pred_region
    _
  $region5: #{pyramid2_forward.13} parent=0 // pred_fallthru
    _
  // Predicated region
  $region6: #{pyramid2_forward.13} parent=0 // pred_check
    _
  $region7: #{pyramid2_forward.13} parent=0 // pred_check_branch
    %11 = sbr.rel (0) target = $region9
  $region8: #{pyramid2_forward.13} parent=0 // pred_region
    _
  $region9: #{pyramid2_forward.13} parent=0 // pred_fallthru
    _
  // Predicated region
  $region10: #{pyramid2_forward.13} parent=0 // pred_check
    _
  $region11: #{pyramid2_forward.13} parent=0 // pred_check_branch
    %13 = sbr.rel (0) target = $region13
  $region12: #{pyramid2_forward.13} parent=0 // pred_region
    _
  $region13: #{pyramid2_forward.13} parent=0 // pred_fallthru
    _
  %v14 = vld [vmem:[%s0] sm:$0xff]
  %v15 = vld [vmem:[%s0 + $0x8] sm:$0xff]
  %v16 = vld [vmem:[%s1] sm:$0xff]
  %v17 = vld [vmem:[%s1 + $0x8] sm:$0xff]
  %v18 = vld [vmem:[%s1 + $0x10] sm:$0xff]
  %v19 = vld [vmem:[%s1 + $0x18] sm:$0xff]
  %v20 = vld [vmem:[%s1 + $0x20] sm:$0xff]
  %v21 = vld [vmem:[%s1 + $0x28] sm:$0xff]
  %v22 = vld [vmem:[%s1 + $0x30] sm:$0xff]
  %v23 = vld [vmem:[%s1 + $0x38] sm:$0xff]
  %v24 = vld [vmem:[%s1 + $0x40] sm:$0xff]
  %v25 = vld [vmem:[%s1 + $0x48] sm:$0xff]
  %v26 = vld [vmem:[%s1 + $0x50] sm:$0xff]
  %v27 = vld [vmem:[%s1 + $0x58] sm:$0xff]
  %v28 = vld [vmem:[%s1 + $0x60] sm:$0xff]
  %v29 = vld [vmem:[%s1 + $0x68] sm:$0xff]
  %v30 = vld [vmem:[%s1 + $0x70] sm:$0xff]
  %v31 = vld [vmem:[%s1 + $0x78] sm:$0xff]
  %v32 = vld [vmem:[%s1 + $0x80] sm:$0xff]
  %v33 = vld [vmem:[%s1 + $0x88] sm:$0xff]
  %v34 = vld [vmem:[%s1 + $0x90] sm:$0xff]
  %v35 = vld [vmem:[%s1 + $0x98] sm:$0xff]
  %v36 = vld [vmem:[%s1 + $0xa0] sm:$0xff]
  %v37 = vld [vmem:[%s1 + $0xa8] sm:$0xff]
  %v38 = vld [vmem:[%s1 + $0xb0] sm:$0xff]
  %v39 = vld [vmem:[%s1 + $0xb8] sm:$0xff]
  %v40 = vld [vmem:[%s1 + $0xc0] sm:$0xff]
  %v41 = vld [vmem:[%s1 + $0xc8] sm:$0xff]
  %v42 = vld [vmem:[%s1 + $0xd0] sm:$0xff]
  %v43 = vld [vmem:[%s1 + $0xd8] sm:$0xff]
  %v44 = vld [vmem:[%s1 + $0xe0] sm:$0xff]
  %v45 = vld [vmem:[%s1 + $0xe8] sm:$0xff]
  %v46 = vld [vmem:[%s1 + $0xf0] sm:$0xff]
  %v47 = vld [vmem:[%s1 + $0xf8] sm:$0xff]
  %v48 = vld [vmem:[%s1 + $0x100] sm:$0xff]
  %v49 = vld [vmem:[%s1 + $0x108] sm:$0xff]
  %v50 = vld [vmem:[%s1 + $0x110] sm:$0xff]
  %v51 = vld [vmem:[%s1 + $0x118] sm:$0xff]
  %v52 = vld [vmem:[%s1 + $0x120] sm:$0xff]
  %v53 = vld [vmem:[%s1 + $0x128] sm:$0xff]
  %v54 = vld [vmem:[%s1 + $0x130] sm:$0xff]
  %v55 = vld [vmem:[%s1 + $0x138] sm:$0xff]
  %v56 = vld [vmem:[%s1 + $0x140] sm:$0xff]
  %v57 = vld [vmem:[%s1 + $0x148] sm:$0xff]
  %v58 = vld [vmem:[%s1 + $0x150] sm:$0xff]
  %v59 = vld [vmem:[%s1 + $0x158] sm:$0xff]
  %v60 = vld [vmem:[%s1 + $0x160] sm:$0xff]
  %v61 = vld [vmem:[%s1 + $0x168] sm:$0xff]
  %v62 = vld [vmem:[%s1 + $0x170] sm:$0xff]
  %v63 = vld [vmem:[%s1 + $0x178] sm:$0xff]
  %v64 = vld [vmem:[%s1 + $0x180] sm:$0xff]
  %v65 = vld [vmem:[%s1 + $0x188] sm:$0xff]
  %v66 = vld [vmem:[%s1 + $0x190] sm:$0xff]
  %v67 = vld [vmem:[%s1 + $0x198] sm:$0xff]
  %v68 = vld [vmem:[%s1 + $0x1a0] sm:$0xff]
  %v69 = vld [vmem:[%s1 + $0x1a8] sm:$0xff]
  %v70 = vld [vmem:[%s1 + $0x1b0] sm:$0xff]
  %v71 = vld [vmem:[%s1 + $0x1b8] sm:$0xff]
  %v72 = vld [vmem:[%s1 + $0x1c0] sm:$0xff]
  %v73 = vld [vmem:[%s1 + $0x1c8] sm:$0xff]
  %v74 = vld [vmem:[%s1 + $0x1d0] sm:$0xff]
  %v75 = vld [vmem:[%s1 + $0x1d8] sm:$0xff]
  %v76 = vld [vmem:[%s1 + $0x1e0] sm:$0xff]
  %v77 = vld [vmem:[%s1 + $0x1e8] sm:$0xff]
  %v78 = vld [vmem:[%s1 + $0x1f0] sm:$0xff]
  %v79 = vld [vmem:[%s1 + $0x1f8] sm:$0xff]
  %v80 = vld [vmem:[%s2] sm:$0xff]
  %v81 = vld [vmem:[%s2 + $0x8] sm:$0xff]
  %83 = vset.pattern.permute.xlu0 0
  %84 = vperm.xlu0 %83, %v80
  %v85 = vpop.permute.xlu0 %84
  %88 = vset.pattern.permute.xlu0 0
  %89 = vperm.xlu0 %88, %v81
  %v90 = vpop.permute.xlu0 %89
  %92 = vmatprep.subr.mxu0 %v17
  %93 = vmatpush1.msra.mxu0 %v16
  %94 = vmatprep.subr.mxu0 %v21
  %95 = vmatpush1.msra.mxu0 %v20
  %96 = vmatprep.subr.mxu0 %v25
  %97 = vmatpush1.msra.mxu0 %v24
  %98 = vmatprep.subr.mxu0 %v29
  %99 = vmatpush1.msra.mxu0 %v28
  %100 = vmatprep.subr.mxu0 %v33
  %101 = vmatpush1.msra.mxu0 %v32
  %102 = vmatprep.subr.mxu0 %v37
  %103 = vmatpush1.msra.mxu0 %v36
  %104 = vmatprep.subr.mxu0 %v41
  %105 = vmatpush1.msra.mxu0 %v40
  %106 = vmatprep.subr.mxu0 %v45
  %107 = vmatpush1.msra.mxu0 %v44
  %108 = vmatprep.subr.mxu0 %v49
  %109 = vmatpush1.msra.mxu0 %v48
  %110 = vmatprep.subr.mxu0 %v53
  %111 = vmatpush1.msra.mxu0 %v52
  %112 = vmatprep.subr.mxu0 %v57
  %113 = vmatpush1.msra.mxu0 %v56
  %114 = vmatprep.subr.mxu0 %v61
  %115 = vmatpush1.msra.mxu0 %v60
  %116 = vmatprep.subr.mxu0 %v65
  %117 = vmatpush1.msra.mxu0 %v64
  %118 = vmatprep.subr.mxu0 %v69
  %119 = vmatpush1.msra.mxu0 %v68
  %120 = vmatprep.subr.mxu0 %v73
  %121 = vmatpush1.msra.mxu0 %v72
  %122 = vmatprep.subr.mxu0 %v77
  %123 = vmatpush1.msra.mxu0 %v76
  %124 = vmatprep.subr.mxu0 0.0
  %125 = vmatpush1.msra.mxu0 0.0
  %126 = vmatprep.subr.mxu0 0.0
  %127 = vmatpush1.msra.mxu0 0.0
  %128 = vmatprep.subr.mxu0 0.0
  %129 = vmatpush1.msra.mxu0 0.0
  %130 = vmatprep.subr.mxu0 0.0
  %131 = vmatpush1.msra.mxu0 0.0
  %132 = vmatprep.subr.mxu0 0.0
  %133 = vmatpush1.msra.mxu0 0.0
  %134 = vmatprep.subr.mxu0 0.0
  %135 = vmatpush1.msra.mxu0 0.0
  %136 = vmatprep.subr.mxu0 0.0
  %137 = vmatpush1.msra.mxu0 0.0
  %138 = vmatprep.subr.mxu0 0.0
  %139 = vmatpush1.msra.mxu0 0.0
  %140 = vmatprep.subr.mxu0 0.0
  %141 = vmatpush1.msra.mxu0 0.0
  %142 = vmatprep.subr.mxu0 0.0
  %143 = vmatpush1.msra.mxu0 0.0
  %144 = vmatprep.subr.mxu0 0.0
  %145 = vmatpush1.msra.mxu0 0.0
  %146 = vmatprep.subr.mxu0 0.0
  %147 = vmatpush1.msra.mxu0 0.0
  %148 = vmatprep.subr.mxu0 0.0
  %149 = vmatpush1.msra.mxu0 0.0
  %150 = vmatprep.subr.mxu0 0.0
  %151 = vmatpush1.msra.mxu0 0.0
  %152 = vmatprep.subr.mxu0 0.0
  %153 = vmatpush1.msra.mxu0 0.0
  %154 = vmatprep.subr.mxu0 0.0
  %155 = vmatpush1.msra.mxu0 0.0
  %156 = vmatprep.mubr.f32.mxu0 0.0
  %157 = vmatmul.mubr.f32.gmra.mrb[0].mxu0 %v14
  %v158 = vpop.f32.mrb[0].mxu0
  %v159 = vadd.f32 %v85, %v158
  %v160 = vpop.f32.mrb[0].mxu0
  %v161 = vadd.f32 %v85, %v160
  %162 = vmatprep.mubr.f32.mxu0 0.0
  %163 = vmatmul.mubr.f32.gmra.mrb[0].mxu0 %v15
  %v164 = vpop.f32.mrb[0].mxu0
  %v165 = vadd.f32 %v90, %v164
  %v166 = vpop.f32.mrb[0].mxu0
  %v167 = vadd.f32 %v90, %v166
  %168 = vdwg.mxu0
  %169 = vmatprep.subr.mxu0 %v19
  %170 = vmatpush1.msra.mxu0 %v18
  %171 = vmatprep.subr.mxu0 %v23
  %172 = vmatpush1.msra.mxu0 %v22
  %173 = vmatprep.subr.mxu0 %v27
  %174 = vmatpush1.msra.mxu0 %v26
  %175 = vmatprep.subr.mxu0 %v31
  %176 = vmatpush1.msra.mxu0 %v30
  %177 = vmatprep.subr.mxu0 %v35
  %178 = vmatpush1.msra.mxu0 %v34
  %179 = vmatprep.subr.mxu0 %v39
  %180 = vmatpush1.msra.mxu0 %v38
  %181 = vmatprep.subr.mxu0 %v43
  %182 = vmatpush1.msra.mxu0 %v42
  %183 = vmatprep.subr.mxu0 %v47
  %184 = vmatpush1.msra.mxu0 %v46
  %185 = vmatprep.subr.mxu0 %v51
  %186 = vmatpush1.msra.mxu0 %v50
  %187 = vmatprep.subr.mxu0 %v55
  %188 = vmatpush1.msra.mxu0 %v54
  %189 = vmatprep.subr.mxu0 %v59
  %190 = vmatpush1.msra.mxu0 %v58
  %191 = vmatprep.subr.mxu0 %v63
  %192 = vmatpush1.msra.mxu0 %v62
  %193 = vmatprep.subr.mxu0 %v67
  %194 = vmatpush1.msra.mxu0 %v66
  %195 = vmatprep.subr.mxu0 %v71
  %196 = vmatpush1.msra.mxu0 %v70
  %197 = vmatprep.subr.mxu0 %v75
  %198 = vmatpush1.msra.mxu0 %v74
  %199 = vmatprep.subr.mxu0 %v79
  %200 = vmatpush1.msra.mxu0 %v78
  %201 = vmatprep.subr.mxu0 0.0
  %202 = vmatpush1.msra.mxu0 0.0
  %203 = vmatprep.subr.mxu0 0.0
  %204 = vmatpush1.msra.mxu0 0.0
  %205 = vmatprep.subr.mxu0 0.0
  %206 = vmatpush1.msra.mxu0 0.0
  %207 = vmatprep.subr.mxu0 0.0
  %208 = vmatpush1.msra.mxu0 0.0
  %209 = vmatprep.subr.mxu0 0.0
  %210 = vmatpush1.msra.mxu0 0.0
  %211 = vmatprep.subr.mxu0 0.0
  %212 = vmatpush1.msra.mxu0 0.0
  %213 = vmatprep.subr.mxu0 0.0
  %214 = vmatpush1.msra.mxu0 0.0
  %215 = vmatprep.subr.mxu0 0.0
  %216 = vmatpush1.msra.mxu0 0.0
  %217 = vmatprep.subr.mxu0 0.0
  %218 = vmatpush1.msra.mxu0 0.0
  %219 = vmatprep.subr.mxu0 0.0
  %220 = vmatpush1.msra.mxu0 0.0
  %221 = vmatprep.subr.mxu0 0.0
  %222 = vmatpush1.msra.mxu0 0.0
  %223 = vmatprep.subr.mxu0 0.0
  %224 = vmatpush1.msra.mxu0 0.0
  %225 = vmatprep.subr.mxu0 0.0
  %226 = vmatpush1.msra.mxu0 0.0
  %227 = vmatprep.subr.mxu0 0.0
  %228 = vmatpush1.msra.mxu0 0.0
  %229 = vmatprep.subr.mxu0 0.0
  %230 = vmatpush1.msra.mxu0 0.0
  %231 = vmatprep.subr.mxu0 0.0
  %232 = vmatpush1.msra.mxu0 0.0
  %233 = vmatprep.mubr.f32.mxu0 0.0
  %234 = vmatmul.mubr.f32.gmra.mrb[0].mxu0 %v14
  %v235 = vpop.f32.mrb[0].mxu0
  %v236 = vadd.f32 %v85, %v235
  %v237 = vpop.f32.mrb[0].mxu0
  %v238 = vadd.f32 %v85, %v237
  %239 = vmatprep.mubr.f32.mxu0 0.0
  %240 = vmatmul.mubr.f32.gmra.mrb[0].mxu0 %v15
  %v241 = vpop.f32.mrb[0].mxu0
  %v242 = vadd.f32 %v90, %v241
  %v243 = vpop.f32.mrb[0].mxu0
  %v244 = vadd.f32 %v90, %v243
  %245 = vdwg.mxu0
  %v246 = vmax.f32 %v159, 0.0
  %v247 = vmax.f32 %v161, 0.0
  %v248 = vmax.f32 %v236, 0.0
  %v249 = vmax.f32 %v238, 0.0
  %v250 = vmax.f32 %v165, 0.0
  %v251 = vmax.f32 %v167, 0.0
  %v252 = vmax.f32 %v242, 0.0
  %v253 = vmax.f32 %v244, 0.0
  %254 = vst [vmem:[%s3] sm:$0xff] %v246
  %255 = vst [vmem:[%s3 + $0x8] sm:$0xff] %v247
  %256 = vst [vmem:[%s3 + $0x10] sm:$0xff] %v248
  %257 = vst [vmem:[%s3 + $0x18] sm:$0xff] %v249
  %258 = vst [vmem:[%s3 + $0x20] sm:$0xff] %v250
  %259 = vst [vmem:[%s3 + $0x28] sm:$0xff] %v251
  %260 = vst [vmem:[%s3 + $0x30] sm:$0xff] %v252
  %261 = vst [vmem:[%s3 + $0x38] sm:$0xff] %v253
  // Predicated region
  $region14: #{pyramid2_forward.13} parent=0 // pred_check
    _
  $region15: #{pyramid2_forward.13} parent=0 // pred_check_branch
    %263 = sbr.rel (0) target = $region17
  $region16: #{pyramid2_forward.13} parent=0 // pred_region
    _
  $region17: #{pyramid2_forward.13} parent=0 // pred_fallthru
    _
  // Predicated region
  $region18: #{pyramid2_forward.13} parent=0 // pred_check
    _
  $region19: #{pyramid2_forward.13} parent=0 // pred_check_branch
    %265 = sbr.rel (0) target = $region21
  $region20: #{pyramid2_forward.13} parent=0 // pred_region
    _
  $region21: #{pyramid2_forward.13} parent=0 // pred_fallthru
    _

// kernel: pyramid2_forward.14
$region0: #{pyramid2_forward.14}
  #allocation0 [shape = 'u32[]', space=smem, size = 0x4, offset = 0x4, fixed_abs, tag = 'smem constant byte address 0x4 - core index']
  #allocation1 [shape = 'u32[144,128]{1,0:T(1,128)}', space=vmem, size = 0x12000, scoped, tag = 'internal scratch']
  %s0 = inlined_call_operand.vmem [shape: f32[32,256], index: 0, kind: input, shape index: {}]
  %s1 = inlined_call_operand.vmem [shape: f32[256,128], index: 1, kind: input, shape index: {}]
  %s2 = inlined_call_operand.vmem [shape: f32[32,1], index: 2, kind: input, shape index: {}]
  %s3 = inlined_call_operand.vmem [shape: f32[32,128], index: 3, kind: output, shape index: {}]
  %s4 = sld [smem:[#allocation0]]
  $region22: #{pyramid2_forward.14} parent=0
    _
  %s6 = ssub.s32 1, %s4
  %s7 = scalar_select 0, %s6, %s4
  // Predicated region
  $region2: #{pyramid2_forward.14} parent=0 // pred_check
    _
  $region3: #{pyramid2_forward.14} parent=0 // pred_check_branch
    %9 = sbr.rel (0) target = $region5
  $region4: #{pyramid2_forward.14} parent=0 // pred_region
    _
  $region5: #{pyramid2_forward.14} parent=0 // pred_fallthru
    _
  // Predicated region
  $region6: #{pyramid2_forward.14} parent=0 // pred_check
    _
  $region7: #{pyramid2_forward.14} parent=0 // pred_check_branch
    %11 = sbr.rel (0) target = $region9
  $region8: #{pyramid2_forward.14} parent=0 // pred_region
    _
  $region9: #{pyramid2_forward.14} parent=0 // pred_fallthru
    _
  // Predicated region
  $region10: #{pyramid2_forward.14} parent=0 // pred_check
    _
  $region11: #{pyramid2_forward.14} parent=0 // pred_check_branch
    %13 = sbr.rel (0) target = $region13
  $region12: #{pyramid2_forward.14} parent=0 // pred_region
    _
  $region13: #{pyramid2_forward.14} parent=0 // pred_fallthru
    _
  %v14 = vld [vmem:[%s0] sm:$0xff]
  %v15 = vld [vmem:[%s0 + $0x8] sm:$0xff]
  %v16 = vld [vmem:[%s0 + $0x10] sm:$0xff]
  %v17 = vld [vmem:[%s0 + $0x18] sm:$0xff]
  %v18 = vld [vmem:[%s0 + $0x20] sm:$0xff]
  %v19 = vld [vmem:[%s0 + $0x28] sm:$0xff]
  %v20 = vld [vmem:[%s0 + $0x30] sm:$0xff]
  %v21 = vld [vmem:[%s0 + $0x38] sm:$0xff]
  %v22 = vld [vmem:[%s1] sm:$0xff]
  %v23 = vld [vmem:[%s1 + $0x8] sm:$0xff]
  %v24 = vld [vmem:[%s1 + $0x10] sm:$0xff]
  %v25 = vld [vmem:[%s1 + $0x18] sm:$0xff]
  %v26 = vld [vmem:[%s1 + $0x20] sm:$0xff]
  %v27 = vld [vmem:[%s1 + $0x28] sm:$0xff]
  %v28 = vld [vmem:[%s1 + $0x30] sm:$0xff]
  %v29 = vld [vmem:[%s1 + $0x38] sm:$0xff]
  %v30 = vld [vmem:[%s1 + $0x40] sm:$0xff]
  %v31 = vld [vmem:[%s1 + $0x48] sm:$0xff]
  %v32 = vld [vmem:[%s1 + $0x50] sm:$0xff]
  %v33 = vld [vmem:[%s1 + $0x58] sm:$0xff]
  %v34 = vld [vmem:[%s1 + $0x60] sm:$0xff]
  %v35 = vld [vmem:[%s1 + $0x68] sm:$0xff]
  %v36 = vld [vmem:[%s1 + $0x70] sm:$0xff]
  %v37 = vld [vmem:[%s1 + $0x78] sm:$0xff]
  %v38 = vld [vmem:[%s1 + $0x80] sm:$0xff]
  %v39 = vld [vmem:[%s1 + $0x88] sm:$0xff]
  %v40 = vld [vmem:[%s1 + $0x90] sm:$0xff]
  %v41 = vld [vmem:[%s1 + $0x98] sm:$0xff]
  %v42 = vld [vmem:[%s1 + $0xa0] sm:$0xff]
  %v43 = vld [vmem:[%s1 + $0xa8] sm:$0xff]
  %v44 = vld [vmem:[%s1 + $0xb0] sm:$0xff]
  %v45 = vld [vmem:[%s1 + $0xb8] sm:$0xff]
  %v46 = vld [vmem:[%s1 + $0xc0] sm:$0xff]
  %v47 = vld [vmem:[%s1 + $0xc8] sm:$0xff]
  %v48 = vld [vmem:[%s1 + $0xd0] sm:$0xff]
  %v49 = vld [vmem:[%s1 + $0xd8] sm:$0xff]
  %v50 = vld [vmem:[%s1 + $0xe0] sm:$0xff]
  %v51 = vld [vmem:[%s1 + $0xe8] sm:$0xff]
  %v52 = vld [vmem:[%s1 + $0xf0] sm:$0xff]
  %v53 = vld [vmem:[%s1 + $0xf8] sm:$0xff]
  %v54 = vld [vmem:[%s2] sm:$0xff]
  %v55 = vld [vmem:[%s2 + $0x8] sm:$0xff]
  %v56 = vld [vmem:[%s2 + $0x10] sm:$0xff]
  %v57 = vld [vmem:[%s2 + $0x18] sm:$0xff]
  %59 = vset.pattern.permute.xlu0 0
  %60 = vperm.xlu0 %59, %v54
  %v61 = vpop.permute.xlu0 %60
  %64 = vset.pattern.permute.xlu0 0
  %65 = vperm.xlu0 %64, %v55
  %v66 = vpop.permute.xlu0 %65
  %69 = vset.pattern.permute.xlu0 0
  %70 = vperm.xlu0 %69, %v56
  %v71 = vpop.permute.xlu0 %70
  %74 = vset.pattern.permute.xlu0 0
  %75 = vperm.xlu0 %74, %v57
  %v76 = vpop.permute.xlu0 %75
  %78 = vmatprep.subr.mxu0 0.0
  %79 = vmatpush1.msra.mxu0 %v22
  %80 = vmatprep.subr.mxu0 0.0
  %81 = vmatpush1.msra.mxu0 %v23
  %82 = vmatprep.subr.mxu0 0.0
  %83 = vmatpush1.msra.mxu0 %v24
  %84 = vmatprep.subr.mxu0 0.0
  %85 = vmatpush1.msra.mxu0 %v25
  %86 = vmatprep.subr.mxu0 0.0
  %87 = vmatpush1.msra.mxu0 %v26
  %88 = vmatprep.subr.mxu0 0.0
  %89 = vmatpush1.msra.mxu0 %v27
  %90 = vmatprep.subr.mxu0 0.0
  %91 = vmatpush1.msra.mxu0 %v28
  %92 = vmatprep.subr.mxu0 0.0
  %93 = vmatpush1.msra.mxu0 %v29
  %94 = vmatprep.subr.mxu0 0.0
  %95 = vmatpush1.msra.mxu0 %v30
  %96 = vmatprep.subr.mxu0 0.0
  %97 = vmatpush1.msra.mxu0 %v31
  %98 = vmatprep.subr.mxu0 0.0
  %99 = vmatpush1.msra.mxu0 %v32
  %100 = vmatprep.subr.mxu0 0.0
  %101 = vmatpush1.msra.mxu0 %v33
  %102 = vmatprep.subr.mxu0 0.0
  %103 = vmatpush1.msra.mxu0 %v34
  %104 = vmatprep.subr.mxu0 0.0
  %105 = vmatpush1.msra.mxu0 %v35
  %106 = vmatprep.subr.mxu0 0.0
  %107 = vmatpush1.msra.mxu0 %v36
  %108 = vmatprep.subr.mxu0 0.0
  %109 = vmatpush1.msra.mxu0 %v37
  %110 = vmatprep.subr.mxu0 0.0
  %111 = vmatpush1.msra.mxu0 %v38
  %112 = vmatprep.subr.mxu0 0.0
  %113 = vmatpush1.msra.mxu0 %v39
  %114 = vmatprep.subr.mxu0 0.0
  %115 = vmatpush1.msra.mxu0 %v40
  %116 = vmatprep.subr.mxu0 0.0
  %117 = vmatpush1.msra.mxu0 %v41
  %118 = vmatprep.subr.mxu0 0.0
  %119 = vmatpush1.msra.mxu0 %v42
  %120 = vmatprep.subr.mxu0 0.0
  %121 = vmatpush1.msra.mxu0 %v43
  %122 = vmatprep.subr.mxu0 0.0
  %123 = vmatpush1.msra.mxu0 %v44
  %124 = vmatprep.subr.mxu0 0.0
  %125 = vmatpush1.msra.mxu0 %v45
  %126 = vmatprep.subr.mxu0 0.0
  %127 = vmatpush1.msra.mxu0 %v46
  %128 = vmatprep.subr.mxu0 0.0
  %129 = vmatpush1.msra.mxu0 %v47
  %130 = vmatprep.subr.mxu0 0.0
  %131 = vmatpush1.msra.mxu0 %v48
  %132 = vmatprep.subr.mxu0 0.0
  %133 = vmatpush1.msra.mxu0 %v49
  %134 = vmatprep.subr.mxu0 0.0
  %135 = vmatpush1.msra.mxu0 %v50
  %136 = vmatprep.subr.mxu0 0.0
  %137 = vmatpush1.msra.mxu0 %v51
  %138 = vmatprep.subr.mxu0 0.0
  %139 = vmatpush1.msra.mxu0 %v52
  %140 = vmatprep.subr.mxu0 0.0
  %141 = vmatpush1.msra.mxu0 %v53
  %142 = vmatprep.mubr.f32.mxu0 %v15
  %143 = vmatmul.mubr.f32.gmra.mrb[0].mxu0 %v14
  %v144 = vpop.f32.mrb[0].mxu0
  %v145 = vadd.f32 %v61, %v144
  %v146 = vpop.f32.mrb[0].mxu0
  %147 = vmatprep.mubr.f32.mxu0 %v17
  %148 = vmatmul.mubr.f32.gmra.mrb[0].mxu0 %v16
  %v149 = vpop.f32.mrb[0].mxu0
  %v150 = vadd.f32 %v66, %v149
  %v151 = vpop.f32.mrb[0].mxu0
  %152 = vmatprep.mubr.f32.mxu0 %v19
  %153 = vmatmul.mubr.f32.gmra.mrb[0].mxu0 %v18
  %v154 = vpop.f32.mrb[0].mxu0
  %v155 = vadd.f32 %v71, %v154
  %v156 = vpop.f32.mrb[0].mxu0
  %157 = vmatprep.mubr.f32.mxu0 %v21
  %158 = vmatmul.mubr.f32.gmra.mrb[0].mxu0 %v20
  %v159 = vpop.f32.mrb[0].mxu0
  %v160 = vadd.f32 %v76, %v159
  %v161 = vpop.f32.mrb[0].mxu0
  %162 = vdwg.mxu0
  %v163 = vmax.f32 %v145, 0.0
  %v164 = vmax.f32 %v150, 0.0
  %v165 = vmax.f32 %v155, 0.0
  %v166 = vmax.f32 %v160, 0.0
  %167 = vst [vmem:[%s3] sm:$0xff] %v163
  %168 = vst [vmem:[%s3 + $0x8] sm:$0xff] %v164
  %169 = vst [vmem:[%s3 + $0x10] sm:$0xff] %v165
  %170 = vst [vmem:[%s3 + $0x18] sm:$0xff] %v166
  // Predicated region
  $region14: #{pyramid2_forward.14} parent=0 // pred_check
    _
  $region15: #{pyramid2_forward.14} parent=0 // pred_check_branch
    %172 = sbr.rel (0) target = $region17
  $region16: #{pyramid2_forward.14} parent=0 // pred_region
    _
  $region17: #{pyramid2_forward.14} parent=0 // pred_fallthru
    _
  // Predicated region
  $region18: #{pyramid2_forward.14} parent=0 // pred_check
    _
  $region19: #{pyramid2_forward.14} parent=0 // pred_check_branch
    %174 = sbr.rel (0) target = $region21
  $region20: #{pyramid2_forward.14} parent=0 // pred_region
    _
  $region21: #{pyramid2_forward.14} parent=0 // pred_fallthru
    _

// kernel: pyramid2_forward.15
$region0: #{pyramid2_forward.15}
  #allocation0 [shape = 'u32[]', space=smem, size = 0x4, offset = 0x4, fixed_abs, tag = 'smem constant byte address 0x4 - core index']
  #allocation1 [shape = 'u32[144,128]{1,0:T(1,128)}', space=vmem, size = 0x12000, scoped, tag = 'internal scratch']
  %s0 = inlined_call_operand.vmem [shape: f32[64,512], index: 0, kind: input, shape index: {}]
  %s1 = inlined_call_operand.vmem [shape: f32[512,32], index: 1, kind: input, shape index: {}]
  %s2 = inlined_call_operand.vmem [shape: f32[64,1], index: 2, kind: input, shape index: {}]
  %s3 = inlined_call_operand.vmem [shape: f32[64,32], index: 3, kind: output, shape index: {}]
  %s4 = sld [smem:[#allocation0]]
  $region22: #{pyramid2_forward.15} parent=0
    _
  %s6 = ssub.s32 1, %s4
  %s7 = scalar_select 0, %s6, %s4
  // Predicated region
  $region2: #{pyramid2_forward.15} parent=0 // pred_check
    _
  $region3: #{pyramid2_forward.15} parent=0 // pred_check_branch
    %9 = sbr.rel (0) target = $region5
  $region4: #{pyramid2_forward.15} parent=0 // pred_region
    _
  $region5: #{pyramid2_forward.15} parent=0 // pred_fallthru
    _
  // Predicated region
  $region6: #{pyramid2_forward.15} parent=0 // pred_check
    _
  $region7: #{pyramid2_forward.15} parent=0 // pred_check_branch
    %11 = sbr.rel (0) target = $region9
  $region8: #{pyramid2_forward.15} parent=0 // pred_region
    _
  $region9: #{pyramid2_forward.15} parent=0 // pred_fallthru
    _
  // Predicated region
  $region10: #{pyramid2_forward.15} parent=0 // pred_check
    _
  $region11: #{pyramid2_forward.15} parent=0 // pred_check_branch
    %13 = sbr.rel (0) target = $region13
  $region12: #{pyramid2_forward.15} parent=0 // pred_region
    _
  $region13: #{pyramid2_forward.15} parent=0 // pred_fallthru
    _
  %v14 = vld [vmem:[%s0] sm:$0xff]
  %v15 = vld [vmem:[%s0 + $0x8] sm:$0xff]
  %v16 = vld [vmem:[%s0 + $0x10] sm:$0xff]
  %v17 = vld [vmem:[%s0 + $0x18] sm:$0xff]
  %v18 = vld [vmem:[%s0 + $0x20] sm:$0xff]
  %v19 = vld [vmem:[%s0 + $0x28] sm:$0xff]
  %v20 = vld [vmem:[%s0 + $0x30] sm:$0xff]
  %v21 = vld [vmem:[%s0 + $0x38] sm:$0xff]
  %v22 = vld [vmem:[%s0 + $0x40] sm:$0xff]
  %v23 = vld [vmem:[%s0 + $0x48] sm:$0xff]
  %v24 = vld [vmem:[%s0 + $0x50] sm:$0xff]
  %v25 = vld [vmem:[%s0 + $0x58] sm:$0xff]
  %v26 = vld [vmem:[%s0 + $0x60] sm:$0xff]
  %v27 = vld [vmem:[%s0 + $0x68] sm:$0xff]
  %v28 = vld [vmem:[%s0 + $0x70] sm:$0xff]
  %v29 = vld [vmem:[%s0 + $0x78] sm:$0xff]
  %v30 = vld [vmem:[%s0 + $0x80] sm:$0xff]
  %v31 = vld [vmem:[%s0 + $0x88] sm:$0xff]
  %v32 = vld [vmem:[%s0 + $0x90] sm:$0xff]
  %v33 = vld [vmem:[%s0 + $0x98] sm:$0xff]
  %v34 = vld [vmem:[%s0 + $0xa0] sm:$0xff]
  %v35 = vld [vmem:[%s0 + $0xa8] sm:$0xff]
  %v36 = vld [vmem:[%s0 + $0xb0] sm:$0xff]
  %v37 = vld [vmem:[%s0 + $0xb8] sm:$0xff]
  %v38 = vld [vmem:[%s0 + $0xc0] sm:$0xff]
  %v39 = vld [vmem:[%s0 + $0xc8] sm:$0xff]
  %v40 = vld [vmem:[%s0 + $0xd0] sm:$0xff]
  %v41 = vld [vmem:[%s0 + $0xd8] sm:$0xff]
  %v42 = vld [vmem:[%s0 + $0xe0] sm:$0xff]
  %v43 = vld [vmem:[%s0 + $0xe8] sm:$0xff]
  %v44 = vld [vmem:[%s0 + $0xf0] sm:$0xff]
  %v45 = vld [vmem:[%s0 + $0xf8] sm:$0xff]
  %v46 = vld [vmem:[%s1] sm:$0xff]
  %v47 = vld [vmem:[%s1 + $0x8] sm:$0xff]
  %v48 = vld [vmem:[%s1 + $0x10] sm:$0xff]
  %v49 = vld [vmem:[%s1 + $0x18] sm:$0xff]
  %v50 = vld [vmem:[%s1 + $0x20] sm:$0xff]
  %v51 = vld [vmem:[%s1 + $0x28] sm:$0xff]
  %v52 = vld [vmem:[%s1 + $0x30] sm:$0xff]
  %v53 = vld [vmem:[%s1 + $0x38] sm:$0xff]
  %v54 = vld [vmem:[%s1 + $0x40] sm:$0xff]
  %v55 = vld [vmem:[%s1 + $0x48] sm:$0xff]
  %v56 = vld [vmem:[%s1 + $0x50] sm:$0xff]
  %v57 = vld [vmem:[%s1 + $0x58] sm:$0xff]
  %v58 = vld [vmem:[%s1 + $0x60] sm:$0xff]
  %v59 = vld [vmem:[%s1 + $0x68] sm:$0xff]
  %v60 = vld [vmem:[%s1 + $0x70] sm:$0xff]
  %v61 = vld [vmem:[%s1 + $0x78] sm:$0xff]
  %v62 = vld [vmem:[%s1 + $0x80] sm:$0xff]
  %v63 = vld [vmem:[%s1 + $0x88] sm:$0xff]
  %v64 = vld [vmem:[%s1 + $0x90] sm:$0xff]
  %v65 = vld [vmem:[%s1 + $0x98] sm:$0xff]
  %v66 = vld [vmem:[%s1 + $0xa0] sm:$0xff]
  %v67 = vld [vmem:[%s1 + $0xa8] sm:$0xff]
  %v68 = vld [vmem:[%s1 + $0xb0] sm:$0xff]
  %v69 = vld [vmem:[%s1 + $0xb8] sm:$0xff]
  %v70 = vld [vmem:[%s1 + $0xc0] sm:$0xff]
  %v71 = vld [vmem:[%s1 + $0xc8] sm:$0xff]
  %v72 = vld [vmem:[%s1 + $0xd0] sm:$0xff]
  %v73 = vld [vmem:[%s1 + $0xd8] sm:$0xff]
  %v74 = vld [vmem:[%s1 + $0xe0] sm:$0xff]
  %v75 = vld [vmem:[%s1 + $0xe8] sm:$0xff]
  %v76 = vld [vmem:[%s1 + $0xf0] sm:$0xff]
  %v77 = vld [vmem:[%s1 + $0xf8] sm:$0xff]
  %v78 = vld [vmem:[%s1 + $0x100] sm:$0xff]
  %v79 = vld [vmem:[%s1 + $0x108] sm:$0xff]
  %v80 = vld [vmem:[%s1 + $0x110] sm:$0xff]
  %v81 = vld [vmem:[%s1 + $0x118] sm:$0xff]
  %v82 = vld [vmem:[%s1 + $0x120] sm:$0xff]
  %v83 = vld [vmem:[%s1 + $0x128] sm:$0xff]
  %v84 = vld [vmem:[%s1 + $0x130] sm:$0xff]
  %v85 = vld [vmem:[%s1 + $0x138] sm:$0xff]
  %v86 = vld [vmem:[%s1 + $0x140] sm:$0xff]
  %v87 = vld [vmem:[%s1 + $0x148] sm:$0xff]
  %v88 = vld [vmem:[%s1 + $0x150] sm:$0xff]
  %v89 = vld [vmem:[%s1 + $0x158] sm:$0xff]
  %v90 = vld [vmem:[%s1 + $0x160] sm:$0xff]
  %v91 = vld [vmem:[%s1 + $0x168] sm:$0xff]
  %v92 = vld [vmem:[%s1 + $0x170] sm:$0xff]
  %v93 = vld [vmem:[%s1 + $0x178] sm:$0xff]
  %v94 = vld [vmem:[%s1 + $0x180] sm:$0xff]
  %v95 = vld [vmem:[%s1 + $0x188] sm:$0xff]
  %v96 = vld [vmem:[%s1 + $0x190] sm:$0xff]
  %v97 = vld [vmem:[%s1 + $0x198] sm:$0xff]
  %v98 = vld [vmem:[%s1 + $0x1a0] sm:$0xff]
  %v99 = vld [vmem:[%s1 + $0x1a8] sm:$0xff]
  %v100 = vld [vmem:[%s1 + $0x1b0] sm:$0xff]
  %v101 = vld [vmem:[%s1 + $0x1b8] sm:$0xff]
  %v102 = vld [vmem:[%s1 + $0x1c0] sm:$0xff]
  %v103 = vld [vmem:[%s1 + $0x1c8] sm:$0xff]
  %v104 = vld [vmem:[%s1 + $0x1d0] sm:$0xff]
  %v105 = vld [vmem:[%s1 + $0x1d8] sm:$0xff]
  %v106 = vld [vmem:[%s1 + $0x1e0] sm:$0xff]
  %v107 = vld [vmem:[%s1 + $0x1e8] sm:$0xff]
  %v108 = vld [vmem:[%s1 + $0x1f0] sm:$0xff]
  %v109 = vld [vmem:[%s1 + $0x1f8] sm:$0xff]
  %v110 = vld [vmem:[%s2] sm:$0xff]
  %v111 = vld [vmem:[%s2 + $0x8] sm:$0xff]
  %v112 = vld [vmem:[%s2 + $0x10] sm:$0xff]
  %v113 = vld [vmem:[%s2 + $0x18] sm:$0xff]
  %v114 = vld [vmem:[%s2 + $0x20] sm:$0xff]
  %v115 = vld [vmem:[%s2 + $0x28] sm:$0xff]
  %v116 = vld [vmem:[%s2 + $0x30] sm:$0xff]
  %v117 = vld [vmem:[%s2 + $0x38] sm:$0xff]
  %119 = vset.pattern.permute.xlu0 0
  %120 = vperm.xlu0 %119, %v110
  %v121 = vpop.permute.xlu0 %120
  %124 = vset.pattern.permute.xlu0 0
  %125 = vperm.xlu0 %124, %v111
  %v126 = vpop.permute.xlu0 %125
  %129 = vset.pattern.permute.xlu0 0
  %130 = vperm.xlu0 %129, %v112
  %v131 = vpop.permute.xlu0 %130
  %134 = vset.pattern.permute.xlu0 0
  %135 = vperm.xlu0 %134, %v113
  %v136 = vpop.permute.xlu0 %135
  %139 = vset.pattern.permute.xlu0 0
  %140 = vperm.xlu0 %139, %v114
  %v141 = vpop.permute.xlu0 %140
  %144 = vset.pattern.permute.xlu0 0
  %145 = vperm.xlu0 %144, %v115
  %v146 = vpop.permute.xlu0 %145
  %149 = vset.pattern.permute.xlu0 0
  %150 = vperm.xlu0 %149, %v116
  %v151 = vpop.permute.xlu0 %150
  %154 = vset.pattern.permute.xlu0 0
  %155 = vperm.xlu0 %154, %v117
  %v156 = vpop.permute.xlu0 %155
  %158 = vmatprep.subr.mxu0 0.0
  %159 = vmatpush1.msra.mxu0 %v46
  %160 = vmatprep.subr.mxu0 0.0
  %161 = vmatpush1.msra.mxu0 %v47
  %162 = vmatprep.subr.mxu0 0.0
  %163 = vmatpush1.msra.mxu0 %v48
  %164 = vmatprep.subr.mxu0 0.0
  %165 = vmatpush1.msra.mxu0 %v49
  %166 = vmatprep.subr.mxu0 0.0
  %167 = vmatpush1.msra.mxu0 %v50
  %168 = vmatprep.subr.mxu0 0.0
  %169 = vmatpush1.msra.mxu0 %v51
  %170 = vmatprep.subr.mxu0 0.0
  %171 = vmatpush1.msra.mxu0 %v52
  %172 = vmatprep.subr.mxu0 0.0
  %173 = vmatpush1.msra.mxu0 %v53
  %174 = vmatprep.subr.mxu0 0.0
  %175 = vmatpush1.msra.mxu0 %v54
  %176 = vmatprep.subr.mxu0 0.0
  %177 = vmatpush1.msra.mxu0 %v55
  %178 = vmatprep.subr.mxu0 0.0
  %179 = vmatpush1.msra.mxu0 %v56
  %180 = vmatprep.subr.mxu0 0.0
  %181 = vmatpush1.msra.mxu0 %v57
  %182 = vmatprep.subr.mxu0 0.0
  %183 = vmatpush1.msra.mxu0 %v58
  %184 = vmatprep.subr.mxu0 0.0
  %185 = vmatpush1.msra.mxu0 %v59
  %186 = vmatprep.subr.mxu0 0.0
  %187 = vmatpush1.msra.mxu0 %v60
  %188 = vmatprep.subr.mxu0 0.0
  %189 = vmatpush1.msra.mxu0 %v61
  %190 = vmatprep.subr.mxu0 0.0
  %191 = vmatpush1.msra.mxu0 %v62
  %192 = vmatprep.subr.mxu0 0.0
  %193 = vmatpush1.msra.mxu0 %v63
  %194 = vmatprep.subr.mxu0 0.0
  %195 = vmatpush1.msra.mxu0 %v64
  %196 = vmatprep.subr.mxu0 0.0
  %197 = vmatpush1.msra.mxu0 %v65
  %198 = vmatprep.subr.mxu0 0.0
  %199 = vmatpush1.msra.mxu0 %v66
  %200 = vmatprep.subr.mxu0 0.0
  %201 = vmatpush1.msra.mxu0 %v67
  %202 = vmatprep.subr.mxu0 0.0
  %203 = vmatpush1.msra.mxu0 %v68
  %204 = vmatprep.subr.mxu0 0.0
  %205 = vmatpush1.msra.mxu0 %v69
  %206 = vmatprep.subr.mxu0 0.0
  %207 = vmatpush1.msra.mxu0 %v70
  %208 = vmatprep.subr.mxu0 0.0
  %209 = vmatpush1.msra.mxu0 %v71
  %210 = vmatprep.subr.mxu0 0.0
  %211 = vmatpush1.msra.mxu0 %v72
  %212 = vmatprep.subr.mxu0 0.0
  %213 = vmatpush1.msra.mxu0 %v73
  %214 = vmatprep.subr.mxu0 0.0
  %215 = vmatpush1.msra.mxu0 %v74
  %216 = vmatprep.subr.mxu0 0.0
  %217 = vmatpush1.msra.mxu0 %v75
  %218 = vmatprep.subr.mxu0 0.0
  %219 = vmatpush1.msra.mxu0 %v76
  %220 = vmatprep.subr.mxu0 0.0
  %221 = vmatpush1.msra.mxu0 %v77
  %222 = vmatprep.mubr.f32.mxu0 %v15
  %223 = vmatmul.mubr.f32.gmra.mrb[0].mxu0 %v14
  %v224 = vpop.f32.mrb[0].mxu0
  %v225 = vadd.f32 %v121, %v224
  %v226 = vpop.f32.mrb[0].mxu0
  %227 = vmatprep.mubr.f32.mxu0 %v19
  %228 = vmatmul.mubr.f32.gmra.mrb[0].mxu0 %v18
  %v229 = vpop.f32.mrb[0].mxu0
  %v230 = vadd.f32 %v126, %v229
  %v231 = vpop.f32.mrb[0].mxu0
  %232 = vmatprep.mubr.f32.mxu0 %v23
  %233 = vmatmul.mubr.f32.gmra.mrb[0].mxu0 %v22
  %v234 = vpop.f32.mrb[0].mxu0
  %v235 = vadd.f32 %v131, %v234
  %v236 = vpop.f32.mrb[0].mxu0
  %237 = vmatprep.mubr.f32.mxu0 %v27
  %238 = vmatmul.mubr.f32.gmra.mrb[0].mxu0 %v26
  %v239 = vpop.f32.mrb[0].mxu0
  %v240 = vadd.f32 %v136, %v239
  %v241 = vpop.f32.mrb[0].mxu0
  %242 = vmatprep.mubr.f32.mxu0 %v31
  %243 = vmatmul.mubr.f32.gmra.mrb[0].mxu0 %v30
  %v244 = vpop.f32.mrb[0].mxu0
  %v245 = vadd.f32 %v141, %v244
  %v246 = vpop.f32.mrb[0].mxu0
  %247 = vmatprep.mubr.f32.mxu0 %v35
  %248 = vmatmul.mubr.f32.gmra.mrb[0].mxu0 %v34
  %v249 = vpop.f32.mrb[0].mxu0
  %v250 = vadd.f32 %v146, %v249
  %v251 = vpop.f32.mrb[0].mxu0
  %252 = vmatprep.mubr.f32.mxu0 %v39
  %253 = vmatmul.mubr.f32.gmra.mrb[0].mxu0 %v38
  %v254 = vpop.f32.mrb[0].mxu0
  %v255 = vadd.f32 %v151, %v254
  %v256 = vpop.f32.mrb[0].mxu0
  %257 = vmatprep.mubr.f32.mxu0 %v43
  %258 = vmatmul.mubr.f32.gmra.mrb[0].mxu0 %v42
  %v259 = vpop.f32.mrb[0].mxu0
  %v260 = vadd.f32 %v156, %v259
  %v261 = vpop.f32.mrb[0].mxu0
  %262 = vdwg.mxu0
  %263 = vmatprep.subr.mxu0 0.0
  %264 = vmatpush1.msra.mxu0 %v78
  %265 = vmatprep.subr.mxu0 0.0
  %266 = vmatpush1.msra.mxu0 %v79
  %267 = vmatprep.subr.mxu0 0.0
  %268 = vmatpush1.msra.mxu0 %v80
  %269 = vmatprep.subr.mxu0 0.0
  %270 = vmatpush1.msra.mxu0 %v81
  %271 = vmatprep.subr.mxu0 0.0
  %272 = vmatpush1.msra.mxu0 %v82
  %273 = vmatprep.subr.mxu0 0.0
  %274 = vmatpush1.msra.mxu0 %v83
  %275 = vmatprep.subr.mxu0 0.0
  %276 = vmatpush1.msra.mxu0 %v84
  %277 = vmatprep.subr.mxu0 0.0
  %278 = vmatpush1.msra.mxu0 %v85
  %279 = vmatprep.subr.mxu0 0.0
  %280 = vmatpush1.msra.mxu0 %v86
  %281 = vmatprep.subr.mxu0 0.0
  %282 = vmatpush1.msra.mxu0 %v87
  %283 = vmatprep.subr.mxu0 0.0
  %284 = vmatpush1.msra.mxu0 %v88
  %285 = vmatprep.subr.mxu0 0.0
  %286 = vmatpush1.msra.mxu0 %v89
  %287 = vmatprep.subr.mxu0 0.0
  %288 = vmatpush1.msra.mxu0 %v90
  %289 = vmatprep.subr.mxu0 0.0
  %290 = vmatpush1.msra.mxu0 %v91
  %291 = vmatprep.subr.mxu0 0.0
  %292 = vmatpush1.msra.mxu0 %v92
  %293 = vmatprep.subr.mxu0 0.0
  %294 = vmatpush1.msra.mxu0 %v93
  %295 = vmatprep.subr.mxu0 0.0
  %296 = vmatpush1.msra.mxu0 %v94
  %297 = vmatprep.subr.mxu0 0.0
  %298 = vmatpush1.msra.mxu0 %v95
  %299 = vmatprep.subr.mxu0 0.0
  %300 = vmatpush1.msra.mxu0 %v96
  %301 = vmatprep.subr.mxu0 0.0
  %302 = vmatpush1.msra.mxu0 %v97
  %303 = vmatprep.subr.mxu0 0.0
  %304 = vmatpush1.msra.mxu0 %v98
  %305 = vmatprep.subr.mxu0 0.0
  %306 = vmatpush1.msra.mxu0 %v99
  %307 = vmatprep.subr.mxu0 0.0
  %308 = vmatpush1.msra.mxu0 %v100
  %309 = vmatprep.subr.mxu0 0.0
  %310 = vmatpush1.msra.mxu0 %v101
  %311 = vmatprep.subr.mxu0 0.0
  %312 = vmatpush1.msra.mxu0 %v102
  %313 = vmatprep.subr.mxu0 0.0
  %314 = vmatpush1.msra.mxu0 %v103
  %315 = vmatprep.subr.mxu0 0.0
  %316 = vmatpush1.msra.mxu0 %v104
  %317 = vmatprep.subr.mxu0 0.0
  %318 = vmatpush1.msra.mxu0 %v105
  %319 = vmatprep.subr.mxu0 0.0
  %320 = vmatpush1.msra.mxu0 %v106
  %321 = vmatprep.subr.mxu0 0.0
  %322 = vmatpush1.msra.mxu0 %v107
  %323 = vmatprep.subr.mxu0 0.0
  %324 = vmatpush1.msra.mxu0 %v108
  %325 = vmatprep.subr.mxu0 0.0
  %326 = vmatpush1.msra.mxu0 %v109
  %327 = vmatprep.mubr.f32.mxu0 %v17
  %328 = vmatmul.mubr.f32.gmra.mrb[0].mxu0 %v16
  %v329 = vpop.f32.mrb[0].mxu0
  %v330 = vadd.f32 %v225, %v329
  %v331 = vpop.f32.mrb[0].mxu0
  %332 = vmatprep.mubr.f32.mxu0 %v21
  %333 = vmatmul.mubr.f32.gmra.mrb[0].mxu0 %v20
  %v334 = vpop.f32.mrb[0].mxu0
  %v335 = vadd.f32 %v230, %v334
  %v336 = vpop.f32.mrb[0].mxu0
  %337 = vmatprep.mubr.f32.mxu0 %v25
  %338 = vmatmul.mubr.f32.gmra.mrb[0].mxu0 %v24
  %v339 = vpop.f32.mrb[0].mxu0
  %v340 = vadd.f32 %v235, %v339
  %v341 = vpop.f32.mrb[0].mxu0
  %342 = vmatprep.mubr.f32.mxu0 %v29
  %343 = vmatmul.mubr.f32.gmra.mrb[0].mxu0 %v28
  %v344 = vpop.f32.mrb[0].mxu0
  %v345 = vadd.f32 %v240, %v344
  %v346 = vpop.f32.mrb[0].mxu0
  %347 = vmatprep.mubr.f32.mxu0 %v33
  %348 = vmatmul.mubr.f32.gmra.mrb[0].mxu0 %v32
  %v349 = vpop.f32.mrb[0].mxu0
  %v350 = vadd.f32 %v245, %v349
  %v351 = vpop.f32.mrb[0].mxu0
  %352 = vmatprep.mubr.f32.mxu0 %v37
  %353 = vmatmul.mubr.f32.gmra.mrb[0].mxu0 %v36
  %v354 = vpop.f32.mrb[0].mxu0
  %v355 = vadd.f32 %v250, %v354
  %v356 = vpop.f32.mrb[0].mxu0
  %357 = vmatprep.mubr.f32.mxu0 %v41
  %358 = vmatmul.mubr.f32.gmra.mrb[0].mxu0 %v40
  %v359 = vpop.f32.mrb[0].mxu0
  %v360 = vadd.f32 %v255, %v359
  %v361 = vpop.f32.mrb[0].mxu0
  %362 = vmatprep.mubr.f32.mxu0 %v45
  %363 = vmatmul.mubr.f32.gmra.mrb[0].mxu0 %v44
  %v364 = vpop.f32.mrb[0].mxu0
  %v365 = vadd.f32 %v260, %v364
  %v366 = vpop.f32.mrb[0].mxu0
  %367 = vdwg.mxu0
  %v368 = vmax.f32 %v330, 0.0
  %v369 = vmax.f32 %v335, 0.0
  %v370 = vmax.f32 %v340, 0.0
  %v371 = vmax.f32 %v345, 0.0
  %v372 = vmax.f32 %v350, 0.0
  %v373 = vmax.f32 %v355, 0.0
  %v374 = vmax.f32 %v360, 0.0
  %v375 = vmax.f32 %v365, 0.0
  %vm376 = vcmask 261120
  %377 = vst.msk [vmem:[%s3] sm:$0xff] %vm376, %v368
  %378 = vst.msk [vmem:[%s3 + $0x8] sm:$0xff] %vm376, %v369
  %379 = vst.msk [vmem:[%s3 + $0x10] sm:$0xff] %vm376, %v370
  %380 = vst.msk [vmem:[%s3 + $0x18] sm:$0xff] %vm376, %v371
  %381 = vst.msk [vmem:[%s3 + $0x20] sm:$0xff] %vm376, %v372
  %382 = vst.msk [vmem:[%s3 + $0x28] sm:$0xff] %vm376, %v373
  %383 = vst.msk [vmem:[%s3 + $0x30] sm:$0xff] %vm376, %v374
  %384 = vst.msk [vmem:[%s3 + $0x38] sm:$0xff] %vm376, %v375
  // Predicated region
  $region14: #{pyramid2_forward.15} parent=0 // pred_check
    _
  $region15: #{pyramid2_forward.15} parent=0 // pred_check_branch
    %386 = sbr.rel (0) target = $region17
  $region16: #{pyramid2_forward.15} parent=0 // pred_region
    _
  $region17: #{pyramid2_forward.15} parent=0 // pred_fallthru
    _
  // Predicated region
  $region18: #{pyramid2_forward.15} parent=0 // pred_check
    _
  $region19: #{pyramid2_forward.15} parent=0 // pred_check_branch
    %388 = sbr.rel (0) target = $region21
  $region20: #{pyramid2_forward.15} parent=0 // pred_region
    _
  $region21: #{pyramid2_forward.15} parent=0 // pred_fallthru
    _

// kernel: pyramid2_forward.16
$region0: #{pyramid2_forward.16}
  #allocation0 [shape = 'u32[]', space=smem, size = 0x4, offset = 0x4, fixed_abs, tag = 'smem constant byte address 0x4 - core index']
  #allocation1 [shape = 'u32[144,128]{1,0:T(1,128)}', space=vmem, size = 0x12000, scoped, tag = 'internal scratch']
  %s0 = inlined_call_operand.vmem [shape: f32[64,1024], index: 0, kind: input, shape index: {}]
  %s1 = inlined_call_operand.vmem [shape: f32[1024,8], index: 1, kind: input, shape index: {}]
  %s2 = inlined_call_operand.vmem [shape: f32[64,1], index: 2, kind: input, shape index: {}]
  %s3 = inlined_call_operand.vmem [shape: f32[64,8], index: 3, kind: output, shape index: {}]
  %s4 = sld [smem:[#allocation0]]
  $region22: #{pyramid2_forward.16} parent=0
    _
  %s6 = ssub.s32 1, %s4
  %s7 = scalar_select 0, %s6, %s4
  // Predicated region
  $region2: #{pyramid2_forward.16} parent=0 // pred_check
    _
  $region3: #{pyramid2_forward.16} parent=0 // pred_check_branch
    %9 = sbr.rel (0) target = $region5
  $region4: #{pyramid2_forward.16} parent=0 // pred_region
    _
  $region5: #{pyramid2_forward.16} parent=0 // pred_fallthru
    _
  // Predicated region
  $region6: #{pyramid2_forward.16} parent=0 // pred_check
    _
  $region7: #{pyramid2_forward.16} parent=0 // pred_check_branch
    %11 = sbr.rel (0) target = $region9
  $region8: #{pyramid2_forward.16} parent=0 // pred_region
    _
  $region9: #{pyramid2_forward.16} parent=0 // pred_fallthru
    _
  // Predicated region
  $region10: #{pyramid2_forward.16} parent=0 // pred_check
    _
  $region11: #{pyramid2_forward.16} parent=0 // pred_check_branch
    %13 = sbr.rel (0) target = $region13
  $region12: #{pyramid2_forward.16} parent=0 // pred_region
    _
  $region13: #{pyramid2_forward.16} parent=0 // pred_fallthru
    _
  %v14 = vld [vmem:[%s0] sm:$0xff]
  %v15 = vld [vmem:[%s0 + $0x8] sm:$0xff]
  %v16 = vld [vmem:[%s0 + $0x10] sm:$0xff]
  %v17 = vld [vmem:[%s0 + $0x18] sm:$0xff]
  %v18 = vld [vmem:[%s0 + $0x20] sm:$0xff]
  %v19 = vld [vmem:[%s0 + $0x28] sm:$0xff]
  %v20 = vld [vmem:[%s0 + $0x30] sm:$0xff]
  %v21 = vld [vmem:[%s0 + $0x38] sm:$0xff]
  %v22 = vld [vmem:[%s0 + $0x40] sm:$0xff]
  %v23 = vld [vmem:[%s0 + $0x48] sm:$0xff]
  %v24 = vld [vmem:[%s0 + $0x50] sm:$0xff]
  %v25 = vld [vmem:[%s0 + $0x58] sm:$0xff]
  %v26 = vld [vmem:[%s0 + $0x60] sm:$0xff]
  %v27 = vld [vmem:[%s0 + $0x68] sm:$0xff]
  %v28 = vld [vmem:[%s0 + $0x70] sm:$0xff]
  %v29 = vld [vmem:[%s0 + $0x78] sm:$0xff]
  %v30 = vld [vmem:[%s0 + $0x80] sm:$0xff]
  %v31 = vld [vmem:[%s0 + $0x88] sm:$0xff]
  %v32 = vld [vmem:[%s0 + $0x90] sm:$0xff]
  %v33 = vld [vmem:[%s0 + $0x98] sm:$0xff]
  %v34 = vld [vmem:[%s0 + $0xa0] sm:$0xff]
  %v35 = vld [vmem:[%s0 + $0xa8] sm:$0xff]
  %v36 = vld [vmem:[%s0 + $0xb0] sm:$0xff]
  %v37 = vld [vmem:[%s0 + $0xb8] sm:$0xff]
  %v38 = vld [vmem:[%s0 + $0xc0] sm:$0xff]
  %v39 = vld [vmem:[%s0 + $0xc8] sm:$0xff]
  %v40 = vld [vmem:[%s0 + $0xd0] sm:$0xff]
  %v41 = vld [vmem:[%s0 + $0xd8] sm:$0xff]
  %v42 = vld [vmem:[%s0 + $0xe0] sm:$0xff]
  %v43 = vld [vmem:[%s0 + $0xe8] sm:$0xff]
  %v44 = vld [vmem:[%s0 + $0xf0] sm:$0xff]
  %v45 = vld [vmem:[%s0 + $0xf8] sm:$0xff]
  %v46 = vld [vmem:[%s0 + $0x100] sm:$0xff]
  %v47 = vld [vmem:[%s0 + $0x108] sm:$0xff]
  %v48 = vld [vmem:[%s0 + $0x110] sm:$0xff]
  %v49 = vld [vmem:[%s0 + $0x118] sm:$0xff]
  %v50 = vld [vmem:[%s0 + $0x120] sm:$0xff]
  %v51 = vld [vmem:[%s0 + $0x128] sm:$0xff]
  %v52 = vld [vmem:[%s0 + $0x130] sm:$0xff]
  %v53 = vld [vmem:[%s0 + $0x138] sm:$0xff]
  %v54 = vld [vmem:[%s0 + $0x140] sm:$0xff]
  %v55 = vld [vmem:[%s0 + $0x148] sm:$0xff]
  %v56 = vld [vmem:[%s0 + $0x150] sm:$0xff]
  %v57 = vld [vmem:[%s0 + $0x158] sm:$0xff]
  %v58 = vld [vmem:[%s0 + $0x160] sm:$0xff]
  %v59 = vld [vmem:[%s0 + $0x168] sm:$0xff]
  %v60 = vld [vmem:[%s0 + $0x170] sm:$0xff]
  %v61 = vld [vmem:[%s0 + $0x178] sm:$0xff]
  %v62 = vld [vmem:[%s0 + $0x180] sm:$0xff]
  %v63 = vld [vmem:[%s0 + $0x188] sm:$0xff]
  %v64 = vld [vmem:[%s0 + $0x190] sm:$0xff]
  %v65 = vld [vmem:[%s0 + $0x198] sm:$0xff]
  %v66 = vld [vmem:[%s0 + $0x1a0] sm:$0xff]
  %v67 = vld [vmem:[%s0 + $0x1a8] sm:$0xff]
  %v68 = vld [vmem:[%s0 + $0x1b0] sm:$0xff]
  %v69 = vld [vmem:[%s0 + $0x1b8] sm:$0xff]
  %v70 = vld [vmem:[%s0 + $0x1c0] sm:$0xff]
  %v71 = vld [vmem:[%s0 + $0x1c8] sm:$0xff]
  %v72 = vld [vmem:[%s0 + $0x1d0] sm:$0xff]
  %v73 = vld [vmem:[%s0 + $0x1d8] sm:$0xff]
  %v74 = vld [vmem:[%s0 + $0x1e0] sm:$0xff]
  %v75 = vld [vmem:[%s0 + $0x1e8] sm:$0xff]
  %v76 = vld [vmem:[%s0 + $0x1f0] sm:$0xff]
  %v77 = vld [vmem:[%s0 + $0x1f8] sm:$0xff]
  %v78 = vld [vmem:[%s1] sm:$0xff]
  %v79 = vld [vmem:[%s1 + $0x8] sm:$0xff]
  %v80 = vld [vmem:[%s1 + $0x10] sm:$0xff]
  %v81 = vld [vmem:[%s1 + $0x18] sm:$0xff]
  %v82 = vld [vmem:[%s1 + $0x20] sm:$0xff]
  %v83 = vld [vmem:[%s1 + $0x28] sm:$0xff]
  %v84 = vld [vmem:[%s1 + $0x30] sm:$0xff]
  %v85 = vld [vmem:[%s1 + $0x38] sm:$0xff]
  %v86 = vld [vmem:[%s1 + $0x40] sm:$0xff]
  %v87 = vld [vmem:[%s1 + $0x48] sm:$0xff]
  %v88 = vld [vmem:[%s1 + $0x50] sm:$0xff]
  %v89 = vld [vmem:[%s1 + $0x58] sm:$0xff]
  %v90 = vld [vmem:[%s1 + $0x60] sm:$0xff]
  %v91 = vld [vmem:[%s1 + $0x68] sm:$0xff]
  %v92 = vld [vmem:[%s1 + $0x70] sm:$0xff]
  %v93 = vld [vmem:[%s1 + $0x78] sm:$0xff]
  %v94 = vld [vmem:[%s1 + $0x80] sm:$0xff]
  %v95 = vld [vmem:[%s1 + $0x88] sm:$0xff]
  %v96 = vld [vmem:[%s1 + $0x90] sm:$0xff]
  %v97 = vld [vmem:[%s1 + $0x98] sm:$0xff]
  %v98 = vld [vmem:[%s1 + $0xa0] sm:$0xff]
  %v99 = vld [vmem:[%s1 + $0xa8] sm:$0xff]
  %v100 = vld [vmem:[%s1 + $0xb0] sm:$0xff]
  %v101 = vld [vmem:[%s1 + $0xb8] sm:$0xff]
  %v102 = vld [vmem:[%s1 + $0xc0] sm:$0xff]
  %v103 = vld [vmem:[%s1 + $0xc8] sm:$0xff]
  %v104 = vld [vmem:[%s1 + $0xd0] sm:$0xff]
  %v105 = vld [vmem:[%s1 + $0xd8] sm:$0xff]
  %v106 = vld [vmem:[%s1 + $0xe0] sm:$0xff]
  %v107 = vld [vmem:[%s1 + $0xe8] sm:$0xff]
  %v108 = vld [vmem:[%s1 + $0xf0] sm:$0xff]
  %v109 = vld [vmem:[%s1 + $0xf8] sm:$0xff]
  %v110 = vld [vmem:[%s1 + $0x100] sm:$0xff]
  %v111 = vld [vmem:[%s1 + $0x108] sm:$0xff]
  %v112 = vld [vmem:[%s1 + $0x110] sm:$0xff]
  %v113 = vld [vmem:[%s1 + $0x118] sm:$0xff]
  %v114 = vld [vmem:[%s1 + $0x120] sm:$0xff]
  %v115 = vld [vmem:[%s1 + $0x128] sm:$0xff]
  %v116 = vld [vmem:[%s1 + $0x130] sm:$0xff]
  %v117 = vld [vmem:[%s1 + $0x138] sm:$0xff]
  %v118 = vld [vmem:[%s1 + $0x140] sm:$0xff]
  %v119 = vld [vmem:[%s1 + $0x148] sm:$0xff]
  %v120 = vld [vmem:[%s1 + $0x150] sm:$0xff]
  %v121 = vld [vmem:[%s1 + $0x158] sm:$0xff]
  %v122 = vld [vmem:[%s1 + $0x160] sm:$0xff]
  %v123 = vld [vmem:[%s1 + $0x168] sm:$0xff]
  %v124 = vld [vmem:[%s1 + $0x170] sm:$0xff]
  %v125 = vld [vmem:[%s1 + $0x178] sm:$0xff]
  %v126 = vld [vmem:[%s1 + $0x180] sm:$0xff]
  %v127 = vld [vmem:[%s1 + $0x188] sm:$0xff]
  %v128 = vld [vmem:[%s1 + $0x190] sm:$0xff]
  %v129 = vld [vmem:[%s1 + $0x198] sm:$0xff]
  %v130 = vld [vmem:[%s1 + $0x1a0] sm:$0xff]
  %v131 = vld [vmem:[%s1 + $0x1a8] sm:$0xff]
  %v132 = vld [vmem:[%s1 + $0x1b0] sm:$0xff]
  %v133 = vld [vmem:[%s1 + $0x1b8] sm:$0xff]
  %v134 = vld [vmem:[%s1 + $0x1c0] sm:$0xff]
  %v135 = vld [vmem:[%s1 + $0x1c8] sm:$0xff]
  %v136 = vld [vmem:[%s1 + $0x1d0] sm:$0xff]
  %v137 = vld [vmem:[%s1 + $0x1d8] sm:$0xff]
  %v138 = vld [vmem:[%s1 + $0x1e0] sm:$0xff]
  %v139 = vld [vmem:[%s1 + $0x1e8] sm:$0xff]
  %v140 = vld [vmem:[%s1 + $0x1f0] sm:$0xff]
  %v141 = vld [vmem:[%s1 + $0x1f8] sm:$0xff]
  %v142 = vld [vmem:[%s1 + $0x200] sm:$0xff]
  %v143 = vld [vmem:[%s1 + $0x208] sm:$0xff]
  %v144 = vld [vmem:[%s1 + $0x210] sm:$0xff]
  %v145 = vld [vmem:[%s1 + $0x218] sm:$0xff]
  %v146 = vld [vmem:[%s1 + $0x220] sm:$0xff]
  %v147 = vld [vmem:[%s1 + $0x228] sm:$0xff]
  %v148 = vld [vmem:[%s1 + $0x230] sm:$0xff]
  %v149 = vld [vmem:[%s1 + $0x238] sm:$0xff]
  %v150 = vld [vmem:[%s1 + $0x240] sm:$0xff]
  %v151 = vld [vmem:[%s1 + $0x248] sm:$0xff]
  %v152 = vld [vmem:[%s1 + $0x250] sm:$0xff]
  %v153 = vld [vmem:[%s1 + $0x258] sm:$0xff]
  %v154 = vld [vmem:[%s1 + $0x260] sm:$0xff]
  %v155 = vld [vmem:[%s1 + $0x268] sm:$0xff]
  %v156 = vld [vmem:[%s1 + $0x270] sm:$0xff]
  %v157 = vld [vmem:[%s1 + $0x278] sm:$0xff]
  %v158 = vld [vmem:[%s1 + $0x280] sm:$0xff]
  %v159 = vld [vmem:[%s1 + $0x288] sm:$0xff]
  %v160 = vld [vmem:[%s1 + $0x290] sm:$0xff]
  %v161 = vld [vmem:[%s1 + $0x298] sm:$0xff]
  %v162 = vld [vmem:[%s1 + $0x2a0] sm:$0xff]
  %v163 = vld [vmem:[%s1 + $0x2a8] sm:$0xff]
  %v164 = vld [vmem:[%s1 + $0x2b0] sm:$0xff]
  %v165 = vld [vmem:[%s1 + $0x2b8] sm:$0xff]
  %v166 = vld [vmem:[%s1 + $0x2c0] sm:$0xff]
  %v167 = vld [vmem:[%s1 + $0x2c8] sm:$0xff]
  %v168 = vld [vmem:[%s1 + $0x2d0] sm:$0xff]
  %v169 = vld [vmem:[%s1 + $0x2d8] sm:$0xff]
  %v170 = vld [vmem:[%s1 + $0x2e0] sm:$0xff]
  %v171 = vld [vmem:[%s1 + $0x2e8] sm:$0xff]
  %v172 = vld [vmem:[%s1 + $0x2f0] sm:$0xff]
  %v173 = vld [vmem:[%s1 + $0x2f8] sm:$0xff]
  %v174 = vld [vmem:[%s1 + $0x300] sm:$0xff]
  %v175 = vld [vmem:[%s1 + $0x308] sm:$0xff]
  %v176 = vld [vmem:[%s1 + $0x310] sm:$0xff]
  %v177 = vld [vmem:[%s1 + $0x318] sm:$0xff]
  %v178 = vld [vmem:[%s1 + $0x320] sm:$0xff]
  %v179 = vld [vmem:[%s1 + $0x328] sm:$0xff]
  %v180 = vld [vmem:[%s1 + $0x330] sm:$0xff]
  %v181 = vld [vmem:[%s1 + $0x338] sm:$0xff]
  %v182 = vld [vmem:[%s1 + $0x340] sm:$0xff]
  %v183 = vld [vmem:[%s1 + $0x348] sm:$0xff]
  %v184 = vld [vmem:[%s1 + $0x350] sm:$0xff]
  %v185 = vld [vmem:[%s1 + $0x358] sm:$0xff]
  %v186 = vld [vmem:[%s1 + $0x360] sm:$0xff]
  %v187 = vld [vmem:[%s1 + $0x368] sm:$0xff]
  %v188 = vld [vmem:[%s1 + $0x370] sm:$0xff]
  %v189 = vld [vmem:[%s1 + $0x378] sm:$0xff]
  %v190 = vld [vmem:[%s1 + $0x380] sm:$0xff]
  %v191 = vld [vmem:[%s1 + $0x388] sm:$0xff]
  %v192 = vld [vmem:[%s1 + $0x390] sm:$0xff]
  %v193 = vld [vmem:[%s1 + $0x398] sm:$0xff]
  %v194 = vld [vmem:[%s1 + $0x3a0] sm:$0xff]
  %v195 = vld [vmem:[%s1 + $0x3a8] sm:$0xff]
  %v196 = vld [vmem:[%s1 + $0x3b0] sm:$0xff]
  %v197 = vld [vmem:[%s1 + $0x3b8] sm:$0xff]
  %v198 = vld [vmem:[%s1 + $0x3c0] sm:$0xff]
  %v199 = vld [vmem:[%s1 + $0x3c8] sm:$0xff]
  %v200 = vld [vmem:[%s1 + $0x3d0] sm:$0xff]
  %v201 = vld [vmem:[%s1 + $0x3d8] sm:$0xff]
  %v202 = vld [vmem:[%s1 + $0x3e0] sm:$0xff]
  %v203 = vld [vmem:[%s1 + $0x3e8] sm:$0xff]
  %v204 = vld [vmem:[%s1 + $0x3f0] sm:$0xff]
  %v205 = vld [vmem:[%s1 + $0x3f8] sm:$0xff]
  %v206 = vld [vmem:[%s2] sm:$0xff]
  %v207 = vld [vmem:[%s2 + $0x8] sm:$0xff]
  %v208 = vld [vmem:[%s2 + $0x10] sm:$0xff]
  %v209 = vld [vmem:[%s2 + $0x18] sm:$0xff]
  %v210 = vld [vmem:[%s2 + $0x20] sm:$0xff]
  %v211 = vld [vmem:[%s2 + $0x28] sm:$0xff]
  %v212 = vld [vmem:[%s2 + $0x30] sm:$0xff]
  %v213 = vld [vmem:[%s2 + $0x38] sm:$0xff]
  %215 = vset.pattern.permute.xlu0 0
  %216 = vperm.xlu0 %215, %v206
  %v217 = vpop.permute.xlu0 %216
  %220 = vset.pattern.permute.xlu0 0
  %221 = vperm.xlu0 %220, %v207
  %v222 = vpop.permute.xlu0 %221
  %225 = vset.pattern.permute.xlu0 0
  %226 = vperm.xlu0 %225, %v208
  %v227 = vpop.permute.xlu0 %226
  %230 = vset.pattern.permute.xlu0 0
  %231 = vperm.xlu0 %230, %v209
  %v232 = vpop.permute.xlu0 %231
  %235 = vset.pattern.permute.xlu0 0
  %236 = vperm.xlu0 %235, %v210
  %v237 = vpop.permute.xlu0 %236
  %240 = vset.pattern.permute.xlu0 0
  %241 = vperm.xlu0 %240, %v211
  %v242 = vpop.permute.xlu0 %241
  %245 = vset.pattern.permute.xlu0 0
  %246 = vperm.xlu0 %245, %v212
  %v247 = vpop.permute.xlu0 %246
  %250 = vset.pattern.permute.xlu0 0
  %251 = vperm.xlu0 %250, %v213
  %v252 = vpop.permute.xlu0 %251
  %254 = vmatprep.subr.mxu0 0.0
  %255 = vmatpush1.msra.mxu0 %v78
  %256 = vmatprep.subr.mxu0 0.0
  %257 = vmatpush1.msra.mxu0 %v79
  %258 = vmatprep.subr.mxu0 0.0
  %259 = vmatpush1.msra.mxu0 %v80
  %260 = vmatprep.subr.mxu0 0.0
  %261 = vmatpush1.msra.mxu0 %v81
  %262 = vmatprep.subr.mxu0 0.0
  %263 = vmatpush1.msra.mxu0 %v82
  %264 = vmatprep.subr.mxu0 0.0
  %265 = vmatpush1.msra.mxu0 %v83
  %266 = vmatprep.subr.mxu0 0.0
  %267 = vmatpush1.msra.mxu0 %v84
  %268 = vmatprep.subr.mxu0 0.0
  %269 = vmatpush1.msra.mxu0 %v85
  %270 = vmatprep.subr.mxu0 0.0
  %271 = vmatpush1.msra.mxu0 %v86
  %272 = vmatprep.subr.mxu0 0.0
  %273 = vmatpush1.msra.mxu0 %v87
  %274 = vmatprep.subr.mxu0 0.0
  %275 = vmatpush1.msra.mxu0 %v88
  %276 = vmatprep.subr.mxu0 0.0
  %277 = vmatpush1.msra.mxu0 %v89
  %278 = vmatprep.subr.mxu0 0.0
  %279 = vmatpush1.msra.mxu0 %v90
  %280 = vmatprep.subr.mxu0 0.0
  %281 = vmatpush1.msra.mxu0 %v91
  %282 = vmatprep.subr.mxu0 0.0
  %283 = vmatpush1.msra.mxu0 %v92
  %284 = vmatprep.subr.mxu0 0.0
  %285 = vmatpush1.msra.mxu0 %v93
  %286 = vmatprep.subr.mxu0 0.0
  %287 = vmatpush1.msra.mxu0 %v94
  %288 = vmatprep.subr.mxu0 0.0
  %289 = vmatpush1.msra.mxu0 %v95
  %290 = vmatprep.subr.mxu0 0.0
  %291 = vmatpush1.msra.mxu0 %v96
  %292 = vmatprep.subr.mxu0 0.0
  %293 = vmatpush1.msra.mxu0 %v97
  %294 = vmatprep.subr.mxu0 0.0
  %295 = vmatpush1.msra.mxu0 %v98
  %296 = vmatprep.subr.mxu0 0.0
  %297 = vmatpush1.msra.mxu0 %v99
  %298 = vmatprep.subr.mxu0 0.0
  %299 = vmatpush1.msra.mxu0 %v100
  %300 = vmatprep.subr.mxu0 0.0
  %301 = vmatpush1.msra.mxu0 %v101
  %302 = vmatprep.subr.mxu0 0.0
  %303 = vmatpush1.msra.mxu0 %v102
  %304 = vmatprep.subr.mxu0 0.0
  %305 = vmatpush1.msra.mxu0 %v103
  %306 = vmatprep.subr.mxu0 0.0
  %307 = vmatpush1.msra.mxu0 %v104
  %308 = vmatprep.subr.mxu0 0.0
  %309 = vmatpush1.msra.mxu0 %v105
  %310 = vmatprep.subr.mxu0 0.0
  %311 = vmatpush1.msra.mxu0 %v106
  %312 = vmatprep.subr.mxu0 0.0
  %313 = vmatpush1.msra.mxu0 %v107
  %314 = vmatprep.subr.mxu0 0.0
  %315 = vmatpush1.msra.mxu0 %v108
  %316 = vmatprep.subr.mxu0 0.0
  %317 = vmatpush1.msra.mxu0 %v109
  %318 = vmatprep.mubr.f32.mxu0 %v15
  %319 = vmatmul.mubr.f32.gmra.mrb[0].mxu0 %v14
  %v320 = vpop.f32.mrb[0].mxu0
  %v321 = vadd.f32 %v217, %v320
  %v322 = vpop.f32.mrb[0].mxu0
  %323 = vmatprep.mubr.f32.mxu0 %v23
  %324 = vmatmul.mubr.f32.gmra.mrb[0].mxu0 %v22
  %v325 = vpop.f32.mrb[0].mxu0
  %v326 = vadd.f32 %v222, %v325
  %v327 = vpop.f32.mrb[0].mxu0
  %328 = vmatprep.mubr.f32.mxu0 %v31
  %329 = vmatmul.mubr.f32.gmra.mrb[0].mxu0 %v30
  %v330 = vpop.f32.mrb[0].mxu0
  %v331 = vadd.f32 %v227, %v330
  %v332 = vpop.f32.mrb[0].mxu0
  %333 = vmatprep.mubr.f32.mxu0 %v39
  %334 = vmatmul.mubr.f32.gmra.mrb[0].mxu0 %v38
  %v335 = vpop.f32.mrb[0].mxu0
  %v336 = vadd.f32 %v232, %v335
  %v337 = vpop.f32.mrb[0].mxu0
  %338 = vmatprep.mubr.f32.mxu0 %v47
  %339 = vmatmul.mubr.f32.gmra.mrb[0].mxu0 %v46
  %v340 = vpop.f32.mrb[0].mxu0
  %v341 = vadd.f32 %v237, %v340
  %v342 = vpop.f32.mrb[0].mxu0
  %343 = vmatprep.mubr.f32.mxu0 %v55
  %344 = vmatmul.mubr.f32.gmra.mrb[0].mxu0 %v54
  %v345 = vpop.f32.mrb[0].mxu0
  %v346 = vadd.f32 %v242, %v345
  %v347 = vpop.f32.mrb[0].mxu0
  %348 = vmatprep.mubr.f32.mxu0 %v63
  %349 = vmatmul.mubr.f32.gmra.mrb[0].mxu0 %v62
  %v350 = vpop.f32.mrb[0].mxu0
  %v351 = vadd.f32 %v247, %v350
  %v352 = vpop.f32.mrb[0].mxu0
  %353 = vmatprep.mubr.f32.mxu0 %v71
  %354 = vmatmul.mubr.f32.gmra.mrb[0].mxu0 %v70
  %v355 = vpop.f32.mrb[0].mxu0
  %v356 = vadd.f32 %v252, %v355
  %v357 = vpop.f32.mrb[0].mxu0
  %358 = vdwg.mxu0
  %359 = vmatprep.subr.mxu0 0.0
  %360 = vmatpush1.msra.mxu0 %v110
  %361 = vmatprep.subr.mxu0 0.0
  %362 = vmatpush1.msra.mxu0 %v111
  %363 = vmatprep.subr.mxu0 0.0
  %364 = vmatpush1.msra.mxu0 %v112
  %365 = vmatprep.subr.mxu0 0.0
  %366 = vmatpush1.msra.mxu0 %v113
  %367 = vmatprep.subr.mxu0 0.0
  %368 = vmatpush1.msra.mxu0 %v114
  %369 = vmatprep.subr.mxu0 0.0
  %370 = vmatpush1.msra.mxu0 %v115
  %371 = vmatprep.subr.mxu0 0.0
  %372 = vmatpush1.msra.mxu0 %v116
  %373 = vmatprep.subr.mxu0 0.0
  %374 = vmatpush1.msra.mxu0 %v117
  %375 = vmatprep.subr.mxu0 0.0
  %376 = vmatpush1.msra.mxu0 %v118
  %377 = vmatprep.subr.mxu0 0.0
  %378 = vmatpush1.msra.mxu0 %v119
  %379 = vmatprep.subr.mxu0 0.0
  %380 = vmatpush1.msra.mxu0 %v120
  %381 = vmatprep.subr.mxu0 0.0
  %382 = vmatpush1.msra.mxu0 %v121
  %383 = vmatprep.subr.mxu0 0.0
  %384 = vmatpush1.msra.mxu0 %v122
  %385 = vmatprep.subr.mxu0 0.0
  %386 = vmatpush1.msra.mxu0 %v123
  %387 = vmatprep.subr.mxu0 0.0
  %388 = vmatpush1.msra.mxu0 %v124
  %389 = vmatprep.subr.mxu0 0.0
  %390 = vmatpush1.msra.mxu0 %v125
  %391 = vmatprep.subr.mxu0 0.0
  %392 = vmatpush1.msra.mxu0 %v126
  %393 = vmatprep.subr.mxu0 0.0
  %394 = vmatpush1.msra.mxu0 %v127
  %395 = vmatprep.subr.mxu0 0.0
  %396 = vmatpush1.msra.mxu0 %v128
  %397 = vmatprep.subr.mxu0 0.0
  %398 = vmatpush1.msra.mxu0 %v129
  %399 = vmatprep.subr.mxu0 0.0
  %400 = vmatpush1.msra.mxu0 %v130
  %401 = vmatprep.subr.mxu0 0.0
  %402 = vmatpush1.msra.mxu0 %v131
  %403 = vmatprep.subr.mxu0 0.0
  %404 = vmatpush1.msra.mxu0 %v132
  %405 = vmatprep.subr.mxu0 0.0
  %406 = vmatpush1.msra.mxu0 %v133
  %407 = vmatprep.subr.mxu0 0.0
  %408 = vmatpush1.msra.mxu0 %v134
  %409 = vmatprep.subr.mxu0 0.0
  %410 = vmatpush1.msra.mxu0 %v135
  %411 = vmatprep.subr.mxu0 0.0
  %412 = vmatpush1.msra.mxu0 %v136
  %413 = vmatprep.subr.mxu0 0.0
  %414 = vmatpush1.msra.mxu0 %v137
  %415 = vmatprep.subr.mxu0 0.0
  %416 = vmatpush1.msra.mxu0 %v138
  %417 = vmatprep.subr.mxu0 0.0
  %418 = vmatpush1.msra.mxu0 %v139
  %419 = vmatprep.subr.mxu0 0.0
  %420 = vmatpush1.msra.mxu0 %v140
  %421 = vmatprep.subr.mxu0 0.0
  %422 = vmatpush1.msra.mxu0 %v141
  %423 = vmatprep.mubr.f32.mxu0 %v17
  %424 = vmatmul.mubr.f32.gmra.mrb[0].mxu0 %v16
  %v425 = vpop.f32.mrb[0].mxu0
  %v426 = vadd.f32 %v321, %v425
  %v427 = vpop.f32.mrb[0].mxu0
  %428 = vmatprep.mubr.f32.mxu0 %v25
  %429 = vmatmul.mubr.f32.gmra.mrb[0].mxu0 %v24
  %v430 = vpop.f32.mrb[0].mxu0
  %v431 = vadd.f32 %v326, %v430
  %v432 = vpop.f32.mrb[0].mxu0
  %433 = vmatprep.mubr.f32.mxu0 %v33
  %434 = vmatmul.mubr.f32.gmra.mrb[0].mxu0 %v32
  %v435 = vpop.f32.mrb[0].mxu0
  %v436 = vadd.f32 %v331, %v435
  %v437 = vpop.f32.mrb[0].mxu0
  %438 = vmatprep.mubr.f32.mxu0 %v41
  %439 = vmatmul.mubr.f32.gmra.mrb[0].mxu0 %v40
  %v440 = vpop.f32.mrb[0].mxu0
  %v441 = vadd.f32 %v336, %v440
  %v442 = vpop.f32.mrb[0].mxu0
  %443 = vmatprep.mubr.f32.mxu0 %v49
  %444 = vmatmul.mubr.f32.gmra.mrb[0].mxu0 %v48
  %v445 = vpop.f32.mrb[0].mxu0
  %v446 = vadd.f32 %v341, %v445
  %v447 = vpop.f32.mrb[0].mxu0
  %448 = vmatprep.mubr.f32.mxu0 %v57
  %449 = vmatmul.mubr.f32.gmra.mrb[0].mxu0 %v56
  %v450 = vpop.f32.mrb[0].mxu0
  %v451 = vadd.f32 %v346, %v450
  %v452 = vpop.f32.mrb[0].mxu0
  %453 = vmatprep.mubr.f32.mxu0 %v65
  %454 = vmatmul.mubr.f32.gmra.mrb[0].mxu0 %v64
  %v455 = vpop.f32.mrb[0].mxu0
  %v456 = vadd.f32 %v351, %v455
  %v457 = vpop.f32.mrb[0].mxu0
  %458 = vmatprep.mubr.f32.mxu0 %v73
  %459 = vmatmul.mubr.f32.gmra.mrb[0].mxu0 %v72
  %v460 = vpop.f32.mrb[0].mxu0
  %v461 = vadd.f32 %v356, %v460
  %v462 = vpop.f32.mrb[0].mxu0
  %463 = vdwg.mxu0
  %464 = vmatprep.subr.mxu0 0.0
  %465 = vmatpush1.msra.mxu0 %v142
  %466 = vmatprep.subr.mxu0 0.0
  %467 = vmatpush1.msra.mxu0 %v143
  %468 = vmatprep.subr.mxu0 0.0
  %469 = vmatpush1.msra.mxu0 %v144
  %470 = vmatprep.subr.mxu0 0.0
  %471 = vmatpush1.msra.mxu0 %v145
  %472 = vmatprep.subr.mxu0 0.0
  %473 = vmatpush1.msra.mxu0 %v146
  %474 = vmatprep.subr.mxu0 0.0
  %475 = vmatpush1.msra.mxu0 %v147
  %476 = vmatprep.subr.mxu0 0.0
  %477 = vmatpush1.msra.mxu0 %v148
  %478 = vmatprep.subr.mxu0 0.0
  %479 = vmatpush1.msra.mxu0 %v149
  %480 = vmatprep.subr.mxu0 0.0
  %481 = vmatpush1.msra.mxu0 %v150
  %482 = vmatprep.subr.mxu0 0.0
  %483 = vmatpush1.msra.mxu0 %v151
  %484 = vmatprep.subr.mxu0 0.0
  %485 = vmatpush1.msra.mxu0 %v152
  %486 = vmatprep.subr.mxu0 0.0
  %487 = vmatpush1.msra.mxu0 %v153
  %488 = vmatprep.subr.mxu0 0.0
  %489 = vmatpush1.msra.mxu0 %v154
  %490 = vmatprep.subr.mxu0 0.0
  %491 = vmatpush1.msra.mxu0 %v155
  %492 = vmatprep.subr.mxu0 0.0
  %493 = vmatpush1.msra.mxu0 %v156
  %494 = vmatprep.subr.mxu0 0.0
  %495 = vmatpush1.msra.mxu0 %v157
  %496 = vmatprep.subr.mxu0 0.0
  %497 = vmatpush1.msra.mxu0 %v158
  %498 = vmatprep.subr.mxu0 0.0
  %499 = vmatpush1.msra.mxu0 %v159
  %500 = vmatprep.subr.mxu0 0.0
  %501 = vmatpush1.msra.mxu0 %v160
  %502 = vmatprep.subr.mxu0 0.0
  %503 = vmatpush1.msra.mxu0 %v161
  %504 = vmatprep.subr.mxu0 0.0
  %505 = vmatpush1.msra.mxu0 %v162
  %506 = vmatprep.subr.mxu0 0.0
  %507 = vmatpush1.msra.mxu0 %v163
  %508 = vmatprep.subr.mxu0 0.0
  %509 = vmatpush1.msra.mxu0 %v164
  %510 = vmatprep.subr.mxu0 0.0
  %511 = vmatpush1.msra.mxu0 %v165
  %512 = vmatprep.subr.mxu0 0.0
  %513 = vmatpush1.msra.mxu0 %v166
  %514 = vmatprep.subr.mxu0 0.0
  %515 = vmatpush1.msra.mxu0 %v167
  %516 = vmatprep.subr.mxu0 0.0
  %517 = vmatpush1.msra.mxu0 %v168
  %518 = vmatprep.subr.mxu0 0.0
  %519 = vmatpush1.msra.mxu0 %v169
  %520 = vmatprep.subr.mxu0 0.0
  %521 = vmatpush1.msra.mxu0 %v170
  %522 = vmatprep.subr.mxu0 0.0
  %523 = vmatpush1.msra.mxu0 %v171
  %524 = vmatprep.subr.mxu0 0.0
  %525 = vmatpush1.msra.mxu0 %v172
  %526 = vmatprep.subr.mxu0 0.0
  %527 = vmatpush1.msra.mxu0 %v173
  %528 = vmatprep.mubr.f32.mxu0 %v19
  %529 = vmatmul.mubr.f32.gmra.mrb[0].mxu0 %v18
  %v530 = vpop.f32.mrb[0].mxu0
  %v531 = vadd.f32 %v426, %v530
  %v532 = vpop.f32.mrb[0].mxu0
  %533 = vmatprep.mubr.f32.mxu0 %v27
  %534 = vmatmul.mubr.f32.gmra.mrb[0].mxu0 %v26
  %v535 = vpop.f32.mrb[0].mxu0
  %v536 = vadd.f32 %v431, %v535
  %v537 = vpop.f32.mrb[0].mxu0
  %538 = vmatprep.mubr.f32.mxu0 %v35
  %539 = vmatmul.mubr.f32.gmra.mrb[0].mxu0 %v34
  %v540 = vpop.f32.mrb[0].mxu0
  %v541 = vadd.f32 %v436, %v540
  %v542 = vpop.f32.mrb[0].mxu0
  %543 = vmatprep.mubr.f32.mxu0 %v43
  %544 = vmatmul.mubr.f32.gmra.mrb[0].mxu0 %v42
  %v545 = vpop.f32.mrb[0].mxu0
  %v546 = vadd.f32 %v441, %v545
  %v547 = vpop.f32.mrb[0].mxu0
  %548 = vmatprep.mubr.f32.mxu0 %v51
  %549 = vmatmul.mubr.f32.gmra.mrb[0].mxu0 %v50
  %v550 = vpop.f32.mrb[0].mxu0
  %v551 = vadd.f32 %v446, %v550
  %v552 = vpop.f32.mrb[0].mxu0
  %553 = vmatprep.mubr.f32.mxu0 %v59
  %554 = vmatmul.mubr.f32.gmra.mrb[0].mxu0 %v58
  %v555 = vpop.f32.mrb[0].mxu0
  %v556 = vadd.f32 %v451, %v555
  %v557 = vpop.f32.mrb[0].mxu0
  %558 = vmatprep.mubr.f32.mxu0 %v67
  %559 = vmatmul.mubr.f32.gmra.mrb[0].mxu0 %v66
  %v560 = vpop.f32.mrb[0].mxu0
  %v561 = vadd.f32 %v456, %v560
  %v562 = vpop.f32.mrb[0].mxu0
  %563 = vmatprep.mubr.f32.mxu0 %v75
  %564 = vmatmul.mubr.f32.gmra.mrb[0].mxu0 %v74
  %v565 = vpop.f32.mrb[0].mxu0
  %v566 = vadd.f32 %v461, %v565
  %v567 = vpop.f32.mrb[0].mxu0
  %568 = vdwg.mxu0
  %569 = vmatprep.subr.mxu0 0.0
  %570 = vmatpush1.msra.mxu0 %v174
  %571 = vmatprep.subr.mxu0 0.0
  %572 = vmatpush1.msra.mxu0 %v175
  %573 = vmatprep.subr.mxu0 0.0
  %574 = vmatpush1.msra.mxu0 %v176
  %575 = vmatprep.subr.mxu0 0.0
  %576 = vmatpush1.msra.mxu0 %v177
  %577 = vmatprep.subr.mxu0 0.0
  %578 = vmatpush1.msra.mxu0 %v178
  %579 = vmatprep.subr.mxu0 0.0
  %580 = vmatpush1.msra.mxu0 %v179
  %581 = vmatprep.subr.mxu0 0.0
  %582 = vmatpush1.msra.mxu0 %v180
  %583 = vmatprep.subr.mxu0 0.0
  %584 = vmatpush1.msra.mxu0 %v181
  %585 = vmatprep.subr.mxu0 0.0
  %586 = vmatpush1.msra.mxu0 %v182
  %587 = vmatprep.subr.mxu0 0.0
  %588 = vmatpush1.msra.mxu0 %v183
  %589 = vmatprep.subr.mxu0 0.0
  %590 = vmatpush1.msra.mxu0 %v184
  %591 = vmatprep.subr.mxu0 0.0
  %592 = vmatpush1.msra.mxu0 %v185
  %593 = vmatprep.subr.mxu0 0.0
  %594 = vmatpush1.msra.mxu0 %v186
  %595 = vmatprep.subr.mxu0 0.0
  %596 = vmatpush1.msra.mxu0 %v187
  %597 = vmatprep.subr.mxu0 0.0
  %598 = vmatpush1.msra.mxu0 %v188
  %599 = vmatprep.subr.mxu0 0.0
  %600 = vmatpush1.msra.mxu0 %v189
  %601 = vmatprep.subr.mxu0 0.0
  %602 = vmatpush1.msra.mxu0 %v190
  %603 = vmatprep.subr.mxu0 0.0
  %604 = vmatpush1.msra.mxu0 %v191
  %605 = vmatprep.subr.mxu0 0.0
  %606 = vmatpush1.msra.mxu0 %v192
  %607 = vmatprep.subr.mxu0 0.0
  %608 = vmatpush1.msra.mxu0 %v193
  %609 = vmatprep.subr.mxu0 0.0
  %610 = vmatpush1.msra.mxu0 %v194
  %611 = vmatprep.subr.mxu0 0.0
  %612 = vmatpush1.msra.mxu0 %v195
  %613 = vmatprep.subr.mxu0 0.0
  %614 = vmatpush1.msra.mxu0 %v196
  %615 = vmatprep.subr.mxu0 0.0
  %616 = vmatpush1.msra.mxu0 %v197
  %617 = vmatprep.subr.mxu0 0.0
  %618 = vmatpush1.msra.mxu0 %v198
  %619 = vmatprep.subr.mxu0 0.0
  %620 = vmatpush1.msra.mxu0 %v199
  %621 = vmatprep.subr.mxu0 0.0
  %622 = vmatpush1.msra.mxu0 %v200
  %623 = vmatprep.subr.mxu0 0.0
  %624 = vmatpush1.msra.mxu0 %v201
  %625 = vmatprep.subr.mxu0 0.0
  %626 = vmatpush1.msra.mxu0 %v202
  %627 = vmatprep.subr.mxu0 0.0
  %628 = vmatpush1.msra.mxu0 %v203
  %629 = vmatprep.subr.mxu0 0.0
  %630 = vmatpush1.msra.mxu0 %v204
  %631 = vmatprep.subr.mxu0 0.0
  %632 = vmatpush1.msra.mxu0 %v205
  %633 = vmatprep.mubr.f32.mxu0 %v21
  %634 = vmatmul.mubr.f32.gmra.mrb[0].mxu0 %v20
  %v635 = vpop.f32.mrb[0].mxu0
  %v636 = vadd.f32 %v531, %v635
  %v637 = vpop.f32.mrb[0].mxu0
  %638 = vmatprep.mubr.f32.mxu0 %v29
  %639 = vmatmul.mubr.f32.gmra.mrb[0].mxu0 %v28
  %v640 = vpop.f32.mrb[0].mxu0
  %v641 = vadd.f32 %v536, %v640
  %v642 = vpop.f32.mrb[0].mxu0
  %643 = vmatprep.mubr.f32.mxu0 %v37
  %644 = vmatmul.mubr.f32.gmra.mrb[0].mxu0 %v36
  %v645 = vpop.f32.mrb[0].mxu0
  %v646 = vadd.f32 %v541, %v645
  %v647 = vpop.f32.mrb[0].mxu0
  %648 = vmatprep.mubr.f32.mxu0 %v45
  %649 = vmatmul.mubr.f32.gmra.mrb[0].mxu0 %v44
  %v650 = vpop.f32.mrb[0].mxu0
  %v651 = vadd.f32 %v546, %v650
  %v652 = vpop.f32.mrb[0].mxu0
  %653 = vmatprep.mubr.f32.mxu0 %v53
  %654 = vmatmul.mubr.f32.gmra.mrb[0].mxu0 %v52
  %v655 = vpop.f32.mrb[0].mxu0
  %v656 = vadd.f32 %v551, %v655
  %v657 = vpop.f32.mrb[0].mxu0
  %658 = vmatprep.mubr.f32.mxu0 %v61
  %659 = vmatmul.mubr.f32.gmra.mrb[0].mxu0 %v60
  %v660 = vpop.f32.mrb[0].mxu0
  %v661 = vadd.f32 %v556, %v660
  %v662 = vpop.f32.mrb[0].mxu0
  %663 = vmatprep.mubr.f32.mxu0 %v69
  %664 = vmatmul.mubr.f32.gmra.mrb[0].mxu0 %v68
  %v665 = vpop.f32.mrb[0].mxu0
  %v666 = vadd.f32 %v561, %v665
  %v667 = vpop.f32.mrb[0].mxu0
  %668 = vmatprep.mubr.f32.mxu0 %v77
  %669 = vmatmul.mubr.f32.gmra.mrb[0].mxu0 %v76
  %v670 = vpop.f32.mrb[0].mxu0
  %v671 = vadd.f32 %v566, %v670
  %v672 = vpop.f32.mrb[0].mxu0
  %673 = vdwg.mxu0
  %v674 = vmax.f32 %v636, 0.0
  %v675 = vmax.f32 %v641, 0.0
  %v676 = vmax.f32 %v646, 0.0
  %v677 = vmax.f32 %v651, 0.0
  %v678 = vmax.f32 %v656, 0.0
  %v679 = vmax.f32 %v661, 0.0
  %v680 = vmax.f32 %v666, 0.0
  %v681 = vmax.f32 %v671, 0.0
  %vm682 = vcmask 64512
  %683 = vst.msk [vmem:[%s3] sm:$0xff] %vm682, %v674
  %684 = vst.msk [vmem:[%s3 + $0x8] sm:$0xff] %vm682, %v675
  %685 = vst.msk [vmem:[%s3 + $0x10] sm:$0xff] %vm682, %v676
  %686 = vst.msk [vmem:[%s3 + $0x18] sm:$0xff] %vm682, %v677
  %687 = vst.msk [vmem:[%s3 + $0x20] sm:$0xff] %vm682, %v678
  %688 = vst.msk [vmem:[%s3 + $0x28] sm:$0xff] %vm682, %v679
  %689 = vst.msk [vmem:[%s3 + $0x30] sm:$0xff] %vm682, %v680
  %690 = vst.msk [vmem:[%s3 + $0x38] sm:$0xff] %vm682, %v681
  // Predicated region
  $region14: #{pyramid2_forward.16} parent=0 // pred_check
    _
  $region15: #{pyramid2_forward.16} parent=0 // pred_check_branch
    %692 = sbr.rel (0) target = $region17
  $region16: #{pyramid2_forward.16} parent=0 // pred_region
    _
  $region17: #{pyramid2_forward.16} parent=0 // pred_fallthru
    _
  // Predicated region
  $region18: #{pyramid2_forward.16} parent=0 // pred_check
    _
  $region19: #{pyramid2_forward.16} parent=0 // pred_check_branch
    %694 = sbr.rel (0) target = $region21
  $region20: #{pyramid2_forward.16} parent=0 // pred_region
    _
  $region21: #{pyramid2_forward.16} parent=0 // pred_fallthru
    _

// kernel: pyramid2_forward.17
$region0: #{pyramid2_forward.17}
  #allocation0 [shape = 'u32[]', space=smem, size = 0x4, offset = 0x4, fixed_abs, tag = 'smem constant byte address 0x4 - core index']
  #allocation1 [shape = 'u32[144,128]{1,0:T(1,128)}', space=vmem, size = 0x12000, scoped, tag = 'internal scratch']
  %s0 = inlined_call_operand.vmem [shape: f32[64,1024], index: 0, kind: input, shape index: {}]
  %s1 = inlined_call_operand.vmem [shape: f32[1024,2], index: 1, kind: input, shape index: {}]
  %s2 = inlined_call_operand.vmem [shape: f32[64,1], index: 2, kind: input, shape index: {}]
  %s3 = inlined_call_operand.vmem [shape: f32[64,2], index: 3, kind: output, shape index: {}]
  %s4 = sld [smem:[#allocation0]]
  $region22: #{pyramid2_forward.17} parent=0
    _
  %s6 = ssub.s32 1, %s4
  %s7 = scalar_select 0, %s6, %s4
  // Predicated region
  $region2: #{pyramid2_forward.17} parent=0 // pred_check
    _
  $region3: #{pyramid2_forward.17} parent=0 // pred_check_branch
    %9 = sbr.rel (0) target = $region5
  $region4: #{pyramid2_forward.17} parent=0 // pred_region
    _
  $region5: #{pyramid2_forward.17} parent=0 // pred_fallthru
    _
  // Predicated region
  $region6: #{pyramid2_forward.17} parent=0 // pred_check
    _
  $region7: #{pyramid2_forward.17} parent=0 // pred_check_branch
    %11 = sbr.rel (0) target = $region9
  $region8: #{pyramid2_forward.17} parent=0 // pred_region
    _
  $region9: #{pyramid2_forward.17} parent=0 // pred_fallthru
    _
  // Predicated region
  $region10: #{pyramid2_forward.17} parent=0 // pred_check
    _
  $region11: #{pyramid2_forward.17} parent=0 // pred_check_branch
    %13 = sbr.rel (0) target = $region13
  $region12: #{pyramid2_forward.17} parent=0 // pred_region
    _
  $region13: #{pyramid2_forward.17} parent=0 // pred_fallthru
    _
  %v14 = vld [vmem:[%s0] sm:$0xff]
  %v15 = vld [vmem:[%s0 + $0x8] sm:$0xff]
  %v16 = vld [vmem:[%s0 + $0x10] sm:$0xff]
  %v17 = vld [vmem:[%s0 + $0x18] sm:$0xff]
  %v18 = vld [vmem:[%s0 + $0x20] sm:$0xff]
  %v19 = vld [vmem:[%s0 + $0x28] sm:$0xff]
  %v20 = vld [vmem:[%s0 + $0x30] sm:$0xff]
  %v21 = vld [vmem:[%s0 + $0x38] sm:$0xff]
  %v22 = vld [vmem:[%s0 + $0x40] sm:$0xff]
  %v23 = vld [vmem:[%s0 + $0x48] sm:$0xff]
  %v24 = vld [vmem:[%s0 + $0x50] sm:$0xff]
  %v25 = vld [vmem:[%s0 + $0x58] sm:$0xff]
  %v26 = vld [vmem:[%s0 + $0x60] sm:$0xff]
  %v27 = vld [vmem:[%s0 + $0x68] sm:$0xff]
  %v28 = vld [vmem:[%s0 + $0x70] sm:$0xff]
  %v29 = vld [vmem:[%s0 + $0x78] sm:$0xff]
  %v30 = vld [vmem:[%s0 + $0x80] sm:$0xff]
  %v31 = vld [vmem:[%s0 + $0x88] sm:$0xff]
  %v32 = vld [vmem:[%s0 + $0x90] sm:$0xff]
  %v33 = vld [vmem:[%s0 + $0x98] sm:$0xff]
  %v34 = vld [vmem:[%s0 + $0xa0] sm:$0xff]
  %v35 = vld [vmem:[%s0 + $0xa8] sm:$0xff]
  %v36 = vld [vmem:[%s0 + $0xb0] sm:$0xff]
  %v37 = vld [vmem:[%s0 + $0xb8] sm:$0xff]
  %v38 = vld [vmem:[%s0 + $0xc0] sm:$0xff]
  %v39 = vld [vmem:[%s0 + $0xc8] sm:$0xff]
  %v40 = vld [vmem:[%s0 + $0xd0] sm:$0xff]
  %v41 = vld [vmem:[%s0 + $0xd8] sm:$0xff]
  %v42 = vld [vmem:[%s0 + $0xe0] sm:$0xff]
  %v43 = vld [vmem:[%s0 + $0xe8] sm:$0xff]
  %v44 = vld [vmem:[%s0 + $0xf0] sm:$0xff]
  %v45 = vld [vmem:[%s0 + $0xf8] sm:$0xff]
  %v46 = vld [vmem:[%s0 + $0x100] sm:$0xff]
  %v47 = vld [vmem:[%s0 + $0x108] sm:$0xff]
  %v48 = vld [vmem:[%s0 + $0x110] sm:$0xff]
  %v49 = vld [vmem:[%s0 + $0x118] sm:$0xff]
  %v50 = vld [vmem:[%s0 + $0x120] sm:$0xff]
  %v51 = vld [vmem:[%s0 + $0x128] sm:$0xff]
  %v52 = vld [vmem:[%s0 + $0x130] sm:$0xff]
  %v53 = vld [vmem:[%s0 + $0x138] sm:$0xff]
  %v54 = vld [vmem:[%s0 + $0x140] sm:$0xff]
  %v55 = vld [vmem:[%s0 + $0x148] sm:$0xff]
  %v56 = vld [vmem:[%s0 + $0x150] sm:$0xff]
  %v57 = vld [vmem:[%s0 + $0x158] sm:$0xff]
  %v58 = vld [vmem:[%s0 + $0x160] sm:$0xff]
  %v59 = vld [vmem:[%s0 + $0x168] sm:$0xff]
  %v60 = vld [vmem:[%s0 + $0x170] sm:$0xff]
  %v61 = vld [vmem:[%s0 + $0x178] sm:$0xff]
  %v62 = vld [vmem:[%s0 + $0x180] sm:$0xff]
  %v63 = vld [vmem:[%s0 + $0x188] sm:$0xff]
  %v64 = vld [vmem:[%s0 + $0x190] sm:$0xff]
  %v65 = vld [vmem:[%s0 + $0x198] sm:$0xff]
  %v66 = vld [vmem:[%s0 + $0x1a0] sm:$0xff]
  %v67 = vld [vmem:[%s0 + $0x1a8] sm:$0xff]
  %v68 = vld [vmem:[%s0 + $0x1b0] sm:$0xff]
  %v69 = vld [vmem:[%s0 + $0x1b8] sm:$0xff]
  %v70 = vld [vmem:[%s0 + $0x1c0] sm:$0xff]
  %v71 = vld [vmem:[%s0 + $0x1c8] sm:$0xff]
  %v72 = vld [vmem:[%s0 + $0x1d0] sm:$0xff]
  %v73 = vld [vmem:[%s0 + $0x1d8] sm:$0xff]
  %v74 = vld [vmem:[%s0 + $0x1e0] sm:$0xff]
  %v75 = vld [vmem:[%s0 + $0x1e8] sm:$0xff]
  %v76 = vld [vmem:[%s0 + $0x1f0] sm:$0xff]
  %v77 = vld [vmem:[%s0 + $0x1f8] sm:$0xff]
  %v78 = vld [vmem:[%s1] sm:$0xff]
  %v79 = vld [vmem:[%s1 + $0x8] sm:$0xff]
  %v80 = vld [vmem:[%s1 + $0x10] sm:$0xff]
  %v81 = vld [vmem:[%s1 + $0x18] sm:$0xff]
  %v82 = vld [vmem:[%s1 + $0x20] sm:$0xff]
  %v83 = vld [vmem:[%s1 + $0x28] sm:$0xff]
  %v84 = vld [vmem:[%s1 + $0x30] sm:$0xff]
  %v85 = vld [vmem:[%s1 + $0x38] sm:$0xff]
  %v86 = vld [vmem:[%s1 + $0x40] sm:$0xff]
  %v87 = vld [vmem:[%s1 + $0x48] sm:$0xff]
  %v88 = vld [vmem:[%s1 + $0x50] sm:$0xff]
  %v89 = vld [vmem:[%s1 + $0x58] sm:$0xff]
  %v90 = vld [vmem:[%s1 + $0x60] sm:$0xff]
  %v91 = vld [vmem:[%s1 + $0x68] sm:$0xff]
  %v92 = vld [vmem:[%s1 + $0x70] sm:$0xff]
  %v93 = vld [vmem:[%s1 + $0x78] sm:$0xff]
  %v94 = vld [vmem:[%s1 + $0x80] sm:$0xff]
  %v95 = vld [vmem:[%s1 + $0x88] sm:$0xff]
  %v96 = vld [vmem:[%s1 + $0x90] sm:$0xff]
  %v97 = vld [vmem:[%s1 + $0x98] sm:$0xff]
  %v98 = vld [vmem:[%s1 + $0xa0] sm:$0xff]
  %v99 = vld [vmem:[%s1 + $0xa8] sm:$0xff]
  %v100 = vld [vmem:[%s1 + $0xb0] sm:$0xff]
  %v101 = vld [vmem:[%s1 + $0xb8] sm:$0xff]
  %v102 = vld [vmem:[%s1 + $0xc0] sm:$0xff]
  %v103 = vld [vmem:[%s1 + $0xc8] sm:$0xff]
  %v104 = vld [vmem:[%s1 + $0xd0] sm:$0xff]
  %v105 = vld [vmem:[%s1 + $0xd8] sm:$0xff]
  %v106 = vld [vmem:[%s1 + $0xe0] sm:$0xff]
  %v107 = vld [vmem:[%s1 + $0xe8] sm:$0xff]
  %v108 = vld [vmem:[%s1 + $0xf0] sm:$0xff]
  %v109 = vld [vmem:[%s1 + $0xf8] sm:$0xff]
  %v110 = vld [vmem:[%s1 + $0x100] sm:$0xff]
  %v111 = vld [vmem:[%s1 + $0x108] sm:$0xff]
  %v112 = vld [vmem:[%s1 + $0x110] sm:$0xff]
  %v113 = vld [vmem:[%s1 + $0x118] sm:$0xff]
  %v114 = vld [vmem:[%s1 + $0x120] sm:$0xff]
  %v115 = vld [vmem:[%s1 + $0x128] sm:$0xff]
  %v116 = vld [vmem:[%s1 + $0x130] sm:$0xff]
  %v117 = vld [vmem:[%s1 + $0x138] sm:$0xff]
  %v118 = vld [vmem:[%s1 + $0x140] sm:$0xff]
  %v119 = vld [vmem:[%s1 + $0x148] sm:$0xff]
  %v120 = vld [vmem:[%s1 + $0x150] sm:$0xff]
  %v121 = vld [vmem:[%s1 + $0x158] sm:$0xff]
  %v122 = vld [vmem:[%s1 + $0x160] sm:$0xff]
  %v123 = vld [vmem:[%s1 + $0x168] sm:$0xff]
  %v124 = vld [vmem:[%s1 + $0x170] sm:$0xff]
  %v125 = vld [vmem:[%s1 + $0x178] sm:$0xff]
  %v126 = vld [vmem:[%s1 + $0x180] sm:$0xff]
  %v127 = vld [vmem:[%s1 + $0x188] sm:$0xff]
  %v128 = vld [vmem:[%s1 + $0x190] sm:$0xff]
  %v129 = vld [vmem:[%s1 + $0x198] sm:$0xff]
  %v130 = vld [vmem:[%s1 + $0x1a0] sm:$0xff]
  %v131 = vld [vmem:[%s1 + $0x1a8] sm:$0xff]
  %v132 = vld [vmem:[%s1 + $0x1b0] sm:$0xff]
  %v133 = vld [vmem:[%s1 + $0x1b8] sm:$0xff]
  %v134 = vld [vmem:[%s1 + $0x1c0] sm:$0xff]
  %v135 = vld [vmem:[%s1 + $0x1c8] sm:$0xff]
  %v136 = vld [vmem:[%s1 + $0x1d0] sm:$0xff]
  %v137 = vld [vmem:[%s1 + $0x1d8] sm:$0xff]
  %v138 = vld [vmem:[%s1 + $0x1e0] sm:$0xff]
  %v139 = vld [vmem:[%s1 + $0x1e8] sm:$0xff]
  %v140 = vld [vmem:[%s1 + $0x1f0] sm:$0xff]
  %v141 = vld [vmem:[%s1 + $0x1f8] sm:$0xff]
  %v142 = vld [vmem:[%s1 + $0x200] sm:$0xff]
  %v143 = vld [vmem:[%s1 + $0x208] sm:$0xff]
  %v144 = vld [vmem:[%s1 + $0x210] sm:$0xff]
  %v145 = vld [vmem:[%s1 + $0x218] sm:$0xff]
  %v146 = vld [vmem:[%s1 + $0x220] sm:$0xff]
  %v147 = vld [vmem:[%s1 + $0x228] sm:$0xff]
  %v148 = vld [vmem:[%s1 + $0x230] sm:$0xff]
  %v149 = vld [vmem:[%s1 + $0x238] sm:$0xff]
  %v150 = vld [vmem:[%s1 + $0x240] sm:$0xff]
  %v151 = vld [vmem:[%s1 + $0x248] sm:$0xff]
  %v152 = vld [vmem:[%s1 + $0x250] sm:$0xff]
  %v153 = vld [vmem:[%s1 + $0x258] sm:$0xff]
  %v154 = vld [vmem:[%s1 + $0x260] sm:$0xff]
  %v155 = vld [vmem:[%s1 + $0x268] sm:$0xff]
  %v156 = vld [vmem:[%s1 + $0x270] sm:$0xff]
  %v157 = vld [vmem:[%s1 + $0x278] sm:$0xff]
  %v158 = vld [vmem:[%s1 + $0x280] sm:$0xff]
  %v159 = vld [vmem:[%s1 + $0x288] sm:$0xff]
  %v160 = vld [vmem:[%s1 + $0x290] sm:$0xff]
  %v161 = vld [vmem:[%s1 + $0x298] sm:$0xff]
  %v162 = vld [vmem:[%s1 + $0x2a0] sm:$0xff]
  %v163 = vld [vmem:[%s1 + $0x2a8] sm:$0xff]
  %v164 = vld [vmem:[%s1 + $0x2b0] sm:$0xff]
  %v165 = vld [vmem:[%s1 + $0x2b8] sm:$0xff]
  %v166 = vld [vmem:[%s1 + $0x2c0] sm:$0xff]
  %v167 = vld [vmem:[%s1 + $0x2c8] sm:$0xff]
  %v168 = vld [vmem:[%s1 + $0x2d0] sm:$0xff]
  %v169 = vld [vmem:[%s1 + $0x2d8] sm:$0xff]
  %v170 = vld [vmem:[%s1 + $0x2e0] sm:$0xff]
  %v171 = vld [vmem:[%s1 + $0x2e8] sm:$0xff]
  %v172 = vld [vmem:[%s1 + $0x2f0] sm:$0xff]
  %v173 = vld [vmem:[%s1 + $0x2f8] sm:$0xff]
  %v174 = vld [vmem:[%s1 + $0x300] sm:$0xff]
  %v175 = vld [vmem:[%s1 + $0x308] sm:$0xff]
  %v176 = vld [vmem:[%s1 + $0x310] sm:$0xff]
  %v177 = vld [vmem:[%s1 + $0x318] sm:$0xff]
  %v178 = vld [vmem:[%s1 + $0x320] sm:$0xff]
  %v179 = vld [vmem:[%s1 + $0x328] sm:$0xff]
  %v180 = vld [vmem:[%s1 + $0x330] sm:$0xff]
  %v181 = vld [vmem:[%s1 + $0x338] sm:$0xff]
  %v182 = vld [vmem:[%s1 + $0x340] sm:$0xff]
  %v183 = vld [vmem:[%s1 + $0x348] sm:$0xff]
  %v184 = vld [vmem:[%s1 + $0x350] sm:$0xff]
  %v185 = vld [vmem:[%s1 + $0x358] sm:$0xff]
  %v186 = vld [vmem:[%s1 + $0x360] sm:$0xff]
  %v187 = vld [vmem:[%s1 + $0x368] sm:$0xff]
  %v188 = vld [vmem:[%s1 + $0x370] sm:$0xff]
  %v189 = vld [vmem:[%s1 + $0x378] sm:$0xff]
  %v190 = vld [vmem:[%s1 + $0x380] sm:$0xff]
  %v191 = vld [vmem:[%s1 + $0x388] sm:$0xff]
  %v192 = vld [vmem:[%s1 + $0x390] sm:$0xff]
  %v193 = vld [vmem:[%s1 + $0x398] sm:$0xff]
  %v194 = vld [vmem:[%s1 + $0x3a0] sm:$0xff]
  %v195 = vld [vmem:[%s1 + $0x3a8] sm:$0xff]
  %v196 = vld [vmem:[%s1 + $0x3b0] sm:$0xff]
  %v197 = vld [vmem:[%s1 + $0x3b8] sm:$0xff]
  %v198 = vld [vmem:[%s1 + $0x3c0] sm:$0xff]
  %v199 = vld [vmem:[%s1 + $0x3c8] sm:$0xff]
  %v200 = vld [vmem:[%s1 + $0x3d0] sm:$0xff]
  %v201 = vld [vmem:[%s1 + $0x3d8] sm:$0xff]
  %v202 = vld [vmem:[%s1 + $0x3e0] sm:$0xff]
  %v203 = vld [vmem:[%s1 + $0x3e8] sm:$0xff]
  %v204 = vld [vmem:[%s1 + $0x3f0] sm:$0xff]
  %v205 = vld [vmem:[%s1 + $0x3f8] sm:$0xff]
  %v206 = vld [vmem:[%s2] sm:$0xff]
  %v207 = vld [vmem:[%s2 + $0x8] sm:$0xff]
  %v208 = vld [vmem:[%s2 + $0x10] sm:$0xff]
  %v209 = vld [vmem:[%s2 + $0x18] sm:$0xff]
  %v210 = vld [vmem:[%s2 + $0x20] sm:$0xff]
  %v211 = vld [vmem:[%s2 + $0x28] sm:$0xff]
  %v212 = vld [vmem:[%s2 + $0x30] sm:$0xff]
  %v213 = vld [vmem:[%s2 + $0x38] sm:$0xff]
  %215 = vset.pattern.permute.xlu0 0
  %216 = vperm.xlu0 %215, %v206
  %v217 = vpop.permute.xlu0 %216
  %220 = vset.pattern.permute.xlu0 0
  %221 = vperm.xlu0 %220, %v207
  %v222 = vpop.permute.xlu0 %221
  %225 = vset.pattern.permute.xlu0 0
  %226 = vperm.xlu0 %225, %v208
  %v227 = vpop.permute.xlu0 %226
  %230 = vset.pattern.permute.xlu0 0
  %231 = vperm.xlu0 %230, %v209
  %v232 = vpop.permute.xlu0 %231
  %235 = vset.pattern.permute.xlu0 0
  %236 = vperm.xlu0 %235, %v210
  %v237 = vpop.permute.xlu0 %236
  %240 = vset.pattern.permute.xlu0 0
  %241 = vperm.xlu0 %240, %v211
  %v242 = vpop.permute.xlu0 %241
  %245 = vset.pattern.permute.xlu0 0
  %246 = vperm.xlu0 %245, %v212
  %v247 = vpop.permute.xlu0 %246
  %250 = vset.pattern.permute.xlu0 0
  %251 = vperm.xlu0 %250, %v213
  %v252 = vpop.permute.xlu0 %251
  %254 = vmatprep.subr.mxu0 0.0
  %255 = vmatpush1.msra.mxu0 %v78
  %256 = vmatprep.subr.mxu0 0.0
  %257 = vmatpush1.msra.mxu0 %v79
  %258 = vmatprep.subr.mxu0 0.0
  %259 = vmatpush1.msra.mxu0 %v80
  %260 = vmatprep.subr.mxu0 0.0
  %261 = vmatpush1.msra.mxu0 %v81
  %262 = vmatprep.subr.mxu0 0.0
  %263 = vmatpush1.msra.mxu0 %v82
  %264 = vmatprep.subr.mxu0 0.0
  %265 = vmatpush1.msra.mxu0 %v83
  %266 = vmatprep.subr.mxu0 0.0
  %267 = vmatpush1.msra.mxu0 %v84
  %268 = vmatprep.subr.mxu0 0.0
  %269 = vmatpush1.msra.mxu0 %v85
  %270 = vmatprep.subr.mxu0 0.0
  %271 = vmatpush1.msra.mxu0 %v86
  %272 = vmatprep.subr.mxu0 0.0
  %273 = vmatpush1.msra.mxu0 %v87
  %274 = vmatprep.subr.mxu0 0.0
  %275 = vmatpush1.msra.mxu0 %v88
  %276 = vmatprep.subr.mxu0 0.0
  %277 = vmatpush1.msra.mxu0 %v89
  %278 = vmatprep.subr.mxu0 0.0
  %279 = vmatpush1.msra.mxu0 %v90
  %280 = vmatprep.subr.mxu0 0.0
  %281 = vmatpush1.msra.mxu0 %v91
  %282 = vmatprep.subr.mxu0 0.0
  %283 = vmatpush1.msra.mxu0 %v92
  %284 = vmatprep.subr.mxu0 0.0
  %285 = vmatpush1.msra.mxu0 %v93
  %286 = vmatprep.subr.mxu0 0.0
  %287 = vmatpush1.msra.mxu0 %v94
  %288 = vmatprep.subr.mxu0 0.0
  %289 = vmatpush1.msra.mxu0 %v95
  %290 = vmatprep.subr.mxu0 0.0
  %291 = vmatpush1.msra.mxu0 %v96
  %292 = vmatprep.subr.mxu0 0.0
  %293 = vmatpush1.msra.mxu0 %v97
  %294 = vmatprep.subr.mxu0 0.0
  %295 = vmatpush1.msra.mxu0 %v98
  %296 = vmatprep.subr.mxu0 0.0
  %297 = vmatpush1.msra.mxu0 %v99
  %298 = vmatprep.subr.mxu0 0.0
  %299 = vmatpush1.msra.mxu0 %v100
  %300 = vmatprep.subr.mxu0 0.0
  %301 = vmatpush1.msra.mxu0 %v101
  %302 = vmatprep.subr.mxu0 0.0
  %303 = vmatpush1.msra.mxu0 %v102
  %304 = vmatprep.subr.mxu0 0.0
  %305 = vmatpush1.msra.mxu0 %v103
  %306 = vmatprep.subr.mxu0 0.0
  %307 = vmatpush1.msra.mxu0 %v104
  %308 = vmatprep.subr.mxu0 0.0
  %309 = vmatpush1.msra.mxu0 %v105
  %310 = vmatprep.subr.mxu0 0.0
  %311 = vmatpush1.msra.mxu0 %v106
  %312 = vmatprep.subr.mxu0 0.0
  %313 = vmatpush1.msra.mxu0 %v107
  %314 = vmatprep.subr.mxu0 0.0
  %315 = vmatpush1.msra.mxu0 %v108
  %316 = vmatprep.subr.mxu0 0.0
  %317 = vmatpush1.msra.mxu0 %v109
  %318 = vmatprep.mubr.f32.mxu0 %v15
  %319 = vmatmul.mubr.f32.gmra.mrb[0].mxu0 %v14
  %v320 = vpop.f32.mrb[0].mxu0
  %v321 = vadd.f32 %v217, %v320
  %v322 = vpop.f32.mrb[0].mxu0
  %323 = vmatprep.mubr.f32.mxu0 %v23
  %324 = vmatmul.mubr.f32.gmra.mrb[0].mxu0 %v22
  %v325 = vpop.f32.mrb[0].mxu0
  %v326 = vadd.f32 %v222, %v325
  %v327 = vpop.f32.mrb[0].mxu0
  %328 = vmatprep.mubr.f32.mxu0 %v31
  %329 = vmatmul.mubr.f32.gmra.mrb[0].mxu0 %v30
  %v330 = vpop.f32.mrb[0].mxu0
  %v331 = vadd.f32 %v227, %v330
  %v332 = vpop.f32.mrb[0].mxu0
  %333 = vmatprep.mubr.f32.mxu0 %v39
  %334 = vmatmul.mubr.f32.gmra.mrb[0].mxu0 %v38
  %v335 = vpop.f32.mrb[0].mxu0
  %v336 = vadd.f32 %v232, %v335
  %v337 = vpop.f32.mrb[0].mxu0
  %338 = vmatprep.mubr.f32.mxu0 %v47
  %339 = vmatmul.mubr.f32.gmra.mrb[0].mxu0 %v46
  %v340 = vpop.f32.mrb[0].mxu0
  %v341 = vadd.f32 %v237, %v340
  %v342 = vpop.f32.mrb[0].mxu0
  %343 = vmatprep.mubr.f32.mxu0 %v55
  %344 = vmatmul.mubr.f32.gmra.mrb[0].mxu0 %v54
  %v345 = vpop.f32.mrb[0].mxu0
  %v346 = vadd.f32 %v242, %v345
  %v347 = vpop.f32.mrb[0].mxu0
  %348 = vmatprep.mubr.f32.mxu0 %v63
  %349 = vmatmul.mubr.f32.gmra.mrb[0].mxu0 %v62
  %v350 = vpop.f32.mrb[0].mxu0
  %v351 = vadd.f32 %v247, %v350
  %v352 = vpop.f32.mrb[0].mxu0
  %353 = vmatprep.mubr.f32.mxu0 %v71
  %354 = vmatmul.mubr.f32.gmra.mrb[0].mxu0 %v70
  %v355 = vpop.f32.mrb[0].mxu0
  %v356 = vadd.f32 %v252, %v355
  %v357 = vpop.f32.mrb[0].mxu0
  %358 = vdwg.mxu0
  %359 = vmatprep.subr.mxu0 0.0
  %360 = vmatpush1.msra.mxu0 %v110
  %361 = vmatprep.subr.mxu0 0.0
  %362 = vmatpush1.msra.mxu0 %v111
  %363 = vmatprep.subr.mxu0 0.0
  %364 = vmatpush1.msra.mxu0 %v112
  %365 = vmatprep.subr.mxu0 0.0
  %366 = vmatpush1.msra.mxu0 %v113
  %367 = vmatprep.subr.mxu0 0.0
  %368 = vmatpush1.msra.mxu0 %v114
  %369 = vmatprep.subr.mxu0 0.0
  %370 = vmatpush1.msra.mxu0 %v115
  %371 = vmatprep.subr.mxu0 0.0
  %372 = vmatpush1.msra.mxu0 %v116
  %373 = vmatprep.subr.mxu0 0.0
  %374 = vmatpush1.msra.mxu0 %v117
  %375 = vmatprep.subr.mxu0 0.0
  %376 = vmatpush1.msra.mxu0 %v118
  %377 = vmatprep.subr.mxu0 0.0
  %378 = vmatpush1.msra.mxu0 %v119
  %379 = vmatprep.subr.mxu0 0.0
  %380 = vmatpush1.msra.mxu0 %v120
  %381 = vmatprep.subr.mxu0 0.0
  %382 = vmatpush1.msra.mxu0 %v121
  %383 = vmatprep.subr.mxu0 0.0
  %384 = vmatpush1.msra.mxu0 %v122
  %385 = vmatprep.subr.mxu0 0.0
  %386 = vmatpush1.msra.mxu0 %v123
  %387 = vmatprep.subr.mxu0 0.0
  %388 = vmatpush1.msra.mxu0 %v124
  %389 = vmatprep.subr.mxu0 0.0
  %390 = vmatpush1.msra.mxu0 %v125
  %391 = vmatprep.subr.mxu0 0.0
  %392 = vmatpush1.msra.mxu0 %v126
  %393 = vmatprep.subr.mxu0 0.0
  %394 = vmatpush1.msra.mxu0 %v127
  %395 = vmatprep.subr.mxu0 0.0
  %396 = vmatpush1.msra.mxu0 %v128
  %397 = vmatprep.subr.mxu0 0.0
  %398 = vmatpush1.msra.mxu0 %v129
  %399 = vmatprep.subr.mxu0 0.0
  %400 = vmatpush1.msra.mxu0 %v130
  %401 = vmatprep.subr.mxu0 0.0
  %402 = vmatpush1.msra.mxu0 %v131
  %403 = vmatprep.subr.mxu0 0.0
  %404 = vmatpush1.msra.mxu0 %v132
  %405 = vmatprep.subr.mxu0 0.0
  %406 = vmatpush1.msra.mxu0 %v133
  %407 = vmatprep.subr.mxu0 0.0
  %408 = vmatpush1.msra.mxu0 %v134
  %409 = vmatprep.subr.mxu0 0.0
  %410 = vmatpush1.msra.mxu0 %v135
  %411 = vmatprep.subr.mxu0 0.0
  %412 = vmatpush1.msra.mxu0 %v136
  %413 = vmatprep.subr.mxu0 0.0
  %414 = vmatpush1.msra.mxu0 %v137
  %415 = vmatprep.subr.mxu0 0.0
  %416 = vmatpush1.msra.mxu0 %v138
  %417 = vmatprep.subr.mxu0 0.0
  %418 = vmatpush1.msra.mxu0 %v139
  %419 = vmatprep.subr.mxu0 0.0
  %420 = vmatpush1.msra.mxu0 %v140
  %421 = vmatprep.subr.mxu0 0.0
  %422 = vmatpush1.msra.mxu0 %v141
  %423 = vmatprep.mubr.f32.mxu0 %v17
  %424 = vmatmul.mubr.f32.gmra.mrb[0].mxu0 %v16
  %v425 = vpop.f32.mrb[0].mxu0
  %v426 = vadd.f32 %v321, %v425
  %v427 = vpop.f32.mrb[0].mxu0
  %428 = vmatprep.mubr.f32.mxu0 %v25
  %429 = vmatmul.mubr.f32.gmra.mrb[0].mxu0 %v24
  %v430 = vpop.f32.mrb[0].mxu0
  %v431 = vadd.f32 %v326, %v430
  %v432 = vpop.f32.mrb[0].mxu0
  %433 = vmatprep.mubr.f32.mxu0 %v33
  %434 = vmatmul.mubr.f32.gmra.mrb[0].mxu0 %v32
  %v435 = vpop.f32.mrb[0].mxu0
  %v436 = vadd.f32 %v331, %v435
  %v437 = vpop.f32.mrb[0].mxu0
  %438 = vmatprep.mubr.f32.mxu0 %v41
  %439 = vmatmul.mubr.f32.gmra.mrb[0].mxu0 %v40
  %v440 = vpop.f32.mrb[0].mxu0
  %v441 = vadd.f32 %v336, %v440
  %v442 = vpop.f32.mrb[0].mxu0
  %443 = vmatprep.mubr.f32.mxu0 %v49
  %444 = vmatmul.mubr.f32.gmra.mrb[0].mxu0 %v48
  %v445 = vpop.f32.mrb[0].mxu0
  %v446 = vadd.f32 %v341, %v445
  %v447 = vpop.f32.mrb[0].mxu0
  %448 = vmatprep.mubr.f32.mxu0 %v57
  %449 = vmatmul.mubr.f32.gmra.mrb[0].mxu0 %v56
  %v450 = vpop.f32.mrb[0].mxu0
  %v451 = vadd.f32 %v346, %v450
  %v452 = vpop.f32.mrb[0].mxu0
  %453 = vmatprep.mubr.f32.mxu0 %v65
  %454 = vmatmul.mubr.f32.gmra.mrb[0].mxu0 %v64
  %v455 = vpop.f32.mrb[0].mxu0
  %v456 = vadd.f32 %v351, %v455
  %v457 = vpop.f32.mrb[0].mxu0
  %458 = vmatprep.mubr.f32.mxu0 %v73
  %459 = vmatmul.mubr.f32.gmra.mrb[0].mxu0 %v72
  %v460 = vpop.f32.mrb[0].mxu0
  %v461 = vadd.f32 %v356, %v460
  %v462 = vpop.f32.mrb[0].mxu0
  %463 = vdwg.mxu0
  %464 = vmatprep.subr.mxu0 0.0
  %465 = vmatpush1.msra.mxu0 %v142
  %466 = vmatprep.subr.mxu0 0.0
  %467 = vmatpush1.msra.mxu0 %v143
  %468 = vmatprep.subr.mxu0 0.0
  %469 = vmatpush1.msra.mxu0 %v144
  %470 = vmatprep.subr.mxu0 0.0
  %471 = vmatpush1.msra.mxu0 %v145
  %472 = vmatprep.subr.mxu0 0.0
  %473 = vmatpush1.msra.mxu0 %v146
  %474 = vmatprep.subr.mxu0 0.0
  %475 = vmatpush1.msra.mxu0 %v147
  %476 = vmatprep.subr.mxu0 0.0
  %477 = vmatpush1.msra.mxu0 %v148
  %478 = vmatprep.subr.mxu0 0.0
  %479 = vmatpush1.msra.mxu0 %v149
  %480 = vmatprep.subr.mxu0 0.0
  %481 = vmatpush1.msra.mxu0 %v150
  %482 = vmatprep.subr.mxu0 0.0
  %483 = vmatpush1.msra.mxu0 %v151
  %484 = vmatprep.subr.mxu0 0.0
  %485 = vmatpush1.msra.mxu0 %v152
  %486 = vmatprep.subr.mxu0 0.0
  %487 = vmatpush1.msra.mxu0 %v153
  %488 = vmatprep.subr.mxu0 0.0
  %489 = vmatpush1.msra.mxu0 %v154
  %490 = vmatprep.subr.mxu0 0.0
  %491 = vmatpush1.msra.mxu0 %v155
  %492 = vmatprep.subr.mxu0 0.0
  %493 = vmatpush1.msra.mxu0 %v156
  %494 = vmatprep.subr.mxu0 0.0
  %495 = vmatpush1.msra.mxu0 %v157
  %496 = vmatprep.subr.mxu0 0.0
  %497 = vmatpush1.msra.mxu0 %v158
  %498 = vmatprep.subr.mxu0 0.0
  %499 = vmatpush1.msra.mxu0 %v159
  %500 = vmatprep.subr.mxu0 0.0
  %501 = vmatpush1.msra.mxu0 %v160
  %502 = vmatprep.subr.mxu0 0.0
  %503 = vmatpush1.msra.mxu0 %v161
  %504 = vmatprep.subr.mxu0 0.0
  %505 = vmatpush1.msra.mxu0 %v162
  %506 = vmatprep.subr.mxu0 0.0
  %507 = vmatpush1.msra.mxu0 %v163
  %508 = vmatprep.subr.mxu0 0.0
  %509 = vmatpush1.msra.mxu0 %v164
  %510 = vmatprep.subr.mxu0 0.0
  %511 = vmatpush1.msra.mxu0 %v165
  %512 = vmatprep.subr.mxu0 0.0
  %513 = vmatpush1.msra.mxu0 %v166
  %514 = vmatprep.subr.mxu0 0.0
  %515 = vmatpush1.msra.mxu0 %v167
  %516 = vmatprep.subr.mxu0 0.0
  %517 = vmatpush1.msra.mxu0 %v168
  %518 = vmatprep.subr.mxu0 0.0
  %519 = vmatpush1.msra.mxu0 %v169
  %520 = vmatprep.subr.mxu0 0.0
  %521 = vmatpush1.msra.mxu0 %v170
  %522 = vmatprep.subr.mxu0 0.0
  %523 = vmatpush1.msra.mxu0 %v171
  %524 = vmatprep.subr.mxu0 0.0
  %525 = vmatpush1.msra.mxu0 %v172
  %526 = vmatprep.subr.mxu0 0.0
  %527 = vmatpush1.msra.mxu0 %v173
  %528 = vmatprep.mubr.f32.mxu0 %v19
  %529 = vmatmul.mubr.f32.gmra.mrb[0].mxu0 %v18
  %v530 = vpop.f32.mrb[0].mxu0
  %v531 = vadd.f32 %v426, %v530
  %v532 = vpop.f32.mrb[0].mxu0
  %533 = vmatprep.mubr.f32.mxu0 %v27
  %534 = vmatmul.mubr.f32.gmra.mrb[0].mxu0 %v26
  %v535 = vpop.f32.mrb[0].mxu0
  %v536 = vadd.f32 %v431, %v535
  %v537 = vpop.f32.mrb[0].mxu0
  %538 = vmatprep.mubr.f32.mxu0 %v35
  %539 = vmatmul.mubr.f32.gmra.mrb[0].mxu0 %v34
  %v540 = vpop.f32.mrb[0].mxu0
  %v541 = vadd.f32 %v436, %v540
  %v542 = vpop.f32.mrb[0].mxu0
  %543 = vmatprep.mubr.f32.mxu0 %v43
  %544 = vmatmul.mubr.f32.gmra.mrb[0].mxu0 %v42
  %v545 = vpop.f32.mrb[0].mxu0
  %v546 = vadd.f32 %v441, %v545
  %v547 = vpop.f32.mrb[0].mxu0
  %548 = vmatprep.mubr.f32.mxu0 %v51
  %549 = vmatmul.mubr.f32.gmra.mrb[0].mxu0 %v50
  %v550 = vpop.f32.mrb[0].mxu0
  %v551 = vadd.f32 %v446, %v550
  %v552 = vpop.f32.mrb[0].mxu0
  %553 = vmatprep.mubr.f32.mxu0 %v59
  %554 = vmatmul.mubr.f32.gmra.mrb[0].mxu0 %v58
  %v555 = vpop.f32.mrb[0].mxu0
  %v556 = vadd.f32 %v451, %v555
  %v557 = vpop.f32.mrb[0].mxu0
  %558 = vmatprep.mubr.f32.mxu0 %v67
  %559 = vmatmul.mubr.f32.gmra.mrb[0].mxu0 %v66
  %v560 = vpop.f32.mrb[0].mxu0
  %v561 = vadd.f32 %v456, %v560
  %v562 = vpop.f32.mrb[0].mxu0
  %563 = vmatprep.mubr.f32.mxu0 %v75
  %564 = vmatmul.mubr.f32.gmra.mrb[0].mxu0 %v74
  %v565 = vpop.f32.mrb[0].mxu0
  %v566 = vadd.f32 %v461, %v565
  %v567 = vpop.f32.mrb[0].mxu0
  %568 = vdwg.mxu0
  %569 = vmatprep.subr.mxu0 0.0
  %570 = vmatpush1.msra.mxu0 %v174
  %571 = vmatprep.subr.mxu0 0.0
  %572 = vmatpush1.msra.mxu0 %v175
  %573 = vmatprep.subr.mxu0 0.0
  %574 = vmatpush1.msra.mxu0 %v176
  %575 = vmatprep.subr.mxu0 0.0
  %576 = vmatpush1.msra.mxu0 %v177
  %577 = vmatprep.subr.mxu0 0.0
  %578 = vmatpush1.msra.mxu0 %v178
  %579 = vmatprep.subr.mxu0 0.0
  %580 = vmatpush1.msra.mxu0 %v179
  %581 = vmatprep.subr.mxu0 0.0
  %582 = vmatpush1.msra.mxu0 %v180
  %583 = vmatprep.subr.mxu0 0.0
  %584 = vmatpush1.msra.mxu0 %v181
  %585 = vmatprep.subr.mxu0 0.0
  %586 = vmatpush1.msra.mxu0 %v182
  %587 = vmatprep.subr.mxu0 0.0
  %588 = vmatpush1.msra.mxu0 %v183
  %589 = vmatprep.subr.mxu0 0.0
  %590 = vmatpush1.msra.mxu0 %v184
  %591 = vmatprep.subr.mxu0 0.0
  %592 = vmatpush1.msra.mxu0 %v185
  %593 = vmatprep.subr.mxu0 0.0
  %594 = vmatpush1.msra.mxu0 %v186
  %595 = vmatprep.subr.mxu0 0.0
  %596 = vmatpush1.msra.mxu0 %v187
  %597 = vmatprep.subr.mxu0 0.0
  %598 = vmatpush1.msra.mxu0 %v188
  %599 = vmatprep.subr.mxu0 0.0
  %600 = vmatpush1.msra.mxu0 %v189
  %601 = vmatprep.subr.mxu0 0.0
  %602 = vmatpush1.msra.mxu0 %v190
  %603 = vmatprep.subr.mxu0 0.0
  %604 = vmatpush1.msra.mxu0 %v191
  %605 = vmatprep.subr.mxu0 0.0
  %606 = vmatpush1.msra.mxu0 %v192
  %607 = vmatprep.subr.mxu0 0.0
  %608 = vmatpush1.msra.mxu0 %v193
  %609 = vmatprep.subr.mxu0 0.0
  %610 = vmatpush1.msra.mxu0 %v194
  %611 = vmatprep.subr.mxu0 0.0
  %612 = vmatpush1.msra.mxu0 %v195
  %613 = vmatprep.subr.mxu0 0.0
  %614 = vmatpush1.msra.mxu0 %v196
  %615 = vmatprep.subr.mxu0 0.0
  %616 = vmatpush1.msra.mxu0 %v197
  %617 = vmatprep.subr.mxu0 0.0
  %618 = vmatpush1.msra.mxu0 %v198
  %619 = vmatprep.subr.mxu0 0.0
  %620 = vmatpush1.msra.mxu0 %v199
  %621 = vmatprep.subr.mxu0 0.0
  %622 = vmatpush1.msra.mxu0 %v200
  %623 = vmatprep.subr.mxu0 0.0
  %624 = vmatpush1.msra.mxu0 %v201
  %625 = vmatprep.subr.mxu0 0.0
  %626 = vmatpush1.msra.mxu0 %v202
  %627 = vmatprep.subr.mxu0 0.0
  %628 = vmatpush1.msra.mxu0 %v203
  %629 = vmatprep.subr.mxu0 0.0
  %630 = vmatpush1.msra.mxu0 %v204
  %631 = vmatprep.subr.mxu0 0.0
  %632 = vmatpush1.msra.mxu0 %v205
  %633 = vmatprep.mubr.f32.mxu0 %v21
  %634 = vmatmul.mubr.f32.gmra.mrb[0].mxu0 %v20
  %v635 = vpop.f32.mrb[0].mxu0
  %v636 = vadd.f32 %v531, %v635
  %v637 = vpop.f32.mrb[0].mxu0
  %638 = vmatprep.mubr.f32.mxu0 %v29
  %639 = vmatmul.mubr.f32.gmra.mrb[0].mxu0 %v28
  %v640 = vpop.f32.mrb[0].mxu0
  %v641 = vadd.f32 %v536, %v640
  %v642 = vpop.f32.mrb[0].mxu0
  %643 = vmatprep.mubr.f32.mxu0 %v37
  %644 = vmatmul.mubr.f32.gmra.mrb[0].mxu0 %v36
  %v645 = vpop.f32.mrb[0].mxu0
  %v646 = vadd.f32 %v541, %v645
  %v647 = vpop.f32.mrb[0].mxu0
  %648 = vmatprep.mubr.f32.mxu0 %v45
  %649 = vmatmul.mubr.f32.gmra.mrb[0].mxu0 %v44
  %v650 = vpop.f32.mrb[0].mxu0
  %v651 = vadd.f32 %v546, %v650
  %v652 = vpop.f32.mrb[0].mxu0
  %653 = vmatprep.mubr.f32.mxu0 %v53
  %654 = vmatmul.mubr.f32.gmra.mrb[0].mxu0 %v52
  %v655 = vpop.f32.mrb[0].mxu0
  %v656 = vadd.f32 %v551, %v655
  %v657 = vpop.f32.mrb[0].mxu0
  %658 = vmatprep.mubr.f32.mxu0 %v61
  %659 = vmatmul.mubr.f32.gmra.mrb[0].mxu0 %v60
  %v660 = vpop.f32.mrb[0].mxu0
  %v661 = vadd.f32 %v556, %v660
  %v662 = vpop.f32.mrb[0].mxu0
  %663 = vmatprep.mubr.f32.mxu0 %v69
  %664 = vmatmul.mubr.f32.gmra.mrb[0].mxu0 %v68
  %v665 = vpop.f32.mrb[0].mxu0
  %v666 = vadd.f32 %v561, %v665
  %v667 = vpop.f32.mrb[0].mxu0
  %668 = vmatprep.mubr.f32.mxu0 %v77
  %669 = vmatmul.mubr.f32.gmra.mrb[0].mxu0 %v76
  %v670 = vpop.f32.mrb[0].mxu0
  %v671 = vadd.f32 %v566, %v670
  %v672 = vpop.f32.mrb[0].mxu0
  %673 = vdwg.mxu0
  %v674 = vmax.f32 %v636, 0.0
  %v675 = vmax.f32 %v641, 0.0
  %v676 = vmax.f32 %v646, 0.0
  %v677 = vmax.f32 %v651, 0.0
  %v678 = vmax.f32 %v656, 0.0
  %v679 = vmax.f32 %v661, 0.0
  %v680 = vmax.f32 %v666, 0.0
  %v681 = vmax.f32 %v671, 0.0
  %vm682 = vcmask 15360
  %683 = vst.msk [vmem:[%s3] sm:$0xff] %vm682, %v674
  %684 = vst.msk [vmem:[%s3 + $0x8] sm:$0xff] %vm682, %v675
  %685 = vst.msk [vmem:[%s3 + $0x10] sm:$0xff] %vm682, %v676
  %686 = vst.msk [vmem:[%s3 + $0x18] sm:$0xff] %vm682, %v677
  %687 = vst.msk [vmem:[%s3 + $0x20] sm:$0xff] %vm682, %v678
  %688 = vst.msk [vmem:[%s3 + $0x28] sm:$0xff] %vm682, %v679
  %689 = vst.msk [vmem:[%s3 + $0x30] sm:$0xff] %vm682, %v680
  %690 = vst.msk [vmem:[%s3 + $0x38] sm:$0xff] %vm682, %v681
  // Predicated region
  $region14: #{pyramid2_forward.17} parent=0 // pred_check
    _
  $region15: #{pyramid2_forward.17} parent=0 // pred_check_branch
    %692 = sbr.rel (0) target = $region17
  $region16: #{pyramid2_forward.17} parent=0 // pred_region
    _
  $region17: #{pyramid2_forward.17} parent=0 // pred_fallthru
    _
  // Predicated region
  $region18: #{pyramid2_forward.17} parent=0 // pred_check
    _
  $region19: #{pyramid2_forward.17} parent=0 // pred_check_branch
    %694 = sbr.rel (0) target = $region21
  $region20: #{pyramid2_forward.17} parent=0 // pred_region
    _
  $region21: #{pyramid2_forward.17} parent=0 // pred_fallthru
    _

// kernel: pyramid2_forward.18
$region0: #{pyramid2_forward.18}
  #allocation0 [shape = 'u32[]', space=smem, size = 0x4, offset = 0x4, fixed_abs, tag = 'smem constant byte address 0x4 - core index']
  #allocation1 [shape = 'u32[144,128]{1,0:T(1,128)}', space=vmem, size = 0x12000, scoped, tag = 'internal scratch']
  %s0 = inlined_call_operand.vmem [shape: f32[256,576], index: 0, kind: input, shape index: {}]
  %s1 = inlined_call_operand.vmem [shape: f32[576,2], index: 1, kind: input, shape index: {}]
  %s2 = inlined_call_operand.vmem [shape: f32[256,1], index: 2, kind: input, shape index: {}]
  %s3 = inlined_call_operand.vmem [shape: f32[256,2], index: 3, kind: output, shape index: {}]
  %s4 = sld [smem:[#allocation0]]
  $region22: #{pyramid2_forward.18} parent=0
    _
  %s6 = ssub.s32 1, %s4
  %s7 = scalar_select 0, %s6, %s4
  // Predicated region
  $region2: #{pyramid2_forward.18} parent=0 // pred_check
    _
  $region3: #{pyramid2_forward.18} parent=0 // pred_check_branch
    %9 = sbr.rel (0) target = $region5
  $region4: #{pyramid2_forward.18} parent=0 // pred_region
    _
  $region5: #{pyramid2_forward.18} parent=0 // pred_fallthru
    _
  // Predicated region
  $region6: #{pyramid2_forward.18} parent=0 // pred_check
    _
  $region7: #{pyramid2_forward.18} parent=0 // pred_check_branch
    %11 = sbr.rel (0) target = $region9
  $region8: #{pyramid2_forward.18} parent=0 // pred_region
    _
  $region9: #{pyramid2_forward.18} parent=0 // pred_fallthru
    _
  // Predicated region
  $region10: #{pyramid2_forward.18} parent=0 // pred_check
    _
  $region11: #{pyramid2_forward.18} parent=0 // pred_check_branch
    %13 = sbr.rel (0) target = $region13
  $region12: #{pyramid2_forward.18} parent=0 // pred_region
    _
  $region13: #{pyramid2_forward.18} parent=0 // pred_fallthru
    _
  %v14 = vld [vmem:[%s0] sm:$0xff]
  %v15 = vld [vmem:[%s0 + $0x8] sm:$0xff]
  %v16 = vld [vmem:[%s0 + $0x10] sm:$0xff]
  %v17 = vld [vmem:[%s0 + $0x18] sm:$0xff]
  %v18 = vld [vmem:[%s0 + $0x20] sm:$0xff]
  %v19 = vld [vmem:[%s0 + $0x28] sm:$0xff]
  %v20 = vld [vmem:[%s0 + $0x30] sm:$0xff]
  %v21 = vld [vmem:[%s0 + $0x38] sm:$0xff]
  %v22 = vld [vmem:[%s0 + $0x40] sm:$0xff]
  %v23 = vld [vmem:[%s0 + $0x48] sm:$0xff]
  %v24 = vld [vmem:[%s0 + $0x50] sm:$0xff]
  %v25 = vld [vmem:[%s0 + $0x58] sm:$0xff]
  %v26 = vld [vmem:[%s0 + $0x60] sm:$0xff]
  %v27 = vld [vmem:[%s0 + $0x68] sm:$0xff]
  %v28 = vld [vmem:[%s0 + $0x70] sm:$0xff]
  %v29 = vld [vmem:[%s0 + $0x78] sm:$0xff]
  %v30 = vld [vmem:[%s0 + $0x80] sm:$0xff]
  %v31 = vld [vmem:[%s0 + $0x88] sm:$0xff]
  %v32 = vld [vmem:[%s0 + $0x90] sm:$0xff]
  %v33 = vld [vmem:[%s0 + $0x98] sm:$0xff]
  %v34 = vld [vmem:[%s0 + $0xa0] sm:$0xff]
  %v35 = vld [vmem:[%s0 + $0xa8] sm:$0xff]
  %v36 = vld [vmem:[%s0 + $0xb0] sm:$0xff]
  %v37 = vld [vmem:[%s0 + $0xb8] sm:$0xff]
  %v38 = vld [vmem:[%s0 + $0xc0] sm:$0xff]
  %v39 = vld [vmem:[%s0 + $0xc8] sm:$0xff]
  %v40 = vld [vmem:[%s0 + $0xd0] sm:$0xff]
  %v41 = vld [vmem:[%s0 + $0xd8] sm:$0xff]
  %v42 = vld [vmem:[%s0 + $0xe0] sm:$0xff]
  %v43 = vld [vmem:[%s0 + $0xe8] sm:$0xff]
  %v44 = vld [vmem:[%s0 + $0xf0] sm:$0xff]
  %v45 = vld [vmem:[%s0 + $0xf8] sm:$0xff]
  %v46 = vld [vmem:[%s0 + $0x100] sm:$0xff]
  %v47 = vld [vmem:[%s0 + $0x108] sm:$0xff]
  %v48 = vld [vmem:[%s0 + $0x110] sm:$0xff]
  %v49 = vld [vmem:[%s0 + $0x118] sm:$0xff]
  %v50 = vld [vmem:[%s0 + $0x120] sm:$0xff]
  %v51 = vld [vmem:[%s0 + $0x128] sm:$0xff]
  %v52 = vld [vmem:[%s0 + $0x130] sm:$0xff]
  %v53 = vld [vmem:[%s0 + $0x138] sm:$0xff]
  %v54 = vld [vmem:[%s0 + $0x140] sm:$0xff]
  %v55 = vld [vmem:[%s0 + $0x148] sm:$0xff]
  %v56 = vld [vmem:[%s0 + $0x150] sm:$0xff]
  %v57 = vld [vmem:[%s0 + $0x158] sm:$0xff]
  %v58 = vld [vmem:[%s0 + $0x160] sm:$0xff]
  %v59 = vld [vmem:[%s0 + $0x168] sm:$0xff]
  %v60 = vld [vmem:[%s0 + $0x170] sm:$0xff]
  %v61 = vld [vmem:[%s0 + $0x178] sm:$0xff]
  %v62 = vld [vmem:[%s0 + $0x180] sm:$0xff]
  %v63 = vld [vmem:[%s0 + $0x188] sm:$0xff]
  %v64 = vld [vmem:[%s0 + $0x190] sm:$0xff]
  %v65 = vld [vmem:[%s0 + $0x198] sm:$0xff]
  %v66 = vld [vmem:[%s0 + $0x1a0] sm:$0xff]
  %v67 = vld [vmem:[%s0 + $0x1a8] sm:$0xff]
  %v68 = vld [vmem:[%s0 + $0x1b0] sm:$0xff]
  %v69 = vld [vmem:[%s0 + $0x1b8] sm:$0xff]
  %v70 = vld [vmem:[%s0 + $0x1c0] sm:$0xff]
  %v71 = vld [vmem:[%s0 + $0x1c8] sm:$0xff]
  %v72 = vld [vmem:[%s0 + $0x1d0] sm:$0xff]
  %v73 = vld [vmem:[%s0 + $0x1d8] sm:$0xff]
  %v74 = vld [vmem:[%s0 + $0x1e0] sm:$0xff]
  %v75 = vld [vmem:[%s0 + $0x1e8] sm:$0xff]
  %v76 = vld [vmem:[%s0 + $0x1f0] sm:$0xff]
  %v77 = vld [vmem:[%s0 + $0x1f8] sm:$0xff]
  %v78 = vld [vmem:[%s0 + $0x200] sm:$0xff]
  %v79 = vld [vmem:[%s0 + $0x208] sm:$0xff]
  %v80 = vld [vmem:[%s0 + $0x210] sm:$0xff]
  %v81 = vld [vmem:[%s0 + $0x218] sm:$0xff]
  %v82 = vld [vmem:[%s0 + $0x220] sm:$0xff]
  %v83 = vld [vmem:[%s0 + $0x228] sm:$0xff]
  %v84 = vld [vmem:[%s0 + $0x230] sm:$0xff]
  %v85 = vld [vmem:[%s0 + $0x238] sm:$0xff]
  %v86 = vld [vmem:[%s0 + $0x240] sm:$0xff]
  %v87 = vld [vmem:[%s0 + $0x248] sm:$0xff]
  %v88 = vld [vmem:[%s0 + $0x250] sm:$0xff]
  %v89 = vld [vmem:[%s0 + $0x258] sm:$0xff]
  %v90 = vld [vmem:[%s0 + $0x260] sm:$0xff]
  %v91 = vld [vmem:[%s0 + $0x268] sm:$0xff]
  %v92 = vld [vmem:[%s0 + $0x270] sm:$0xff]
  %v93 = vld [vmem:[%s0 + $0x278] sm:$0xff]
  %v94 = vld [vmem:[%s0 + $0x280] sm:$0xff]
  %v95 = vld [vmem:[%s0 + $0x288] sm:$0xff]
  %v96 = vld [vmem:[%s0 + $0x290] sm:$0xff]
  %v97 = vld [vmem:[%s0 + $0x298] sm:$0xff]
  %v98 = vld [vmem:[%s0 + $0x2a0] sm:$0xff]
  %v99 = vld [vmem:[%s0 + $0x2a8] sm:$0xff]
  %v100 = vld [vmem:[%s0 + $0x2b0] sm:$0xff]
  %v101 = vld [vmem:[%s0 + $0x2b8] sm:$0xff]
  %v102 = vld [vmem:[%s0 + $0x2c0] sm:$0xff]
  %v103 = vld [vmem:[%s0 + $0x2c8] sm:$0xff]
  %v104 = vld [vmem:[%s0 + $0x2d0] sm:$0xff]
  %v105 = vld [vmem:[%s0 + $0x2d8] sm:$0xff]
  %v106 = vld [vmem:[%s0 + $0x2e0] sm:$0xff]
  %v107 = vld [vmem:[%s0 + $0x2e8] sm:$0xff]
  %v108 = vld [vmem:[%s0 + $0x2f0] sm:$0xff]
  %v109 = vld [vmem:[%s0 + $0x2f8] sm:$0xff]
  %v110 = vld [vmem:[%s0 + $0x300] sm:$0xff]
  %v111 = vld [vmem:[%s0 + $0x308] sm:$0xff]
  %v112 = vld [vmem:[%s0 + $0x310] sm:$0xff]
  %v113 = vld [vmem:[%s0 + $0x318] sm:$0xff]
  %v114 = vld [vmem:[%s0 + $0x320] sm:$0xff]
  %v115 = vld [vmem:[%s0 + $0x328] sm:$0xff]
  %v116 = vld [vmem:[%s0 + $0x330] sm:$0xff]
  %v117 = vld [vmem:[%s0 + $0x338] sm:$0xff]
  %v118 = vld [vmem:[%s0 + $0x340] sm:$0xff]
  %v119 = vld [vmem:[%s0 + $0x348] sm:$0xff]
  %v120 = vld [vmem:[%s0 + $0x350] sm:$0xff]
  %v121 = vld [vmem:[%s0 + $0x358] sm:$0xff]
  %v122 = vld [vmem:[%s0 + $0x360] sm:$0xff]
  %v123 = vld [vmem:[%s0 + $0x368] sm:$0xff]
  %v124 = vld [vmem:[%s0 + $0x370] sm:$0xff]
  %v125 = vld [vmem:[%s0 + $0x378] sm:$0xff]
  %v126 = vld [vmem:[%s0 + $0x380] sm:$0xff]
  %v127 = vld [vmem:[%s0 + $0x388] sm:$0xff]
  %v128 = vld [vmem:[%s0 + $0x390] sm:$0xff]
  %v129 = vld [vmem:[%s0 + $0x398] sm:$0xff]
  %v130 = vld [vmem:[%s0 + $0x3a0] sm:$0xff]
  %v131 = vld [vmem:[%s0 + $0x3a8] sm:$0xff]
  %v132 = vld [vmem:[%s0 + $0x3b0] sm:$0xff]
  %v133 = vld [vmem:[%s0 + $0x3b8] sm:$0xff]
  %v134 = vld [vmem:[%s0 + $0x3c0] sm:$0xff]
  %v135 = vld [vmem:[%s0 + $0x3c8] sm:$0xff]
  %v136 = vld [vmem:[%s0 + $0x3d0] sm:$0xff]
  %v137 = vld [vmem:[%s0 + $0x3d8] sm:$0xff]
  %v138 = vld [vmem:[%s0 + $0x3e0] sm:$0xff]
  %v139 = vld [vmem:[%s0 + $0x3e8] sm:$0xff]
  %v140 = vld [vmem:[%s0 + $0x3f0] sm:$0xff]
  %v141 = vld [vmem:[%s0 + $0x3f8] sm:$0xff]
  %v142 = vld [vmem:[%s0 + $0x400] sm:$0xff]
  %v143 = vld [vmem:[%s0 + $0x408] sm:$0xff]
  %v144 = vld [vmem:[%s0 + $0x410] sm:$0xff]
  %v145 = vld [vmem:[%s0 + $0x418] sm:$0xff]
  %v146 = vld [vmem:[%s0 + $0x420] sm:$0xff]
  %v147 = vld [vmem:[%s0 + $0x428] sm:$0xff]
  %v148 = vld [vmem:[%s0 + $0x430] sm:$0xff]
  %v149 = vld [vmem:[%s0 + $0x438] sm:$0xff]
  %v150 = vld [vmem:[%s0 + $0x440] sm:$0xff]
  %v151 = vld [vmem:[%s0 + $0x448] sm:$0xff]
  %v152 = vld [vmem:[%s0 + $0x450] sm:$0xff]
  %v153 = vld [vmem:[%s0 + $0x458] sm:$0xff]
  %v154 = vld [vmem:[%s0 + $0x460] sm:$0xff]
  %v155 = vld [vmem:[%s0 + $0x468] sm:$0xff]
  %v156 = vld [vmem:[%s0 + $0x470] sm:$0xff]
  %v157 = vld [vmem:[%s0 + $0x478] sm:$0xff]
  %v158 = vld [vmem:[%s0 + $0x480] sm:$0xff]
  %v159 = vld [vmem:[%s0 + $0x488] sm:$0xff]
  %v160 = vld [vmem:[%s0 + $0x490] sm:$0xff]
  %v161 = vld [vmem:[%s0 + $0x498] sm:$0xff]
  %v162 = vld [vmem:[%s0 + $0x4a0] sm:$0xff]
  %v163 = vld [vmem:[%s0 + $0x4a8] sm:$0xff]
  %v164 = vld [vmem:[%s0 + $0x4b0] sm:$0xff]
  %v165 = vld [vmem:[%s0 + $0x4b8] sm:$0xff]
  %v166 = vld [vmem:[%s0 + $0x4c0] sm:$0xff]
  %v167 = vld [vmem:[%s0 + $0x4c8] sm:$0xff]
  %v168 = vld [vmem:[%s0 + $0x4d0] sm:$0xff]
  %v169 = vld [vmem:[%s0 + $0x4d8] sm:$0xff]
  %v170 = vld [vmem:[%s0 + $0x4e0] sm:$0xff]
  %v171 = vld [vmem:[%s0 + $0x4e8] sm:$0xff]
  %v172 = vld [vmem:[%s0 + $0x4f0] sm:$0xff]
  %v173 = vld [vmem:[%s0 + $0x4f8] sm:$0xff]
  %v174 = vld [vmem:[%s1] sm:$0xff]
  %v175 = vld [vmem:[%s1 + $0x8] sm:$0xff]
  %v176 = vld [vmem:[%s1 + $0x10] sm:$0xff]
  %v177 = vld [vmem:[%s1 + $0x18] sm:$0xff]
  %v178 = vld [vmem:[%s1 + $0x20] sm:$0xff]
  %v179 = vld [vmem:[%s1 + $0x28] sm:$0xff]
  %v180 = vld [vmem:[%s1 + $0x30] sm:$0xff]
  %v181 = vld [vmem:[%s1 + $0x38] sm:$0xff]
  %v182 = vld [vmem:[%s1 + $0x40] sm:$0xff]
  %v183 = vld [vmem:[%s1 + $0x48] sm:$0xff]
  %v184 = vld [vmem:[%s1 + $0x50] sm:$0xff]
  %v185 = vld [vmem:[%s1 + $0x58] sm:$0xff]
  %v186 = vld [vmem:[%s1 + $0x60] sm:$0xff]
  %v187 = vld [vmem:[%s1 + $0x68] sm:$0xff]
  %v188 = vld [vmem:[%s1 + $0x70] sm:$0xff]
  %v189 = vld [vmem:[%s1 + $0x78] sm:$0xff]
  %v190 = vld [vmem:[%s1 + $0x80] sm:$0xff]
  %v191 = vld [vmem:[%s1 + $0x88] sm:$0xff]
  %v192 = vld [vmem:[%s1 + $0x90] sm:$0xff]
  %v193 = vld [vmem:[%s1 + $0x98] sm:$0xff]
  %v194 = vld [vmem:[%s1 + $0xa0] sm:$0xff]
  %v195 = vld [vmem:[%s1 + $0xa8] sm:$0xff]
  %v196 = vld [vmem:[%s1 + $0xb0] sm:$0xff]
  %v197 = vld [vmem:[%s1 + $0xb8] sm:$0xff]
  %v198 = vld [vmem:[%s1 + $0xc0] sm:$0xff]
  %v199 = vld [vmem:[%s1 + $0xc8] sm:$0xff]
  %v200 = vld [vmem:[%s1 + $0xd0] sm:$0xff]
  %v201 = vld [vmem:[%s1 + $0xd8] sm:$0xff]
  %v202 = vld [vmem:[%s1 + $0xe0] sm:$0xff]
  %v203 = vld [vmem:[%s1 + $0xe8] sm:$0xff]
  %v204 = vld [vmem:[%s1 + $0xf0] sm:$0xff]
  %v205 = vld [vmem:[%s1 + $0xf8] sm:$0xff]
  %v206 = vld [vmem:[%s1 + $0x100] sm:$0xff]
  %v207 = vld [vmem:[%s1 + $0x108] sm:$0xff]
  %v208 = vld [vmem:[%s1 + $0x110] sm:$0xff]
  %v209 = vld [vmem:[%s1 + $0x118] sm:$0xff]
  %v210 = vld [vmem:[%s1 + $0x120] sm:$0xff]
  %v211 = vld [vmem:[%s1 + $0x128] sm:$0xff]
  %v212 = vld [vmem:[%s1 + $0x130] sm:$0xff]
  %v213 = vld [vmem:[%s1 + $0x138] sm:$0xff]
  %v214 = vld [vmem:[%s1 + $0x140] sm:$0xff]
  %v215 = vld [vmem:[%s1 + $0x148] sm:$0xff]
  %v216 = vld [vmem:[%s1 + $0x150] sm:$0xff]
  %v217 = vld [vmem:[%s1 + $0x158] sm:$0xff]
  %v218 = vld [vmem:[%s1 + $0x160] sm:$0xff]
  %v219 = vld [vmem:[%s1 + $0x168] sm:$0xff]
  %v220 = vld [vmem:[%s1 + $0x170] sm:$0xff]
  %v221 = vld [vmem:[%s1 + $0x178] sm:$0xff]
  %v222 = vld [vmem:[%s1 + $0x180] sm:$0xff]
  %v223 = vld [vmem:[%s1 + $0x188] sm:$0xff]
  %v224 = vld [vmem:[%s1 + $0x190] sm:$0xff]
  %v225 = vld [vmem:[%s1 + $0x198] sm:$0xff]
  %v226 = vld [vmem:[%s1 + $0x1a0] sm:$0xff]
  %v227 = vld [vmem:[%s1 + $0x1a8] sm:$0xff]
  %v228 = vld [vmem:[%s1 + $0x1b0] sm:$0xff]
  %v229 = vld [vmem:[%s1 + $0x1b8] sm:$0xff]
  %v230 = vld [vmem:[%s1 + $0x1c0] sm:$0xff]
  %v231 = vld [vmem:[%s1 + $0x1c8] sm:$0xff]
  %v232 = vld [vmem:[%s1 + $0x1d0] sm:$0xff]
  %v233 = vld [vmem:[%s1 + $0x1d8] sm:$0xff]
  %v234 = vld [vmem:[%s1 + $0x1e0] sm:$0xff]
  %v235 = vld [vmem:[%s1 + $0x1e8] sm:$0xff]
  %v236 = vld [vmem:[%s1 + $0x1f0] sm:$0xff]
  %v237 = vld [vmem:[%s1 + $0x1f8] sm:$0xff]
  %v238 = vld [vmem:[%s1 + $0x200] sm:$0xff]
  %v239 = vld [vmem:[%s1 + $0x208] sm:$0xff]
  %v240 = vld [vmem:[%s1 + $0x210] sm:$0xff]
  %v241 = vld [vmem:[%s1 + $0x218] sm:$0xff]
  %v242 = vld [vmem:[%s1 + $0x220] sm:$0xff]
  %v243 = vld [vmem:[%s1 + $0x228] sm:$0xff]
  %v244 = vld [vmem:[%s1 + $0x230] sm:$0xff]
  %v245 = vld [vmem:[%s1 + $0x238] sm:$0xff]
  %v246 = vld [vmem:[%s2] sm:$0xff]
  %v247 = vld [vmem:[%s2 + $0x8] sm:$0xff]
  %v248 = vld [vmem:[%s2 + $0x10] sm:$0xff]
  %v249 = vld [vmem:[%s2 + $0x18] sm:$0xff]
  %v250 = vld [vmem:[%s2 + $0x20] sm:$0xff]
  %v251 = vld [vmem:[%s2 + $0x28] sm:$0xff]
  %v252 = vld [vmem:[%s2 + $0x30] sm:$0xff]
  %v253 = vld [vmem:[%s2 + $0x38] sm:$0xff]
  %v254 = vld [vmem:[%s2 + $0x40] sm:$0xff]
  %v255 = vld [vmem:[%s2 + $0x48] sm:$0xff]
  %v256 = vld [vmem:[%s2 + $0x50] sm:$0xff]
  %v257 = vld [vmem:[%s2 + $0x58] sm:$0xff]
  %v258 = vld [vmem:[%s2 + $0x60] sm:$0xff]
  %v259 = vld [vmem:[%s2 + $0x68] sm:$0xff]
  %v260 = vld [vmem:[%s2 + $0x70] sm:$0xff]
  %v261 = vld [vmem:[%s2 + $0x78] sm:$0xff]
  %v262 = vld [vmem:[%s2 + $0x80] sm:$0xff]
  %v263 = vld [vmem:[%s2 + $0x88] sm:$0xff]
  %v264 = vld [vmem:[%s2 + $0x90] sm:$0xff]
  %v265 = vld [vmem:[%s2 + $0x98] sm:$0xff]
  %v266 = vld [vmem:[%s2 + $0xa0] sm:$0xff]
  %v267 = vld [vmem:[%s2 + $0xa8] sm:$0xff]
  %v268 = vld [vmem:[%s2 + $0xb0] sm:$0xff]
  %v269 = vld [vmem:[%s2 + $0xb8] sm:$0xff]
  %v270 = vld [vmem:[%s2 + $0xc0] sm:$0xff]
  %v271 = vld [vmem:[%s2 + $0xc8] sm:$0xff]
  %v272 = vld [vmem:[%s2 + $0xd0] sm:$0xff]
  %v273 = vld [vmem:[%s2 + $0xd8] sm:$0xff]
  %v274 = vld [vmem:[%s2 + $0xe0] sm:$0xff]
  %v275 = vld [vmem:[%s2 + $0xe8] sm:$0xff]
  %v276 = vld [vmem:[%s2 + $0xf0] sm:$0xff]
  %v277 = vld [vmem:[%s2 + $0xf8] sm:$0xff]
  %279 = vset.pattern.permute.xlu0 0
  %280 = vperm.xlu0 %279, %v246
  %v281 = vpop.permute.xlu0 %280
  %284 = vset.pattern.permute.xlu0 0
  %285 = vperm.xlu0 %284, %v247
  %v286 = vpop.permute.xlu0 %285
  %289 = vset.pattern.permute.xlu0 0
  %290 = vperm.xlu0 %289, %v248
  %v291 = vpop.permute.xlu0 %290
  %294 = vset.pattern.permute.xlu0 0
  %295 = vperm.xlu0 %294, %v249
  %v296 = vpop.permute.xlu0 %295
  %299 = vset.pattern.permute.xlu0 0
  %300 = vperm.xlu0 %299, %v250
  %v301 = vpop.permute.xlu0 %300
  %304 = vset.pattern.permute.xlu0 0
  %305 = vperm.xlu0 %304, %v251
  %v306 = vpop.permute.xlu0 %305
  %309 = vset.pattern.permute.xlu0 0
  %310 = vperm.xlu0 %309, %v252
  %v311 = vpop.permute.xlu0 %310
  %314 = vset.pattern.permute.xlu0 0
  %315 = vperm.xlu0 %314, %v253
  %v316 = vpop.permute.xlu0 %315
  %319 = vset.pattern.permute.xlu0 0
  %320 = vperm.xlu0 %319, %v254
  %v321 = vpop.permute.xlu0 %320
  %324 = vset.pattern.permute.xlu0 0
  %325 = vperm.xlu0 %324, %v255
  %v326 = vpop.permute.xlu0 %325
  %329 = vset.pattern.permute.xlu0 0
  %330 = vperm.xlu0 %329, %v256
  %v331 = vpop.permute.xlu0 %330
  %334 = vset.pattern.permute.xlu0 0
  %335 = vperm.xlu0 %334, %v257
  %v336 = vpop.permute.xlu0 %335
  %339 = vset.pattern.permute.xlu0 0
  %340 = vperm.xlu0 %339, %v258
  %v341 = vpop.permute.xlu0 %340
  %344 = vset.pattern.permute.xlu0 0
  %345 = vperm.xlu0 %344, %v259
  %v346 = vpop.permute.xlu0 %345
  %349 = vset.pattern.permute.xlu0 0
  %350 = vperm.xlu0 %349, %v260
  %v351 = vpop.permute.xlu0 %350
  %354 = vset.pattern.permute.xlu0 0
  %355 = vperm.xlu0 %354, %v261
  %v356 = vpop.permute.xlu0 %355
  %359 = vset.pattern.permute.xlu0 0
  %360 = vperm.xlu0 %359, %v262
  %v361 = vpop.permute.xlu0 %360
  %364 = vset.pattern.permute.xlu0 0
  %365 = vperm.xlu0 %364, %v263
  %v366 = vpop.permute.xlu0 %365
  %369 = vset.pattern.permute.xlu0 0
  %370 = vperm.xlu0 %369, %v264
  %v371 = vpop.permute.xlu0 %370
  %374 = vset.pattern.permute.xlu0 0
  %375 = vperm.xlu0 %374, %v265
  %v376 = vpop.permute.xlu0 %375
  %379 = vset.pattern.permute.xlu0 0
  %380 = vperm.xlu0 %379, %v266
  %v381 = vpop.permute.xlu0 %380
  %384 = vset.pattern.permute.xlu0 0
  %385 = vperm.xlu0 %384, %v267
  %v386 = vpop.permute.xlu0 %385
  %389 = vset.pattern.permute.xlu0 0
  %390 = vperm.xlu0 %389, %v268
  %v391 = vpop.permute.xlu0 %390
  %394 = vset.pattern.permute.xlu0 0
  %395 = vperm.xlu0 %394, %v269
  %v396 = vpop.permute.xlu0 %395
  %399 = vset.pattern.permute.xlu0 0
  %400 = vperm.xlu0 %399, %v270
  %v401 = vpop.permute.xlu0 %400
  %404 = vset.pattern.permute.xlu0 0
  %405 = vperm.xlu0 %404, %v271
  %v406 = vpop.permute.xlu0 %405
  %409 = vset.pattern.permute.xlu0 0
  %410 = vperm.xlu0 %409, %v272
  %v411 = vpop.permute.xlu0 %410
  %414 = vset.pattern.permute.xlu0 0
  %415 = vperm.xlu0 %414, %v273
  %v416 = vpop.permute.xlu0 %415
  %419 = vset.pattern.permute.xlu0 0
  %420 = vperm.xlu0 %419, %v274
  %v421 = vpop.permute.xlu0 %420
  %424 = vset.pattern.permute.xlu0 0
  %425 = vperm.xlu0 %424, %v275
  %v426 = vpop.permute.xlu0 %425
  %429 = vset.pattern.permute.xlu0 0
  %430 = vperm.xlu0 %429, %v276
  %v431 = vpop.permute.xlu0 %430
  %434 = vset.pattern.permute.xlu0 0
  %435 = vperm.xlu0 %434, %v277
  %v436 = vpop.permute.xlu0 %435
  %vm438 = vcmask 523264
  %v440 = vsel %vm438, %v18, 0
  %v443 = vsel %vm438, %v23, 0
  %v446 = vsel %vm438, %v28, 0
  %v449 = vsel %vm438, %v33, 0
  %v452 = vsel %vm438, %v38, 0
  %v455 = vsel %vm438, %v43, 0
  %v458 = vsel %vm438, %v48, 0
  %v461 = vsel %vm438, %v53, 0
  %v464 = vsel %vm438, %v58, 0
  %v467 = vsel %vm438, %v63, 0
  %v470 = vsel %vm438, %v68, 0
  %v473 = vsel %vm438, %v73, 0
  %v476 = vsel %vm438, %v78, 0
  %v479 = vsel %vm438, %v83, 0
  %v482 = vsel %vm438, %v88, 0
  %v485 = vsel %vm438, %v93, 0
  %v488 = vsel %vm438, %v98, 0
  %v491 = vsel %vm438, %v103, 0
  %v494 = vsel %vm438, %v108, 0
  %v497 = vsel %vm438, %v113, 0
  %v500 = vsel %vm438, %v118, 0
  %v503 = vsel %vm438, %v123, 0
  %v506 = vsel %vm438, %v128, 0
  %v509 = vsel %vm438, %v133, 0
  %v512 = vsel %vm438, %v138, 0
  %v515 = vsel %vm438, %v143, 0
  %v518 = vsel %vm438, %v148, 0
  %v521 = vsel %vm438, %v153, 0
  %v524 = vsel %vm438, %v158, 0
  %v527 = vsel %vm438, %v163, 0
  %v530 = vsel %vm438, %v168, 0
  %v533 = vsel %vm438, %v173, 0
  %535 = vmatprep.subr.mxu0 0.0
  %536 = vmatpush1.msra.mxu0 %v174
  %537 = vmatprep.subr.mxu0 0.0
  %538 = vmatpush1.msra.mxu0 %v175
  %539 = vmatprep.subr.mxu0 0.0
  %540 = vmatpush1.msra.mxu0 %v176
  %541 = vmatprep.subr.mxu0 0.0
  %542 = vmatpush1.msra.mxu0 %v177
  %543 = vmatprep.subr.mxu0 0.0
  %544 = vmatpush1.msra.mxu0 %v178
  %545 = vmatprep.subr.mxu0 0.0
  %546 = vmatpush1.msra.mxu0 %v179
  %547 = vmatprep.subr.mxu0 0.0
  %548 = vmatpush1.msra.mxu0 %v180
  %549 = vmatprep.subr.mxu0 0.0
  %550 = vmatpush1.msra.mxu0 %v181
  %551 = vmatprep.subr.mxu0 0.0
  %552 = vmatpush1.msra.mxu0 %v182
  %553 = vmatprep.subr.mxu0 0.0
  %554 = vmatpush1.msra.mxu0 %v183
  %555 = vmatprep.subr.mxu0 0.0
  %556 = vmatpush1.msra.mxu0 %v184
  %557 = vmatprep.subr.mxu0 0.0
  %558 = vmatpush1.msra.mxu0 %v185
  %559 = vmatprep.subr.mxu0 0.0
  %560 = vmatpush1.msra.mxu0 %v186
  %561 = vmatprep.subr.mxu0 0.0
  %562 = vmatpush1.msra.mxu0 %v187
  %563 = vmatprep.subr.mxu0 0.0
  %564 = vmatpush1.msra.mxu0 %v188
  %565 = vmatprep.subr.mxu0 0.0
  %566 = vmatpush1.msra.mxu0 %v189
  %567 = vmatprep.subr.mxu0 0.0
  %568 = vmatpush1.msra.mxu0 %v190
  %569 = vmatprep.subr.mxu0 0.0
  %570 = vmatpush1.msra.mxu0 %v191
  %571 = vmatprep.subr.mxu0 0.0
  %572 = vmatpush1.msra.mxu0 %v192
  %573 = vmatprep.subr.mxu0 0.0
  %574 = vmatpush1.msra.mxu0 %v193
  %575 = vmatprep.subr.mxu0 0.0
  %576 = vmatpush1.msra.mxu0 %v194
  %577 = vmatprep.subr.mxu0 0.0
  %578 = vmatpush1.msra.mxu0 %v195
  %579 = vmatprep.subr.mxu0 0.0
  %580 = vmatpush1.msra.mxu0 %v196
  %581 = vmatprep.subr.mxu0 0.0
  %582 = vmatpush1.msra.mxu0 %v197
  %583 = vmatprep.subr.mxu0 0.0
  %584 = vmatpush1.msra.mxu0 %v198
  %585 = vmatprep.subr.mxu0 0.0
  %586 = vmatpush1.msra.mxu0 %v199
  %587 = vmatprep.subr.mxu0 0.0
  %588 = vmatpush1.msra.mxu0 %v200
  %589 = vmatprep.subr.mxu0 0.0
  %590 = vmatpush1.msra.mxu0 %v201
  %591 = vmatprep.subr.mxu0 0.0
  %592 = vmatpush1.msra.mxu0 %v202
  %593 = vmatprep.subr.mxu0 0.0
  %594 = vmatpush1.msra.mxu0 %v203
  %595 = vmatprep.subr.mxu0 0.0
  %596 = vmatpush1.msra.mxu0 %v204
  %597 = vmatprep.subr.mxu0 0.0
  %598 = vmatpush1.msra.mxu0 %v205
  %599 = vmatprep.mubr.f32.mxu0 %v15
  %600 = vmatmul.mubr.f32.gmra.mrb[0].mxu0 %v14
  %v601 = vpop.f32.mrb[0].mxu0
  %v602 = vadd.f32 %v281, %v601
  %v603 = vpop.f32.mrb[0].mxu0
  %604 = vmatprep.mubr.f32.mxu0 %v20
  %605 = vmatmul.mubr.f32.gmra.mrb[0].mxu0 %v19
  %v606 = vpop.f32.mrb[0].mxu0
  %v607 = vadd.f32 %v286, %v606
  %v608 = vpop.f32.mrb[0].mxu0
  %609 = vmatprep.mubr.f32.mxu0 %v25
  %610 = vmatmul.mubr.f32.gmra.mrb[0].mxu0 %v24
  %v611 = vpop.f32.mrb[0].mxu0
  %v612 = vadd.f32 %v291, %v611
  %v613 = vpop.f32.mrb[0].mxu0
  %614 = vmatprep.mubr.f32.mxu0 %v30
  %615 = vmatmul.mubr.f32.gmra.mrb[0].mxu0 %v29
  %v616 = vpop.f32.mrb[0].mxu0
  %v617 = vadd.f32 %v296, %v616
  %v618 = vpop.f32.mrb[0].mxu0
  %619 = vmatprep.mubr.f32.mxu0 %v35
  %620 = vmatmul.mubr.f32.gmra.mrb[0].mxu0 %v34
  %v621 = vpop.f32.mrb[0].mxu0
  %v622 = vadd.f32 %v301, %v621
  %v623 = vpop.f32.mrb[0].mxu0
  %624 = vmatprep.mubr.f32.mxu0 %v40
  %625 = vmatmul.mubr.f32.gmra.mrb[0].mxu0 %v39
  %v626 = vpop.f32.mrb[0].mxu0
  %v627 = vadd.f32 %v306, %v626
  %v628 = vpop.f32.mrb[0].mxu0
  %629 = vmatprep.mubr.f32.mxu0 %v45
  %630 = vmatmul.mubr.f32.gmra.mrb[0].mxu0 %v44
  %v631 = vpop.f32.mrb[0].mxu0
  %v632 = vadd.f32 %v311, %v631
  %v633 = vpop.f32.mrb[0].mxu0
  %634 = vmatprep.mubr.f32.mxu0 %v50
  %635 = vmatmul.mubr.f32.gmra.mrb[0].mxu0 %v49
  %v636 = vpop.f32.mrb[0].mxu0
  %v637 = vadd.f32 %v316, %v636
  %v638 = vpop.f32.mrb[0].mxu0
  %639 = vmatprep.mubr.f32.mxu0 %v55
  %640 = vmatmul.mubr.f32.gmra.mrb[0].mxu0 %v54
  %v641 = vpop.f32.mrb[0].mxu0
  %v642 = vadd.f32 %v321, %v641
  %v643 = vpop.f32.mrb[0].mxu0
  %644 = vmatprep.mubr.f32.mxu0 %v60
  %645 = vmatmul.mubr.f32.gmra.mrb[0].mxu0 %v59
  %v646 = vpop.f32.mrb[0].mxu0
  %v647 = vadd.f32 %v326, %v646
  %v648 = vpop.f32.mrb[0].mxu0
  %649 = vmatprep.mubr.f32.mxu0 %v65
  %650 = vmatmul.mubr.f32.gmra.mrb[0].mxu0 %v64
  %v651 = vpop.f32.mrb[0].mxu0
  %v652 = vadd.f32 %v331, %v651
  %v653 = vpop.f32.mrb[0].mxu0
  %654 = vmatprep.mubr.f32.mxu0 %v70
  %655 = vmatmul.mubr.f32.gmra.mrb[0].mxu0 %v69
  %v656 = vpop.f32.mrb[0].mxu0
  %v657 = vadd.f32 %v336, %v656
  %v658 = vpop.f32.mrb[0].mxu0
  %659 = vmatprep.mubr.f32.mxu0 %v75
  %660 = vmatmul.mubr.f32.gmra.mrb[0].mxu0 %v74
  %v661 = vpop.f32.mrb[0].mxu0
  %v662 = vadd.f32 %v341, %v661
  %v663 = vpop.f32.mrb[0].mxu0
  %664 = vmatprep.mubr.f32.mxu0 %v80
  %665 = vmatmul.mubr.f32.gmra.mrb[0].mxu0 %v79
  %v666 = vpop.f32.mrb[0].mxu0
  %v667 = vadd.f32 %v346, %v666
  %v668 = vpop.f32.mrb[0].mxu0
  %669 = vmatprep.mubr.f32.mxu0 %v85
  %670 = vmatmul.mubr.f32.gmra.mrb[0].mxu0 %v84
  %v671 = vpop.f32.mrb[0].mxu0
  %v672 = vadd.f32 %v351, %v671
  %v673 = vpop.f32.mrb[0].mxu0
  %674 = vmatprep.mubr.f32.mxu0 %v90
  %675 = vmatmul.mubr.f32.gmra.mrb[0].mxu0 %v89
  %v676 = vpop.f32.mrb[0].mxu0
  %v677 = vadd.f32 %v356, %v676
  %v678 = vpop.f32.mrb[0].mxu0
  %679 = vmatprep.mubr.f32.mxu0 %v95
  %680 = vmatmul.mubr.f32.gmra.mrb[0].mxu0 %v94
  %v681 = vpop.f32.mrb[0].mxu0
  %v682 = vadd.f32 %v361, %v681
  %v683 = vpop.f32.mrb[0].mxu0
  %684 = vmatprep.mubr.f32.mxu0 %v100
  %685 = vmatmul.mubr.f32.gmra.mrb[0].mxu0 %v99
  %v686 = vpop.f32.mrb[0].mxu0
  %v687 = vadd.f32 %v366, %v686
  %v688 = vpop.f32.mrb[0].mxu0
  %689 = vmatprep.mubr.f32.mxu0 %v105
  %690 = vmatmul.mubr.f32.gmra.mrb[0].mxu0 %v104
  %v691 = vpop.f32.mrb[0].mxu0
  %v692 = vadd.f32 %v371, %v691
  %v693 = vpop.f32.mrb[0].mxu0
  %694 = vmatprep.mubr.f32.mxu0 %v110
  %695 = vmatmul.mubr.f32.gmra.mrb[0].mxu0 %v109
  %v696 = vpop.f32.mrb[0].mxu0
  %v697 = vadd.f32 %v376, %v696
  %v698 = vpop.f32.mrb[0].mxu0
  %699 = vmatprep.mubr.f32.mxu0 %v115
  %700 = vmatmul.mubr.f32.gmra.mrb[0].mxu0 %v114
  %v701 = vpop.f32.mrb[0].mxu0
  %v702 = vadd.f32 %v381, %v701
  %v703 = vpop.f32.mrb[0].mxu0
  %704 = vmatprep.mubr.f32.mxu0 %v120
  %705 = vmatmul.mubr.f32.gmra.mrb[0].mxu0 %v119
  %v706 = vpop.f32.mrb[0].mxu0
  %v707 = vadd.f32 %v386, %v706
  %v708 = vpop.f32.mrb[0].mxu0
  %709 = vmatprep.mubr.f32.mxu0 %v125
  %710 = vmatmul.mubr.f32.gmra.mrb[0].mxu0 %v124
  %v711 = vpop.f32.mrb[0].mxu0
  %v712 = vadd.f32 %v391, %v711
  %v713 = vpop.f32.mrb[0].mxu0
  %714 = vmatprep.mubr.f32.mxu0 %v130
  %715 = vmatmul.mubr.f32.gmra.mrb[0].mxu0 %v129
  %v716 = vpop.f32.mrb[0].mxu0
  %v717 = vadd.f32 %v396, %v716
  %v718 = vpop.f32.mrb[0].mxu0
  %719 = vmatprep.mubr.f32.mxu0 %v135
  %720 = vmatmul.mubr.f32.gmra.mrb[0].mxu0 %v134
  %v721 = vpop.f32.mrb[0].mxu0
  %v722 = vadd.f32 %v401, %v721
  %v723 = vpop.f32.mrb[0].mxu0
  %724 = vmatprep.mubr.f32.mxu0 %v140
  %725 = vmatmul.mubr.f32.gmra.mrb[0].mxu0 %v139
  %v726 = vpop.f32.mrb[0].mxu0
  %v727 = vadd.f32 %v406, %v726
  %v728 = vpop.f32.mrb[0].mxu0
  %729 = vmatprep.mubr.f32.mxu0 %v145
  %730 = vmatmul.mubr.f32.gmra.mrb[0].mxu0 %v144
  %v731 = vpop.f32.mrb[0].mxu0
  %v732 = vadd.f32 %v411, %v731
  %v733 = vpop.f32.mrb[0].mxu0
  %734 = vmatprep.mubr.f32.mxu0 %v150
  %735 = vmatmul.mubr.f32.gmra.mrb[0].mxu0 %v149
  %v736 = vpop.f32.mrb[0].mxu0
  %v737 = vadd.f32 %v416, %v736
  %v738 = vpop.f32.mrb[0].mxu0
  %739 = vmatprep.mubr.f32.mxu0 %v155
  %740 = vmatmul.mubr.f32.gmra.mrb[0].mxu0 %v154
  %v741 = vpop.f32.mrb[0].mxu0
  %v742 = vadd.f32 %v421, %v741
  %v743 = vpop.f32.mrb[0].mxu0
  %744 = vmatprep.mubr.f32.mxu0 %v160
  %745 = vmatmul.mubr.f32.gmra.mrb[0].mxu0 %v159
  %v746 = vpop.f32.mrb[0].mxu0
  %v747 = vadd.f32 %v426, %v746
  %v748 = vpop.f32.mrb[0].mxu0
  %749 = vmatprep.mubr.f32.mxu0 %v165
  %750 = vmatmul.mubr.f32.gmra.mrb[0].mxu0 %v164
  %v751 = vpop.f32.mrb[0].mxu0
  %v752 = vadd.f32 %v431, %v751
  %v753 = vpop.f32.mrb[0].mxu0
  %754 = vmatprep.mubr.f32.mxu0 %v170
  %755 = vmatmul.mubr.f32.gmra.mrb[0].mxu0 %v169
  %v756 = vpop.f32.mrb[0].mxu0
  %v757 = vadd.f32 %v436, %v756
  %v758 = vpop.f32.mrb[0].mxu0
  %759 = vdwg.mxu0
  %760 = vmatprep.subr.mxu0 0.0
  %761 = vmatpush1.msra.mxu0 %v206
  %762 = vmatprep.subr.mxu0 0.0
  %763 = vmatpush1.msra.mxu0 %v207
  %764 = vmatprep.subr.mxu0 0.0
  %765 = vmatpush1.msra.mxu0 %v208
  %766 = vmatprep.subr.mxu0 0.0
  %767 = vmatpush1.msra.mxu0 %v209
  %768 = vmatprep.subr.mxu0 0.0
  %769 = vmatpush1.msra.mxu0 %v210
  %770 = vmatprep.subr.mxu0 0.0
  %771 = vmatpush1.msra.mxu0 %v211
  %772 = vmatprep.subr.mxu0 0.0
  %773 = vmatpush1.msra.mxu0 %v212
  %774 = vmatprep.subr.mxu0 0.0
  %775 = vmatpush1.msra.mxu0 %v213
  %776 = vmatprep.subr.mxu0 0.0
  %777 = vmatpush1.msra.mxu0 %v214
  %778 = vmatprep.subr.mxu0 0.0
  %779 = vmatpush1.msra.mxu0 %v215
  %780 = vmatprep.subr.mxu0 0.0
  %781 = vmatpush1.msra.mxu0 %v216
  %782 = vmatprep.subr.mxu0 0.0
  %783 = vmatpush1.msra.mxu0 %v217
  %784 = vmatprep.subr.mxu0 0.0
  %785 = vmatpush1.msra.mxu0 %v218
  %786 = vmatprep.subr.mxu0 0.0
  %787 = vmatpush1.msra.mxu0 %v219
  %788 = vmatprep.subr.mxu0 0.0
  %789 = vmatpush1.msra.mxu0 %v220
  %790 = vmatprep.subr.mxu0 0.0
  %791 = vmatpush1.msra.mxu0 %v221
  %792 = vmatprep.subr.mxu0 0.0
  %793 = vmatpush1.msra.mxu0 %v222
  %794 = vmatprep.subr.mxu0 0.0
  %795 = vmatpush1.msra.mxu0 %v223
  %796 = vmatprep.subr.mxu0 0.0
  %797 = vmatpush1.msra.mxu0 %v224
  %798 = vmatprep.subr.mxu0 0.0
  %799 = vmatpush1.msra.mxu0 %v225
  %800 = vmatprep.subr.mxu0 0.0
  %801 = vmatpush1.msra.mxu0 %v226
  %802 = vmatprep.subr.mxu0 0.0
  %803 = vmatpush1.msra.mxu0 %v227
  %804 = vmatprep.subr.mxu0 0.0
  %805 = vmatpush1.msra.mxu0 %v228
  %806 = vmatprep.subr.mxu0 0.0
  %807 = vmatpush1.msra.mxu0 %v229
  %808 = vmatprep.subr.mxu0 0.0
  %809 = vmatpush1.msra.mxu0 %v230
  %810 = vmatprep.subr.mxu0 0.0
  %811 = vmatpush1.msra.mxu0 %v231
  %812 = vmatprep.subr.mxu0 0.0
  %813 = vmatpush1.msra.mxu0 %v232
  %814 = vmatprep.subr.mxu0 0.0
  %815 = vmatpush1.msra.mxu0 %v233
  %816 = vmatprep.subr.mxu0 0.0
  %817 = vmatpush1.msra.mxu0 %v234
  %818 = vmatprep.subr.mxu0 0.0
  %819 = vmatpush1.msra.mxu0 %v235
  %820 = vmatprep.subr.mxu0 0.0
  %821 = vmatpush1.msra.mxu0 %v236
  %822 = vmatprep.subr.mxu0 0.0
  %823 = vmatpush1.msra.mxu0 %v237
  %824 = vmatprep.mubr.f32.mxu0 %v17
  %825 = vmatmul.mubr.f32.gmra.mrb[0].mxu0 %v16
  %v826 = vpop.f32.mrb[0].mxu0
  %v827 = vadd.f32 %v602, %v826
  %v828 = vpop.f32.mrb[0].mxu0
  %829 = vmatprep.mubr.f32.mxu0 %v22
  %830 = vmatmul.mubr.f32.gmra.mrb[0].mxu0 %v21
  %v831 = vpop.f32.mrb[0].mxu0
  %v832 = vadd.f32 %v607, %v831
  %v833 = vpop.f32.mrb[0].mxu0
  %834 = vmatprep.mubr.f32.mxu0 %v27
  %835 = vmatmul.mubr.f32.gmra.mrb[0].mxu0 %v26
  %v836 = vpop.f32.mrb[0].mxu0
  %v837 = vadd.f32 %v612, %v836
  %v838 = vpop.f32.mrb[0].mxu0
  %839 = vmatprep.mubr.f32.mxu0 %v32
  %840 = vmatmul.mubr.f32.gmra.mrb[0].mxu0 %v31
  %v841 = vpop.f32.mrb[0].mxu0
  %v842 = vadd.f32 %v617, %v841
  %v843 = vpop.f32.mrb[0].mxu0
  %844 = vmatprep.mubr.f32.mxu0 %v37
  %845 = vmatmul.mubr.f32.gmra.mrb[0].mxu0 %v36
  %v846 = vpop.f32.mrb[0].mxu0
  %v847 = vadd.f32 %v622, %v846
  %v848 = vpop.f32.mrb[0].mxu0
  %849 = vmatprep.mubr.f32.mxu0 %v42
  %850 = vmatmul.mubr.f32.gmra.mrb[0].mxu0 %v41
  %v851 = vpop.f32.mrb[0].mxu0
  %v852 = vadd.f32 %v627, %v851
  %v853 = vpop.f32.mrb[0].mxu0
  %854 = vmatprep.mubr.f32.mxu0 %v47
  %855 = vmatmul.mubr.f32.gmra.mrb[0].mxu0 %v46
  %v856 = vpop.f32.mrb[0].mxu0
  %v857 = vadd.f32 %v632, %v856
  %v858 = vpop.f32.mrb[0].mxu0
  %859 = vmatprep.mubr.f32.mxu0 %v52
  %860 = vmatmul.mubr.f32.gmra.mrb[0].mxu0 %v51
  %v861 = vpop.f32.mrb[0].mxu0
  %v862 = vadd.f32 %v637, %v861
  %v863 = vpop.f32.mrb[0].mxu0
  %864 = vmatprep.mubr.f32.mxu0 %v57
  %865 = vmatmul.mubr.f32.gmra.mrb[0].mxu0 %v56
  %v866 = vpop.f32.mrb[0].mxu0
  %v867 = vadd.f32 %v642, %v866
  %v868 = vpop.f32.mrb[0].mxu0
  %869 = vmatprep.mubr.f32.mxu0 %v62
  %870 = vmatmul.mubr.f32.gmra.mrb[0].mxu0 %v61
  %v871 = vpop.f32.mrb[0].mxu0
  %v872 = vadd.f32 %v647, %v871
  %v873 = vpop.f32.mrb[0].mxu0
  %874 = vmatprep.mubr.f32.mxu0 %v67
  %875 = vmatmul.mubr.f32.gmra.mrb[0].mxu0 %v66
  %v876 = vpop.f32.mrb[0].mxu0
  %v877 = vadd.f32 %v652, %v876
  %v878 = vpop.f32.mrb[0].mxu0
  %879 = vmatprep.mubr.f32.mxu0 %v72
  %880 = vmatmul.mubr.f32.gmra.mrb[0].mxu0 %v71
  %v881 = vpop.f32.mrb[0].mxu0
  %v882 = vadd.f32 %v657, %v881
  %v883 = vpop.f32.mrb[0].mxu0
  %884 = vmatprep.mubr.f32.mxu0 %v77
  %885 = vmatmul.mubr.f32.gmra.mrb[0].mxu0 %v76
  %v886 = vpop.f32.mrb[0].mxu0
  %v887 = vadd.f32 %v662, %v886
  %v888 = vpop.f32.mrb[0].mxu0
  %889 = vmatprep.mubr.f32.mxu0 %v82
  %890 = vmatmul.mubr.f32.gmra.mrb[0].mxu0 %v81
  %v891 = vpop.f32.mrb[0].mxu0
  %v892 = vadd.f32 %v667, %v891
  %v893 = vpop.f32.mrb[0].mxu0
  %894 = vmatprep.mubr.f32.mxu0 %v87
  %895 = vmatmul.mubr.f32.gmra.mrb[0].mxu0 %v86
  %v896 = vpop.f32.mrb[0].mxu0
  %v897 = vadd.f32 %v672, %v896
  %v898 = vpop.f32.mrb[0].mxu0
  %899 = vmatprep.mubr.f32.mxu0 %v92
  %900 = vmatmul.mubr.f32.gmra.mrb[0].mxu0 %v91
  %v901 = vpop.f32.mrb[0].mxu0
  %v902 = vadd.f32 %v677, %v901
  %v903 = vpop.f32.mrb[0].mxu0
  %904 = vmatprep.mubr.f32.mxu0 %v97
  %905 = vmatmul.mubr.f32.gmra.mrb[0].mxu0 %v96
  %v906 = vpop.f32.mrb[0].mxu0
  %v907 = vadd.f32 %v682, %v906
  %v908 = vpop.f32.mrb[0].mxu0
  %909 = vmatprep.mubr.f32.mxu0 %v102
  %910 = vmatmul.mubr.f32.gmra.mrb[0].mxu0 %v101
  %v911 = vpop.f32.mrb[0].mxu0
  %v912 = vadd.f32 %v687, %v911
  %v913 = vpop.f32.mrb[0].mxu0
  %914 = vmatprep.mubr.f32.mxu0 %v107
  %915 = vmatmul.mubr.f32.gmra.mrb[0].mxu0 %v106
  %v916 = vpop.f32.mrb[0].mxu0
  %v917 = vadd.f32 %v692, %v916
  %v918 = vpop.f32.mrb[0].mxu0
  %919 = vmatprep.mubr.f32.mxu0 %v112
  %920 = vmatmul.mubr.f32.gmra.mrb[0].mxu0 %v111
  %v921 = vpop.f32.mrb[0].mxu0
  %v922 = vadd.f32 %v697, %v921
  %v923 = vpop.f32.mrb[0].mxu0
  %924 = vmatprep.mubr.f32.mxu0 %v117
  %925 = vmatmul.mubr.f32.gmra.mrb[0].mxu0 %v116
  %v926 = vpop.f32.mrb[0].mxu0
  %v927 = vadd.f32 %v702, %v926
  %v928 = vpop.f32.mrb[0].mxu0
  %929 = vmatprep.mubr.f32.mxu0 %v122
  %930 = vmatmul.mubr.f32.gmra.mrb[0].mxu0 %v121
  %v931 = vpop.f32.mrb[0].mxu0
  %v932 = vadd.f32 %v707, %v931
  %v933 = vpop.f32.mrb[0].mxu0
  %934 = vmatprep.mubr.f32.mxu0 %v127
  %935 = vmatmul.mubr.f32.gmra.mrb[0].mxu0 %v126
  %v936 = vpop.f32.mrb[0].mxu0
  %v937 = vadd.f32 %v712, %v936
  %v938 = vpop.f32.mrb[0].mxu0
  %939 = vmatprep.mubr.f32.mxu0 %v132
  %940 = vmatmul.mubr.f32.gmra.mrb[0].mxu0 %v131
  %v941 = vpop.f32.mrb[0].mxu0
  %v942 = vadd.f32 %v717, %v941
  %v943 = vpop.f32.mrb[0].mxu0
  %944 = vmatprep.mubr.f32.mxu0 %v137
  %945 = vmatmul.mubr.f32.gmra.mrb[0].mxu0 %v136
  %v946 = vpop.f32.mrb[0].mxu0
  %v947 = vadd.f32 %v722, %v946
  %v948 = vpop.f32.mrb[0].mxu0
  %949 = vmatprep.mubr.f32.mxu0 %v142
  %950 = vmatmul.mubr.f32.gmra.mrb[0].mxu0 %v141
  %v951 = vpop.f32.mrb[0].mxu0
  %v952 = vadd.f32 %v727, %v951
  %v953 = vpop.f32.mrb[0].mxu0
  %954 = vmatprep.mubr.f32.mxu0 %v147
  %955 = vmatmul.mubr.f32.gmra.mrb[0].mxu0 %v146
  %v956 = vpop.f32.mrb[0].mxu0
  %v957 = vadd.f32 %v732, %v956
  %v958 = vpop.f32.mrb[0].mxu0
  %959 = vmatprep.mubr.f32.mxu0 %v152
  %960 = vmatmul.mubr.f32.gmra.mrb[0].mxu0 %v151
  %v961 = vpop.f32.mrb[0].mxu0
  %v962 = vadd.f32 %v737, %v961
  %v963 = vpop.f32.mrb[0].mxu0
  %964 = vmatprep.mubr.f32.mxu0 %v157
  %965 = vmatmul.mubr.f32.gmra.mrb[0].mxu0 %v156
  %v966 = vpop.f32.mrb[0].mxu0
  %v967 = vadd.f32 %v742, %v966
  %v968 = vpop.f32.mrb[0].mxu0
  %969 = vmatprep.mubr.f32.mxu0 %v162
  %970 = vmatmul.mubr.f32.gmra.mrb[0].mxu0 %v161
  %v971 = vpop.f32.mrb[0].mxu0
  %v972 = vadd.f32 %v747, %v971
  %v973 = vpop.f32.mrb[0].mxu0
  %974 = vmatprep.mubr.f32.mxu0 %v167
  %975 = vmatmul.mubr.f32.gmra.mrb[0].mxu0 %v166
  %v976 = vpop.f32.mrb[0].mxu0
  %v977 = vadd.f32 %v752, %v976
  %v978 = vpop.f32.mrb[0].mxu0
  %979 = vmatprep.mubr.f32.mxu0 %v172
  %980 = vmatmul.mubr.f32.gmra.mrb[0].mxu0 %v171
  %v981 = vpop.f32.mrb[0].mxu0
  %v982 = vadd.f32 %v757, %v981
  %v983 = vpop.f32.mrb[0].mxu0
  %984 = vdwg.mxu0
  %985 = vmatprep.subr.mxu0 0.0
  %986 = vmatpush1.msra.mxu0 %v238
  %987 = vmatprep.subr.mxu0 0.0
  %988 = vmatpush1.msra.mxu0 %v239
  %989 = vmatprep.subr.mxu0 0.0
  %990 = vmatpush1.msra.mxu0 %v240
  %991 = vmatprep.subr.mxu0 0.0
  %992 = vmatpush1.msra.mxu0 %v241
  %993 = vmatprep.subr.mxu0 0.0
  %994 = vmatpush1.msra.mxu0 %v242
  %995 = vmatprep.subr.mxu0 0.0
  %996 = vmatpush1.msra.mxu0 %v243
  %997 = vmatprep.subr.mxu0 0.0
  %998 = vmatpush1.msra.mxu0 %v244
  %999 = vmatprep.subr.mxu0 0.0
  %1000 = vmatpush1.msra.mxu0 %v245
  %1001 = vmatprep.subr.mxu0 0.0
  %1002 = vmatpush1.msra.mxu0 0.0
  %1003 = vmatprep.subr.mxu0 0.0
  %1004 = vmatpush1.msra.mxu0 0.0
  %1005 = vmatprep.subr.mxu0 0.0
  %1006 = vmatpush1.msra.mxu0 0.0
  %1007 = vmatprep.subr.mxu0 0.0
  %1008 = vmatpush1.msra.mxu0 0.0
  %1009 = vmatprep.subr.mxu0 0.0
  %1010 = vmatpush1.msra.mxu0 0.0
  %1011 = vmatprep.subr.mxu0 0.0
  %1012 = vmatpush1.msra.mxu0 0.0
  %1013 = vmatprep.subr.mxu0 0.0
  %1014 = vmatpush1.msra.mxu0 0.0
  %1015 = vmatprep.subr.mxu0 0.0
  %1016 = vmatpush1.msra.mxu0 0.0
  %1017 = vmatprep.subr.mxu0 0.0
  %1018 = vmatpush1.msra.mxu0 0.0
  %1019 = vmatprep.subr.mxu0 0.0
  %1020 = vmatpush1.msra.mxu0 0.0
  %1021 = vmatprep.subr.mxu0 0.0
  %1022 = vmatpush1.msra.mxu0 0.0
  %1023 = vmatprep.subr.mxu0 0.0
  %1024 = vmatpush1.msra.mxu0 0.0
  %1025 = vmatprep.subr.mxu0 0.0
  %1026 = vmatpush1.msra.mxu0 0.0
  %1027 = vmatprep.subr.mxu0 0.0
  %1028 = vmatpush1.msra.mxu0 0.0
  %1029 = vmatprep.subr.mxu0 0.0
  %1030 = vmatpush1.msra.mxu0 0.0
  %1031 = vmatprep.subr.mxu0 0.0
  %1032 = vmatpush1.msra.mxu0 0.0
  %1033 = vmatprep.subr.mxu0 0.0
  %1034 = vmatpush1.msra.mxu0 0.0
  %1035 = vmatprep.subr.mxu0 0.0
  %1036 = vmatpush1.msra.mxu0 0.0
  %1037 = vmatprep.subr.mxu0 0.0
  %1038 = vmatpush1.msra.mxu0 0.0
  %1039 = vmatprep.subr.mxu0 0.0
  %1040 = vmatpush1.msra.mxu0 0.0
  %1041 = vmatprep.subr.mxu0 0.0
  %1042 = vmatpush1.msra.mxu0 0.0
  %1043 = vmatprep.subr.mxu0 0.0
  %1044 = vmatpush1.msra.mxu0 0.0
  %1045 = vmatprep.subr.mxu0 0.0
  %1046 = vmatpush1.msra.mxu0 0.0
  %1047 = vmatprep.subr.mxu0 0.0
  %1048 = vmatpush1.msra.mxu0 0.0
  %1049 = vmatprep.mubr.f32.mxu0 0.0
  %1050 = vmatmul.mubr.f32.gmra.mrb[0].mxu0 %v440
  %v1051 = vpop.f32.mrb[0].mxu0
  %v1052 = vadd.f32 %v827, %v1051
  %v1053 = vpop.f32.mrb[0].mxu0
  %1054 = vmatprep.mubr.f32.mxu0 0.0
  %1055 = vmatmul.mubr.f32.gmra.mrb[0].mxu0 %v443
  %v1056 = vpop.f32.mrb[0].mxu0
  %v1057 = vadd.f32 %v832, %v1056
  %v1058 = vpop.f32.mrb[0].mxu0
  %1059 = vmatprep.mubr.f32.mxu0 0.0
  %1060 = vmatmul.mubr.f32.gmra.mrb[0].mxu0 %v446
  %v1061 = vpop.f32.mrb[0].mxu0
  %v1062 = vadd.f32 %v837, %v1061
  %v1063 = vpop.f32.mrb[0].mxu0
  %1064 = vmatprep.mubr.f32.mxu0 0.0
  %1065 = vmatmul.mubr.f32.gmra.mrb[0].mxu0 %v449
  %v1066 = vpop.f32.mrb[0].mxu0
  %v1067 = vadd.f32 %v842, %v1066
  %v1068 = vpop.f32.mrb[0].mxu0
  %1069 = vmatprep.mubr.f32.mxu0 0.0
  %1070 = vmatmul.mubr.f32.gmra.mrb[0].mxu0 %v452
  %v1071 = vpop.f32.mrb[0].mxu0
  %v1072 = vadd.f32 %v847, %v1071
  %v1073 = vpop.f32.mrb[0].mxu0
  %1074 = vmatprep.mubr.f32.mxu0 0.0
  %1075 = vmatmul.mubr.f32.gmra.mrb[0].mxu0 %v455
  %v1076 = vpop.f32.mrb[0].mxu0
  %v1077 = vadd.f32 %v852, %v1076
  %v1078 = vpop.f32.mrb[0].mxu0
  %1079 = vmatprep.mubr.f32.mxu0 0.0
  %1080 = vmatmul.mubr.f32.gmra.mrb[0].mxu0 %v458
  %v1081 = vpop.f32.mrb[0].mxu0
  %v1082 = vadd.f32 %v857, %v1081
  %v1083 = vpop.f32.mrb[0].mxu0
  %1084 = vmatprep.mubr.f32.mxu0 0.0
  %1085 = vmatmul.mubr.f32.gmra.mrb[0].mxu0 %v461
  %v1086 = vpop.f32.mrb[0].mxu0
  %v1087 = vadd.f32 %v862, %v1086
  %v1088 = vpop.f32.mrb[0].mxu0
  %1089 = vmatprep.mubr.f32.mxu0 0.0
  %1090 = vmatmul.mubr.f32.gmra.mrb[0].mxu0 %v464
  %v1091 = vpop.f32.mrb[0].mxu0
  %v1092 = vadd.f32 %v867, %v1091
  %v1093 = vpop.f32.mrb[0].mxu0
  %1094 = vmatprep.mubr.f32.mxu0 0.0
  %1095 = vmatmul.mubr.f32.gmra.mrb[0].mxu0 %v467
  %v1096 = vpop.f32.mrb[0].mxu0
  %v1097 = vadd.f32 %v872, %v1096
  %v1098 = vpop.f32.mrb[0].mxu0
  %1099 = vmatprep.mubr.f32.mxu0 0.0
  %1100 = vmatmul.mubr.f32.gmra.mrb[0].mxu0 %v470
  %v1101 = vpop.f32.mrb[0].mxu0
  %v1102 = vadd.f32 %v877, %v1101
  %v1103 = vpop.f32.mrb[0].mxu0
  %1104 = vmatprep.mubr.f32.mxu0 0.0
  %1105 = vmatmul.mubr.f32.gmra.mrb[0].mxu0 %v473
  %v1106 = vpop.f32.mrb[0].mxu0
  %v1107 = vadd.f32 %v882, %v1106
  %v1108 = vpop.f32.mrb[0].mxu0
  %1109 = vmatprep.mubr.f32.mxu0 0.0
  %1110 = vmatmul.mubr.f32.gmra.mrb[0].mxu0 %v476
  %v1111 = vpop.f32.mrb[0].mxu0
  %v1112 = vadd.f32 %v887, %v1111
  %v1113 = vpop.f32.mrb[0].mxu0
  %1114 = vmatprep.mubr.f32.mxu0 0.0
  %1115 = vmatmul.mubr.f32.gmra.mrb[0].mxu0 %v479
  %v1116 = vpop.f32.mrb[0].mxu0
  %v1117 = vadd.f32 %v892, %v1116
  %v1118 = vpop.f32.mrb[0].mxu0
  %1119 = vmatprep.mubr.f32.mxu0 0.0
  %1120 = vmatmul.mubr.f32.gmra.mrb[0].mxu0 %v482
  %v1121 = vpop.f32.mrb[0].mxu0
  %v1122 = vadd.f32 %v897, %v1121
  %v1123 = vpop.f32.mrb[0].mxu0
  %1124 = vmatprep.mubr.f32.mxu0 0.0
  %1125 = vmatmul.mubr.f32.gmra.mrb[0].mxu0 %v485
  %v1126 = vpop.f32.mrb[0].mxu0
  %v1127 = vadd.f32 %v902, %v1126
  %v1128 = vpop.f32.mrb[0].mxu0
  %1129 = vmatprep.mubr.f32.mxu0 0.0
  %1130 = vmatmul.mubr.f32.gmra.mrb[0].mxu0 %v488
  %v1131 = vpop.f32.mrb[0].mxu0
  %v1132 = vadd.f32 %v907, %v1131
  %v1133 = vpop.f32.mrb[0].mxu0
  %1134 = vmatprep.mubr.f32.mxu0 0.0
  %1135 = vmatmul.mubr.f32.gmra.mrb[0].mxu0 %v491
  %v1136 = vpop.f32.mrb[0].mxu0
  %v1137 = vadd.f32 %v912, %v1136
  %v1138 = vpop.f32.mrb[0].mxu0
  %1139 = vmatprep.mubr.f32.mxu0 0.0
  %1140 = vmatmul.mubr.f32.gmra.mrb[0].mxu0 %v494
  %v1141 = vpop.f32.mrb[0].mxu0
  %v1142 = vadd.f32 %v917, %v1141
  %v1143 = vpop.f32.mrb[0].mxu0
  %1144 = vmatprep.mubr.f32.mxu0 0.0
  %1145 = vmatmul.mubr.f32.gmra.mrb[0].mxu0 %v497
  %v1146 = vpop.f32.mrb[0].mxu0
  %v1147 = vadd.f32 %v922, %v1146
  %v1148 = vpop.f32.mrb[0].mxu0
  %1149 = vmatprep.mubr.f32.mxu0 0.0
  %1150 = vmatmul.mubr.f32.gmra.mrb[0].mxu0 %v500
  %v1151 = vpop.f32.mrb[0].mxu0
  %v1152 = vadd.f32 %v927, %v1151
  %v1153 = vpop.f32.mrb[0].mxu0
  %1154 = vmatprep.mubr.f32.mxu0 0.0
  %1155 = vmatmul.mubr.f32.gmra.mrb[0].mxu0 %v503
  %v1156 = vpop.f32.mrb[0].mxu0
  %v1157 = vadd.f32 %v932, %v1156
  %v1158 = vpop.f32.mrb[0].mxu0
  %1159 = vmatprep.mubr.f32.mxu0 0.0
  %1160 = vmatmul.mubr.f32.gmra.mrb[0].mxu0 %v506
  %v1161 = vpop.f32.mrb[0].mxu0
  %v1162 = vadd.f32 %v937, %v1161
  %v1163 = vpop.f32.mrb[0].mxu0
  %1164 = vmatprep.mubr.f32.mxu0 0.0
  %1165 = vmatmul.mubr.f32.gmra.mrb[0].mxu0 %v509
  %v1166 = vpop.f32.mrb[0].mxu0
  %v1167 = vadd.f32 %v942, %v1166
  %v1168 = vpop.f32.mrb[0].mxu0
  %1169 = vmatprep.mubr.f32.mxu0 0.0
  %1170 = vmatmul.mubr.f32.gmra.mrb[0].mxu0 %v512
  %v1171 = vpop.f32.mrb[0].mxu0
  %v1172 = vadd.f32 %v947, %v1171
  %v1173 = vpop.f32.mrb[0].mxu0
  %1174 = vmatprep.mubr.f32.mxu0 0.0
  %1175 = vmatmul.mubr.f32.gmra.mrb[0].mxu0 %v515
  %v1176 = vpop.f32.mrb[0].mxu0
  %v1177 = vadd.f32 %v952, %v1176
  %v1178 = vpop.f32.mrb[0].mxu0
  %1179 = vmatprep.mubr.f32.mxu0 0.0
  %1180 = vmatmul.mubr.f32.gmra.mrb[0].mxu0 %v518
  %v1181 = vpop.f32.mrb[0].mxu0
  %v1182 = vadd.f32 %v957, %v1181
  %v1183 = vpop.f32.mrb[0].mxu0
  %1184 = vmatprep.mubr.f32.mxu0 0.0
  %1185 = vmatmul.mubr.f32.gmra.mrb[0].mxu0 %v521
  %v1186 = vpop.f32.mrb[0].mxu0
  %v1187 = vadd.f32 %v962, %v1186
  %v1188 = vpop.f32.mrb[0].mxu0
  %1189 = vmatprep.mubr.f32.mxu0 0.0
  %1190 = vmatmul.mubr.f32.gmra.mrb[0].mxu0 %v524
  %v1191 = vpop.f32.mrb[0].mxu0
  %v1192 = vadd.f32 %v967, %v1191
  %v1193 = vpop.f32.mrb[0].mxu0
  %1194 = vmatprep.mubr.f32.mxu0 0.0
  %1195 = vmatmul.mubr.f32.gmra.mrb[0].mxu0 %v527
  %v1196 = vpop.f32.mrb[0].mxu0
  %v1197 = vadd.f32 %v972, %v1196
  %v1198 = vpop.f32.mrb[0].mxu0
  %1199 = vmatprep.mubr.f32.mxu0 0.0
  %1200 = vmatmul.mubr.f32.gmra.mrb[0].mxu0 %v530
  %v1201 = vpop.f32.mrb[0].mxu0
  %v1202 = vadd.f32 %v977, %v1201
  %v1203 = vpop.f32.mrb[0].mxu0
  %1204 = vmatprep.mubr.f32.mxu0 0.0
  %1205 = vmatmul.mubr.f32.gmra.mrb[0].mxu0 %v533
  %v1206 = vpop.f32.mrb[0].mxu0
  %v1207 = vadd.f32 %v982, %v1206
  %v1208 = vpop.f32.mrb[0].mxu0
  %1209 = vdwg.mxu0
  %v1210 = vmax.f32 %v1052, 0.0
  %v1211 = vmax.f32 %v1057, 0.0
  %v1212 = vmax.f32 %v1062, 0.0
  %v1213 = vmax.f32 %v1067, 0.0
  %v1214 = vmax.f32 %v1072, 0.0
  %v1215 = vmax.f32 %v1077, 0.0
  %v1216 = vmax.f32 %v1082, 0.0
  %v1217 = vmax.f32 %v1087, 0.0
  %v1218 = vmax.f32 %v1092, 0.0
  %v1219 = vmax.f32 %v1097, 0.0
  %v1220 = vmax.f32 %v1102, 0.0
  %v1221 = vmax.f32 %v1107, 0.0
  %v1222 = vmax.f32 %v1112, 0.0
  %v1223 = vmax.f32 %v1117, 0.0
  %v1224 = vmax.f32 %v1122, 0.0
  %v1225 = vmax.f32 %v1127, 0.0
  %v1226 = vmax.f32 %v1132, 0.0
  %v1227 = vmax.f32 %v1137, 0.0
  %v1228 = vmax.f32 %v1142, 0.0
  %v1229 = vmax.f32 %v1147, 0.0
  %v1230 = vmax.f32 %v1152, 0.0
  %v1231 = vmax.f32 %v1157, 0.0
  %v1232 = vmax.f32 %v1162, 0.0
  %v1233 = vmax.f32 %v1167, 0.0
  %v1234 = vmax.f32 %v1172, 0.0
  %v1235 = vmax.f32 %v1177, 0.0
  %v1236 = vmax.f32 %v1182, 0.0
  %v1237 = vmax.f32 %v1187, 0.0
  %v1238 = vmax.f32 %v1192, 0.0
  %v1239 = vmax.f32 %v1197, 0.0
  %v1240 = vmax.f32 %v1202, 0.0
  %v1241 = vmax.f32 %v1207, 0.0
  %vm1242 = vcmask 15360
  %1243 = vst.msk [vmem:[%s3] sm:$0xff] %vm1242, %v1210
  %1244 = vst.msk [vmem:[%s3 + $0x8] sm:$0xff] %vm1242, %v1211
  %1245 = vst.msk [vmem:[%s3 + $0x10] sm:$0xff] %vm1242, %v1212
  %1246 = vst.msk [vmem:[%s3 + $0x18] sm:$0xff] %vm1242, %v1213
  %1247 = vst.msk [vmem:[%s3 + $0x20] sm:$0xff] %vm1242, %v1214
  %1248 = vst.msk [vmem:[%s3 + $0x28] sm:$0xff] %vm1242, %v1215
  %1249 = vst.msk [vmem:[%s3 + $0x30] sm:$0xff] %vm1242, %v1216
  %1250 = vst.msk [vmem:[%s3 + $0x38] sm:$0xff] %vm1242, %v1217
  %1251 = vst.msk [vmem:[%s3 + $0x40] sm:$0xff] %vm1242, %v1218
  %1252 = vst.msk [vmem:[%s3 + $0x48] sm:$0xff] %vm1242, %v1219
  %1253 = vst.msk [vmem:[%s3 + $0x50] sm:$0xff] %vm1242, %v1220
  %1254 = vst.msk [vmem:[%s3 + $0x58] sm:$0xff] %vm1242, %v1221
  %1255 = vst.msk [vmem:[%s3 + $0x60] sm:$0xff] %vm1242, %v1222
  %1256 = vst.msk [vmem:[%s3 + $0x68] sm:$0xff] %vm1242, %v1223
  %1257 = vst.msk [vmem:[%s3 + $0x70] sm:$0xff] %vm1242, %v1224
  %1258 = vst.msk [vmem:[%s3 + $0x78] sm:$0xff] %vm1242, %v1225
  %1259 = vst.msk [vmem:[%s3 + $0x80] sm:$0xff] %vm1242, %v1226
  %1260 = vst.msk [vmem:[%s3 + $0x88] sm:$0xff] %vm1242, %v1227
  %1261 = vst.msk [vmem:[%s3 + $0x90] sm:$0xff] %vm1242, %v1228
  %1262 = vst.msk [vmem:[%s3 + $0x98] sm:$0xff] %vm1242, %v1229
  %1263 = vst.msk [vmem:[%s3 + $0xa0] sm:$0xff] %vm1242, %v1230
  %1264 = vst.msk [vmem:[%s3 + $0xa8] sm:$0xff] %vm1242, %v1231
  %1265 = vst.msk [vmem:[%s3 + $0xb0] sm:$0xff] %vm1242, %v1232
  %1266 = vst.msk [vmem:[%s3 + $0xb8] sm:$0xff] %vm1242, %v1233
  %1267 = vst.msk [vmem:[%s3 + $0xc0] sm:$0xff] %vm1242, %v1234
  %1268 = vst.msk [vmem:[%s3 + $0xc8] sm:$0xff] %vm1242, %v1235
  %1269 = vst.msk [vmem:[%s3 + $0xd0] sm:$0xff] %vm1242, %v1236
  %1270 = vst.msk [vmem:[%s3 + $0xd8] sm:$0xff] %vm1242, %v1237
  %1271 = vst.msk [vmem:[%s3 + $0xe0] sm:$0xff] %vm1242, %v1238
  %1272 = vst.msk [vmem:[%s3 + $0xe8] sm:$0xff] %vm1242, %v1239
  %1273 = vst.msk [vmem:[%s3 + $0xf0] sm:$0xff] %vm1242, %v1240
  %1274 = vst.msk [vmem:[%s3 + $0xf8] sm:$0xff] %vm1242, %v1241
  // Predicated region
  $region14: #{pyramid2_forward.18} parent=0 // pred_check
    _
  $region15: #{pyramid2_forward.18} parent=0 // pred_check_branch
    %1276 = sbr.rel (0) target = $region17
  $region16: #{pyramid2_forward.18} parent=0 // pred_region
    _
  $region17: #{pyramid2_forward.18} parent=0 // pred_fallthru
    _
  // Predicated region
  $region18: #{pyramid2_forward.18} parent=0 // pred_check
    _
  $region19: #{pyramid2_forward.18} parent=0 // pred_check_branch
    %1278 = sbr.rel (0) target = $region21
  $region20: #{pyramid2_forward.18} parent=0 // pred_region
    _
  $region21: #{pyramid2_forward.18} parent=0 // pred_fallthru
    _

// kernel: pyramid2_forward.19
$region0: #{pyramid2_forward.19}
  #allocation0 [shape = 'u32[]', space=smem, size = 0x4, offset = 0x4, fixed_abs, tag = 'smem constant byte address 0x4 - core index']
  #allocation1 [shape = 'u32[144,128]{1,0:T(1,128)}', space=vmem, size = 0x12000, scoped, tag = 'internal scratch']
  %s0 = inlined_call_operand.vmem [shape: f32[256,576], index: 0, kind: input, shape index: {}]
  %s1 = inlined_call_operand.vmem [shape: f32[576,8], index: 1, kind: input, shape index: {}]
  %s2 = inlined_call_operand.vmem [shape: f32[256,1], index: 2, kind: input, shape index: {}]
  %s3 = inlined_call_operand.vmem [shape: f32[256,8], index: 3, kind: output, shape index: {}]
  %s4 = sld [smem:[#allocation0]]
  $region22: #{pyramid2_forward.19} parent=0
    _
  %s6 = ssub.s32 1, %s4
  %s7 = scalar_select 0, %s6, %s4
  // Predicated region
  $region2: #{pyramid2_forward.19} parent=0 // pred_check
    _
  $region3: #{pyramid2_forward.19} parent=0 // pred_check_branch
    %9 = sbr.rel (0) target = $region5
  $region4: #{pyramid2_forward.19} parent=0 // pred_region
    _
  $region5: #{pyramid2_forward.19} parent=0 // pred_fallthru
    _
  // Predicated region
  $region6: #{pyramid2_forward.19} parent=0 // pred_check
    _
  $region7: #{pyramid2_forward.19} parent=0 // pred_check_branch
    %11 = sbr.rel (0) target = $region9
  $region8: #{pyramid2_forward.19} parent=0 // pred_region
    _
  $region9: #{pyramid2_forward.19} parent=0 // pred_fallthru
    _
  // Predicated region
  $region10: #{pyramid2_forward.19} parent=0 // pred_check
    _
  $region11: #{pyramid2_forward.19} parent=0 // pred_check_branch
    %13 = sbr.rel (0) target = $region13
  $region12: #{pyramid2_forward.19} parent=0 // pred_region
    _
  $region13: #{pyramid2_forward.19} parent=0 // pred_fallthru
    _
  %v14 = vld [vmem:[%s0] sm:$0xff]
  %v15 = vld [vmem:[%s0 + $0x8] sm:$0xff]
  %v16 = vld [vmem:[%s0 + $0x10] sm:$0xff]
  %v17 = vld [vmem:[%s0 + $0x18] sm:$0xff]
  %v18 = vld [vmem:[%s0 + $0x20] sm:$0xff]
  %v19 = vld [vmem:[%s0 + $0x28] sm:$0xff]
  %v20 = vld [vmem:[%s0 + $0x30] sm:$0xff]
  %v21 = vld [vmem:[%s0 + $0x38] sm:$0xff]
  %v22 = vld [vmem:[%s0 + $0x40] sm:$0xff]
  %v23 = vld [vmem:[%s0 + $0x48] sm:$0xff]
  %v24 = vld [vmem:[%s0 + $0x50] sm:$0xff]
  %v25 = vld [vmem:[%s0 + $0x58] sm:$0xff]
  %v26 = vld [vmem:[%s0 + $0x60] sm:$0xff]
  %v27 = vld [vmem:[%s0 + $0x68] sm:$0xff]
  %v28 = vld [vmem:[%s0 + $0x70] sm:$0xff]
  %v29 = vld [vmem:[%s0 + $0x78] sm:$0xff]
  %v30 = vld [vmem:[%s0 + $0x80] sm:$0xff]
  %v31 = vld [vmem:[%s0 + $0x88] sm:$0xff]
  %v32 = vld [vmem:[%s0 + $0x90] sm:$0xff]
  %v33 = vld [vmem:[%s0 + $0x98] sm:$0xff]
  %v34 = vld [vmem:[%s0 + $0xa0] sm:$0xff]
  %v35 = vld [vmem:[%s0 + $0xa8] sm:$0xff]
  %v36 = vld [vmem:[%s0 + $0xb0] sm:$0xff]
  %v37 = vld [vmem:[%s0 + $0xb8] sm:$0xff]
  %v38 = vld [vmem:[%s0 + $0xc0] sm:$0xff]
  %v39 = vld [vmem:[%s0 + $0xc8] sm:$0xff]
  %v40 = vld [vmem:[%s0 + $0xd0] sm:$0xff]
  %v41 = vld [vmem:[%s0 + $0xd8] sm:$0xff]
  %v42 = vld [vmem:[%s0 + $0xe0] sm:$0xff]
  %v43 = vld [vmem:[%s0 + $0xe8] sm:$0xff]
  %v44 = vld [vmem:[%s0 + $0xf0] sm:$0xff]
  %v45 = vld [vmem:[%s0 + $0xf8] sm:$0xff]
  %v46 = vld [vmem:[%s0 + $0x100] sm:$0xff]
  %v47 = vld [vmem:[%s0 + $0x108] sm:$0xff]
  %v48 = vld [vmem:[%s0 + $0x110] sm:$0xff]
  %v49 = vld [vmem:[%s0 + $0x118] sm:$0xff]
  %v50 = vld [vmem:[%s0 + $0x120] sm:$0xff]
  %v51 = vld [vmem:[%s0 + $0x128] sm:$0xff]
  %v52 = vld [vmem:[%s0 + $0x130] sm:$0xff]
  %v53 = vld [vmem:[%s0 + $0x138] sm:$0xff]
  %v54 = vld [vmem:[%s0 + $0x140] sm:$0xff]
  %v55 = vld [vmem:[%s0 + $0x148] sm:$0xff]
  %v56 = vld [vmem:[%s0 + $0x150] sm:$0xff]
  %v57 = vld [vmem:[%s0 + $0x158] sm:$0xff]
  %v58 = vld [vmem:[%s0 + $0x160] sm:$0xff]
  %v59 = vld [vmem:[%s0 + $0x168] sm:$0xff]
  %v60 = vld [vmem:[%s0 + $0x170] sm:$0xff]
  %v61 = vld [vmem:[%s0 + $0x178] sm:$0xff]
  %v62 = vld [vmem:[%s0 + $0x180] sm:$0xff]
  %v63 = vld [vmem:[%s0 + $0x188] sm:$0xff]
  %v64 = vld [vmem:[%s0 + $0x190] sm:$0xff]
  %v65 = vld [vmem:[%s0 + $0x198] sm:$0xff]
  %v66 = vld [vmem:[%s0 + $0x1a0] sm:$0xff]
  %v67 = vld [vmem:[%s0 + $0x1a8] sm:$0xff]
  %v68 = vld [vmem:[%s0 + $0x1b0] sm:$0xff]
  %v69 = vld [vmem:[%s0 + $0x1b8] sm:$0xff]
  %v70 = vld [vmem:[%s0 + $0x1c0] sm:$0xff]
  %v71 = vld [vmem:[%s0 + $0x1c8] sm:$0xff]
  %v72 = vld [vmem:[%s0 + $0x1d0] sm:$0xff]
  %v73 = vld [vmem:[%s0 + $0x1d8] sm:$0xff]
  %v74 = vld [vmem:[%s0 + $0x1e0] sm:$0xff]
  %v75 = vld [vmem:[%s0 + $0x1e8] sm:$0xff]
  %v76 = vld [vmem:[%s0 + $0x1f0] sm:$0xff]
  %v77 = vld [vmem:[%s0 + $0x1f8] sm:$0xff]
  %v78 = vld [vmem:[%s0 + $0x200] sm:$0xff]
  %v79 = vld [vmem:[%s0 + $0x208] sm:$0xff]
  %v80 = vld [vmem:[%s0 + $0x210] sm:$0xff]
  %v81 = vld [vmem:[%s0 + $0x218] sm:$0xff]
  %v82 = vld [vmem:[%s0 + $0x220] sm:$0xff]
  %v83 = vld [vmem:[%s0 + $0x228] sm:$0xff]
  %v84 = vld [vmem:[%s0 + $0x230] sm:$0xff]
  %v85 = vld [vmem:[%s0 + $0x238] sm:$0xff]
  %v86 = vld [vmem:[%s0 + $0x240] sm:$0xff]
  %v87 = vld [vmem:[%s0 + $0x248] sm:$0xff]
  %v88 = vld [vmem:[%s0 + $0x250] sm:$0xff]
  %v89 = vld [vmem:[%s0 + $0x258] sm:$0xff]
  %v90 = vld [vmem:[%s0 + $0x260] sm:$0xff]
  %v91 = vld [vmem:[%s0 + $0x268] sm:$0xff]
  %v92 = vld [vmem:[%s0 + $0x270] sm:$0xff]
  %v93 = vld [vmem:[%s0 + $0x278] sm:$0xff]
  %v94 = vld [vmem:[%s0 + $0x280] sm:$0xff]
  %v95 = vld [vmem:[%s0 + $0x288] sm:$0xff]
  %v96 = vld [vmem:[%s0 + $0x290] sm:$0xff]
  %v97 = vld [vmem:[%s0 + $0x298] sm:$0xff]
  %v98 = vld [vmem:[%s0 + $0x2a0] sm:$0xff]
  %v99 = vld [vmem:[%s0 + $0x2a8] sm:$0xff]
  %v100 = vld [vmem:[%s0 + $0x2b0] sm:$0xff]
  %v101 = vld [vmem:[%s0 + $0x2b8] sm:$0xff]
  %v102 = vld [vmem:[%s0 + $0x2c0] sm:$0xff]
  %v103 = vld [vmem:[%s0 + $0x2c8] sm:$0xff]
  %v104 = vld [vmem:[%s0 + $0x2d0] sm:$0xff]
  %v105 = vld [vmem:[%s0 + $0x2d8] sm:$0xff]
  %v106 = vld [vmem:[%s0 + $0x2e0] sm:$0xff]
  %v107 = vld [vmem:[%s0 + $0x2e8] sm:$0xff]
  %v108 = vld [vmem:[%s0 + $0x2f0] sm:$0xff]
  %v109 = vld [vmem:[%s0 + $0x2f8] sm:$0xff]
  %v110 = vld [vmem:[%s0 + $0x300] sm:$0xff]
  %v111 = vld [vmem:[%s0 + $0x308] sm:$0xff]
  %v112 = vld [vmem:[%s0 + $0x310] sm:$0xff]
  %v113 = vld [vmem:[%s0 + $0x318] sm:$0xff]
  %v114 = vld [vmem:[%s0 + $0x320] sm:$0xff]
  %v115 = vld [vmem:[%s0 + $0x328] sm:$0xff]
  %v116 = vld [vmem:[%s0 + $0x330] sm:$0xff]
  %v117 = vld [vmem:[%s0 + $0x338] sm:$0xff]
  %v118 = vld [vmem:[%s0 + $0x340] sm:$0xff]
  %v119 = vld [vmem:[%s0 + $0x348] sm:$0xff]
  %v120 = vld [vmem:[%s0 + $0x350] sm:$0xff]
  %v121 = vld [vmem:[%s0 + $0x358] sm:$0xff]
  %v122 = vld [vmem:[%s0 + $0x360] sm:$0xff]
  %v123 = vld [vmem:[%s0 + $0x368] sm:$0xff]
  %v124 = vld [vmem:[%s0 + $0x370] sm:$0xff]
  %v125 = vld [vmem:[%s0 + $0x378] sm:$0xff]
  %v126 = vld [vmem:[%s0 + $0x380] sm:$0xff]
  %v127 = vld [vmem:[%s0 + $0x388] sm:$0xff]
  %v128 = vld [vmem:[%s0 + $0x390] sm:$0xff]
  %v129 = vld [vmem:[%s0 + $0x398] sm:$0xff]
  %v130 = vld [vmem:[%s0 + $0x3a0] sm:$0xff]
  %v131 = vld [vmem:[%s0 + $0x3a8] sm:$0xff]
  %v132 = vld [vmem:[%s0 + $0x3b0] sm:$0xff]
  %v133 = vld [vmem:[%s0 + $0x3b8] sm:$0xff]
  %v134 = vld [vmem:[%s0 + $0x3c0] sm:$0xff]
  %v135 = vld [vmem:[%s0 + $0x3c8] sm:$0xff]
  %v136 = vld [vmem:[%s0 + $0x3d0] sm:$0xff]
  %v137 = vld [vmem:[%s0 + $0x3d8] sm:$0xff]
  %v138 = vld [vmem:[%s0 + $0x3e0] sm:$0xff]
  %v139 = vld [vmem:[%s0 + $0x3e8] sm:$0xff]
  %v140 = vld [vmem:[%s0 + $0x3f0] sm:$0xff]
  %v141 = vld [vmem:[%s0 + $0x3f8] sm:$0xff]
  %v142 = vld [vmem:[%s0 + $0x400] sm:$0xff]
  %v143 = vld [vmem:[%s0 + $0x408] sm:$0xff]
  %v144 = vld [vmem:[%s0 + $0x410] sm:$0xff]
  %v145 = vld [vmem:[%s0 + $0x418] sm:$0xff]
  %v146 = vld [vmem:[%s0 + $0x420] sm:$0xff]
  %v147 = vld [vmem:[%s0 + $0x428] sm:$0xff]
  %v148 = vld [vmem:[%s0 + $0x430] sm:$0xff]
  %v149 = vld [vmem:[%s0 + $0x438] sm:$0xff]
  %v150 = vld [vmem:[%s0 + $0x440] sm:$0xff]
  %v151 = vld [vmem:[%s0 + $0x448] sm:$0xff]
  %v152 = vld [vmem:[%s0 + $0x450] sm:$0xff]
  %v153 = vld [vmem:[%s0 + $0x458] sm:$0xff]
  %v154 = vld [vmem:[%s0 + $0x460] sm:$0xff]
  %v155 = vld [vmem:[%s0 + $0x468] sm:$0xff]
  %v156 = vld [vmem:[%s0 + $0x470] sm:$0xff]
  %v157 = vld [vmem:[%s0 + $0x478] sm:$0xff]
  %v158 = vld [vmem:[%s0 + $0x480] sm:$0xff]
  %v159 = vld [vmem:[%s0 + $0x488] sm:$0xff]
  %v160 = vld [vmem:[%s0 + $0x490] sm:$0xff]
  %v161 = vld [vmem:[%s0 + $0x498] sm:$0xff]
  %v162 = vld [vmem:[%s0 + $0x4a0] sm:$0xff]
  %v163 = vld [vmem:[%s0 + $0x4a8] sm:$0xff]
  %v164 = vld [vmem:[%s0 + $0x4b0] sm:$0xff]
  %v165 = vld [vmem:[%s0 + $0x4b8] sm:$0xff]
  %v166 = vld [vmem:[%s0 + $0x4c0] sm:$0xff]
  %v167 = vld [vmem:[%s0 + $0x4c8] sm:$0xff]
  %v168 = vld [vmem:[%s0 + $0x4d0] sm:$0xff]
  %v169 = vld [vmem:[%s0 + $0x4d8] sm:$0xff]
  %v170 = vld [vmem:[%s0 + $0x4e0] sm:$0xff]
  %v171 = vld [vmem:[%s0 + $0x4e8] sm:$0xff]
  %v172 = vld [vmem:[%s0 + $0x4f0] sm:$0xff]
  %v173 = vld [vmem:[%s0 + $0x4f8] sm:$0xff]
  %v174 = vld [vmem:[%s1] sm:$0xff]
  %v175 = vld [vmem:[%s1 + $0x8] sm:$0xff]
  %v176 = vld [vmem:[%s1 + $0x10] sm:$0xff]
  %v177 = vld [vmem:[%s1 + $0x18] sm:$0xff]
  %v178 = vld [vmem:[%s1 + $0x20] sm:$0xff]
  %v179 = vld [vmem:[%s1 + $0x28] sm:$0xff]
  %v180 = vld [vmem:[%s1 + $0x30] sm:$0xff]
  %v181 = vld [vmem:[%s1 + $0x38] sm:$0xff]
  %v182 = vld [vmem:[%s1 + $0x40] sm:$0xff]
  %v183 = vld [vmem:[%s1 + $0x48] sm:$0xff]
  %v184 = vld [vmem:[%s1 + $0x50] sm:$0xff]
  %v185 = vld [vmem:[%s1 + $0x58] sm:$0xff]
  %v186 = vld [vmem:[%s1 + $0x60] sm:$0xff]
  %v187 = vld [vmem:[%s1 + $0x68] sm:$0xff]
  %v188 = vld [vmem:[%s1 + $0x70] sm:$0xff]
  %v189 = vld [vmem:[%s1 + $0x78] sm:$0xff]
  %v190 = vld [vmem:[%s1 + $0x80] sm:$0xff]
  %v191 = vld [vmem:[%s1 + $0x88] sm:$0xff]
  %v192 = vld [vmem:[%s1 + $0x90] sm:$0xff]
  %v193 = vld [vmem:[%s1 + $0x98] sm:$0xff]
  %v194 = vld [vmem:[%s1 + $0xa0] sm:$0xff]
  %v195 = vld [vmem:[%s1 + $0xa8] sm:$0xff]
  %v196 = vld [vmem:[%s1 + $0xb0] sm:$0xff]
  %v197 = vld [vmem:[%s1 + $0xb8] sm:$0xff]
  %v198 = vld [vmem:[%s1 + $0xc0] sm:$0xff]
  %v199 = vld [vmem:[%s1 + $0xc8] sm:$0xff]
  %v200 = vld [vmem:[%s1 + $0xd0] sm:$0xff]
  %v201 = vld [vmem:[%s1 + $0xd8] sm:$0xff]
  %v202 = vld [vmem:[%s1 + $0xe0] sm:$0xff]
  %v203 = vld [vmem:[%s1 + $0xe8] sm:$0xff]
  %v204 = vld [vmem:[%s1 + $0xf0] sm:$0xff]
  %v205 = vld [vmem:[%s1 + $0xf8] sm:$0xff]
  %v206 = vld [vmem:[%s1 + $0x100] sm:$0xff]
  %v207 = vld [vmem:[%s1 + $0x108] sm:$0xff]
  %v208 = vld [vmem:[%s1 + $0x110] sm:$0xff]
  %v209 = vld [vmem:[%s1 + $0x118] sm:$0xff]
  %v210 = vld [vmem:[%s1 + $0x120] sm:$0xff]
  %v211 = vld [vmem:[%s1 + $0x128] sm:$0xff]
  %v212 = vld [vmem:[%s1 + $0x130] sm:$0xff]
  %v213 = vld [vmem:[%s1 + $0x138] sm:$0xff]
  %v214 = vld [vmem:[%s1 + $0x140] sm:$0xff]
  %v215 = vld [vmem:[%s1 + $0x148] sm:$0xff]
  %v216 = vld [vmem:[%s1 + $0x150] sm:$0xff]
  %v217 = vld [vmem:[%s1 + $0x158] sm:$0xff]
  %v218 = vld [vmem:[%s1 + $0x160] sm:$0xff]
  %v219 = vld [vmem:[%s1 + $0x168] sm:$0xff]
  %v220 = vld [vmem:[%s1 + $0x170] sm:$0xff]
  %v221 = vld [vmem:[%s1 + $0x178] sm:$0xff]
  %v222 = vld [vmem:[%s1 + $0x180] sm:$0xff]
  %v223 = vld [vmem:[%s1 + $0x188] sm:$0xff]
  %v224 = vld [vmem:[%s1 + $0x190] sm:$0xff]
  %v225 = vld [vmem:[%s1 + $0x198] sm:$0xff]
  %v226 = vld [vmem:[%s1 + $0x1a0] sm:$0xff]
  %v227 = vld [vmem:[%s1 + $0x1a8] sm:$0xff]
  %v228 = vld [vmem:[%s1 + $0x1b0] sm:$0xff]
  %v229 = vld [vmem:[%s1 + $0x1b8] sm:$0xff]
  %v230 = vld [vmem:[%s1 + $0x1c0] sm:$0xff]
  %v231 = vld [vmem:[%s1 + $0x1c8] sm:$0xff]
  %v232 = vld [vmem:[%s1 + $0x1d0] sm:$0xff]
  %v233 = vld [vmem:[%s1 + $0x1d8] sm:$0xff]
  %v234 = vld [vmem:[%s1 + $0x1e0] sm:$0xff]
  %v235 = vld [vmem:[%s1 + $0x1e8] sm:$0xff]
  %v236 = vld [vmem:[%s1 + $0x1f0] sm:$0xff]
  %v237 = vld [vmem:[%s1 + $0x1f8] sm:$0xff]
  %v238 = vld [vmem:[%s1 + $0x200] sm:$0xff]
  %v239 = vld [vmem:[%s1 + $0x208] sm:$0xff]
  %v240 = vld [vmem:[%s1 + $0x210] sm:$0xff]
  %v241 = vld [vmem:[%s1 + $0x218] sm:$0xff]
  %v242 = vld [vmem:[%s1 + $0x220] sm:$0xff]
  %v243 = vld [vmem:[%s1 + $0x228] sm:$0xff]
  %v244 = vld [vmem:[%s1 + $0x230] sm:$0xff]
  %v245 = vld [vmem:[%s1 + $0x238] sm:$0xff]
  %v246 = vld [vmem:[%s2] sm:$0xff]
  %v247 = vld [vmem:[%s2 + $0x8] sm:$0xff]
  %v248 = vld [vmem:[%s2 + $0x10] sm:$0xff]
  %v249 = vld [vmem:[%s2 + $0x18] sm:$0xff]
  %v250 = vld [vmem:[%s2 + $0x20] sm:$0xff]
  %v251 = vld [vmem:[%s2 + $0x28] sm:$0xff]
  %v252 = vld [vmem:[%s2 + $0x30] sm:$0xff]
  %v253 = vld [vmem:[%s2 + $0x38] sm:$0xff]
  %v254 = vld [vmem:[%s2 + $0x40] sm:$0xff]
  %v255 = vld [vmem:[%s2 + $0x48] sm:$0xff]
  %v256 = vld [vmem:[%s2 + $0x50] sm:$0xff]
  %v257 = vld [vmem:[%s2 + $0x58] sm:$0xff]
  %v258 = vld [vmem:[%s2 + $0x60] sm:$0xff]
  %v259 = vld [vmem:[%s2 + $0x68] sm:$0xff]
  %v260 = vld [vmem:[%s2 + $0x70] sm:$0xff]
  %v261 = vld [vmem:[%s2 + $0x78] sm:$0xff]
  %v262 = vld [vmem:[%s2 + $0x80] sm:$0xff]
  %v263 = vld [vmem:[%s2 + $0x88] sm:$0xff]
  %v264 = vld [vmem:[%s2 + $0x90] sm:$0xff]
  %v265 = vld [vmem:[%s2 + $0x98] sm:$0xff]
  %v266 = vld [vmem:[%s2 + $0xa0] sm:$0xff]
  %v267 = vld [vmem:[%s2 + $0xa8] sm:$0xff]
  %v268 = vld [vmem:[%s2 + $0xb0] sm:$0xff]
  %v269 = vld [vmem:[%s2 + $0xb8] sm:$0xff]
  %v270 = vld [vmem:[%s2 + $0xc0] sm:$0xff]
  %v271 = vld [vmem:[%s2 + $0xc8] sm:$0xff]
  %v272 = vld [vmem:[%s2 + $0xd0] sm:$0xff]
  %v273 = vld [vmem:[%s2 + $0xd8] sm:$0xff]
  %v274 = vld [vmem:[%s2 + $0xe0] sm:$0xff]
  %v275 = vld [vmem:[%s2 + $0xe8] sm:$0xff]
  %v276 = vld [vmem:[%s2 + $0xf0] sm:$0xff]
  %v277 = vld [vmem:[%s2 + $0xf8] sm:$0xff]
  %279 = vset.pattern.permute.xlu0 0
  %280 = vperm.xlu0 %279, %v246
  %v281 = vpop.permute.xlu0 %280
  %284 = vset.pattern.permute.xlu0 0
  %285 = vperm.xlu0 %284, %v247
  %v286 = vpop.permute.xlu0 %285
  %289 = vset.pattern.permute.xlu0 0
  %290 = vperm.xlu0 %289, %v248
  %v291 = vpop.permute.xlu0 %290
  %294 = vset.pattern.permute.xlu0 0
  %295 = vperm.xlu0 %294, %v249
  %v296 = vpop.permute.xlu0 %295
  %299 = vset.pattern.permute.xlu0 0
  %300 = vperm.xlu0 %299, %v250
  %v301 = vpop.permute.xlu0 %300
  %304 = vset.pattern.permute.xlu0 0
  %305 = vperm.xlu0 %304, %v251
  %v306 = vpop.permute.xlu0 %305
  %309 = vset.pattern.permute.xlu0 0
  %310 = vperm.xlu0 %309, %v252
  %v311 = vpop.permute.xlu0 %310
  %314 = vset.pattern.permute.xlu0 0
  %315 = vperm.xlu0 %314, %v253
  %v316 = vpop.permute.xlu0 %315
  %319 = vset.pattern.permute.xlu0 0
  %320 = vperm.xlu0 %319, %v254
  %v321 = vpop.permute.xlu0 %320
  %324 = vset.pattern.permute.xlu0 0
  %325 = vperm.xlu0 %324, %v255
  %v326 = vpop.permute.xlu0 %325
  %329 = vset.pattern.permute.xlu0 0
  %330 = vperm.xlu0 %329, %v256
  %v331 = vpop.permute.xlu0 %330
  %334 = vset.pattern.permute.xlu0 0
  %335 = vperm.xlu0 %334, %v257
  %v336 = vpop.permute.xlu0 %335
  %339 = vset.pattern.permute.xlu0 0
  %340 = vperm.xlu0 %339, %v258
  %v341 = vpop.permute.xlu0 %340
  %344 = vset.pattern.permute.xlu0 0
  %345 = vperm.xlu0 %344, %v259
  %v346 = vpop.permute.xlu0 %345
  %349 = vset.pattern.permute.xlu0 0
  %350 = vperm.xlu0 %349, %v260
  %v351 = vpop.permute.xlu0 %350
  %354 = vset.pattern.permute.xlu0 0
  %355 = vperm.xlu0 %354, %v261
  %v356 = vpop.permute.xlu0 %355
  %359 = vset.pattern.permute.xlu0 0
  %360 = vperm.xlu0 %359, %v262
  %v361 = vpop.permute.xlu0 %360
  %364 = vset.pattern.permute.xlu0 0
  %365 = vperm.xlu0 %364, %v263
  %v366 = vpop.permute.xlu0 %365
  %369 = vset.pattern.permute.xlu0 0
  %370 = vperm.xlu0 %369, %v264
  %v371 = vpop.permute.xlu0 %370
  %374 = vset.pattern.permute.xlu0 0
  %375 = vperm.xlu0 %374, %v265
  %v376 = vpop.permute.xlu0 %375
  %379 = vset.pattern.permute.xlu0 0
  %380 = vperm.xlu0 %379, %v266
  %v381 = vpop.permute.xlu0 %380
  %384 = vset.pattern.permute.xlu0 0
  %385 = vperm.xlu0 %384, %v267
  %v386 = vpop.permute.xlu0 %385
  %389 = vset.pattern.permute.xlu0 0
  %390 = vperm.xlu0 %389, %v268
  %v391 = vpop.permute.xlu0 %390
  %394 = vset.pattern.permute.xlu0 0
  %395 = vperm.xlu0 %394, %v269
  %v396 = vpop.permute.xlu0 %395
  %399 = vset.pattern.permute.xlu0 0
  %400 = vperm.xlu0 %399, %v270
  %v401 = vpop.permute.xlu0 %400
  %404 = vset.pattern.permute.xlu0 0
  %405 = vperm.xlu0 %404, %v271
  %v406 = vpop.permute.xlu0 %405
  %409 = vset.pattern.permute.xlu0 0
  %410 = vperm.xlu0 %409, %v272
  %v411 = vpop.permute.xlu0 %410
  %414 = vset.pattern.permute.xlu0 0
  %415 = vperm.xlu0 %414, %v273
  %v416 = vpop.permute.xlu0 %415
  %419 = vset.pattern.permute.xlu0 0
  %420 = vperm.xlu0 %419, %v274
  %v421 = vpop.permute.xlu0 %420
  %424 = vset.pattern.permute.xlu0 0
  %425 = vperm.xlu0 %424, %v275
  %v426 = vpop.permute.xlu0 %425
  %429 = vset.pattern.permute.xlu0 0
  %430 = vperm.xlu0 %429, %v276
  %v431 = vpop.permute.xlu0 %430
  %434 = vset.pattern.permute.xlu0 0
  %435 = vperm.xlu0 %434, %v277
  %v436 = vpop.permute.xlu0 %435
  %vm438 = vcmask 523264
  %v440 = vsel %vm438, %v18, 0
  %v443 = vsel %vm438, %v23, 0
  %v446 = vsel %vm438, %v28, 0
  %v449 = vsel %vm438, %v33, 0
  %v452 = vsel %vm438, %v38, 0
  %v455 = vsel %vm438, %v43, 0
  %v458 = vsel %vm438, %v48, 0
  %v461 = vsel %vm438, %v53, 0
  %v464 = vsel %vm438, %v58, 0
  %v467 = vsel %vm438, %v63, 0
  %v470 = vsel %vm438, %v68, 0
  %v473 = vsel %vm438, %v73, 0
  %v476 = vsel %vm438, %v78, 0
  %v479 = vsel %vm438, %v83, 0
  %v482 = vsel %vm438, %v88, 0
  %v485 = vsel %vm438, %v93, 0
  %v488 = vsel %vm438, %v98, 0
  %v491 = vsel %vm438, %v103, 0
  %v494 = vsel %vm438, %v108, 0
  %v497 = vsel %vm438, %v113, 0
  %v500 = vsel %vm438, %v118, 0
  %v503 = vsel %vm438, %v123, 0
  %v506 = vsel %vm438, %v128, 0
  %v509 = vsel %vm438, %v133, 0
  %v512 = vsel %vm438, %v138, 0
  %v515 = vsel %vm438, %v143, 0
  %v518 = vsel %vm438, %v148, 0
  %v521 = vsel %vm438, %v153, 0
  %v524 = vsel %vm438, %v158, 0
  %v527 = vsel %vm438, %v163, 0
  %v530 = vsel %vm438, %v168, 0
  %v533 = vsel %vm438, %v173, 0
  %535 = vmatprep.subr.mxu0 0.0
  %536 = vmatpush1.msra.mxu0 %v174
  %537 = vmatprep.subr.mxu0 0.0
  %538 = vmatpush1.msra.mxu0 %v175
  %539 = vmatprep.subr.mxu0 0.0
  %540 = vmatpush1.msra.mxu0 %v176
  %541 = vmatprep.subr.mxu0 0.0
  %542 = vmatpush1.msra.mxu0 %v177
  %543 = vmatprep.subr.mxu0 0.0
  %544 = vmatpush1.msra.mxu0 %v178
  %545 = vmatprep.subr.mxu0 0.0
  %546 = vmatpush1.msra.mxu0 %v179
  %547 = vmatprep.subr.mxu0 0.0
  %548 = vmatpush1.msra.mxu0 %v180
  %549 = vmatprep.subr.mxu0 0.0
  %550 = vmatpush1.msra.mxu0 %v181
  %551 = vmatprep.subr.mxu0 0.0
  %552 = vmatpush1.msra.mxu0 %v182
  %553 = vmatprep.subr.mxu0 0.0
  %554 = vmatpush1.msra.mxu0 %v183
  %555 = vmatprep.subr.mxu0 0.0
  %556 = vmatpush1.msra.mxu0 %v184
  %557 = vmatprep.subr.mxu0 0.0
  %558 = vmatpush1.msra.mxu0 %v185
  %559 = vmatprep.subr.mxu0 0.0
  %560 = vmatpush1.msra.mxu0 %v186
  %561 = vmatprep.subr.mxu0 0.0
  %562 = vmatpush1.msra.mxu0 %v187
  %563 = vmatprep.subr.mxu0 0.0
  %564 = vmatpush1.msra.mxu0 %v188
  %565 = vmatprep.subr.mxu0 0.0
  %566 = vmatpush1.msra.mxu0 %v189
  %567 = vmatprep.subr.mxu0 0.0
  %568 = vmatpush1.msra.mxu0 %v190
  %569 = vmatprep.subr.mxu0 0.0
  %570 = vmatpush1.msra.mxu0 %v191
  %571 = vmatprep.subr.mxu0 0.0
  %572 = vmatpush1.msra.mxu0 %v192
  %573 = vmatprep.subr.mxu0 0.0
  %574 = vmatpush1.msra.mxu0 %v193
  %575 = vmatprep.subr.mxu0 0.0
  %576 = vmatpush1.msra.mxu0 %v194
  %577 = vmatprep.subr.mxu0 0.0
  %578 = vmatpush1.msra.mxu0 %v195
  %579 = vmatprep.subr.mxu0 0.0
  %580 = vmatpush1.msra.mxu0 %v196
  %581 = vmatprep.subr.mxu0 0.0
  %582 = vmatpush1.msra.mxu0 %v197
  %583 = vmatprep.subr.mxu0 0.0
  %584 = vmatpush1.msra.mxu0 %v198
  %585 = vmatprep.subr.mxu0 0.0
  %586 = vmatpush1.msra.mxu0 %v199
  %587 = vmatprep.subr.mxu0 0.0
  %588 = vmatpush1.msra.mxu0 %v200
  %589 = vmatprep.subr.mxu0 0.0
  %590 = vmatpush1.msra.mxu0 %v201
  %591 = vmatprep.subr.mxu0 0.0
  %592 = vmatpush1.msra.mxu0 %v202
  %593 = vmatprep.subr.mxu0 0.0
  %594 = vmatpush1.msra.mxu0 %v203
  %595 = vmatprep.subr.mxu0 0.0
  %596 = vmatpush1.msra.mxu0 %v204
  %597 = vmatprep.subr.mxu0 0.0
  %598 = vmatpush1.msra.mxu0 %v205
  %599 = vmatprep.mubr.f32.mxu0 %v15
  %600 = vmatmul.mubr.f32.gmra.mrb[0].mxu0 %v14
  %v601 = vpop.f32.mrb[0].mxu0
  %v602 = vadd.f32 %v281, %v601
  %v603 = vpop.f32.mrb[0].mxu0
  %604 = vmatprep.mubr.f32.mxu0 %v20
  %605 = vmatmul.mubr.f32.gmra.mrb[0].mxu0 %v19
  %v606 = vpop.f32.mrb[0].mxu0
  %v607 = vadd.f32 %v286, %v606
  %v608 = vpop.f32.mrb[0].mxu0
  %609 = vmatprep.mubr.f32.mxu0 %v25
  %610 = vmatmul.mubr.f32.gmra.mrb[0].mxu0 %v24
  %v611 = vpop.f32.mrb[0].mxu0
  %v612 = vadd.f32 %v291, %v611
  %v613 = vpop.f32.mrb[0].mxu0
  %614 = vmatprep.mubr.f32.mxu0 %v30
  %615 = vmatmul.mubr.f32.gmra.mrb[0].mxu0 %v29
  %v616 = vpop.f32.mrb[0].mxu0
  %v617 = vadd.f32 %v296, %v616
  %v618 = vpop.f32.mrb[0].mxu0
  %619 = vmatprep.mubr.f32.mxu0 %v35
  %620 = vmatmul.mubr.f32.gmra.mrb[0].mxu0 %v34
  %v621 = vpop.f32.mrb[0].mxu0
  %v622 = vadd.f32 %v301, %v621
  %v623 = vpop.f32.mrb[0].mxu0
  %624 = vmatprep.mubr.f32.mxu0 %v40
  %625 = vmatmul.mubr.f32.gmra.mrb[0].mxu0 %v39
  %v626 = vpop.f32.mrb[0].mxu0
  %v627 = vadd.f32 %v306, %v626
  %v628 = vpop.f32.mrb[0].mxu0
  %629 = vmatprep.mubr.f32.mxu0 %v45
  %630 = vmatmul.mubr.f32.gmra.mrb[0].mxu0 %v44
  %v631 = vpop.f32.mrb[0].mxu0
  %v632 = vadd.f32 %v311, %v631
  %v633 = vpop.f32.mrb[0].mxu0
  %634 = vmatprep.mubr.f32.mxu0 %v50
  %635 = vmatmul.mubr.f32.gmra.mrb[0].mxu0 %v49
  %v636 = vpop.f32.mrb[0].mxu0
  %v637 = vadd.f32 %v316, %v636
  %v638 = vpop.f32.mrb[0].mxu0
  %639 = vmatprep.mubr.f32.mxu0 %v55
  %640 = vmatmul.mubr.f32.gmra.mrb[0].mxu0 %v54
  %v641 = vpop.f32.mrb[0].mxu0
  %v642 = vadd.f32 %v321, %v641
  %v643 = vpop.f32.mrb[0].mxu0
  %644 = vmatprep.mubr.f32.mxu0 %v60
  %645 = vmatmul.mubr.f32.gmra.mrb[0].mxu0 %v59
  %v646 = vpop.f32.mrb[0].mxu0
  %v647 = vadd.f32 %v326, %v646
  %v648 = vpop.f32.mrb[0].mxu0
  %649 = vmatprep.mubr.f32.mxu0 %v65
  %650 = vmatmul.mubr.f32.gmra.mrb[0].mxu0 %v64
  %v651 = vpop.f32.mrb[0].mxu0
  %v652 = vadd.f32 %v331, %v651
  %v653 = vpop.f32.mrb[0].mxu0
  %654 = vmatprep.mubr.f32.mxu0 %v70
  %655 = vmatmul.mubr.f32.gmra.mrb[0].mxu0 %v69
  %v656 = vpop.f32.mrb[0].mxu0
  %v657 = vadd.f32 %v336, %v656
  %v658 = vpop.f32.mrb[0].mxu0
  %659 = vmatprep.mubr.f32.mxu0 %v75
  %660 = vmatmul.mubr.f32.gmra.mrb[0].mxu0 %v74
  %v661 = vpop.f32.mrb[0].mxu0
  %v662 = vadd.f32 %v341, %v661
  %v663 = vpop.f32.mrb[0].mxu0
  %664 = vmatprep.mubr.f32.mxu0 %v80
  %665 = vmatmul.mubr.f32.gmra.mrb[0].mxu0 %v79
  %v666 = vpop.f32.mrb[0].mxu0
  %v667 = vadd.f32 %v346, %v666
  %v668 = vpop.f32.mrb[0].mxu0
  %669 = vmatprep.mubr.f32.mxu0 %v85
  %670 = vmatmul.mubr.f32.gmra.mrb[0].mxu0 %v84
  %v671 = vpop.f32.mrb[0].mxu0
  %v672 = vadd.f32 %v351, %v671
  %v673 = vpop.f32.mrb[0].mxu0
  %674 = vmatprep.mubr.f32.mxu0 %v90
  %675 = vmatmul.mubr.f32.gmra.mrb[0].mxu0 %v89
  %v676 = vpop.f32.mrb[0].mxu0
  %v677 = vadd.f32 %v356, %v676
  %v678 = vpop.f32.mrb[0].mxu0
  %679 = vmatprep.mubr.f32.mxu0 %v95
  %680 = vmatmul.mubr.f32.gmra.mrb[0].mxu0 %v94
  %v681 = vpop.f32.mrb[0].mxu0
  %v682 = vadd.f32 %v361, %v681
  %v683 = vpop.f32.mrb[0].mxu0
  %684 = vmatprep.mubr.f32.mxu0 %v100
  %685 = vmatmul.mubr.f32.gmra.mrb[0].mxu0 %v99
  %v686 = vpop.f32.mrb[0].mxu0
  %v687 = vadd.f32 %v366, %v686
  %v688 = vpop.f32.mrb[0].mxu0
  %689 = vmatprep.mubr.f32.mxu0 %v105
  %690 = vmatmul.mubr.f32.gmra.mrb[0].mxu0 %v104
  %v691 = vpop.f32.mrb[0].mxu0
  %v692 = vadd.f32 %v371, %v691
  %v693 = vpop.f32.mrb[0].mxu0
  %694 = vmatprep.mubr.f32.mxu0 %v110
  %695 = vmatmul.mubr.f32.gmra.mrb[0].mxu0 %v109
  %v696 = vpop.f32.mrb[0].mxu0
  %v697 = vadd.f32 %v376, %v696
  %v698 = vpop.f32.mrb[0].mxu0
  %699 = vmatprep.mubr.f32.mxu0 %v115
  %700 = vmatmul.mubr.f32.gmra.mrb[0].mxu0 %v114
  %v701 = vpop.f32.mrb[0].mxu0
  %v702 = vadd.f32 %v381, %v701
  %v703 = vpop.f32.mrb[0].mxu0
  %704 = vmatprep.mubr.f32.mxu0 %v120
  %705 = vmatmul.mubr.f32.gmra.mrb[0].mxu0 %v119
  %v706 = vpop.f32.mrb[0].mxu0
  %v707 = vadd.f32 %v386, %v706
  %v708 = vpop.f32.mrb[0].mxu0
  %709 = vmatprep.mubr.f32.mxu0 %v125
  %710 = vmatmul.mubr.f32.gmra.mrb[0].mxu0 %v124
  %v711 = vpop.f32.mrb[0].mxu0
  %v712 = vadd.f32 %v391, %v711
  %v713 = vpop.f32.mrb[0].mxu0
  %714 = vmatprep.mubr.f32.mxu0 %v130
  %715 = vmatmul.mubr.f32.gmra.mrb[0].mxu0 %v129
  %v716 = vpop.f32.mrb[0].mxu0
  %v717 = vadd.f32 %v396, %v716
  %v718 = vpop.f32.mrb[0].mxu0
  %719 = vmatprep.mubr.f32.mxu0 %v135
  %720 = vmatmul.mubr.f32.gmra.mrb[0].mxu0 %v134
  %v721 = vpop.f32.mrb[0].mxu0
  %v722 = vadd.f32 %v401, %v721
  %v723 = vpop.f32.mrb[0].mxu0
  %724 = vmatprep.mubr.f32.mxu0 %v140
  %725 = vmatmul.mubr.f32.gmra.mrb[0].mxu0 %v139
  %v726 = vpop.f32.mrb[0].mxu0
  %v727 = vadd.f32 %v406, %v726
  %v728 = vpop.f32.mrb[0].mxu0
  %729 = vmatprep.mubr.f32.mxu0 %v145
  %730 = vmatmul.mubr.f32.gmra.mrb[0].mxu0 %v144
  %v731 = vpop.f32.mrb[0].mxu0
  %v732 = vadd.f32 %v411, %v731
  %v733 = vpop.f32.mrb[0].mxu0
  %734 = vmatprep.mubr.f32.mxu0 %v150
  %735 = vmatmul.mubr.f32.gmra.mrb[0].mxu0 %v149
  %v736 = vpop.f32.mrb[0].mxu0
  %v737 = vadd.f32 %v416, %v736
  %v738 = vpop.f32.mrb[0].mxu0
  %739 = vmatprep.mubr.f32.mxu0 %v155
  %740 = vmatmul.mubr.f32.gmra.mrb[0].mxu0 %v154
  %v741 = vpop.f32.mrb[0].mxu0
  %v742 = vadd.f32 %v421, %v741
  %v743 = vpop.f32.mrb[0].mxu0
  %744 = vmatprep.mubr.f32.mxu0 %v160
  %745 = vmatmul.mubr.f32.gmra.mrb[0].mxu0 %v159
  %v746 = vpop.f32.mrb[0].mxu0
  %v747 = vadd.f32 %v426, %v746
  %v748 = vpop.f32.mrb[0].mxu0
  %749 = vmatprep.mubr.f32.mxu0 %v165
  %750 = vmatmul.mubr.f32.gmra.mrb[0].mxu0 %v164
  %v751 = vpop.f32.mrb[0].mxu0
  %v752 = vadd.f32 %v431, %v751
  %v753 = vpop.f32.mrb[0].mxu0
  %754 = vmatprep.mubr.f32.mxu0 %v170
  %755 = vmatmul.mubr.f32.gmra.mrb[0].mxu0 %v169
  %v756 = vpop.f32.mrb[0].mxu0
  %v757 = vadd.f32 %v436, %v756
  %v758 = vpop.f32.mrb[0].mxu0
  %759 = vdwg.mxu0
  %760 = vmatprep.subr.mxu0 0.0
  %761 = vmatpush1.msra.mxu0 %v206
  %762 = vmatprep.subr.mxu0 0.0
  %763 = vmatpush1.msra.mxu0 %v207
  %764 = vmatprep.subr.mxu0 0.0
  %765 = vmatpush1.msra.mxu0 %v208
  %766 = vmatprep.subr.mxu0 0.0
  %767 = vmatpush1.msra.mxu0 %v209
  %768 = vmatprep.subr.mxu0 0.0
  %769 = vmatpush1.msra.mxu0 %v210
  %770 = vmatprep.subr.mxu0 0.0
  %771 = vmatpush1.msra.mxu0 %v211
  %772 = vmatprep.subr.mxu0 0.0
  %773 = vmatpush1.msra.mxu0 %v212
  %774 = vmatprep.subr.mxu0 0.0
  %775 = vmatpush1.msra.mxu0 %v213
  %776 = vmatprep.subr.mxu0 0.0
  %777 = vmatpush1.msra.mxu0 %v214
  %778 = vmatprep.subr.mxu0 0.0
  %779 = vmatpush1.msra.mxu0 %v215
  %780 = vmatprep.subr.mxu0 0.0
  %781 = vmatpush1.msra.mxu0 %v216
  %782 = vmatprep.subr.mxu0 0.0
  %783 = vmatpush1.msra.mxu0 %v217
  %784 = vmatprep.subr.mxu0 0.0
  %785 = vmatpush1.msra.mxu0 %v218
  %786 = vmatprep.subr.mxu0 0.0
  %787 = vmatpush1.msra.mxu0 %v219
  %788 = vmatprep.subr.mxu0 0.0
  %789 = vmatpush1.msra.mxu0 %v220
  %790 = vmatprep.subr.mxu0 0.0
  %791 = vmatpush1.msra.mxu0 %v221
  %792 = vmatprep.subr.mxu0 0.0
  %793 = vmatpush1.msra.mxu0 %v222
  %794 = vmatprep.subr.mxu0 0.0
  %795 = vmatpush1.msra.mxu0 %v223
  %796 = vmatprep.subr.mxu0 0.0
  %797 = vmatpush1.msra.mxu0 %v224
  %798 = vmatprep.subr.mxu0 0.0
  %799 = vmatpush1.msra.mxu0 %v225
  %800 = vmatprep.subr.mxu0 0.0
  %801 = vmatpush1.msra.mxu0 %v226
  %802 = vmatprep.subr.mxu0 0.0
  %803 = vmatpush1.msra.mxu0 %v227
  %804 = vmatprep.subr.mxu0 0.0
  %805 = vmatpush1.msra.mxu0 %v228
  %806 = vmatprep.subr.mxu0 0.0
  %807 = vmatpush1.msra.mxu0 %v229
  %808 = vmatprep.subr.mxu0 0.0
  %809 = vmatpush1.msra.mxu0 %v230
  %810 = vmatprep.subr.mxu0 0.0
  %811 = vmatpush1.msra.mxu0 %v231
  %812 = vmatprep.subr.mxu0 0.0
  %813 = vmatpush1.msra.mxu0 %v232
  %814 = vmatprep.subr.mxu0 0.0
  %815 = vmatpush1.msra.mxu0 %v233
  %816 = vmatprep.subr.mxu0 0.0
  %817 = vmatpush1.msra.mxu0 %v234
  %818 = vmatprep.subr.mxu0 0.0
  %819 = vmatpush1.msra.mxu0 %v235
  %820 = vmatprep.subr.mxu0 0.0
  %821 = vmatpush1.msra.mxu0 %v236
  %822 = vmatprep.subr.mxu0 0.0
  %823 = vmatpush1.msra.mxu0 %v237
  %824 = vmatprep.mubr.f32.mxu0 %v17
  %825 = vmatmul.mubr.f32.gmra.mrb[0].mxu0 %v16
  %v826 = vpop.f32.mrb[0].mxu0
  %v827 = vadd.f32 %v602, %v826
  %v828 = vpop.f32.mrb[0].mxu0
  %829 = vmatprep.mubr.f32.mxu0 %v22
  %830 = vmatmul.mubr.f32.gmra.mrb[0].mxu0 %v21
  %v831 = vpop.f32.mrb[0].mxu0
  %v832 = vadd.f32 %v607, %v831
  %v833 = vpop.f32.mrb[0].mxu0
  %834 = vmatprep.mubr.f32.mxu0 %v27
  %835 = vmatmul.mubr.f32.gmra.mrb[0].mxu0 %v26
  %v836 = vpop.f32.mrb[0].mxu0
  %v837 = vadd.f32 %v612, %v836
  %v838 = vpop.f32.mrb[0].mxu0
  %839 = vmatprep.mubr.f32.mxu0 %v32
  %840 = vmatmul.mubr.f32.gmra.mrb[0].mxu0 %v31
  %v841 = vpop.f32.mrb[0].mxu0
  %v842 = vadd.f32 %v617, %v841
  %v843 = vpop.f32.mrb[0].mxu0
  %844 = vmatprep.mubr.f32.mxu0 %v37
  %845 = vmatmul.mubr.f32.gmra.mrb[0].mxu0 %v36
  %v846 = vpop.f32.mrb[0].mxu0
  %v847 = vadd.f32 %v622, %v846
  %v848 = vpop.f32.mrb[0].mxu0
  %849 = vmatprep.mubr.f32.mxu0 %v42
  %850 = vmatmul.mubr.f32.gmra.mrb[0].mxu0 %v41
  %v851 = vpop.f32.mrb[0].mxu0
  %v852 = vadd.f32 %v627, %v851
  %v853 = vpop.f32.mrb[0].mxu0
  %854 = vmatprep.mubr.f32.mxu0 %v47
  %855 = vmatmul.mubr.f32.gmra.mrb[0].mxu0 %v46
  %v856 = vpop.f32.mrb[0].mxu0
  %v857 = vadd.f32 %v632, %v856
  %v858 = vpop.f32.mrb[0].mxu0
  %859 = vmatprep.mubr.f32.mxu0 %v52
  %860 = vmatmul.mubr.f32.gmra.mrb[0].mxu0 %v51
  %v861 = vpop.f32.mrb[0].mxu0
  %v862 = vadd.f32 %v637, %v861
  %v863 = vpop.f32.mrb[0].mxu0
  %864 = vmatprep.mubr.f32.mxu0 %v57
  %865 = vmatmul.mubr.f32.gmra.mrb[0].mxu0 %v56
  %v866 = vpop.f32.mrb[0].mxu0
  %v867 = vadd.f32 %v642, %v866
  %v868 = vpop.f32.mrb[0].mxu0
  %869 = vmatprep.mubr.f32.mxu0 %v62
  %870 = vmatmul.mubr.f32.gmra.mrb[0].mxu0 %v61
  %v871 = vpop.f32.mrb[0].mxu0
  %v872 = vadd.f32 %v647, %v871
  %v873 = vpop.f32.mrb[0].mxu0
  %874 = vmatprep.mubr.f32.mxu0 %v67
  %875 = vmatmul.mubr.f32.gmra.mrb[0].mxu0 %v66
  %v876 = vpop.f32.mrb[0].mxu0
  %v877 = vadd.f32 %v652, %v876
  %v878 = vpop.f32.mrb[0].mxu0
  %879 = vmatprep.mubr.f32.mxu0 %v72
  %880 = vmatmul.mubr.f32.gmra.mrb[0].mxu0 %v71
  %v881 = vpop.f32.mrb[0].mxu0
  %v882 = vadd.f32 %v657, %v881
  %v883 = vpop.f32.mrb[0].mxu0
  %884 = vmatprep.mubr.f32.mxu0 %v77
  %885 = vmatmul.mubr.f32.gmra.mrb[0].mxu0 %v76
  %v886 = vpop.f32.mrb[0].mxu0
  %v887 = vadd.f32 %v662, %v886
  %v888 = vpop.f32.mrb[0].mxu0
  %889 = vmatprep.mubr.f32.mxu0 %v82
  %890 = vmatmul.mubr.f32.gmra.mrb[0].mxu0 %v81
  %v891 = vpop.f32.mrb[0].mxu0
  %v892 = vadd.f32 %v667, %v891
  %v893 = vpop.f32.mrb[0].mxu0
  %894 = vmatprep.mubr.f32.mxu0 %v87
  %895 = vmatmul.mubr.f32.gmra.mrb[0].mxu0 %v86
  %v896 = vpop.f32.mrb[0].mxu0
  %v897 = vadd.f32 %v672, %v896
  %v898 = vpop.f32.mrb[0].mxu0
  %899 = vmatprep.mubr.f32.mxu0 %v92
  %900 = vmatmul.mubr.f32.gmra.mrb[0].mxu0 %v91
  %v901 = vpop.f32.mrb[0].mxu0
  %v902 = vadd.f32 %v677, %v901
  %v903 = vpop.f32.mrb[0].mxu0
  %904 = vmatprep.mubr.f32.mxu0 %v97
  %905 = vmatmul.mubr.f32.gmra.mrb[0].mxu0 %v96
  %v906 = vpop.f32.mrb[0].mxu0
  %v907 = vadd.f32 %v682, %v906
  %v908 = vpop.f32.mrb[0].mxu0
  %909 = vmatprep.mubr.f32.mxu0 %v102
  %910 = vmatmul.mubr.f32.gmra.mrb[0].mxu0 %v101
  %v911 = vpop.f32.mrb[0].mxu0
  %v912 = vadd.f32 %v687, %v911
  %v913 = vpop.f32.mrb[0].mxu0
  %914 = vmatprep.mubr.f32.mxu0 %v107
  %915 = vmatmul.mubr.f32.gmra.mrb[0].mxu0 %v106
  %v916 = vpop.f32.mrb[0].mxu0
  %v917 = vadd.f32 %v692, %v916
  %v918 = vpop.f32.mrb[0].mxu0
  %919 = vmatprep.mubr.f32.mxu0 %v112
  %920 = vmatmul.mubr.f32.gmra.mrb[0].mxu0 %v111
  %v921 = vpop.f32.mrb[0].mxu0
  %v922 = vadd.f32 %v697, %v921
  %v923 = vpop.f32.mrb[0].mxu0
  %924 = vmatprep.mubr.f32.mxu0 %v117
  %925 = vmatmul.mubr.f32.gmra.mrb[0].mxu0 %v116
  %v926 = vpop.f32.mrb[0].mxu0
  %v927 = vadd.f32 %v702, %v926
  %v928 = vpop.f32.mrb[0].mxu0
  %929 = vmatprep.mubr.f32.mxu0 %v122
  %930 = vmatmul.mubr.f32.gmra.mrb[0].mxu0 %v121
  %v931 = vpop.f32.mrb[0].mxu0
  %v932 = vadd.f32 %v707, %v931
  %v933 = vpop.f32.mrb[0].mxu0
  %934 = vmatprep.mubr.f32.mxu0 %v127
  %935 = vmatmul.mubr.f32.gmra.mrb[0].mxu0 %v126
  %v936 = vpop.f32.mrb[0].mxu0
  %v937 = vadd.f32 %v712, %v936
  %v938 = vpop.f32.mrb[0].mxu0
  %939 = vmatprep.mubr.f32.mxu0 %v132
  %940 = vmatmul.mubr.f32.gmra.mrb[0].mxu0 %v131
  %v941 = vpop.f32.mrb[0].mxu0
  %v942 = vadd.f32 %v717, %v941
  %v943 = vpop.f32.mrb[0].mxu0
  %944 = vmatprep.mubr.f32.mxu0 %v137
  %945 = vmatmul.mubr.f32.gmra.mrb[0].mxu0 %v136
  %v946 = vpop.f32.mrb[0].mxu0
  %v947 = vadd.f32 %v722, %v946
  %v948 = vpop.f32.mrb[0].mxu0
  %949 = vmatprep.mubr.f32.mxu0 %v142
  %950 = vmatmul.mubr.f32.gmra.mrb[0].mxu0 %v141
  %v951 = vpop.f32.mrb[0].mxu0
  %v952 = vadd.f32 %v727, %v951
  %v953 = vpop.f32.mrb[0].mxu0
  %954 = vmatprep.mubr.f32.mxu0 %v147
  %955 = vmatmul.mubr.f32.gmra.mrb[0].mxu0 %v146
  %v956 = vpop.f32.mrb[0].mxu0
  %v957 = vadd.f32 %v732, %v956
  %v958 = vpop.f32.mrb[0].mxu0
  %959 = vmatprep.mubr.f32.mxu0 %v152
  %960 = vmatmul.mubr.f32.gmra.mrb[0].mxu0 %v151
  %v961 = vpop.f32.mrb[0].mxu0
  %v962 = vadd.f32 %v737, %v961
  %v963 = vpop.f32.mrb[0].mxu0
  %964 = vmatprep.mubr.f32.mxu0 %v157
  %965 = vmatmul.mubr.f32.gmra.mrb[0].mxu0 %v156
  %v966 = vpop.f32.mrb[0].mxu0
  %v967 = vadd.f32 %v742, %v966
  %v968 = vpop.f32.mrb[0].mxu0
  %969 = vmatprep.mubr.f32.mxu0 %v162
  %970 = vmatmul.mubr.f32.gmra.mrb[0].mxu0 %v161
  %v971 = vpop.f32.mrb[0].mxu0
  %v972 = vadd.f32 %v747, %v971
  %v973 = vpop.f32.mrb[0].mxu0
  %974 = vmatprep.mubr.f32.mxu0 %v167
  %975 = vmatmul.mubr.f32.gmra.mrb[0].mxu0 %v166
  %v976 = vpop.f32.mrb[0].mxu0
  %v977 = vadd.f32 %v752, %v976
  %v978 = vpop.f32.mrb[0].mxu0
  %979 = vmatprep.mubr.f32.mxu0 %v172
  %980 = vmatmul.mubr.f32.gmra.mrb[0].mxu0 %v171
  %v981 = vpop.f32.mrb[0].mxu0
  %v982 = vadd.f32 %v757, %v981
  %v983 = vpop.f32.mrb[0].mxu0
  %984 = vdwg.mxu0
  %985 = vmatprep.subr.mxu0 0.0
  %986 = vmatpush1.msra.mxu0 %v238
  %987 = vmatprep.subr.mxu0 0.0
  %988 = vmatpush1.msra.mxu0 %v239
  %989 = vmatprep.subr.mxu0 0.0
  %990 = vmatpush1.msra.mxu0 %v240
  %991 = vmatprep.subr.mxu0 0.0
  %992 = vmatpush1.msra.mxu0 %v241
  %993 = vmatprep.subr.mxu0 0.0
  %994 = vmatpush1.msra.mxu0 %v242
  %995 = vmatprep.subr.mxu0 0.0
  %996 = vmatpush1.msra.mxu0 %v243
  %997 = vmatprep.subr.mxu0 0.0
  %998 = vmatpush1.msra.mxu0 %v244
  %999 = vmatprep.subr.mxu0 0.0
  %1000 = vmatpush1.msra.mxu0 %v245
  %1001 = vmatprep.subr.mxu0 0.0
  %1002 = vmatpush1.msra.mxu0 0.0
  %1003 = vmatprep.subr.mxu0 0.0
  %1004 = vmatpush1.msra.mxu0 0.0
  %1005 = vmatprep.subr.mxu0 0.0
  %1006 = vmatpush1.msra.mxu0 0.0
  %1007 = vmatprep.subr.mxu0 0.0
  %1008 = vmatpush1.msra.mxu0 0.0
  %1009 = vmatprep.subr.mxu0 0.0
  %1010 = vmatpush1.msra.mxu0 0.0
  %1011 = vmatprep.subr.mxu0 0.0
  %1012 = vmatpush1.msra.mxu0 0.0
  %1013 = vmatprep.subr.mxu0 0.0
  %1014 = vmatpush1.msra.mxu0 0.0
  %1015 = vmatprep.subr.mxu0 0.0
  %1016 = vmatpush1.msra.mxu0 0.0
  %1017 = vmatprep.subr.mxu0 0.0
  %1018 = vmatpush1.msra.mxu0 0.0
  %1019 = vmatprep.subr.mxu0 0.0
  %1020 = vmatpush1.msra.mxu0 0.0
  %1021 = vmatprep.subr.mxu0 0.0
  %1022 = vmatpush1.msra.mxu0 0.0
  %1023 = vmatprep.subr.mxu0 0.0
  %1024 = vmatpush1.msra.mxu0 0.0
  %1025 = vmatprep.subr.mxu0 0.0
  %1026 = vmatpush1.msra.mxu0 0.0
  %1027 = vmatprep.subr.mxu0 0.0
  %1028 = vmatpush1.msra.mxu0 0.0
  %1029 = vmatprep.subr.mxu0 0.0
  %1030 = vmatpush1.msra.mxu0 0.0
  %1031 = vmatprep.subr.mxu0 0.0
  %1032 = vmatpush1.msra.mxu0 0.0
  %1033 = vmatprep.subr.mxu0 0.0
  %1034 = vmatpush1.msra.mxu0 0.0
  %1035 = vmatprep.subr.mxu0 0.0
  %1036 = vmatpush1.msra.mxu0 0.0
  %1037 = vmatprep.subr.mxu0 0.0
  %1038 = vmatpush1.msra.mxu0 0.0
  %1039 = vmatprep.subr.mxu0 0.0
  %1040 = vmatpush1.msra.mxu0 0.0
  %1041 = vmatprep.subr.mxu0 0.0
  %1042 = vmatpush1.msra.mxu0 0.0
  %1043 = vmatprep.subr.mxu0 0.0
  %1044 = vmatpush1.msra.mxu0 0.0
  %1045 = vmatprep.subr.mxu0 0.0
  %1046 = vmatpush1.msra.mxu0 0.0
  %1047 = vmatprep.subr.mxu0 0.0
  %1048 = vmatpush1.msra.mxu0 0.0
  %1049 = vmatprep.mubr.f32.mxu0 0.0
  %1050 = vmatmul.mubr.f32.gmra.mrb[0].mxu0 %v440
  %v1051 = vpop.f32.mrb[0].mxu0
  %v1052 = vadd.f32 %v827, %v1051
  %v1053 = vpop.f32.mrb[0].mxu0
  %1054 = vmatprep.mubr.f32.mxu0 0.0
  %1055 = vmatmul.mubr.f32.gmra.mrb[0].mxu0 %v443
  %v1056 = vpop.f32.mrb[0].mxu0
  %v1057 = vadd.f32 %v832, %v1056
  %v1058 = vpop.f32.mrb[0].mxu0
  %1059 = vmatprep.mubr.f32.mxu0 0.0
  %1060 = vmatmul.mubr.f32.gmra.mrb[0].mxu0 %v446
  %v1061 = vpop.f32.mrb[0].mxu0
  %v1062 = vadd.f32 %v837, %v1061
  %v1063 = vpop.f32.mrb[0].mxu0
  %1064 = vmatprep.mubr.f32.mxu0 0.0
  %1065 = vmatmul.mubr.f32.gmra.mrb[0].mxu0 %v449
  %v1066 = vpop.f32.mrb[0].mxu0
  %v1067 = vadd.f32 %v842, %v1066
  %v1068 = vpop.f32.mrb[0].mxu0
  %1069 = vmatprep.mubr.f32.mxu0 0.0
  %1070 = vmatmul.mubr.f32.gmra.mrb[0].mxu0 %v452
  %v1071 = vpop.f32.mrb[0].mxu0
  %v1072 = vadd.f32 %v847, %v1071
  %v1073 = vpop.f32.mrb[0].mxu0
  %1074 = vmatprep.mubr.f32.mxu0 0.0
  %1075 = vmatmul.mubr.f32.gmra.mrb[0].mxu0 %v455
  %v1076 = vpop.f32.mrb[0].mxu0
  %v1077 = vadd.f32 %v852, %v1076
  %v1078 = vpop.f32.mrb[0].mxu0
  %1079 = vmatprep.mubr.f32.mxu0 0.0
  %1080 = vmatmul.mubr.f32.gmra.mrb[0].mxu0 %v458
  %v1081 = vpop.f32.mrb[0].mxu0
  %v1082 = vadd.f32 %v857, %v1081
  %v1083 = vpop.f32.mrb[0].mxu0
  %1084 = vmatprep.mubr.f32.mxu0 0.0
  %1085 = vmatmul.mubr.f32.gmra.mrb[0].mxu0 %v461
  %v1086 = vpop.f32.mrb[0].mxu0
  %v1087 = vadd.f32 %v862, %v1086
  %v1088 = vpop.f32.mrb[0].mxu0
  %1089 = vmatprep.mubr.f32.mxu0 0.0
  %1090 = vmatmul.mubr.f32.gmra.mrb[0].mxu0 %v464
  %v1091 = vpop.f32.mrb[0].mxu0
  %v1092 = vadd.f32 %v867, %v1091
  %v1093 = vpop.f32.mrb[0].mxu0
  %1094 = vmatprep.mubr.f32.mxu0 0.0
  %1095 = vmatmul.mubr.f32.gmra.mrb[0].mxu0 %v467
  %v1096 = vpop.f32.mrb[0].mxu0
  %v1097 = vadd.f32 %v872, %v1096
  %v1098 = vpop.f32.mrb[0].mxu0
  %1099 = vmatprep.mubr.f32.mxu0 0.0
  %1100 = vmatmul.mubr.f32.gmra.mrb[0].mxu0 %v470
  %v1101 = vpop.f32.mrb[0].mxu0
  %v1102 = vadd.f32 %v877, %v1101
  %v1103 = vpop.f32.mrb[0].mxu0
  %1104 = vmatprep.mubr.f32.mxu0 0.0
  %1105 = vmatmul.mubr.f32.gmra.mrb[0].mxu0 %v473
  %v1106 = vpop.f32.mrb[0].mxu0
  %v1107 = vadd.f32 %v882, %v1106
  %v1108 = vpop.f32.mrb[0].mxu0
  %1109 = vmatprep.mubr.f32.mxu0 0.0
  %1110 = vmatmul.mubr.f32.gmra.mrb[0].mxu0 %v476
  %v1111 = vpop.f32.mrb[0].mxu0
  %v1112 = vadd.f32 %v887, %v1111
  %v1113 = vpop.f32.mrb[0].mxu0
  %1114 = vmatprep.mubr.f32.mxu0 0.0
  %1115 = vmatmul.mubr.f32.gmra.mrb[0].mxu0 %v479
  %v1116 = vpop.f32.mrb[0].mxu0
  %v1117 = vadd.f32 %v892, %v1116
  %v1118 = vpop.f32.mrb[0].mxu0
  %1119 = vmatprep.mubr.f32.mxu0 0.0
  %1120 = vmatmul.mubr.f32.gmra.mrb[0].mxu0 %v482
  %v1121 = vpop.f32.mrb[0].mxu0
  %v1122 = vadd.f32 %v897, %v1121
  %v1123 = vpop.f32.mrb[0].mxu0
  %1124 = vmatprep.mubr.f32.mxu0 0.0
  %1125 = vmatmul.mubr.f32.gmra.mrb[0].mxu0 %v485
  %v1126 = vpop.f32.mrb[0].mxu0
  %v1127 = vadd.f32 %v902, %v1126
  %v1128 = vpop.f32.mrb[0].mxu0
  %1129 = vmatprep.mubr.f32.mxu0 0.0
  %1130 = vmatmul.mubr.f32.gmra.mrb[0].mxu0 %v488
  %v1131 = vpop.f32.mrb[0].mxu0
  %v1132 = vadd.f32 %v907, %v1131
  %v1133 = vpop.f32.mrb[0].mxu0
  %1134 = vmatprep.mubr.f32.mxu0 0.0
  %1135 = vmatmul.mubr.f32.gmra.mrb[0].mxu0 %v491
  %v1136 = vpop.f32.mrb[0].mxu0
  %v1137 = vadd.f32 %v912, %v1136
  %v1138 = vpop.f32.mrb[0].mxu0
  %1139 = vmatprep.mubr.f32.mxu0 0.0
  %1140 = vmatmul.mubr.f32.gmra.mrb[0].mxu0 %v494
  %v1141 = vpop.f32.mrb[0].mxu0
  %v1142 = vadd.f32 %v917, %v1141
  %v1143 = vpop.f32.mrb[0].mxu0
  %1144 = vmatprep.mubr.f32.mxu0 0.0
  %1145 = vmatmul.mubr.f32.gmra.mrb[0].mxu0 %v497
  %v1146 = vpop.f32.mrb[0].mxu0
  %v1147 = vadd.f32 %v922, %v1146
  %v1148 = vpop.f32.mrb[0].mxu0
  %1149 = vmatprep.mubr.f32.mxu0 0.0
  %1150 = vmatmul.mubr.f32.gmra.mrb[0].mxu0 %v500
  %v1151 = vpop.f32.mrb[0].mxu0
  %v1152 = vadd.f32 %v927, %v1151
  %v1153 = vpop.f32.mrb[0].mxu0
  %1154 = vmatprep.mubr.f32.mxu0 0.0
  %1155 = vmatmul.mubr.f32.gmra.mrb[0].mxu0 %v503
  %v1156 = vpop.f32.mrb[0].mxu0
  %v1157 = vadd.f32 %v932, %v1156
  %v1158 = vpop.f32.mrb[0].mxu0
  %1159 = vmatprep.mubr.f32.mxu0 0.0
  %1160 = vmatmul.mubr.f32.gmra.mrb[0].mxu0 %v506
  %v1161 = vpop.f32.mrb[0].mxu0
  %v1162 = vadd.f32 %v937, %v1161
  %v1163 = vpop.f32.mrb[0].mxu0
  %1164 = vmatprep.mubr.f32.mxu0 0.0
  %1165 = vmatmul.mubr.f32.gmra.mrb[0].mxu0 %v509
  %v1166 = vpop.f32.mrb[0].mxu0
  %v1167 = vadd.f32 %v942, %v1166
  %v1168 = vpop.f32.mrb[0].mxu0
  %1169 = vmatprep.mubr.f32.mxu0 0.0
  %1170 = vmatmul.mubr.f32.gmra.mrb[0].mxu0 %v512
  %v1171 = vpop.f32.mrb[0].mxu0
  %v1172 = vadd.f32 %v947, %v1171
  %v1173 = vpop.f32.mrb[0].mxu0
  %1174 = vmatprep.mubr.f32.mxu0 0.0
  %1175 = vmatmul.mubr.f32.gmra.mrb[0].mxu0 %v515
  %v1176 = vpop.f32.mrb[0].mxu0
  %v1177 = vadd.f32 %v952, %v1176
  %v1178 = vpop.f32.mrb[0].mxu0
  %1179 = vmatprep.mubr.f32.mxu0 0.0
  %1180 = vmatmul.mubr.f32.gmra.mrb[0].mxu0 %v518
  %v1181 = vpop.f32.mrb[0].mxu0
  %v1182 = vadd.f32 %v957, %v1181
  %v1183 = vpop.f32.mrb[0].mxu0
  %1184 = vmatprep.mubr.f32.mxu0 0.0
  %1185 = vmatmul.mubr.f32.gmra.mrb[0].mxu0 %v521
  %v1186 = vpop.f32.mrb[0].mxu0
  %v1187 = vadd.f32 %v962, %v1186
  %v1188 = vpop.f32.mrb[0].mxu0
  %1189 = vmatprep.mubr.f32.mxu0 0.0
  %1190 = vmatmul.mubr.f32.gmra.mrb[0].mxu0 %v524
  %v1191 = vpop.f32.mrb[0].mxu0
  %v1192 = vadd.f32 %v967, %v1191
  %v1193 = vpop.f32.mrb[0].mxu0
  %1194 = vmatprep.mubr.f32.mxu0 0.0
  %1195 = vmatmul.mubr.f32.gmra.mrb[0].mxu0 %v527
  %v1196 = vpop.f32.mrb[0].mxu0
  %v1197 = vadd.f32 %v972, %v1196
  %v1198 = vpop.f32.mrb[0].mxu0
  %1199 = vmatprep.mubr.f32.mxu0 0.0
  %1200 = vmatmul.mubr.f32.gmra.mrb[0].mxu0 %v530
  %v1201 = vpop.f32.mrb[0].mxu0
  %v1202 = vadd.f32 %v977, %v1201
  %v1203 = vpop.f32.mrb[0].mxu0
  %1204 = vmatprep.mubr.f32.mxu0 0.0
  %1205 = vmatmul.mubr.f32.gmra.mrb[0].mxu0 %v533
  %v1206 = vpop.f32.mrb[0].mxu0
  %v1207 = vadd.f32 %v982, %v1206
  %v1208 = vpop.f32.mrb[0].mxu0
  %1209 = vdwg.mxu0
  %v1210 = vmax.f32 %v1052, 0.0
  %v1211 = vmax.f32 %v1057, 0.0
  %v1212 = vmax.f32 %v1062, 0.0
  %v1213 = vmax.f32 %v1067, 0.0
  %v1214 = vmax.f32 %v1072, 0.0
  %v1215 = vmax.f32 %v1077, 0.0
  %v1216 = vmax.f32 %v1082, 0.0
  %v1217 = vmax.f32 %v1087, 0.0
  %v1218 = vmax.f32 %v1092, 0.0
  %v1219 = vmax.f32 %v1097, 0.0
  %v1220 = vmax.f32 %v1102, 0.0
  %v1221 = vmax.f32 %v1107, 0.0
  %v1222 = vmax.f32 %v1112, 0.0
  %v1223 = vmax.f32 %v1117, 0.0
  %v1224 = vmax.f32 %v1122, 0.0
  %v1225 = vmax.f32 %v1127, 0.0
  %v1226 = vmax.f32 %v1132, 0.0
  %v1227 = vmax.f32 %v1137, 0.0
  %v1228 = vmax.f32 %v1142, 0.0
  %v1229 = vmax.f32 %v1147, 0.0
  %v1230 = vmax.f32 %v1152, 0.0
  %v1231 = vmax.f32 %v1157, 0.0
  %v1232 = vmax.f32 %v1162, 0.0
  %v1233 = vmax.f32 %v1167, 0.0
  %v1234 = vmax.f32 %v1172, 0.0
  %v1235 = vmax.f32 %v1177, 0.0
  %v1236 = vmax.f32 %v1182, 0.0
  %v1237 = vmax.f32 %v1187, 0.0
  %v1238 = vmax.f32 %v1192, 0.0
  %v1239 = vmax.f32 %v1197, 0.0
  %v1240 = vmax.f32 %v1202, 0.0
  %v1241 = vmax.f32 %v1207, 0.0
  %vm1242 = vcmask 64512
  %1243 = vst.msk [vmem:[%s3] sm:$0xff] %vm1242, %v1210
  %1244 = vst.msk [vmem:[%s3 + $0x8] sm:$0xff] %vm1242, %v1211
  %1245 = vst.msk [vmem:[%s3 + $0x10] sm:$0xff] %vm1242, %v1212
  %1246 = vst.msk [vmem:[%s3 + $0x18] sm:$0xff] %vm1242, %v1213
  %1247 = vst.msk [vmem:[%s3 + $0x20] sm:$0xff] %vm1242, %v1214
  %1248 = vst.msk [vmem:[%s3 + $0x28] sm:$0xff] %vm1242, %v1215
  %1249 = vst.msk [vmem:[%s3 + $0x30] sm:$0xff] %vm1242, %v1216
  %1250 = vst.msk [vmem:[%s3 + $0x38] sm:$0xff] %vm1242, %v1217
  %1251 = vst.msk [vmem:[%s3 + $0x40] sm:$0xff] %vm1242, %v1218
  %1252 = vst.msk [vmem:[%s3 + $0x48] sm:$0xff] %vm1242, %v1219
  %1253 = vst.msk [vmem:[%s3 + $0x50] sm:$0xff] %vm1242, %v1220
  %1254 = vst.msk [vmem:[%s3 + $0x58] sm:$0xff] %vm1242, %v1221
  %1255 = vst.msk [vmem:[%s3 + $0x60] sm:$0xff] %vm1242, %v1222
  %1256 = vst.msk [vmem:[%s3 + $0x68] sm:$0xff] %vm1242, %v1223
  %1257 = vst.msk [vmem:[%s3 + $0x70] sm:$0xff] %vm1242, %v1224
  %1258 = vst.msk [vmem:[%s3 + $0x78] sm:$0xff] %vm1242, %v1225
  %1259 = vst.msk [vmem:[%s3 + $0x80] sm:$0xff] %vm1242, %v1226
  %1260 = vst.msk [vmem:[%s3 + $0x88] sm:$0xff] %vm1242, %v1227
  %1261 = vst.msk [vmem:[%s3 + $0x90] sm:$0xff] %vm1242, %v1228
  %1262 = vst.msk [vmem:[%s3 + $0x98] sm:$0xff] %vm1242, %v1229
  %1263 = vst.msk [vmem:[%s3 + $0xa0] sm:$0xff] %vm1242, %v1230
  %1264 = vst.msk [vmem:[%s3 + $0xa8] sm:$0xff] %vm1242, %v1231
  %1265 = vst.msk [vmem:[%s3 + $0xb0] sm:$0xff] %vm1242, %v1232
  %1266 = vst.msk [vmem:[%s3 + $0xb8] sm:$0xff] %vm1242, %v1233
  %1267 = vst.msk [vmem:[%s3 + $0xc0] sm:$0xff] %vm1242, %v1234
  %1268 = vst.msk [vmem:[%s3 + $0xc8] sm:$0xff] %vm1242, %v1235
  %1269 = vst.msk [vmem:[%s3 + $0xd0] sm:$0xff] %vm1242, %v1236
  %1270 = vst.msk [vmem:[%s3 + $0xd8] sm:$0xff] %vm1242, %v1237
  %1271 = vst.msk [vmem:[%s3 + $0xe0] sm:$0xff] %vm1242, %v1238
  %1272 = vst.msk [vmem:[%s3 + $0xe8] sm:$0xff] %vm1242, %v1239
  %1273 = vst.msk [vmem:[%s3 + $0xf0] sm:$0xff] %vm1242, %v1240
  %1274 = vst.msk [vmem:[%s3 + $0xf8] sm:$0xff] %vm1242, %v1241
  // Predicated region
  $region14: #{pyramid2_forward.19} parent=0 // pred_check
    _
  $region15: #{pyramid2_forward.19} parent=0 // pred_check_branch
    %1276 = sbr.rel (0) target = $region17
  $region16: #{pyramid2_forward.19} parent=0 // pred_region
    _
  $region17: #{pyramid2_forward.19} parent=0 // pred_fallthru
    _
  // Predicated region
  $region18: #{pyramid2_forward.19} parent=0 // pred_check
    _
  $region19: #{pyramid2_forward.19} parent=0 // pred_check_branch
    %1278 = sbr.rel (0) target = $region21
  $region20: #{pyramid2_forward.19} parent=0 // pred_region
    _
  $region21: #{pyramid2_forward.19} parent=0 // pred_fallthru
    _

// kernel: pyramid2_forward.20
$region0: #{pyramid2_forward.20}
  #allocation0 [shape = 'u32[]', space=smem, size = 0x4, offset = 0x4, fixed_abs, tag = 'smem constant byte address 0x4 - core index']
  #allocation1 [shape = 'u32[144,128]{1,0:T(1,128)}', space=vmem, size = 0x12000, scoped, tag = 'internal scratch']
  %s0 = inlined_call_operand.vmem [shape: f32[128,576], index: 0, kind: input, shape index: {}]
  %s1 = inlined_call_operand.vmem [shape: f32[576,32], index: 1, kind: input, shape index: {}]
  %s2 = inlined_call_operand.vmem [shape: f32[128,1], index: 2, kind: input, shape index: {}]
  %s3 = inlined_call_operand.vmem [shape: f32[128,32], index: 3, kind: output, shape index: {}]
  %s4 = sld [smem:[#allocation0]]
  $region22: #{pyramid2_forward.20} parent=0
    _
  %s6 = ssub.s32 1, %s4
  %s7 = scalar_select 0, %s6, %s4
  // Predicated region
  $region2: #{pyramid2_forward.20} parent=0 // pred_check
    _
  $region3: #{pyramid2_forward.20} parent=0 // pred_check_branch
    %9 = sbr.rel (0) target = $region5
  $region4: #{pyramid2_forward.20} parent=0 // pred_region
    _
  $region5: #{pyramid2_forward.20} parent=0 // pred_fallthru
    _
  // Predicated region
  $region6: #{pyramid2_forward.20} parent=0 // pred_check
    _
  $region7: #{pyramid2_forward.20} parent=0 // pred_check_branch
    %11 = sbr.rel (0) target = $region9
  $region8: #{pyramid2_forward.20} parent=0 // pred_region
    _
  $region9: #{pyramid2_forward.20} parent=0 // pred_fallthru
    _
  // Predicated region
  $region10: #{pyramid2_forward.20} parent=0 // pred_check
    _
  $region11: #{pyramid2_forward.20} parent=0 // pred_check_branch
    %13 = sbr.rel (0) target = $region13
  $region12: #{pyramid2_forward.20} parent=0 // pred_region
    _
  $region13: #{pyramid2_forward.20} parent=0 // pred_fallthru
    _
  %v14 = vld [vmem:[%s0] sm:$0xff]
  %v15 = vld [vmem:[%s0 + $0x8] sm:$0xff]
  %v16 = vld [vmem:[%s0 + $0x10] sm:$0xff]
  %v17 = vld [vmem:[%s0 + $0x18] sm:$0xff]
  %v18 = vld [vmem:[%s0 + $0x20] sm:$0xff]
  %v19 = vld [vmem:[%s0 + $0x28] sm:$0xff]
  %v20 = vld [vmem:[%s0 + $0x30] sm:$0xff]
  %v21 = vld [vmem:[%s0 + $0x38] sm:$0xff]
  %v22 = vld [vmem:[%s0 + $0x40] sm:$0xff]
  %v23 = vld [vmem:[%s0 + $0x48] sm:$0xff]
  %v24 = vld [vmem:[%s0 + $0x50] sm:$0xff]
  %v25 = vld [vmem:[%s0 + $0x58] sm:$0xff]
  %v26 = vld [vmem:[%s0 + $0x60] sm:$0xff]
  %v27 = vld [vmem:[%s0 + $0x68] sm:$0xff]
  %v28 = vld [vmem:[%s0 + $0x70] sm:$0xff]
  %v29 = vld [vmem:[%s0 + $0x78] sm:$0xff]
  %v30 = vld [vmem:[%s0 + $0x80] sm:$0xff]
  %v31 = vld [vmem:[%s0 + $0x88] sm:$0xff]
  %v32 = vld [vmem:[%s0 + $0x90] sm:$0xff]
  %v33 = vld [vmem:[%s0 + $0x98] sm:$0xff]
  %v34 = vld [vmem:[%s0 + $0xa0] sm:$0xff]
  %v35 = vld [vmem:[%s0 + $0xa8] sm:$0xff]
  %v36 = vld [vmem:[%s0 + $0xb0] sm:$0xff]
  %v37 = vld [vmem:[%s0 + $0xb8] sm:$0xff]
  %v38 = vld [vmem:[%s0 + $0xc0] sm:$0xff]
  %v39 = vld [vmem:[%s0 + $0xc8] sm:$0xff]
  %v40 = vld [vmem:[%s0 + $0xd0] sm:$0xff]
  %v41 = vld [vmem:[%s0 + $0xd8] sm:$0xff]
  %v42 = vld [vmem:[%s0 + $0xe0] sm:$0xff]
  %v43 = vld [vmem:[%s0 + $0xe8] sm:$0xff]
  %v44 = vld [vmem:[%s0 + $0xf0] sm:$0xff]
  %v45 = vld [vmem:[%s0 + $0xf8] sm:$0xff]
  %v46 = vld [vmem:[%s0 + $0x100] sm:$0xff]
  %v47 = vld [vmem:[%s0 + $0x108] sm:$0xff]
  %v48 = vld [vmem:[%s0 + $0x110] sm:$0xff]
  %v49 = vld [vmem:[%s0 + $0x118] sm:$0xff]
  %v50 = vld [vmem:[%s0 + $0x120] sm:$0xff]
  %v51 = vld [vmem:[%s0 + $0x128] sm:$0xff]
  %v52 = vld [vmem:[%s0 + $0x130] sm:$0xff]
  %v53 = vld [vmem:[%s0 + $0x138] sm:$0xff]
  %v54 = vld [vmem:[%s0 + $0x140] sm:$0xff]
  %v55 = vld [vmem:[%s0 + $0x148] sm:$0xff]
  %v56 = vld [vmem:[%s0 + $0x150] sm:$0xff]
  %v57 = vld [vmem:[%s0 + $0x158] sm:$0xff]
  %v58 = vld [vmem:[%s0 + $0x160] sm:$0xff]
  %v59 = vld [vmem:[%s0 + $0x168] sm:$0xff]
  %v60 = vld [vmem:[%s0 + $0x170] sm:$0xff]
  %v61 = vld [vmem:[%s0 + $0x178] sm:$0xff]
  %v62 = vld [vmem:[%s0 + $0x180] sm:$0xff]
  %v63 = vld [vmem:[%s0 + $0x188] sm:$0xff]
  %v64 = vld [vmem:[%s0 + $0x190] sm:$0xff]
  %v65 = vld [vmem:[%s0 + $0x198] sm:$0xff]
  %v66 = vld [vmem:[%s0 + $0x1a0] sm:$0xff]
  %v67 = vld [vmem:[%s0 + $0x1a8] sm:$0xff]
  %v68 = vld [vmem:[%s0 + $0x1b0] sm:$0xff]
  %v69 = vld [vmem:[%s0 + $0x1b8] sm:$0xff]
  %v70 = vld [vmem:[%s0 + $0x1c0] sm:$0xff]
  %v71 = vld [vmem:[%s0 + $0x1c8] sm:$0xff]
  %v72 = vld [vmem:[%s0 + $0x1d0] sm:$0xff]
  %v73 = vld [vmem:[%s0 + $0x1d8] sm:$0xff]
  %v74 = vld [vmem:[%s0 + $0x1e0] sm:$0xff]
  %v75 = vld [vmem:[%s0 + $0x1e8] sm:$0xff]
  %v76 = vld [vmem:[%s0 + $0x1f0] sm:$0xff]
  %v77 = vld [vmem:[%s0 + $0x1f8] sm:$0xff]
  %v78 = vld [vmem:[%s0 + $0x200] sm:$0xff]
  %v79 = vld [vmem:[%s0 + $0x208] sm:$0xff]
  %v80 = vld [vmem:[%s0 + $0x210] sm:$0xff]
  %v81 = vld [vmem:[%s0 + $0x218] sm:$0xff]
  %v82 = vld [vmem:[%s0 + $0x220] sm:$0xff]
  %v83 = vld [vmem:[%s0 + $0x228] sm:$0xff]
  %v84 = vld [vmem:[%s0 + $0x230] sm:$0xff]
  %v85 = vld [vmem:[%s0 + $0x238] sm:$0xff]
  %v86 = vld [vmem:[%s0 + $0x240] sm:$0xff]
  %v87 = vld [vmem:[%s0 + $0x248] sm:$0xff]
  %v88 = vld [vmem:[%s0 + $0x250] sm:$0xff]
  %v89 = vld [vmem:[%s0 + $0x258] sm:$0xff]
  %v90 = vld [vmem:[%s0 + $0x260] sm:$0xff]
  %v91 = vld [vmem:[%s0 + $0x268] sm:$0xff]
  %v92 = vld [vmem:[%s0 + $0x270] sm:$0xff]
  %v93 = vld [vmem:[%s0 + $0x278] sm:$0xff]
  %v94 = vld [vmem:[%s1] sm:$0xff]
  %v95 = vld [vmem:[%s1 + $0x8] sm:$0xff]
  %v96 = vld [vmem:[%s1 + $0x10] sm:$0xff]
  %v97 = vld [vmem:[%s1 + $0x18] sm:$0xff]
  %v98 = vld [vmem:[%s1 + $0x20] sm:$0xff]
  %v99 = vld [vmem:[%s1 + $0x28] sm:$0xff]
  %v100 = vld [vmem:[%s1 + $0x30] sm:$0xff]
  %v101 = vld [vmem:[%s1 + $0x38] sm:$0xff]
  %v102 = vld [vmem:[%s1 + $0x40] sm:$0xff]
  %v103 = vld [vmem:[%s1 + $0x48] sm:$0xff]
  %v104 = vld [vmem:[%s1 + $0x50] sm:$0xff]
  %v105 = vld [vmem:[%s1 + $0x58] sm:$0xff]
  %v106 = vld [vmem:[%s1 + $0x60] sm:$0xff]
  %v107 = vld [vmem:[%s1 + $0x68] sm:$0xff]
  %v108 = vld [vmem:[%s1 + $0x70] sm:$0xff]
  %v109 = vld [vmem:[%s1 + $0x78] sm:$0xff]
  %v110 = vld [vmem:[%s1 + $0x80] sm:$0xff]
  %v111 = vld [vmem:[%s1 + $0x88] sm:$0xff]
  %v112 = vld [vmem:[%s1 + $0x90] sm:$0xff]
  %v113 = vld [vmem:[%s1 + $0x98] sm:$0xff]
  %v114 = vld [vmem:[%s1 + $0xa0] sm:$0xff]
  %v115 = vld [vmem:[%s1 + $0xa8] sm:$0xff]
  %v116 = vld [vmem:[%s1 + $0xb0] sm:$0xff]
  %v117 = vld [vmem:[%s1 + $0xb8] sm:$0xff]
  %v118 = vld [vmem:[%s1 + $0xc0] sm:$0xff]
  %v119 = vld [vmem:[%s1 + $0xc8] sm:$0xff]
  %v120 = vld [vmem:[%s1 + $0xd0] sm:$0xff]
  %v121 = vld [vmem:[%s1 + $0xd8] sm:$0xff]
  %v122 = vld [vmem:[%s1 + $0xe0] sm:$0xff]
  %v123 = vld [vmem:[%s1 + $0xe8] sm:$0xff]
  %v124 = vld [vmem:[%s1 + $0xf0] sm:$0xff]
  %v125 = vld [vmem:[%s1 + $0xf8] sm:$0xff]
  %v126 = vld [vmem:[%s1 + $0x100] sm:$0xff]
  %v127 = vld [vmem:[%s1 + $0x108] sm:$0xff]
  %v128 = vld [vmem:[%s1 + $0x110] sm:$0xff]
  %v129 = vld [vmem:[%s1 + $0x118] sm:$0xff]
  %v130 = vld [vmem:[%s1 + $0x120] sm:$0xff]
  %v131 = vld [vmem:[%s1 + $0x128] sm:$0xff]
  %v132 = vld [vmem:[%s1 + $0x130] sm:$0xff]
  %v133 = vld [vmem:[%s1 + $0x138] sm:$0xff]
  %v134 = vld [vmem:[%s1 + $0x140] sm:$0xff]
  %v135 = vld [vmem:[%s1 + $0x148] sm:$0xff]
  %v136 = vld [vmem:[%s1 + $0x150] sm:$0xff]
  %v137 = vld [vmem:[%s1 + $0x158] sm:$0xff]
  %v138 = vld [vmem:[%s1 + $0x160] sm:$0xff]
  %v139 = vld [vmem:[%s1 + $0x168] sm:$0xff]
  %v140 = vld [vmem:[%s1 + $0x170] sm:$0xff]
  %v141 = vld [vmem:[%s1 + $0x178] sm:$0xff]
  %v142 = vld [vmem:[%s1 + $0x180] sm:$0xff]
  %v143 = vld [vmem:[%s1 + $0x188] sm:$0xff]
  %v144 = vld [vmem:[%s1 + $0x190] sm:$0xff]
  %v145 = vld [vmem:[%s1 + $0x198] sm:$0xff]
  %v146 = vld [vmem:[%s1 + $0x1a0] sm:$0xff]
  %v147 = vld [vmem:[%s1 + $0x1a8] sm:$0xff]
  %v148 = vld [vmem:[%s1 + $0x1b0] sm:$0xff]
  %v149 = vld [vmem:[%s1 + $0x1b8] sm:$0xff]
  %v150 = vld [vmem:[%s1 + $0x1c0] sm:$0xff]
  %v151 = vld [vmem:[%s1 + $0x1c8] sm:$0xff]
  %v152 = vld [vmem:[%s1 + $0x1d0] sm:$0xff]
  %v153 = vld [vmem:[%s1 + $0x1d8] sm:$0xff]
  %v154 = vld [vmem:[%s1 + $0x1e0] sm:$0xff]
  %v155 = vld [vmem:[%s1 + $0x1e8] sm:$0xff]
  %v156 = vld [vmem:[%s1 + $0x1f0] sm:$0xff]
  %v157 = vld [vmem:[%s1 + $0x1f8] sm:$0xff]
  %v158 = vld [vmem:[%s1 + $0x200] sm:$0xff]
  %v159 = vld [vmem:[%s1 + $0x208] sm:$0xff]
  %v160 = vld [vmem:[%s1 + $0x210] sm:$0xff]
  %v161 = vld [vmem:[%s1 + $0x218] sm:$0xff]
  %v162 = vld [vmem:[%s1 + $0x220] sm:$0xff]
  %v163 = vld [vmem:[%s1 + $0x228] sm:$0xff]
  %v164 = vld [vmem:[%s1 + $0x230] sm:$0xff]
  %v165 = vld [vmem:[%s1 + $0x238] sm:$0xff]
  %v166 = vld [vmem:[%s2] sm:$0xff]
  %v167 = vld [vmem:[%s2 + $0x8] sm:$0xff]
  %v168 = vld [vmem:[%s2 + $0x10] sm:$0xff]
  %v169 = vld [vmem:[%s2 + $0x18] sm:$0xff]
  %v170 = vld [vmem:[%s2 + $0x20] sm:$0xff]
  %v171 = vld [vmem:[%s2 + $0x28] sm:$0xff]
  %v172 = vld [vmem:[%s2 + $0x30] sm:$0xff]
  %v173 = vld [vmem:[%s2 + $0x38] sm:$0xff]
  %v174 = vld [vmem:[%s2 + $0x40] sm:$0xff]
  %v175 = vld [vmem:[%s2 + $0x48] sm:$0xff]
  %v176 = vld [vmem:[%s2 + $0x50] sm:$0xff]
  %v177 = vld [vmem:[%s2 + $0x58] sm:$0xff]
  %v178 = vld [vmem:[%s2 + $0x60] sm:$0xff]
  %v179 = vld [vmem:[%s2 + $0x68] sm:$0xff]
  %v180 = vld [vmem:[%s2 + $0x70] sm:$0xff]
  %v181 = vld [vmem:[%s2 + $0x78] sm:$0xff]
  %183 = vset.pattern.permute.xlu0 0
  %184 = vperm.xlu0 %183, %v166
  %v185 = vpop.permute.xlu0 %184
  %188 = vset.pattern.permute.xlu0 0
  %189 = vperm.xlu0 %188, %v167
  %v190 = vpop.permute.xlu0 %189
  %193 = vset.pattern.permute.xlu0 0
  %194 = vperm.xlu0 %193, %v168
  %v195 = vpop.permute.xlu0 %194
  %198 = vset.pattern.permute.xlu0 0
  %199 = vperm.xlu0 %198, %v169
  %v200 = vpop.permute.xlu0 %199
  %203 = vset.pattern.permute.xlu0 0
  %204 = vperm.xlu0 %203, %v170
  %v205 = vpop.permute.xlu0 %204
  %208 = vset.pattern.permute.xlu0 0
  %209 = vperm.xlu0 %208, %v171
  %v210 = vpop.permute.xlu0 %209
  %213 = vset.pattern.permute.xlu0 0
  %214 = vperm.xlu0 %213, %v172
  %v215 = vpop.permute.xlu0 %214
  %218 = vset.pattern.permute.xlu0 0
  %219 = vperm.xlu0 %218, %v173
  %v220 = vpop.permute.xlu0 %219
  %223 = vset.pattern.permute.xlu0 0
  %224 = vperm.xlu0 %223, %v174
  %v225 = vpop.permute.xlu0 %224
  %228 = vset.pattern.permute.xlu0 0
  %229 = vperm.xlu0 %228, %v175
  %v230 = vpop.permute.xlu0 %229
  %233 = vset.pattern.permute.xlu0 0
  %234 = vperm.xlu0 %233, %v176
  %v235 = vpop.permute.xlu0 %234
  %238 = vset.pattern.permute.xlu0 0
  %239 = vperm.xlu0 %238, %v177
  %v240 = vpop.permute.xlu0 %239
  %243 = vset.pattern.permute.xlu0 0
  %244 = vperm.xlu0 %243, %v178
  %v245 = vpop.permute.xlu0 %244
  %248 = vset.pattern.permute.xlu0 0
  %249 = vperm.xlu0 %248, %v179
  %v250 = vpop.permute.xlu0 %249
  %253 = vset.pattern.permute.xlu0 0
  %254 = vperm.xlu0 %253, %v180
  %v255 = vpop.permute.xlu0 %254
  %258 = vset.pattern.permute.xlu0 0
  %259 = vperm.xlu0 %258, %v181
  %v260 = vpop.permute.xlu0 %259
  %vm262 = vcmask 523264
  %v264 = vsel %vm262, %v18, 0
  %v267 = vsel %vm262, %v23, 0
  %v270 = vsel %vm262, %v28, 0
  %v273 = vsel %vm262, %v33, 0
  %v276 = vsel %vm262, %v38, 0
  %v279 = vsel %vm262, %v43, 0
  %v282 = vsel %vm262, %v48, 0
  %v285 = vsel %vm262, %v53, 0
  %v288 = vsel %vm262, %v58, 0
  %v291 = vsel %vm262, %v63, 0
  %v294 = vsel %vm262, %v68, 0
  %v297 = vsel %vm262, %v73, 0
  %v300 = vsel %vm262, %v78, 0
  %v303 = vsel %vm262, %v83, 0
  %v306 = vsel %vm262, %v88, 0
  %v309 = vsel %vm262, %v93, 0
  %311 = vmatprep.subr.mxu0 0.0
  %312 = vmatpush1.msra.mxu0 %v94
  %313 = vmatprep.subr.mxu0 0.0
  %314 = vmatpush1.msra.mxu0 %v95
  %315 = vmatprep.subr.mxu0 0.0
  %316 = vmatpush1.msra.mxu0 %v96
  %317 = vmatprep.subr.mxu0 0.0
  %318 = vmatpush1.msra.mxu0 %v97
  %319 = vmatprep.subr.mxu0 0.0
  %320 = vmatpush1.msra.mxu0 %v98
  %321 = vmatprep.subr.mxu0 0.0
  %322 = vmatpush1.msra.mxu0 %v99
  %323 = vmatprep.subr.mxu0 0.0
  %324 = vmatpush1.msra.mxu0 %v100
  %325 = vmatprep.subr.mxu0 0.0
  %326 = vmatpush1.msra.mxu0 %v101
  %327 = vmatprep.subr.mxu0 0.0
  %328 = vmatpush1.msra.mxu0 %v102
  %329 = vmatprep.subr.mxu0 0.0
  %330 = vmatpush1.msra.mxu0 %v103
  %331 = vmatprep.subr.mxu0 0.0
  %332 = vmatpush1.msra.mxu0 %v104
  %333 = vmatprep.subr.mxu0 0.0
  %334 = vmatpush1.msra.mxu0 %v105
  %335 = vmatprep.subr.mxu0 0.0
  %336 = vmatpush1.msra.mxu0 %v106
  %337 = vmatprep.subr.mxu0 0.0
  %338 = vmatpush1.msra.mxu0 %v107
  %339 = vmatprep.subr.mxu0 0.0
  %340 = vmatpush1.msra.mxu0 %v108
  %341 = vmatprep.subr.mxu0 0.0
  %342 = vmatpush1.msra.mxu0 %v109
  %343 = vmatprep.subr.mxu0 0.0
  %344 = vmatpush1.msra.mxu0 %v110
  %345 = vmatprep.subr.mxu0 0.0
  %346 = vmatpush1.msra.mxu0 %v111
  %347 = vmatprep.subr.mxu0 0.0
  %348 = vmatpush1.msra.mxu0 %v112
  %349 = vmatprep.subr.mxu0 0.0
  %350 = vmatpush1.msra.mxu0 %v113
  %351 = vmatprep.subr.mxu0 0.0
  %352 = vmatpush1.msra.mxu0 %v114
  %353 = vmatprep.subr.mxu0 0.0
  %354 = vmatpush1.msra.mxu0 %v115
  %355 = vmatprep.subr.mxu0 0.0
  %356 = vmatpush1.msra.mxu0 %v116
  %357 = vmatprep.subr.mxu0 0.0
  %358 = vmatpush1.msra.mxu0 %v117
  %359 = vmatprep.subr.mxu0 0.0
  %360 = vmatpush1.msra.mxu0 %v118
  %361 = vmatprep.subr.mxu0 0.0
  %362 = vmatpush1.msra.mxu0 %v119
  %363 = vmatprep.subr.mxu0 0.0
  %364 = vmatpush1.msra.mxu0 %v120
  %365 = vmatprep.subr.mxu0 0.0
  %366 = vmatpush1.msra.mxu0 %v121
  %367 = vmatprep.subr.mxu0 0.0
  %368 = vmatpush1.msra.mxu0 %v122
  %369 = vmatprep.subr.mxu0 0.0
  %370 = vmatpush1.msra.mxu0 %v123
  %371 = vmatprep.subr.mxu0 0.0
  %372 = vmatpush1.msra.mxu0 %v124
  %373 = vmatprep.subr.mxu0 0.0
  %374 = vmatpush1.msra.mxu0 %v125
  %375 = vmatprep.mubr.f32.mxu0 %v15
  %376 = vmatmul.mubr.f32.gmra.mrb[0].mxu0 %v14
  %v377 = vpop.f32.mrb[0].mxu0
  %v378 = vadd.f32 %v185, %v377
  %v379 = vpop.f32.mrb[0].mxu0
  %380 = vmatprep.mubr.f32.mxu0 %v20
  %381 = vmatmul.mubr.f32.gmra.mrb[0].mxu0 %v19
  %v382 = vpop.f32.mrb[0].mxu0
  %v383 = vadd.f32 %v190, %v382
  %v384 = vpop.f32.mrb[0].mxu0
  %385 = vmatprep.mubr.f32.mxu0 %v25
  %386 = vmatmul.mubr.f32.gmra.mrb[0].mxu0 %v24
  %v387 = vpop.f32.mrb[0].mxu0
  %v388 = vadd.f32 %v195, %v387
  %v389 = vpop.f32.mrb[0].mxu0
  %390 = vmatprep.mubr.f32.mxu0 %v30
  %391 = vmatmul.mubr.f32.gmra.mrb[0].mxu0 %v29
  %v392 = vpop.f32.mrb[0].mxu0
  %v393 = vadd.f32 %v200, %v392
  %v394 = vpop.f32.mrb[0].mxu0
  %395 = vmatprep.mubr.f32.mxu0 %v35
  %396 = vmatmul.mubr.f32.gmra.mrb[0].mxu0 %v34
  %v397 = vpop.f32.mrb[0].mxu0
  %v398 = vadd.f32 %v205, %v397
  %v399 = vpop.f32.mrb[0].mxu0
  %400 = vmatprep.mubr.f32.mxu0 %v40
  %401 = vmatmul.mubr.f32.gmra.mrb[0].mxu0 %v39
  %v402 = vpop.f32.mrb[0].mxu0
  %v403 = vadd.f32 %v210, %v402
  %v404 = vpop.f32.mrb[0].mxu0
  %405 = vmatprep.mubr.f32.mxu0 %v45
  %406 = vmatmul.mubr.f32.gmra.mrb[0].mxu0 %v44
  %v407 = vpop.f32.mrb[0].mxu0
  %v408 = vadd.f32 %v215, %v407
  %v409 = vpop.f32.mrb[0].mxu0
  %410 = vmatprep.mubr.f32.mxu0 %v50
  %411 = vmatmul.mubr.f32.gmra.mrb[0].mxu0 %v49
  %v412 = vpop.f32.mrb[0].mxu0
  %v413 = vadd.f32 %v220, %v412
  %v414 = vpop.f32.mrb[0].mxu0
  %415 = vmatprep.mubr.f32.mxu0 %v55
  %416 = vmatmul.mubr.f32.gmra.mrb[0].mxu0 %v54
  %v417 = vpop.f32.mrb[0].mxu0
  %v418 = vadd.f32 %v225, %v417
  %v419 = vpop.f32.mrb[0].mxu0
  %420 = vmatprep.mubr.f32.mxu0 %v60
  %421 = vmatmul.mubr.f32.gmra.mrb[0].mxu0 %v59
  %v422 = vpop.f32.mrb[0].mxu0
  %v423 = vadd.f32 %v230, %v422
  %v424 = vpop.f32.mrb[0].mxu0
  %425 = vmatprep.mubr.f32.mxu0 %v65
  %426 = vmatmul.mubr.f32.gmra.mrb[0].mxu0 %v64
  %v427 = vpop.f32.mrb[0].mxu0
  %v428 = vadd.f32 %v235, %v427
  %v429 = vpop.f32.mrb[0].mxu0
  %430 = vmatprep.mubr.f32.mxu0 %v70
  %431 = vmatmul.mubr.f32.gmra.mrb[0].mxu0 %v69
  %v432 = vpop.f32.mrb[0].mxu0
  %v433 = vadd.f32 %v240, %v432
  %v434 = vpop.f32.mrb[0].mxu0
  %435 = vmatprep.mubr.f32.mxu0 %v75
  %436 = vmatmul.mubr.f32.gmra.mrb[0].mxu0 %v74
  %v437 = vpop.f32.mrb[0].mxu0
  %v438 = vadd.f32 %v245, %v437
  %v439 = vpop.f32.mrb[0].mxu0
  %440 = vmatprep.mubr.f32.mxu0 %v80
  %441 = vmatmul.mubr.f32.gmra.mrb[0].mxu0 %v79
  %v442 = vpop.f32.mrb[0].mxu0
  %v443 = vadd.f32 %v250, %v442
  %v444 = vpop.f32.mrb[0].mxu0
  %445 = vmatprep.mubr.f32.mxu0 %v85
  %446 = vmatmul.mubr.f32.gmra.mrb[0].mxu0 %v84
  %v447 = vpop.f32.mrb[0].mxu0
  %v448 = vadd.f32 %v255, %v447
  %v449 = vpop.f32.mrb[0].mxu0
  %450 = vmatprep.mubr.f32.mxu0 %v90
  %451 = vmatmul.mubr.f32.gmra.mrb[0].mxu0 %v89
  %v452 = vpop.f32.mrb[0].mxu0
  %v453 = vadd.f32 %v260, %v452
  %v454 = vpop.f32.mrb[0].mxu0
  %455 = vdwg.mxu0
  %456 = vmatprep.subr.mxu0 0.0
  %457 = vmatpush1.msra.mxu0 %v126
  %458 = vmatprep.subr.mxu0 0.0
  %459 = vmatpush1.msra.mxu0 %v127
  %460 = vmatprep.subr.mxu0 0.0
  %461 = vmatpush1.msra.mxu0 %v128
  %462 = vmatprep.subr.mxu0 0.0
  %463 = vmatpush1.msra.mxu0 %v129
  %464 = vmatprep.subr.mxu0 0.0
  %465 = vmatpush1.msra.mxu0 %v130
  %466 = vmatprep.subr.mxu0 0.0
  %467 = vmatpush1.msra.mxu0 %v131
  %468 = vmatprep.subr.mxu0 0.0
  %469 = vmatpush1.msra.mxu0 %v132
  %470 = vmatprep.subr.mxu0 0.0
  %471 = vmatpush1.msra.mxu0 %v133
  %472 = vmatprep.subr.mxu0 0.0
  %473 = vmatpush1.msra.mxu0 %v134
  %474 = vmatprep.subr.mxu0 0.0
  %475 = vmatpush1.msra.mxu0 %v135
  %476 = vmatprep.subr.mxu0 0.0
  %477 = vmatpush1.msra.mxu0 %v136
  %478 = vmatprep.subr.mxu0 0.0
  %479 = vmatpush1.msra.mxu0 %v137
  %480 = vmatprep.subr.mxu0 0.0
  %481 = vmatpush1.msra.mxu0 %v138
  %482 = vmatprep.subr.mxu0 0.0
  %483 = vmatpush1.msra.mxu0 %v139
  %484 = vmatprep.subr.mxu0 0.0
  %485 = vmatpush1.msra.mxu0 %v140
  %486 = vmatprep.subr.mxu0 0.0
  %487 = vmatpush1.msra.mxu0 %v141
  %488 = vmatprep.subr.mxu0 0.0
  %489 = vmatpush1.msra.mxu0 %v142
  %490 = vmatprep.subr.mxu0 0.0
  %491 = vmatpush1.msra.mxu0 %v143
  %492 = vmatprep.subr.mxu0 0.0
  %493 = vmatpush1.msra.mxu0 %v144
  %494 = vmatprep.subr.mxu0 0.0
  %495 = vmatpush1.msra.mxu0 %v145
  %496 = vmatprep.subr.mxu0 0.0
  %497 = vmatpush1.msra.mxu0 %v146
  %498 = vmatprep.subr.mxu0 0.0
  %499 = vmatpush1.msra.mxu0 %v147
  %500 = vmatprep.subr.mxu0 0.0
  %501 = vmatpush1.msra.mxu0 %v148
  %502 = vmatprep.subr.mxu0 0.0
  %503 = vmatpush1.msra.mxu0 %v149
  %504 = vmatprep.subr.mxu0 0.0
  %505 = vmatpush1.msra.mxu0 %v150
  %506 = vmatprep.subr.mxu0 0.0
  %507 = vmatpush1.msra.mxu0 %v151
  %508 = vmatprep.subr.mxu0 0.0
  %509 = vmatpush1.msra.mxu0 %v152
  %510 = vmatprep.subr.mxu0 0.0
  %511 = vmatpush1.msra.mxu0 %v153
  %512 = vmatprep.subr.mxu0 0.0
  %513 = vmatpush1.msra.mxu0 %v154
  %514 = vmatprep.subr.mxu0 0.0
  %515 = vmatpush1.msra.mxu0 %v155
  %516 = vmatprep.subr.mxu0 0.0
  %517 = vmatpush1.msra.mxu0 %v156
  %518 = vmatprep.subr.mxu0 0.0
  %519 = vmatpush1.msra.mxu0 %v157
  %520 = vmatprep.mubr.f32.mxu0 %v17
  %521 = vmatmul.mubr.f32.gmra.mrb[0].mxu0 %v16
  %v522 = vpop.f32.mrb[0].mxu0
  %v523 = vadd.f32 %v378, %v522
  %v524 = vpop.f32.mrb[0].mxu0
  %525 = vmatprep.mubr.f32.mxu0 %v22
  %526 = vmatmul.mubr.f32.gmra.mrb[0].mxu0 %v21
  %v527 = vpop.f32.mrb[0].mxu0
  %v528 = vadd.f32 %v383, %v527
  %v529 = vpop.f32.mrb[0].mxu0
  %530 = vmatprep.mubr.f32.mxu0 %v27
  %531 = vmatmul.mubr.f32.gmra.mrb[0].mxu0 %v26
  %v532 = vpop.f32.mrb[0].mxu0
  %v533 = vadd.f32 %v388, %v532
  %v534 = vpop.f32.mrb[0].mxu0
  %535 = vmatprep.mubr.f32.mxu0 %v32
  %536 = vmatmul.mubr.f32.gmra.mrb[0].mxu0 %v31
  %v537 = vpop.f32.mrb[0].mxu0
  %v538 = vadd.f32 %v393, %v537
  %v539 = vpop.f32.mrb[0].mxu0
  %540 = vmatprep.mubr.f32.mxu0 %v37
  %541 = vmatmul.mubr.f32.gmra.mrb[0].mxu0 %v36
  %v542 = vpop.f32.mrb[0].mxu0
  %v543 = vadd.f32 %v398, %v542
  %v544 = vpop.f32.mrb[0].mxu0
  %545 = vmatprep.mubr.f32.mxu0 %v42
  %546 = vmatmul.mubr.f32.gmra.mrb[0].mxu0 %v41
  %v547 = vpop.f32.mrb[0].mxu0
  %v548 = vadd.f32 %v403, %v547
  %v549 = vpop.f32.mrb[0].mxu0
  %550 = vmatprep.mubr.f32.mxu0 %v47
  %551 = vmatmul.mubr.f32.gmra.mrb[0].mxu0 %v46
  %v552 = vpop.f32.mrb[0].mxu0
  %v553 = vadd.f32 %v408, %v552
  %v554 = vpop.f32.mrb[0].mxu0
  %555 = vmatprep.mubr.f32.mxu0 %v52
  %556 = vmatmul.mubr.f32.gmra.mrb[0].mxu0 %v51
  %v557 = vpop.f32.mrb[0].mxu0
  %v558 = vadd.f32 %v413, %v557
  %v559 = vpop.f32.mrb[0].mxu0
  %560 = vmatprep.mubr.f32.mxu0 %v57
  %561 = vmatmul.mubr.f32.gmra.mrb[0].mxu0 %v56
  %v562 = vpop.f32.mrb[0].mxu0
  %v563 = vadd.f32 %v418, %v562
  %v564 = vpop.f32.mrb[0].mxu0
  %565 = vmatprep.mubr.f32.mxu0 %v62
  %566 = vmatmul.mubr.f32.gmra.mrb[0].mxu0 %v61
  %v567 = vpop.f32.mrb[0].mxu0
  %v568 = vadd.f32 %v423, %v567
  %v569 = vpop.f32.mrb[0].mxu0
  %570 = vmatprep.mubr.f32.mxu0 %v67
  %571 = vmatmul.mubr.f32.gmra.mrb[0].mxu0 %v66
  %v572 = vpop.f32.mrb[0].mxu0
  %v573 = vadd.f32 %v428, %v572
  %v574 = vpop.f32.mrb[0].mxu0
  %575 = vmatprep.mubr.f32.mxu0 %v72
  %576 = vmatmul.mubr.f32.gmra.mrb[0].mxu0 %v71
  %v577 = vpop.f32.mrb[0].mxu0
  %v578 = vadd.f32 %v433, %v577
  %v579 = vpop.f32.mrb[0].mxu0
  %580 = vmatprep.mubr.f32.mxu0 %v77
  %581 = vmatmul.mubr.f32.gmra.mrb[0].mxu0 %v76
  %v582 = vpop.f32.mrb[0].mxu0
  %v583 = vadd.f32 %v438, %v582
  %v584 = vpop.f32.mrb[0].mxu0
  %585 = vmatprep.mubr.f32.mxu0 %v82
  %586 = vmatmul.mubr.f32.gmra.mrb[0].mxu0 %v81
  %v587 = vpop.f32.mrb[0].mxu0
  %v588 = vadd.f32 %v443, %v587
  %v589 = vpop.f32.mrb[0].mxu0
  %590 = vmatprep.mubr.f32.mxu0 %v87
  %591 = vmatmul.mubr.f32.gmra.mrb[0].mxu0 %v86
  %v592 = vpop.f32.mrb[0].mxu0
  %v593 = vadd.f32 %v448, %v592
  %v594 = vpop.f32.mrb[0].mxu0
  %595 = vmatprep.mubr.f32.mxu0 %v92
  %596 = vmatmul.mubr.f32.gmra.mrb[0].mxu0 %v91
  %v597 = vpop.f32.mrb[0].mxu0
  %v598 = vadd.f32 %v453, %v597
  %v599 = vpop.f32.mrb[0].mxu0
  %600 = vdwg.mxu0
  %601 = vmatprep.subr.mxu0 0.0
  %602 = vmatpush1.msra.mxu0 %v158
  %603 = vmatprep.subr.mxu0 0.0
  %604 = vmatpush1.msra.mxu0 %v159
  %605 = vmatprep.subr.mxu0 0.0
  %606 = vmatpush1.msra.mxu0 %v160
  %607 = vmatprep.subr.mxu0 0.0
  %608 = vmatpush1.msra.mxu0 %v161
  %609 = vmatprep.subr.mxu0 0.0
  %610 = vmatpush1.msra.mxu0 %v162
  %611 = vmatprep.subr.mxu0 0.0
  %612 = vmatpush1.msra.mxu0 %v163
  %613 = vmatprep.subr.mxu0 0.0
  %614 = vmatpush1.msra.mxu0 %v164
  %615 = vmatprep.subr.mxu0 0.0
  %616 = vmatpush1.msra.mxu0 %v165
  %617 = vmatprep.subr.mxu0 0.0
  %618 = vmatpush1.msra.mxu0 0.0
  %619 = vmatprep.subr.mxu0 0.0
  %620 = vmatpush1.msra.mxu0 0.0
  %621 = vmatprep.subr.mxu0 0.0
  %622 = vmatpush1.msra.mxu0 0.0
  %623 = vmatprep.subr.mxu0 0.0
  %624 = vmatpush1.msra.mxu0 0.0
  %625 = vmatprep.subr.mxu0 0.0
  %626 = vmatpush1.msra.mxu0 0.0
  %627 = vmatprep.subr.mxu0 0.0
  %628 = vmatpush1.msra.mxu0 0.0
  %629 = vmatprep.subr.mxu0 0.0
  %630 = vmatpush1.msra.mxu0 0.0
  %631 = vmatprep.subr.mxu0 0.0
  %632 = vmatpush1.msra.mxu0 0.0
  %633 = vmatprep.subr.mxu0 0.0
  %634 = vmatpush1.msra.mxu0 0.0
  %635 = vmatprep.subr.mxu0 0.0
  %636 = vmatpush1.msra.mxu0 0.0
  %637 = vmatprep.subr.mxu0 0.0
  %638 = vmatpush1.msra.mxu0 0.0
  %639 = vmatprep.subr.mxu0 0.0
  %640 = vmatpush1.msra.mxu0 0.0
  %641 = vmatprep.subr.mxu0 0.0
  %642 = vmatpush1.msra.mxu0 0.0
  %643 = vmatprep.subr.mxu0 0.0
  %644 = vmatpush1.msra.mxu0 0.0
  %645 = vmatprep.subr.mxu0 0.0
  %646 = vmatpush1.msra.mxu0 0.0
  %647 = vmatprep.subr.mxu0 0.0
  %648 = vmatpush1.msra.mxu0 0.0
  %649 = vmatprep.subr.mxu0 0.0
  %650 = vmatpush1.msra.mxu0 0.0
  %651 = vmatprep.subr.mxu0 0.0
  %652 = vmatpush1.msra.mxu0 0.0
  %653 = vmatprep.subr.mxu0 0.0
  %654 = vmatpush1.msra.mxu0 0.0
  %655 = vmatprep.subr.mxu0 0.0
  %656 = vmatpush1.msra.mxu0 0.0
  %657 = vmatprep.subr.mxu0 0.0
  %658 = vmatpush1.msra.mxu0 0.0
  %659 = vmatprep.subr.mxu0 0.0
  %660 = vmatpush1.msra.mxu0 0.0
  %661 = vmatprep.subr.mxu0 0.0
  %662 = vmatpush1.msra.mxu0 0.0
  %663 = vmatprep.subr.mxu0 0.0
  %664 = vmatpush1.msra.mxu0 0.0
  %665 = vmatprep.mubr.f32.mxu0 0.0
  %666 = vmatmul.mubr.f32.gmra.mrb[0].mxu0 %v264
  %v667 = vpop.f32.mrb[0].mxu0
  %v668 = vadd.f32 %v523, %v667
  %v669 = vpop.f32.mrb[0].mxu0
  %670 = vmatprep.mubr.f32.mxu0 0.0
  %671 = vmatmul.mubr.f32.gmra.mrb[0].mxu0 %v267
  %v672 = vpop.f32.mrb[0].mxu0
  %v673 = vadd.f32 %v528, %v672
  %v674 = vpop.f32.mrb[0].mxu0
  %675 = vmatprep.mubr.f32.mxu0 0.0
  %676 = vmatmul.mubr.f32.gmra.mrb[0].mxu0 %v270
  %v677 = vpop.f32.mrb[0].mxu0
  %v678 = vadd.f32 %v533, %v677
  %v679 = vpop.f32.mrb[0].mxu0
  %680 = vmatprep.mubr.f32.mxu0 0.0
  %681 = vmatmul.mubr.f32.gmra.mrb[0].mxu0 %v273
  %v682 = vpop.f32.mrb[0].mxu0
  %v683 = vadd.f32 %v538, %v682
  %v684 = vpop.f32.mrb[0].mxu0
  %685 = vmatprep.mubr.f32.mxu0 0.0
  %686 = vmatmul.mubr.f32.gmra.mrb[0].mxu0 %v276
  %v687 = vpop.f32.mrb[0].mxu0
  %v688 = vadd.f32 %v543, %v687
  %v689 = vpop.f32.mrb[0].mxu0
  %690 = vmatprep.mubr.f32.mxu0 0.0
  %691 = vmatmul.mubr.f32.gmra.mrb[0].mxu0 %v279
  %v692 = vpop.f32.mrb[0].mxu0
  %v693 = vadd.f32 %v548, %v692
  %v694 = vpop.f32.mrb[0].mxu0
  %695 = vmatprep.mubr.f32.mxu0 0.0
  %696 = vmatmul.mubr.f32.gmra.mrb[0].mxu0 %v282
  %v697 = vpop.f32.mrb[0].mxu0
  %v698 = vadd.f32 %v553, %v697
  %v699 = vpop.f32.mrb[0].mxu0
  %700 = vmatprep.mubr.f32.mxu0 0.0
  %701 = vmatmul.mubr.f32.gmra.mrb[0].mxu0 %v285
  %v702 = vpop.f32.mrb[0].mxu0
  %v703 = vadd.f32 %v558, %v702
  %v704 = vpop.f32.mrb[0].mxu0
  %705 = vmatprep.mubr.f32.mxu0 0.0
  %706 = vmatmul.mubr.f32.gmra.mrb[0].mxu0 %v288
  %v707 = vpop.f32.mrb[0].mxu0
  %v708 = vadd.f32 %v563, %v707
  %v709 = vpop.f32.mrb[0].mxu0
  %710 = vmatprep.mubr.f32.mxu0 0.0
  %711 = vmatmul.mubr.f32.gmra.mrb[0].mxu0 %v291
  %v712 = vpop.f32.mrb[0].mxu0
  %v713 = vadd.f32 %v568, %v712
  %v714 = vpop.f32.mrb[0].mxu0
  %715 = vmatprep.mubr.f32.mxu0 0.0
  %716 = vmatmul.mubr.f32.gmra.mrb[0].mxu0 %v294
  %v717 = vpop.f32.mrb[0].mxu0
  %v718 = vadd.f32 %v573, %v717
  %v719 = vpop.f32.mrb[0].mxu0
  %720 = vmatprep.mubr.f32.mxu0 0.0
  %721 = vmatmul.mubr.f32.gmra.mrb[0].mxu0 %v297
  %v722 = vpop.f32.mrb[0].mxu0
  %v723 = vadd.f32 %v578, %v722
  %v724 = vpop.f32.mrb[0].mxu0
  %725 = vmatprep.mubr.f32.mxu0 0.0
  %726 = vmatmul.mubr.f32.gmra.mrb[0].mxu0 %v300
  %v727 = vpop.f32.mrb[0].mxu0
  %v728 = vadd.f32 %v583, %v727
  %v729 = vpop.f32.mrb[0].mxu0
  %730 = vmatprep.mubr.f32.mxu0 0.0
  %731 = vmatmul.mubr.f32.gmra.mrb[0].mxu0 %v303
  %v732 = vpop.f32.mrb[0].mxu0
  %v733 = vadd.f32 %v588, %v732
  %v734 = vpop.f32.mrb[0].mxu0
  %735 = vmatprep.mubr.f32.mxu0 0.0
  %736 = vmatmul.mubr.f32.gmra.mrb[0].mxu0 %v306
  %v737 = vpop.f32.mrb[0].mxu0
  %v738 = vadd.f32 %v593, %v737
  %v739 = vpop.f32.mrb[0].mxu0
  %740 = vmatprep.mubr.f32.mxu0 0.0
  %741 = vmatmul.mubr.f32.gmra.mrb[0].mxu0 %v309
  %v742 = vpop.f32.mrb[0].mxu0
  %v743 = vadd.f32 %v598, %v742
  %v744 = vpop.f32.mrb[0].mxu0
  %745 = vdwg.mxu0
  %v746 = vmax.f32 %v668, 0.0
  %v747 = vmax.f32 %v673, 0.0
  %v748 = vmax.f32 %v678, 0.0
  %v749 = vmax.f32 %v683, 0.0
  %v750 = vmax.f32 %v688, 0.0
  %v751 = vmax.f32 %v693, 0.0
  %v752 = vmax.f32 %v698, 0.0
  %v753 = vmax.f32 %v703, 0.0
  %v754 = vmax.f32 %v708, 0.0
  %v755 = vmax.f32 %v713, 0.0
  %v756 = vmax.f32 %v718, 0.0
  %v757 = vmax.f32 %v723, 0.0
  %v758 = vmax.f32 %v728, 0.0
  %v759 = vmax.f32 %v733, 0.0
  %v760 = vmax.f32 %v738, 0.0
  %v761 = vmax.f32 %v743, 0.0
  %vm762 = vcmask 261120
  %763 = vst.msk [vmem:[%s3] sm:$0xff] %vm762, %v746
  %764 = vst.msk [vmem:[%s3 + $0x8] sm:$0xff] %vm762, %v747
  %765 = vst.msk [vmem:[%s3 + $0x10] sm:$0xff] %vm762, %v748
  %766 = vst.msk [vmem:[%s3 + $0x18] sm:$0xff] %vm762, %v749
  %767 = vst.msk [vmem:[%s3 + $0x20] sm:$0xff] %vm762, %v750
  %768 = vst.msk [vmem:[%s3 + $0x28] sm:$0xff] %vm762, %v751
  %769 = vst.msk [vmem:[%s3 + $0x30] sm:$0xff] %vm762, %v752
  %770 = vst.msk [vmem:[%s3 + $0x38] sm:$0xff] %vm762, %v753
  %771 = vst.msk [vmem:[%s3 + $0x40] sm:$0xff] %vm762, %v754
  %772 = vst.msk [vmem:[%s3 + $0x48] sm:$0xff] %vm762, %v755
  %773 = vst.msk [vmem:[%s3 + $0x50] sm:$0xff] %vm762, %v756
  %774 = vst.msk [vmem:[%s3 + $0x58] sm:$0xff] %vm762, %v757
  %775 = vst.msk [vmem:[%s3 + $0x60] sm:$0xff] %vm762, %v758
  %776 = vst.msk [vmem:[%s3 + $0x68] sm:$0xff] %vm762, %v759
  %777 = vst.msk [vmem:[%s3 + $0x70] sm:$0xff] %vm762, %v760
  %778 = vst.msk [vmem:[%s3 + $0x78] sm:$0xff] %vm762, %v761
  // Predicated region
  $region14: #{pyramid2_forward.20} parent=0 // pred_check
    _
  $region15: #{pyramid2_forward.20} parent=0 // pred_check_branch
    %780 = sbr.rel (0) target = $region17
  $region16: #{pyramid2_forward.20} parent=0 // pred_region
    _
  $region17: #{pyramid2_forward.20} parent=0 // pred_fallthru
    _
  // Predicated region
  $region18: #{pyramid2_forward.20} parent=0 // pred_check
    _
  $region19: #{pyramid2_forward.20} parent=0 // pred_check_branch
    %782 = sbr.rel (0) target = $region21
  $region20: #{pyramid2_forward.20} parent=0 // pred_region
    _
  $region21: #{pyramid2_forward.20} parent=0 // pred_fallthru
    _

// kernel: pyramid2_forward.21
$region0: #{pyramid2_forward.21}
  #allocation0 [shape = 'u32[]', space=smem, size = 0x4, offset = 0x4, fixed_abs, tag = 'smem constant byte address 0x4 - core index']
  #allocation1 [shape = 'u32[144,128]{1,0:T(1,128)}', space=vmem, size = 0x12000, scoped, tag = 'internal scratch']
  %s0 = inlined_call_operand.vmem [shape: f32[64,288], index: 0, kind: input, shape index: {}]
  %s1 = inlined_call_operand.vmem [shape: f32[288,128], index: 1, kind: input, shape index: {}]
  %s2 = inlined_call_operand.vmem [shape: f32[64,1], index: 2, kind: input, shape index: {}]
  %s3 = inlined_call_operand.vmem [shape: f32[64,128], index: 3, kind: output, shape index: {}]
  %s4 = sld [smem:[#allocation0]]
  $region22: #{pyramid2_forward.21} parent=0
    _
  %s6 = ssub.s32 1, %s4
  %s7 = scalar_select 0, %s6, %s4
  // Predicated region
  $region2: #{pyramid2_forward.21} parent=0 // pred_check
    _
  $region3: #{pyramid2_forward.21} parent=0 // pred_check_branch
    %9 = sbr.rel (0) target = $region5
  $region4: #{pyramid2_forward.21} parent=0 // pred_region
    _
  $region5: #{pyramid2_forward.21} parent=0 // pred_fallthru
    _
  // Predicated region
  $region6: #{pyramid2_forward.21} parent=0 // pred_check
    _
  $region7: #{pyramid2_forward.21} parent=0 // pred_check_branch
    %11 = sbr.rel (0) target = $region9
  $region8: #{pyramid2_forward.21} parent=0 // pred_region
    _
  $region9: #{pyramid2_forward.21} parent=0 // pred_fallthru
    _
  // Predicated region
  $region10: #{pyramid2_forward.21} parent=0 // pred_check
    _
  $region11: #{pyramid2_forward.21} parent=0 // pred_check_branch
    %13 = sbr.rel (0) target = $region13
  $region12: #{pyramid2_forward.21} parent=0 // pred_region
    _
  $region13: #{pyramid2_forward.21} parent=0 // pred_fallthru
    _
  %v14 = vld [vmem:[%s0] sm:$0xff]
  %v15 = vld [vmem:[%s0 + $0x8] sm:$0xff]
  %v16 = vld [vmem:[%s0 + $0x10] sm:$0xff]
  %v17 = vld [vmem:[%s0 + $0x18] sm:$0xff]
  %v18 = vld [vmem:[%s0 + $0x20] sm:$0xff]
  %v19 = vld [vmem:[%s0 + $0x28] sm:$0xff]
  %v20 = vld [vmem:[%s0 + $0x30] sm:$0xff]
  %v21 = vld [vmem:[%s0 + $0x38] sm:$0xff]
  %v22 = vld [vmem:[%s0 + $0x40] sm:$0xff]
  %v23 = vld [vmem:[%s0 + $0x48] sm:$0xff]
  %v24 = vld [vmem:[%s0 + $0x50] sm:$0xff]
  %v25 = vld [vmem:[%s0 + $0x58] sm:$0xff]
  %v26 = vld [vmem:[%s0 + $0x60] sm:$0xff]
  %v27 = vld [vmem:[%s0 + $0x68] sm:$0xff]
  %v28 = vld [vmem:[%s0 + $0x70] sm:$0xff]
  %v29 = vld [vmem:[%s0 + $0x78] sm:$0xff]
  %v30 = vld [vmem:[%s0 + $0x80] sm:$0xff]
  %v31 = vld [vmem:[%s0 + $0x88] sm:$0xff]
  %v32 = vld [vmem:[%s0 + $0x90] sm:$0xff]
  %v33 = vld [vmem:[%s0 + $0x98] sm:$0xff]
  %v34 = vld [vmem:[%s0 + $0xa0] sm:$0xff]
  %v35 = vld [vmem:[%s0 + $0xa8] sm:$0xff]
  %v36 = vld [vmem:[%s0 + $0xb0] sm:$0xff]
  %v37 = vld [vmem:[%s0 + $0xb8] sm:$0xff]
  %v38 = vld [vmem:[%s1] sm:$0xff]
  %v39 = vld [vmem:[%s1 + $0x8] sm:$0xff]
  %v40 = vld [vmem:[%s1 + $0x10] sm:$0xff]
  %v41 = vld [vmem:[%s1 + $0x18] sm:$0xff]
  %v42 = vld [vmem:[%s1 + $0x20] sm:$0xff]
  %v43 = vld [vmem:[%s1 + $0x28] sm:$0xff]
  %v44 = vld [vmem:[%s1 + $0x30] sm:$0xff]
  %v45 = vld [vmem:[%s1 + $0x38] sm:$0xff]
  %v46 = vld [vmem:[%s1 + $0x40] sm:$0xff]
  %v47 = vld [vmem:[%s1 + $0x48] sm:$0xff]
  %v48 = vld [vmem:[%s1 + $0x50] sm:$0xff]
  %v49 = vld [vmem:[%s1 + $0x58] sm:$0xff]
  %v50 = vld [vmem:[%s1 + $0x60] sm:$0xff]
  %v51 = vld [vmem:[%s1 + $0x68] sm:$0xff]
  %v52 = vld [vmem:[%s1 + $0x70] sm:$0xff]
  %v53 = vld [vmem:[%s1 + $0x78] sm:$0xff]
  %v54 = vld [vmem:[%s1 + $0x80] sm:$0xff]
  %v55 = vld [vmem:[%s1 + $0x88] sm:$0xff]
  %v56 = vld [vmem:[%s1 + $0x90] sm:$0xff]
  %v57 = vld [vmem:[%s1 + $0x98] sm:$0xff]
  %v58 = vld [vmem:[%s1 + $0xa0] sm:$0xff]
  %v59 = vld [vmem:[%s1 + $0xa8] sm:$0xff]
  %v60 = vld [vmem:[%s1 + $0xb0] sm:$0xff]
  %v61 = vld [vmem:[%s1 + $0xb8] sm:$0xff]
  %v62 = vld [vmem:[%s1 + $0xc0] sm:$0xff]
  %v63 = vld [vmem:[%s1 + $0xc8] sm:$0xff]
  %v64 = vld [vmem:[%s1 + $0xd0] sm:$0xff]
  %v65 = vld [vmem:[%s1 + $0xd8] sm:$0xff]
  %v66 = vld [vmem:[%s1 + $0xe0] sm:$0xff]
  %v67 = vld [vmem:[%s1 + $0xe8] sm:$0xff]
  %v68 = vld [vmem:[%s1 + $0xf0] sm:$0xff]
  %v69 = vld [vmem:[%s1 + $0xf8] sm:$0xff]
  %v70 = vld [vmem:[%s1 + $0x100] sm:$0xff]
  %v71 = vld [vmem:[%s1 + $0x108] sm:$0xff]
  %v72 = vld [vmem:[%s1 + $0x110] sm:$0xff]
  %v73 = vld [vmem:[%s1 + $0x118] sm:$0xff]
  %v74 = vld [vmem:[%s2] sm:$0xff]
  %v75 = vld [vmem:[%s2 + $0x8] sm:$0xff]
  %v76 = vld [vmem:[%s2 + $0x10] sm:$0xff]
  %v77 = vld [vmem:[%s2 + $0x18] sm:$0xff]
  %v78 = vld [vmem:[%s2 + $0x20] sm:$0xff]
  %v79 = vld [vmem:[%s2 + $0x28] sm:$0xff]
  %v80 = vld [vmem:[%s2 + $0x30] sm:$0xff]
  %v81 = vld [vmem:[%s2 + $0x38] sm:$0xff]
  %83 = vset.pattern.permute.xlu0 0
  %84 = vperm.xlu0 %83, %v74
  %v85 = vpop.permute.xlu0 %84
  %88 = vset.pattern.permute.xlu0 0
  %89 = vperm.xlu0 %88, %v75
  %v90 = vpop.permute.xlu0 %89
  %93 = vset.pattern.permute.xlu0 0
  %94 = vperm.xlu0 %93, %v76
  %v95 = vpop.permute.xlu0 %94
  %98 = vset.pattern.permute.xlu0 0
  %99 = vperm.xlu0 %98, %v77
  %v100 = vpop.permute.xlu0 %99
  %103 = vset.pattern.permute.xlu0 0
  %104 = vperm.xlu0 %103, %v78
  %v105 = vpop.permute.xlu0 %104
  %108 = vset.pattern.permute.xlu0 0
  %109 = vperm.xlu0 %108, %v79
  %v110 = vpop.permute.xlu0 %109
  %113 = vset.pattern.permute.xlu0 0
  %114 = vperm.xlu0 %113, %v80
  %v115 = vpop.permute.xlu0 %114
  %118 = vset.pattern.permute.xlu0 0
  %119 = vperm.xlu0 %118, %v81
  %v120 = vpop.permute.xlu0 %119
  %vm122 = vcmask 261120
  %v124 = vsel %vm122, %v16, 0
  %v127 = vsel %vm122, %v19, 0
  %v130 = vsel %vm122, %v22, 0
  %v133 = vsel %vm122, %v25, 0
  %v136 = vsel %vm122, %v28, 0
  %v139 = vsel %vm122, %v31, 0
  %v142 = vsel %vm122, %v34, 0
  %v145 = vsel %vm122, %v37, 0
  %147 = vmatprep.subr.mxu0 0.0
  %148 = vmatpush1.msra.mxu0 %v38
  %149 = vmatprep.subr.mxu0 0.0
  %150 = vmatpush1.msra.mxu0 %v39
  %151 = vmatprep.subr.mxu0 0.0
  %152 = vmatpush1.msra.mxu0 %v40
  %153 = vmatprep.subr.mxu0 0.0
  %154 = vmatpush1.msra.mxu0 %v41
  %155 = vmatprep.subr.mxu0 0.0
  %156 = vmatpush1.msra.mxu0 %v42
  %157 = vmatprep.subr.mxu0 0.0
  %158 = vmatpush1.msra.mxu0 %v43
  %159 = vmatprep.subr.mxu0 0.0
  %160 = vmatpush1.msra.mxu0 %v44
  %161 = vmatprep.subr.mxu0 0.0
  %162 = vmatpush1.msra.mxu0 %v45
  %163 = vmatprep.subr.mxu0 0.0
  %164 = vmatpush1.msra.mxu0 %v46
  %165 = vmatprep.subr.mxu0 0.0
  %166 = vmatpush1.msra.mxu0 %v47
  %167 = vmatprep.subr.mxu0 0.0
  %168 = vmatpush1.msra.mxu0 %v48
  %169 = vmatprep.subr.mxu0 0.0
  %170 = vmatpush1.msra.mxu0 %v49
  %171 = vmatprep.subr.mxu0 0.0
  %172 = vmatpush1.msra.mxu0 %v50
  %173 = vmatprep.subr.mxu0 0.0
  %174 = vmatpush1.msra.mxu0 %v51
  %175 = vmatprep.subr.mxu0 0.0
  %176 = vmatpush1.msra.mxu0 %v52
  %177 = vmatprep.subr.mxu0 0.0
  %178 = vmatpush1.msra.mxu0 %v53
  %179 = vmatprep.subr.mxu0 0.0
  %180 = vmatpush1.msra.mxu0 %v54
  %181 = vmatprep.subr.mxu0 0.0
  %182 = vmatpush1.msra.mxu0 %v55
  %183 = vmatprep.subr.mxu0 0.0
  %184 = vmatpush1.msra.mxu0 %v56
  %185 = vmatprep.subr.mxu0 0.0
  %186 = vmatpush1.msra.mxu0 %v57
  %187 = vmatprep.subr.mxu0 0.0
  %188 = vmatpush1.msra.mxu0 %v58
  %189 = vmatprep.subr.mxu0 0.0
  %190 = vmatpush1.msra.mxu0 %v59
  %191 = vmatprep.subr.mxu0 0.0
  %192 = vmatpush1.msra.mxu0 %v60
  %193 = vmatprep.subr.mxu0 0.0
  %194 = vmatpush1.msra.mxu0 %v61
  %195 = vmatprep.subr.mxu0 0.0
  %196 = vmatpush1.msra.mxu0 %v62
  %197 = vmatprep.subr.mxu0 0.0
  %198 = vmatpush1.msra.mxu0 %v63
  %199 = vmatprep.subr.mxu0 0.0
  %200 = vmatpush1.msra.mxu0 %v64
  %201 = vmatprep.subr.mxu0 0.0
  %202 = vmatpush1.msra.mxu0 %v65
  %203 = vmatprep.subr.mxu0 0.0
  %204 = vmatpush1.msra.mxu0 %v66
  %205 = vmatprep.subr.mxu0 0.0
  %206 = vmatpush1.msra.mxu0 %v67
  %207 = vmatprep.subr.mxu0 0.0
  %208 = vmatpush1.msra.mxu0 %v68
  %209 = vmatprep.subr.mxu0 0.0
  %210 = vmatpush1.msra.mxu0 %v69
  %211 = vmatprep.mubr.f32.mxu0 %v15
  %212 = vmatmul.mubr.f32.gmra.mrb[0].mxu0 %v14
  %v213 = vpop.f32.mrb[0].mxu0
  %v214 = vadd.f32 %v85, %v213
  %v215 = vpop.f32.mrb[0].mxu0
  %216 = vmatprep.mubr.f32.mxu0 %v18
  %217 = vmatmul.mubr.f32.gmra.mrb[0].mxu0 %v17
  %v218 = vpop.f32.mrb[0].mxu0
  %v219 = vadd.f32 %v90, %v218
  %v220 = vpop.f32.mrb[0].mxu0
  %221 = vmatprep.mubr.f32.mxu0 %v21
  %222 = vmatmul.mubr.f32.gmra.mrb[0].mxu0 %v20
  %v223 = vpop.f32.mrb[0].mxu0
  %v224 = vadd.f32 %v95, %v223
  %v225 = vpop.f32.mrb[0].mxu0
  %226 = vmatprep.mubr.f32.mxu0 %v24
  %227 = vmatmul.mubr.f32.gmra.mrb[0].mxu0 %v23
  %v228 = vpop.f32.mrb[0].mxu0
  %v229 = vadd.f32 %v100, %v228
  %v230 = vpop.f32.mrb[0].mxu0
  %231 = vmatprep.mubr.f32.mxu0 %v27
  %232 = vmatmul.mubr.f32.gmra.mrb[0].mxu0 %v26
  %v233 = vpop.f32.mrb[0].mxu0
  %v234 = vadd.f32 %v105, %v233
  %v235 = vpop.f32.mrb[0].mxu0
  %236 = vmatprep.mubr.f32.mxu0 %v30
  %237 = vmatmul.mubr.f32.gmra.mrb[0].mxu0 %v29
  %v238 = vpop.f32.mrb[0].mxu0
  %v239 = vadd.f32 %v110, %v238
  %v240 = vpop.f32.mrb[0].mxu0
  %241 = vmatprep.mubr.f32.mxu0 %v33
  %242 = vmatmul.mubr.f32.gmra.mrb[0].mxu0 %v32
  %v243 = vpop.f32.mrb[0].mxu0
  %v244 = vadd.f32 %v115, %v243
  %v245 = vpop.f32.mrb[0].mxu0
  %246 = vmatprep.mubr.f32.mxu0 %v36
  %247 = vmatmul.mubr.f32.gmra.mrb[0].mxu0 %v35
  %v248 = vpop.f32.mrb[0].mxu0
  %v249 = vadd.f32 %v120, %v248
  %v250 = vpop.f32.mrb[0].mxu0
  %251 = vdwg.mxu0
  %252 = vmatprep.subr.mxu0 0.0
  %253 = vmatpush1.msra.mxu0 %v70
  %254 = vmatprep.subr.mxu0 0.0
  %255 = vmatpush1.msra.mxu0 %v71
  %256 = vmatprep.subr.mxu0 0.0
  %257 = vmatpush1.msra.mxu0 %v72
  %258 = vmatprep.subr.mxu0 0.0
  %259 = vmatpush1.msra.mxu0 %v73
  %260 = vmatprep.subr.mxu0 0.0
  %261 = vmatpush1.msra.mxu0 0.0
  %262 = vmatprep.subr.mxu0 0.0
  %263 = vmatpush1.msra.mxu0 0.0
  %264 = vmatprep.subr.mxu0 0.0
  %265 = vmatpush1.msra.mxu0 0.0
  %266 = vmatprep.subr.mxu0 0.0
  %267 = vmatpush1.msra.mxu0 0.0
  %268 = vmatprep.subr.mxu0 0.0
  %269 = vmatpush1.msra.mxu0 0.0
  %270 = vmatprep.subr.mxu0 0.0
  %271 = vmatpush1.msra.mxu0 0.0
  %272 = vmatprep.subr.mxu0 0.0
  %273 = vmatpush1.msra.mxu0 0.0
  %274 = vmatprep.subr.mxu0 0.0
  %275 = vmatpush1.msra.mxu0 0.0
  %276 = vmatprep.subr.mxu0 0.0
  %277 = vmatpush1.msra.mxu0 0.0
  %278 = vmatprep.subr.mxu0 0.0
  %279 = vmatpush1.msra.mxu0 0.0
  %280 = vmatprep.subr.mxu0 0.0
  %281 = vmatpush1.msra.mxu0 0.0
  %282 = vmatprep.subr.mxu0 0.0
  %283 = vmatpush1.msra.mxu0 0.0
  %284 = vmatprep.subr.mxu0 0.0
  %285 = vmatpush1.msra.mxu0 0.0
  %286 = vmatprep.subr.mxu0 0.0
  %287 = vmatpush1.msra.mxu0 0.0
  %288 = vmatprep.subr.mxu0 0.0
  %289 = vmatpush1.msra.mxu0 0.0
  %290 = vmatprep.subr.mxu0 0.0
  %291 = vmatpush1.msra.mxu0 0.0
  %292 = vmatprep.subr.mxu0 0.0
  %293 = vmatpush1.msra.mxu0 0.0
  %294 = vmatprep.subr.mxu0 0.0
  %295 = vmatpush1.msra.mxu0 0.0
  %296 = vmatprep.subr.mxu0 0.0
  %297 = vmatpush1.msra.mxu0 0.0
  %298 = vmatprep.subr.mxu0 0.0
  %299 = vmatpush1.msra.mxu0 0.0
  %300 = vmatprep.subr.mxu0 0.0
  %301 = vmatpush1.msra.mxu0 0.0
  %302 = vmatprep.subr.mxu0 0.0
  %303 = vmatpush1.msra.mxu0 0.0
  %304 = vmatprep.subr.mxu0 0.0
  %305 = vmatpush1.msra.mxu0 0.0
  %306 = vmatprep.subr.mxu0 0.0
  %307 = vmatpush1.msra.mxu0 0.0
  %308 = vmatprep.subr.mxu0 0.0
  %309 = vmatpush1.msra.mxu0 0.0
  %310 = vmatprep.subr.mxu0 0.0
  %311 = vmatpush1.msra.mxu0 0.0
  %312 = vmatprep.subr.mxu0 0.0
  %313 = vmatpush1.msra.mxu0 0.0
  %314 = vmatprep.subr.mxu0 0.0
  %315 = vmatpush1.msra.mxu0 0.0
  %316 = vmatprep.mubr.f32.mxu0 0.0
  %317 = vmatmul.mubr.f32.gmra.mrb[0].mxu0 %v124
  %v318 = vpop.f32.mrb[0].mxu0
  %v319 = vadd.f32 %v214, %v318
  %v320 = vpop.f32.mrb[0].mxu0
  %321 = vmatprep.mubr.f32.mxu0 0.0
  %322 = vmatmul.mubr.f32.gmra.mrb[0].mxu0 %v127
  %v323 = vpop.f32.mrb[0].mxu0
  %v324 = vadd.f32 %v219, %v323
  %v325 = vpop.f32.mrb[0].mxu0
  %326 = vmatprep.mubr.f32.mxu0 0.0
  %327 = vmatmul.mubr.f32.gmra.mrb[0].mxu0 %v130
  %v328 = vpop.f32.mrb[0].mxu0
  %v329 = vadd.f32 %v224, %v328
  %v330 = vpop.f32.mrb[0].mxu0
  %331 = vmatprep.mubr.f32.mxu0 0.0
  %332 = vmatmul.mubr.f32.gmra.mrb[0].mxu0 %v133
  %v333 = vpop.f32.mrb[0].mxu0
  %v334 = vadd.f32 %v229, %v333
  %v335 = vpop.f32.mrb[0].mxu0
  %336 = vmatprep.mubr.f32.mxu0 0.0
  %337 = vmatmul.mubr.f32.gmra.mrb[0].mxu0 %v136
  %v338 = vpop.f32.mrb[0].mxu0
  %v339 = vadd.f32 %v234, %v338
  %v340 = vpop.f32.mrb[0].mxu0
  %341 = vmatprep.mubr.f32.mxu0 0.0
  %342 = vmatmul.mubr.f32.gmra.mrb[0].mxu0 %v139
  %v343 = vpop.f32.mrb[0].mxu0
  %v344 = vadd.f32 %v239, %v343
  %v345 = vpop.f32.mrb[0].mxu0
  %346 = vmatprep.mubr.f32.mxu0 0.0
  %347 = vmatmul.mubr.f32.gmra.mrb[0].mxu0 %v142
  %v348 = vpop.f32.mrb[0].mxu0
  %v349 = vadd.f32 %v244, %v348
  %v350 = vpop.f32.mrb[0].mxu0
  %351 = vmatprep.mubr.f32.mxu0 0.0
  %352 = vmatmul.mubr.f32.gmra.mrb[0].mxu0 %v145
  %v353 = vpop.f32.mrb[0].mxu0
  %v354 = vadd.f32 %v249, %v353
  %v355 = vpop.f32.mrb[0].mxu0
  %356 = vdwg.mxu0
  %v357 = vmax.f32 %v319, 0.0
  %v358 = vmax.f32 %v324, 0.0
  %v359 = vmax.f32 %v329, 0.0
  %v360 = vmax.f32 %v334, 0.0
  %v361 = vmax.f32 %v339, 0.0
  %v362 = vmax.f32 %v344, 0.0
  %v363 = vmax.f32 %v349, 0.0
  %v364 = vmax.f32 %v354, 0.0
  %365 = vst [vmem:[%s3] sm:$0xff] %v357
  %366 = vst [vmem:[%s3 + $0x8] sm:$0xff] %v358
  %367 = vst [vmem:[%s3 + $0x10] sm:$0xff] %v359
  %368 = vst [vmem:[%s3 + $0x18] sm:$0xff] %v360
  %369 = vst [vmem:[%s3 + $0x20] sm:$0xff] %v361
  %370 = vst [vmem:[%s3 + $0x28] sm:$0xff] %v362
  %371 = vst [vmem:[%s3 + $0x30] sm:$0xff] %v363
  %372 = vst [vmem:[%s3 + $0x38] sm:$0xff] %v364
  // Predicated region
  $region14: #{pyramid2_forward.21} parent=0 // pred_check
    _
  $region15: #{pyramid2_forward.21} parent=0 // pred_check_branch
    %374 = sbr.rel (0) target = $region17
  $region16: #{pyramid2_forward.21} parent=0 // pred_region
    _
  $region17: #{pyramid2_forward.21} parent=0 // pred_fallthru
    _
  // Predicated region
  $region18: #{pyramid2_forward.21} parent=0 // pred_check
    _
  $region19: #{pyramid2_forward.21} parent=0 // pred_check_branch
    %376 = sbr.rel (0) target = $region21
  $region20: #{pyramid2_forward.21} parent=0 // pred_region
    _
  $region21: #{pyramid2_forward.21} parent=0 // pred_fallthru
    _

// kernel: pyramid2_forward.22
$region0: #{pyramid2_forward.22}
  #allocation0 [shape = 'u32[]', space=smem, size = 0x4, offset = 0x4, fixed_abs, tag = 'smem constant byte address 0x4 - core index']
  #allocation1 [shape = 'u32[144,128]{1,0:T(1,128)}', space=vmem, size = 0x12000, scoped, tag = 'internal scratch']
  %s0 = inlined_call_operand.vmem [shape: f32[32,144], index: 0, kind: input, shape index: {}]
  %s1 = inlined_call_operand.vmem [shape: f32[144,512], index: 1, kind: input, shape index: {}]
  %s2 = inlined_call_operand.vmem [shape: f32[32,1], index: 2, kind: input, shape index: {}]
  %s3 = inlined_call_operand.vmem [shape: f32[32,512], index: 3, kind: output, shape index: {}]
  %s4 = sld [smem:[#allocation0]]
  $region22: #{pyramid2_forward.22} parent=0
    _
  %s6 = ssub.s32 1, %s4
  %s7 = scalar_select 0, %s6, %s4
  // Predicated region
  $region2: #{pyramid2_forward.22} parent=0 // pred_check
    _
  $region3: #{pyramid2_forward.22} parent=0 // pred_check_branch
    %9 = sbr.rel (0) target = $region5
  $region4: #{pyramid2_forward.22} parent=0 // pred_region
    _
  $region5: #{pyramid2_forward.22} parent=0 // pred_fallthru
    _
  // Predicated region
  $region6: #{pyramid2_forward.22} parent=0 // pred_check
    _
  $region7: #{pyramid2_forward.22} parent=0 // pred_check_branch
    %11 = sbr.rel (0) target = $region9
  $region8: #{pyramid2_forward.22} parent=0 // pred_region
    _
  $region9: #{pyramid2_forward.22} parent=0 // pred_fallthru
    _
  // Predicated region
  $region10: #{pyramid2_forward.22} parent=0 // pred_check
    _
  $region11: #{pyramid2_forward.22} parent=0 // pred_check_branch
    %13 = sbr.rel (0) target = $region13
  $region12: #{pyramid2_forward.22} parent=0 // pred_region
    _
  $region13: #{pyramid2_forward.22} parent=0 // pred_fallthru
    _
  %v14 = vld [vmem:[%s0] sm:$0xff]
  %v15 = vld [vmem:[%s0 + $0x8] sm:$0xff]
  %v16 = vld [vmem:[%s0 + $0x10] sm:$0xff]
  %v17 = vld [vmem:[%s0 + $0x18] sm:$0xff]
  %v18 = vld [vmem:[%s0 + $0x20] sm:$0xff]
  %v19 = vld [vmem:[%s0 + $0x28] sm:$0xff]
  %v20 = vld [vmem:[%s0 + $0x30] sm:$0xff]
  %v21 = vld [vmem:[%s0 + $0x38] sm:$0xff]
  %v22 = vld [vmem:[%s1] sm:$0xff]
  %v23 = vld [vmem:[%s1 + $0x8] sm:$0xff]
  %v24 = vld [vmem:[%s1 + $0x10] sm:$0xff]
  %v25 = vld [vmem:[%s1 + $0x18] sm:$0xff]
  %v26 = vld [vmem:[%s1 + $0x20] sm:$0xff]
  %v27 = vld [vmem:[%s1 + $0x28] sm:$0xff]
  %v28 = vld [vmem:[%s1 + $0x30] sm:$0xff]
  %v29 = vld [vmem:[%s1 + $0x38] sm:$0xff]
  %v30 = vld [vmem:[%s1 + $0x40] sm:$0xff]
  %v31 = vld [vmem:[%s1 + $0x48] sm:$0xff]
  %v32 = vld [vmem:[%s1 + $0x50] sm:$0xff]
  %v33 = vld [vmem:[%s1 + $0x58] sm:$0xff]
  %v34 = vld [vmem:[%s1 + $0x60] sm:$0xff]
  %v35 = vld [vmem:[%s1 + $0x68] sm:$0xff]
  %v36 = vld [vmem:[%s1 + $0x70] sm:$0xff]
  %v37 = vld [vmem:[%s1 + $0x78] sm:$0xff]
  %v38 = vld [vmem:[%s1 + $0x80] sm:$0xff]
  %v39 = vld [vmem:[%s1 + $0x88] sm:$0xff]
  %v40 = vld [vmem:[%s1 + $0x90] sm:$0xff]
  %v41 = vld [vmem:[%s1 + $0x98] sm:$0xff]
  %v42 = vld [vmem:[%s1 + $0xa0] sm:$0xff]
  %v43 = vld [vmem:[%s1 + $0xa8] sm:$0xff]
  %v44 = vld [vmem:[%s1 + $0xb0] sm:$0xff]
  %v45 = vld [vmem:[%s1 + $0xb8] sm:$0xff]
  %v46 = vld [vmem:[%s1 + $0xc0] sm:$0xff]
  %v47 = vld [vmem:[%s1 + $0xc8] sm:$0xff]
  %v48 = vld [vmem:[%s1 + $0xd0] sm:$0xff]
  %v49 = vld [vmem:[%s1 + $0xd8] sm:$0xff]
  %v50 = vld [vmem:[%s1 + $0xe0] sm:$0xff]
  %v51 = vld [vmem:[%s1 + $0xe8] sm:$0xff]
  %v52 = vld [vmem:[%s1 + $0xf0] sm:$0xff]
  %v53 = vld [vmem:[%s1 + $0xf8] sm:$0xff]
  %v54 = vld [vmem:[%s1 + $0x100] sm:$0xff]
  %v55 = vld [vmem:[%s1 + $0x108] sm:$0xff]
  %v56 = vld [vmem:[%s1 + $0x110] sm:$0xff]
  %v57 = vld [vmem:[%s1 + $0x118] sm:$0xff]
  %v58 = vld [vmem:[%s1 + $0x120] sm:$0xff]
  %v59 = vld [vmem:[%s1 + $0x128] sm:$0xff]
  %v60 = vld [vmem:[%s1 + $0x130] sm:$0xff]
  %v61 = vld [vmem:[%s1 + $0x138] sm:$0xff]
  %v62 = vld [vmem:[%s1 + $0x140] sm:$0xff]
  %v63 = vld [vmem:[%s1 + $0x148] sm:$0xff]
  %v64 = vld [vmem:[%s1 + $0x150] sm:$0xff]
  %v65 = vld [vmem:[%s1 + $0x158] sm:$0xff]
  %v66 = vld [vmem:[%s1 + $0x160] sm:$0xff]
  %v67 = vld [vmem:[%s1 + $0x168] sm:$0xff]
  %v68 = vld [vmem:[%s1 + $0x170] sm:$0xff]
  %v69 = vld [vmem:[%s1 + $0x178] sm:$0xff]
  %v70 = vld [vmem:[%s1 + $0x180] sm:$0xff]
  %v71 = vld [vmem:[%s1 + $0x188] sm:$0xff]
  %v72 = vld [vmem:[%s1 + $0x190] sm:$0xff]
  %v73 = vld [vmem:[%s1 + $0x198] sm:$0xff]
  %v74 = vld [vmem:[%s1 + $0x1a0] sm:$0xff]
  %v75 = vld [vmem:[%s1 + $0x1a8] sm:$0xff]
  %v76 = vld [vmem:[%s1 + $0x1b0] sm:$0xff]
  %v77 = vld [vmem:[%s1 + $0x1b8] sm:$0xff]
  %v78 = vld [vmem:[%s1 + $0x1c0] sm:$0xff]
  %v79 = vld [vmem:[%s1 + $0x1c8] sm:$0xff]
  %v80 = vld [vmem:[%s1 + $0x1d0] sm:$0xff]
  %v81 = vld [vmem:[%s1 + $0x1d8] sm:$0xff]
  %v82 = vld [vmem:[%s1 + $0x1e0] sm:$0xff]
  %v83 = vld [vmem:[%s1 + $0x1e8] sm:$0xff]
  %v84 = vld [vmem:[%s1 + $0x1f0] sm:$0xff]
  %v85 = vld [vmem:[%s1 + $0x1f8] sm:$0xff]
  %v86 = vld [vmem:[%s1 + $0x200] sm:$0xff]
  %v87 = vld [vmem:[%s1 + $0x208] sm:$0xff]
  %v88 = vld [vmem:[%s1 + $0x210] sm:$0xff]
  %v89 = vld [vmem:[%s1 + $0x218] sm:$0xff]
  %v90 = vld [vmem:[%s1 + $0x220] sm:$0xff]
  %v91 = vld [vmem:[%s1 + $0x228] sm:$0xff]
  %v92 = vld [vmem:[%s1 + $0x230] sm:$0xff]
  %v93 = vld [vmem:[%s1 + $0x238] sm:$0xff]
  %v94 = vld [vmem:[%s2] sm:$0xff]
  %v95 = vld [vmem:[%s2 + $0x8] sm:$0xff]
  %v96 = vld [vmem:[%s2 + $0x10] sm:$0xff]
  %v97 = vld [vmem:[%s2 + $0x18] sm:$0xff]
  %99 = vset.pattern.permute.xlu0 0
  %100 = vperm.xlu0 %99, %v94
  %v101 = vpop.permute.xlu0 %100
  %104 = vset.pattern.permute.xlu0 0
  %105 = vperm.xlu0 %104, %v95
  %v106 = vpop.permute.xlu0 %105
  %109 = vset.pattern.permute.xlu0 0
  %110 = vperm.xlu0 %109, %v96
  %v111 = vpop.permute.xlu0 %110
  %114 = vset.pattern.permute.xlu0 0
  %115 = vperm.xlu0 %114, %v97
  %v116 = vpop.permute.xlu0 %115
  %vm118 = vcmask 130048
  %v120 = vsel %vm118, %v15, 0
  %v123 = vsel %vm118, %v17, 0
  %v126 = vsel %vm118, %v19, 0
  %v129 = vsel %vm118, %v21, 0
  %131 = vmatprep.subr.mxu0 %v23
  %132 = vmatpush1.msra.mxu0 %v22
  %133 = vmatprep.subr.mxu0 %v27
  %134 = vmatpush1.msra.mxu0 %v26
  %135 = vmatprep.subr.mxu0 %v31
  %136 = vmatpush1.msra.mxu0 %v30
  %137 = vmatprep.subr.mxu0 %v35
  %138 = vmatpush1.msra.mxu0 %v34
  %139 = vmatprep.subr.mxu0 %v39
  %140 = vmatpush1.msra.mxu0 %v38
  %141 = vmatprep.subr.mxu0 %v43
  %142 = vmatpush1.msra.mxu0 %v42
  %143 = vmatprep.subr.mxu0 %v47
  %144 = vmatpush1.msra.mxu0 %v46
  %145 = vmatprep.subr.mxu0 %v51
  %146 = vmatpush1.msra.mxu0 %v50
  %147 = vmatprep.subr.mxu0 %v55
  %148 = vmatpush1.msra.mxu0 %v54
  %149 = vmatprep.subr.mxu0 %v59
  %150 = vmatpush1.msra.mxu0 %v58
  %151 = vmatprep.subr.mxu0 %v63
  %152 = vmatpush1.msra.mxu0 %v62
  %153 = vmatprep.subr.mxu0 %v67
  %154 = vmatpush1.msra.mxu0 %v66
  %155 = vmatprep.subr.mxu0 %v71
  %156 = vmatpush1.msra.mxu0 %v70
  %157 = vmatprep.subr.mxu0 %v75
  %158 = vmatpush1.msra.mxu0 %v74
  %159 = vmatprep.subr.mxu0 %v79
  %160 = vmatpush1.msra.mxu0 %v78
  %161 = vmatprep.subr.mxu0 %v83
  %162 = vmatpush1.msra.mxu0 %v82
  %163 = vmatprep.subr.mxu0 %v87
  %164 = vmatpush1.msra.mxu0 %v86
  %165 = vmatprep.subr.mxu0 %v91
  %166 = vmatpush1.msra.mxu0 %v90
  %167 = vmatprep.subr.mxu0 0.0
  %168 = vmatpush1.msra.mxu0 0.0
  %169 = vmatprep.subr.mxu0 0.0
  %170 = vmatpush1.msra.mxu0 0.0
  %171 = vmatprep.subr.mxu0 0.0
  %172 = vmatpush1.msra.mxu0 0.0
  %173 = vmatprep.subr.mxu0 0.0
  %174 = vmatpush1.msra.mxu0 0.0
  %175 = vmatprep.subr.mxu0 0.0
  %176 = vmatpush1.msra.mxu0 0.0
  %177 = vmatprep.subr.mxu0 0.0
  %178 = vmatpush1.msra.mxu0 0.0
  %179 = vmatprep.subr.mxu0 0.0
  %180 = vmatpush1.msra.mxu0 0.0
  %181 = vmatprep.subr.mxu0 0.0
  %182 = vmatpush1.msra.mxu0 0.0
  %183 = vmatprep.subr.mxu0 0.0
  %184 = vmatpush1.msra.mxu0 0.0
  %185 = vmatprep.subr.mxu0 0.0
  %186 = vmatpush1.msra.mxu0 0.0
  %187 = vmatprep.subr.mxu0 0.0
  %188 = vmatpush1.msra.mxu0 0.0
  %189 = vmatprep.subr.mxu0 0.0
  %190 = vmatpush1.msra.mxu0 0.0
  %191 = vmatprep.subr.mxu0 0.0
  %192 = vmatpush1.msra.mxu0 0.0
  %193 = vmatprep.subr.mxu0 0.0
  %194 = vmatpush1.msra.mxu0 0.0
  %195 = vmatprep.mubr.f32.mxu0 %v120
  %196 = vmatmul.mubr.f32.gmra.mrb[0].mxu0 %v14
  %v197 = vpop.f32.mrb[0].mxu0
  %v198 = vadd.f32 %v101, %v197
  %v199 = vpop.f32.mrb[0].mxu0
  %v200 = vadd.f32 %v101, %v199
  %201 = vmatprep.mubr.f32.mxu0 %v123
  %202 = vmatmul.mubr.f32.gmra.mrb[0].mxu0 %v16
  %v203 = vpop.f32.mrb[0].mxu0
  %v204 = vadd.f32 %v106, %v203
  %v205 = vpop.f32.mrb[0].mxu0
  %v206 = vadd.f32 %v106, %v205
  %207 = vmatprep.mubr.f32.mxu0 %v126
  %208 = vmatmul.mubr.f32.gmra.mrb[0].mxu0 %v18
  %v209 = vpop.f32.mrb[0].mxu0
  %v210 = vadd.f32 %v111, %v209
  %v211 = vpop.f32.mrb[0].mxu0
  %v212 = vadd.f32 %v111, %v211
  %213 = vmatprep.mubr.f32.mxu0 %v129
  %214 = vmatmul.mubr.f32.gmra.mrb[0].mxu0 %v20
  %v215 = vpop.f32.mrb[0].mxu0
  %v216 = vadd.f32 %v116, %v215
  %v217 = vpop.f32.mrb[0].mxu0
  %v218 = vadd.f32 %v116, %v217
  %219 = vdwg.mxu0
  %220 = vmatprep.subr.mxu0 %v25
  %221 = vmatpush1.msra.mxu0 %v24
  %222 = vmatprep.subr.mxu0 %v29
  %223 = vmatpush1.msra.mxu0 %v28
  %224 = vmatprep.subr.mxu0 %v33
  %225 = vmatpush1.msra.mxu0 %v32
  %226 = vmatprep.subr.mxu0 %v37
  %227 = vmatpush1.msra.mxu0 %v36
  %228 = vmatprep.subr.mxu0 %v41
  %229 = vmatpush1.msra.mxu0 %v40
  %230 = vmatprep.subr.mxu0 %v45
  %231 = vmatpush1.msra.mxu0 %v44
  %232 = vmatprep.subr.mxu0 %v49
  %233 = vmatpush1.msra.mxu0 %v48
  %234 = vmatprep.subr.mxu0 %v53
  %235 = vmatpush1.msra.mxu0 %v52
  %236 = vmatprep.subr.mxu0 %v57
  %237 = vmatpush1.msra.mxu0 %v56
  %238 = vmatprep.subr.mxu0 %v61
  %239 = vmatpush1.msra.mxu0 %v60
  %240 = vmatprep.subr.mxu0 %v65
  %241 = vmatpush1.msra.mxu0 %v64
  %242 = vmatprep.subr.mxu0 %v69
  %243 = vmatpush1.msra.mxu0 %v68
  %244 = vmatprep.subr.mxu0 %v73
  %245 = vmatpush1.msra.mxu0 %v72
  %246 = vmatprep.subr.mxu0 %v77
  %247 = vmatpush1.msra.mxu0 %v76
  %248 = vmatprep.subr.mxu0 %v81
  %249 = vmatpush1.msra.mxu0 %v80
  %250 = vmatprep.subr.mxu0 %v85
  %251 = vmatpush1.msra.mxu0 %v84
  %252 = vmatprep.subr.mxu0 %v89
  %253 = vmatpush1.msra.mxu0 %v88
  %254 = vmatprep.subr.mxu0 %v93
  %255 = vmatpush1.msra.mxu0 %v92
  %256 = vmatprep.subr.mxu0 0.0
  %257 = vmatpush1.msra.mxu0 0.0
  %258 = vmatprep.subr.mxu0 0.0
  %259 = vmatpush1.msra.mxu0 0.0
  %260 = vmatprep.subr.mxu0 0.0
  %261 = vmatpush1.msra.mxu0 0.0
  %262 = vmatprep.subr.mxu0 0.0
  %263 = vmatpush1.msra.mxu0 0.0
  %264 = vmatprep.subr.mxu0 0.0
  %265 = vmatpush1.msra.mxu0 0.0
  %266 = vmatprep.subr.mxu0 0.0
  %267 = vmatpush1.msra.mxu0 0.0
  %268 = vmatprep.subr.mxu0 0.0
  %269 = vmatpush1.msra.mxu0 0.0
  %270 = vmatprep.subr.mxu0 0.0
  %271 = vmatpush1.msra.mxu0 0.0
  %272 = vmatprep.subr.mxu0 0.0
  %273 = vmatpush1.msra.mxu0 0.0
  %274 = vmatprep.subr.mxu0 0.0
  %275 = vmatpush1.msra.mxu0 0.0
  %276 = vmatprep.subr.mxu0 0.0
  %277 = vmatpush1.msra.mxu0 0.0
  %278 = vmatprep.subr.mxu0 0.0
  %279 = vmatpush1.msra.mxu0 0.0
  %280 = vmatprep.subr.mxu0 0.0
  %281 = vmatpush1.msra.mxu0 0.0
  %282 = vmatprep.subr.mxu0 0.0
  %283 = vmatpush1.msra.mxu0 0.0
  %284 = vmatprep.mubr.f32.mxu0 %v120
  %285 = vmatmul.mubr.f32.gmra.mrb[0].mxu0 %v14
  %v286 = vpop.f32.mrb[0].mxu0
  %v287 = vadd.f32 %v101, %v286
  %v288 = vpop.f32.mrb[0].mxu0
  %v289 = vadd.f32 %v101, %v288
  %290 = vmatprep.mubr.f32.mxu0 %v123
  %291 = vmatmul.mubr.f32.gmra.mrb[0].mxu0 %v16
  %v292 = vpop.f32.mrb[0].mxu0
  %v293 = vadd.f32 %v106, %v292
  %v294 = vpop.f32.mrb[0].mxu0
  %v295 = vadd.f32 %v106, %v294
  %296 = vmatprep.mubr.f32.mxu0 %v126
  %297 = vmatmul.mubr.f32.gmra.mrb[0].mxu0 %v18
  %v298 = vpop.f32.mrb[0].mxu0
  %v299 = vadd.f32 %v111, %v298
  %v300 = vpop.f32.mrb[0].mxu0
  %v301 = vadd.f32 %v111, %v300
  %302 = vmatprep.mubr.f32.mxu0 %v129
  %303 = vmatmul.mubr.f32.gmra.mrb[0].mxu0 %v20
  %v304 = vpop.f32.mrb[0].mxu0
  %v305 = vadd.f32 %v116, %v304
  %v306 = vpop.f32.mrb[0].mxu0
  %v307 = vadd.f32 %v116, %v306
  %308 = vdwg.mxu0
  %v309 = vmax.f32 %v198, 0.0
  %v310 = vmax.f32 %v200, 0.0
  %v311 = vmax.f32 %v287, 0.0
  %v312 = vmax.f32 %v289, 0.0
  %v313 = vmax.f32 %v204, 0.0
  %v314 = vmax.f32 %v206, 0.0
  %v315 = vmax.f32 %v293, 0.0
  %v316 = vmax.f32 %v295, 0.0
  %v317 = vmax.f32 %v210, 0.0
  %v318 = vmax.f32 %v212, 0.0
  %v319 = vmax.f32 %v299, 0.0
  %v320 = vmax.f32 %v301, 0.0
  %v321 = vmax.f32 %v216, 0.0
  %v322 = vmax.f32 %v218, 0.0
  %v323 = vmax.f32 %v305, 0.0
  %v324 = vmax.f32 %v307, 0.0
  %325 = vst [vmem:[%s3] sm:$0xff] %v309
  %326 = vst [vmem:[%s3 + $0x8] sm:$0xff] %v310
  %327 = vst [vmem:[%s3 + $0x10] sm:$0xff] %v311
  %328 = vst [vmem:[%s3 + $0x18] sm:$0xff] %v312
  %329 = vst [vmem:[%s3 + $0x20] sm:$0xff] %v313
  %330 = vst [vmem:[%s3 + $0x28] sm:$0xff] %v314
  %331 = vst [vmem:[%s3 + $0x30] sm:$0xff] %v315
  %332 = vst [vmem:[%s3 + $0x38] sm:$0xff] %v316
  %333 = vst [vmem:[%s3 + $0x40] sm:$0xff] %v317
  %334 = vst [vmem:[%s3 + $0x48] sm:$0xff] %v318
  %335 = vst [vmem:[%s3 + $0x50] sm:$0xff] %v319
  %336 = vst [vmem:[%s3 + $0x58] sm:$0xff] %v320
  %337 = vst [vmem:[%s3 + $0x60] sm:$0xff] %v321
  %338 = vst [vmem:[%s3 + $0x68] sm:$0xff] %v322
  %339 = vst [vmem:[%s3 + $0x70] sm:$0xff] %v323
  %340 = vst [vmem:[%s3 + $0x78] sm:$0xff] %v324
  // Predicated region
  $region14: #{pyramid2_forward.22} parent=0 // pred_check
    _
  $region15: #{pyramid2_forward.22} parent=0 // pred_check_branch
    %342 = sbr.rel (0) target = $region17
  $region16: #{pyramid2_forward.22} parent=0 // pred_region
    _
  $region17: #{pyramid2_forward.22} parent=0 // pred_fallthru
    _
  // Predicated region
  $region18: #{pyramid2_forward.22} parent=0 // pred_check
    _
  $region19: #{pyramid2_forward.22} parent=0 // pred_check_branch
    %344 = sbr.rel (0) target = $region21
  $region20: #{pyramid2_forward.22} parent=0 // pred_region
    _
  $region21: #{pyramid2_forward.22} parent=0 // pred_fallthru
    _

// kernel: pyramid2_forward.23
$region0: #{pyramid2_forward.23}
  #allocation0 [shape = 'u32[]', space=smem, size = 0x4, offset = 0x4, fixed_abs, tag = 'smem constant byte address 0x4 - core index']
  #allocation1 [shape = 'u32[144,128]{1,0:T(1,128)}', space=vmem, size = 0x12000, scoped, tag = 'internal scratch']
  %s0 = inlined_call_operand.vmem [shape: f32[12,72], index: 0, kind: input, shape index: {}]
  %s1 = inlined_call_operand.vmem [shape: f32[72,2048], index: 1, kind: input, shape index: {}]
  %s2 = inlined_call_operand.vmem [shape: f32[12,1], index: 2, kind: input, shape index: {}]
  %s3 = inlined_call_operand.vmem [shape: f32[12,2048], index: 3, kind: output, shape index: {}]
  %s4 = sld [smem:[#allocation0]]
  $region87: #{pyramid2_forward.23} parent=0
    _
  %s6 = ssub.s32 1, %s4
  %s7 = scalar_select 0, %s6, %s4
  $region1: #{pyramid2_forward.23} parent=0
    #allocation2 [shape = 'u8[294912]{0}', space=vmem, size = 0x48000, scoped, tag = 'input window, operand 1']
    #allocation3 [shape = 'u8[65536]{0}', space=vmem, size = 0x10000, scoped, tag = 'output window, operand 0']
    loop: start=0, step=1, limit=6
    $region2: #{pyramid2_forward.23} parent=1 // loop_pre_header
      _
    $region3: #{pyramid2_forward.23} parent=1 // loop_header
      %s9 = sphi 0, %s13
      %p10 = scmp.ge.s32.totalorder %s9, 6
      %s17 = sphi 0, %s17
      %s19 = sphi 0, %s17
      %s20 = sphi 0, %s19
      %s34 = sphi 0, %s20
      %s40 = sphi 0, %s42
      %s43 = sphi 0, %s40
      %s44 = sphi 0, %s43
      %s60 = sphi 0, %s44
      %s64 = sphi 0, %s64
      %s66 = sphi 0, %s64
      %s67 = sphi 0, %s66
      %s81 = sphi 0, %s67
      %s87 = sphi 0, %s89
      %s90 = sphi 0, %s87
      %s91 = sphi 0, %s90
      %s107 = sphi 0, %s91
    $region4: #{pyramid2_forward.23} parent=1 // loop_header_branch
      %12 = sbr.rel (%p10) target = $region8
    $region5: #{pyramid2_forward.23} parent=1 // loop_body
      %s14 = ssub.s32 %s9, 1
      %s15 = ssub.s32 %s9, 2
      %s16 = sadd.s32 %s9, 1
      %s18 = sadd.s32 %s17, 1
      %p21 = scmp.eq.s32.totalorder %s9, 3
      %p22 = scmp.ne.s32.totalorder %s17, %s19
      %p23 = scmp.eq.s32.totalorder %s9, 0
      %p24 = por %p22, %p23
      %p25 = scmp.ne.s32.totalorder %s17, %s19
      %p26 = scmp.eq.s32.totalorder %s14, 3
      %p27 = por %p25, %p26
      %p28 = scmp.ne.s32.totalorder %s19, %s20
      %p29 = scmp.eq.s32.totalorder %s14, 0
      %p30 = por %p28, %p29
      %p31 = scmp.ne.s32.totalorder %s19, %s20
      %p32 = scmp.eq.s32.totalorder %s15, 3
      %p33 = por %p31, %p32
      %p35 = scmp.ne.s32.totalorder %s20, %s34
      %p36 = scmp.eq.s32.totalorder %s15, 0
      %p37 = por %p35, %p36
      %s38 = ssub.s32 %s9, %s16
      %p39 = scmp.eq.s32.totalorder %s38, 0
      %s41 = sadd.s32 %s40, 1
      %s42 = scalar_select %p39, %s40, %s41
      %p45 = pneg %p39
      %p46 = scmp.eq.s32.totalorder %s9, 3
      %p47 = por %p45, %p46
      %p48 = scmp.ne.s32.totalorder %s40, %s43
      %p49 = scmp.eq.s32.totalorder %s9, 0
      %p50 = por %p48, %p49
      %p51 = scmp.ne.s32.totalorder %s40, %s43
      %p52 = scmp.eq.s32.totalorder %s14, 3
      %p53 = por %p51, %p52
      %p54 = scmp.ne.s32.totalorder %s43, %s44
      %p55 = scmp.eq.s32.totalorder %s14, 0
      %p56 = por %p54, %p55
      %p57 = scmp.ne.s32.totalorder %s43, %s44
      %p58 = scmp.eq.s32.totalorder %s15, 3
      %p59 = por %p57, %p58
      %p61 = scmp.ne.s32.totalorder %s44, %s60
      %p62 = scmp.eq.s32.totalorder %s15, 0
      %p63 = por %p61, %p62
      %s65 = sadd.s32 %s64, 1
      %p68 = scmp.eq.s32.totalorder %s9, 3
      %p69 = scmp.ne.s32.totalorder %s64, %s66
      %p70 = scmp.eq.s32.totalorder %s9, 0
      %p71 = por %p69, %p70
      %p72 = scmp.ne.s32.totalorder %s64, %s66
      %p73 = scmp.eq.s32.totalorder %s14, 3
      %p74 = por %p72, %p73
      %p75 = scmp.ne.s32.totalorder %s66, %s67
      %p76 = scmp.eq.s32.totalorder %s14, 0
      %p77 = por %p75, %p76
      %p78 = scmp.ne.s32.totalorder %s66, %s67
      %p79 = scmp.eq.s32.totalorder %s15, 3
      %p80 = por %p78, %p79
      %p82 = scmp.ne.s32.totalorder %s67, %s81
      %p83 = scmp.eq.s32.totalorder %s15, 0
      %p84 = por %p82, %p83
      %s85 = ssub.s32 %s9, %s16
      %p86 = scmp.eq.s32.totalorder %s85, 0
      %s88 = sadd.s32 %s87, 1
      %s89 = scalar_select %p86, %s87, %s88
      %p92 = pneg %p86
      %p93 = scmp.eq.s32.totalorder %s9, 3
      %p94 = por %p92, %p93
      %p95 = scmp.ne.s32.totalorder %s87, %s90
      %p96 = scmp.eq.s32.totalorder %s9, 0
      %p97 = por %p95, %p96
      %p98 = scmp.ne.s32.totalorder %s87, %s90
      %p99 = scmp.eq.s32.totalorder %s14, 3
      %p100 = por %p98, %p99
      %p101 = scmp.ne.s32.totalorder %s90, %s91
      %p102 = scmp.eq.s32.totalorder %s14, 0
      %p103 = por %p101, %p102
      %p104 = scmp.ne.s32.totalorder %s90, %s91
      %p105 = scmp.eq.s32.totalorder %s15, 3
      %p106 = por %p104, %p105
      %p108 = scmp.ne.s32.totalorder %s91, %s107
      %p109 = scmp.eq.s32.totalorder %s15, 0
      %p110 = por %p108, %p109
      %p111 = scmp.le.s32.totalorder 1, %s9
      %p112 = scmp.lt.s32.totalorder %s9, 5
      %p113 = pnand %p111, %p112
      %p114 = pneg %p113
      // Predicated region
      $region9: #{pyramid2_forward.23} parent=5 // pred_check
        _
      $region10: #{pyramid2_forward.23} parent=5 // pred_check_branch
        %116 = sbr.rel (%p113) target = $region12
      $region11: #{pyramid2_forward.23} parent=5 // pred_region
        %s117 = ssub.s32 %s9, 1
        // Predicated region
        $region13: #{pyramid2_forward.23} parent=11 // pred_check
          %p118 = pneg %p30
        $region14: #{pyramid2_forward.23} parent=11 // pred_check_branch
          %120 = sbr.rel (%p118) target = $region16
        $region15: #{pyramid2_forward.23} parent=11 // pred_region
          _
        $region16: #{pyramid2_forward.23} parent=11 // pred_fallthru
          _
        // Predicated region
        $region17: #{pyramid2_forward.23} parent=11 // pred_check
          %p121 = pneg %p77
        $region18: #{pyramid2_forward.23} parent=11 // pred_check_branch
          %123 = sbr.rel (%p121) target = $region20
        $region19: #{pyramid2_forward.23} parent=11 // pred_region
          _
        $region20: #{pyramid2_forward.23} parent=11 // pred_fallthru
          _
      $region12: #{pyramid2_forward.23} parent=5 // pred_fallthru
        _
      %p124 = scmp.lt.s32.totalorder %s9, 4
      // Predicated region
      $region21: #{pyramid2_forward.23} parent=5 // pred_check
        %p125 = pneg %p124
      $region22: #{pyramid2_forward.23} parent=5 // pred_check_branch
        %127 = sbr.rel (%p125) target = $region24
      $region23: #{pyramid2_forward.23} parent=5 // pred_region
        // Predicated region
        $region25: #{pyramid2_forward.23} parent=23 // pred_check
          %p128 = pneg %p50
        $region26: #{pyramid2_forward.23} parent=23 // pred_check_branch
          %130 = sbr.rel (%p128) target = $region28
        $region27: #{pyramid2_forward.23} parent=23 // pred_region
          %s131 = sand.u32 %s40, 1
          %s132 = sand.u32 %s40, 1
          %s133 = smul.addr %s132, 288
          %s134 = scalar_lea.vmem [#allocation2], %s133
          %s135 = smul.u32 4, %s9
          %s136 = smul.addr %s135, 8
          %s137 = scalar_lea.vmem %s1, %s136
          // Predicated region
          $region29: #{pyramid2_forward.23} parent=27 // pred_check
            _
          $region30: #{pyramid2_forward.23} parent=27 // pred_check_branch
            %139 = sbr.rel (0) target = $region32
          $region31: #{pyramid2_forward.23} parent=27 // pred_region
            // Predicated region
            $region33: #{pyramid2_forward.23} parent=31 // pred_check
              _
            $region34: #{pyramid2_forward.23} parent=31 // pred_check_branch
              %141 = sbr.rel (0) target = $region36
            $region35: #{pyramid2_forward.23} parent=31 // pred_region
              loop: start=0, step=1, limit=1
              $region37: #{pyramid2_forward.23} parent=35 // loop_pre_header
                _
              $region38: #{pyramid2_forward.23} parent=35 // loop_header
                %s143 = sphi 0, %s147
                %p144 = scmp.ge.s32.totalorder %s143, 1
                %s148 = sphi %s137, %s137
                %s149 = sphi %s134, %s134
              $region39: #{pyramid2_forward.23} parent=35 // loop_header_branch
                %146 = sbr.rel (%p144) target = $region43
              $region40: #{pyramid2_forward.23} parent=35 // loop_body
                %v150 = vld [vmem:[%s148] sm:$0xff]
                %151 = vst [vmem:[%s149] sm:$0xff] %v150
                %v152 = vld [vmem:[%s148 + $0x8] sm:$0xff]
                %153 = vst [vmem:[%s149 + $0x8] sm:$0xff] %v152
                %v154 = vld [vmem:[%s148 + $0x10] sm:$0xff]
                %155 = vst [vmem:[%s149 + $0x10] sm:$0xff] %v154
                %v156 = vld [vmem:[%s148 + $0x18] sm:$0xff]
                %157 = vst [vmem:[%s149 + $0x18] sm:$0xff] %v156
                %v158 = vld [vmem:[%s148 + $0x80] sm:$0xff]
                %159 = vst [vmem:[%s149 + $0x20] sm:$0xff] %v158
                %v160 = vld [vmem:[%s148 + $0x88] sm:$0xff]
                %161 = vst [vmem:[%s149 + $0x28] sm:$0xff] %v160
                %v162 = vld [vmem:[%s148 + $0x90] sm:$0xff]
                %163 = vst [vmem:[%s149 + $0x30] sm:$0xff] %v162
                %v164 = vld [vmem:[%s148 + $0x98] sm:$0xff]
                %165 = vst [vmem:[%s149 + $0x38] sm:$0xff] %v164
                %v166 = vld [vmem:[%s148 + $0x100] sm:$0xff]
                %167 = vst [vmem:[%s149 + $0x40] sm:$0xff] %v166
                %v168 = vld [vmem:[%s148 + $0x108] sm:$0xff]
                %169 = vst [vmem:[%s149 + $0x48] sm:$0xff] %v168
                %v170 = vld [vmem:[%s148 + $0x110] sm:$0xff]
                %171 = vst [vmem:[%s149 + $0x50] sm:$0xff] %v170
                %v172 = vld [vmem:[%s148 + $0x118] sm:$0xff]
                %173 = vst [vmem:[%s149 + $0x58] sm:$0xff] %v172
                %v174 = vld [vmem:[%s148 + $0x180] sm:$0xff]
                %175 = vst [vmem:[%s149 + $0x60] sm:$0xff] %v174
                %v176 = vld [vmem:[%s148 + $0x188] sm:$0xff]
                %177 = vst [vmem:[%s149 + $0x68] sm:$0xff] %v176
                %v178 = vld [vmem:[%s148 + $0x190] sm:$0xff]
                %179 = vst [vmem:[%s149 + $0x70] sm:$0xff] %v178
                %v180 = vld [vmem:[%s148 + $0x198] sm:$0xff]
                %181 = vst [vmem:[%s149 + $0x78] sm:$0xff] %v180
                %v182 = vld [vmem:[%s148 + $0x200] sm:$0xff]
                %183 = vst [vmem:[%s149 + $0x80] sm:$0xff] %v182
                %v184 = vld [vmem:[%s148 + $0x208] sm:$0xff]
                %185 = vst [vmem:[%s149 + $0x88] sm:$0xff] %v184
                %v186 = vld [vmem:[%s148 + $0x210] sm:$0xff]
                %187 = vst [vmem:[%s149 + $0x90] sm:$0xff] %v186
                %v188 = vld [vmem:[%s148 + $0x218] sm:$0xff]
                %189 = vst [vmem:[%s149 + $0x98] sm:$0xff] %v188
                %v190 = vld [vmem:[%s148 + $0x280] sm:$0xff]
                %191 = vst [vmem:[%s149 + $0xa0] sm:$0xff] %v190
                %v192 = vld [vmem:[%s148 + $0x288] sm:$0xff]
                %193 = vst [vmem:[%s149 + $0xa8] sm:$0xff] %v192
                %v194 = vld [vmem:[%s148 + $0x290] sm:$0xff]
                %195 = vst [vmem:[%s149 + $0xb0] sm:$0xff] %v194
                %v196 = vld [vmem:[%s148 + $0x298] sm:$0xff]
                %197 = vst [vmem:[%s149 + $0xb8] sm:$0xff] %v196
                %v198 = vld [vmem:[%s148 + $0x300] sm:$0xff]
                %199 = vst [vmem:[%s149 + $0xc0] sm:$0xff] %v198
                %v200 = vld [vmem:[%s148 + $0x308] sm:$0xff]
                %201 = vst [vmem:[%s149 + $0xc8] sm:$0xff] %v200
                %v202 = vld [vmem:[%s148 + $0x310] sm:$0xff]
                %203 = vst [vmem:[%s149 + $0xd0] sm:$0xff] %v202
                %v204 = vld [vmem:[%s148 + $0x318] sm:$0xff]
                %205 = vst [vmem:[%s149 + $0xd8] sm:$0xff] %v204
                %v206 = vld [vmem:[%s148 + $0x380] sm:$0xff]
                %207 = vst [vmem:[%s149 + $0xe0] sm:$0xff] %v206
                %v208 = vld [vmem:[%s148 + $0x388] sm:$0xff]
                %209 = vst [vmem:[%s149 + $0xe8] sm:$0xff] %v208
                %v210 = vld [vmem:[%s148 + $0x390] sm:$0xff]
                %211 = vst [vmem:[%s149 + $0xf0] sm:$0xff] %v210
                %v212 = vld [vmem:[%s148 + $0x398] sm:$0xff]
                %213 = vst [vmem:[%s149 + $0xf8] sm:$0xff] %v212
                %v214 = vld [vmem:[%s148 + $0x400] sm:$0xff]
                %215 = vst [vmem:[%s149 + $0x100] sm:$0xff] %v214
                %v216 = vld [vmem:[%s148 + $0x408] sm:$0xff]
                %217 = vst [vmem:[%s149 + $0x108] sm:$0xff] %v216
                %v218 = vld [vmem:[%s148 + $0x410] sm:$0xff]
                %219 = vst [vmem:[%s149 + $0x110] sm:$0xff] %v218
                %v220 = vld [vmem:[%s148 + $0x418] sm:$0xff]
                %221 = vst [vmem:[%s149 + $0x118] sm:$0xff] %v220
              $region41: #{pyramid2_forward.23} parent=35 // loop_footer
                %s147 = sadd.s32 1, %s143
              $region42: #{pyramid2_forward.23} parent=35 // loop_footer_branch
                %142 = sbr.rel target = $region38
              $region43: #{pyramid2_forward.23} parent=35 // loop_exit
                _
            $region36: #{pyramid2_forward.23} parent=31 // pred_fallthru
              _
            // Predicated region
            $region44: #{pyramid2_forward.23} parent=31 // pred_check
              _
            $region45: #{pyramid2_forward.23} parent=31 // pred_check_branch
              %223 = sbr.rel target = $region47
            $region46: #{pyramid2_forward.23} parent=31 // pred_region
              _
            $region47: #{pyramid2_forward.23} parent=31 // pred_fallthru
              _
          $region32: #{pyramid2_forward.23} parent=27 // pred_fallthru
            _
          %224 = vnop
        $region28: #{pyramid2_forward.23} parent=23 // pred_fallthru
          _
      $region24: #{pyramid2_forward.23} parent=5 // pred_fallthru
        _
      %p225 = scmp.le.s32.totalorder 1, %s9
      %p226 = scmp.lt.s32.totalorder %s9, 5
      %p227 = pnand %p225, %p226
      %p228 = pneg %p227
      // Predicated region
      $region48: #{pyramid2_forward.23} parent=5 // pred_check
        _
      $region49: #{pyramid2_forward.23} parent=5 // pred_check_branch
        %230 = sbr.rel (%p227) target = $region51
      $region50: #{pyramid2_forward.23} parent=5 // pred_region
        %s231 = ssub.s32 %s9, 1
        %s232 = sand.u32 %s43, 1
        %s233 = sand.u32 %s43, 1
        %s234 = smul.addr %s233, 288
        %s235 = scalar_lea.vmem [#allocation2], %s234
        // Predicated region
        $region52: #{pyramid2_forward.23} parent=50 // pred_check
          %p236 = pneg %p56
        $region53: #{pyramid2_forward.23} parent=50 // pred_check_branch
          %238 = sbr.rel (%p236) target = $region55
        $region54: #{pyramid2_forward.23} parent=50 // pred_region
          _
        $region55: #{pyramid2_forward.23} parent=50 // pred_fallthru
          _
        %p239 = pneg %p30
        %p240 = pneg %p27
        %s241 = sand.u32 %s43, 1
        %s242 = sand.u32 %s43, 1
        %s243 = smul.addr %s242, 288
        %s244 = scalar_lea.vmem [#allocation2], %s243
        %p245 = pneg %p56
        %p246 = pneg %p53
        %p247 = pneg %p77
        %p248 = pneg %p74
        %p249 = pneg %p103
        %p250 = pneg %p100
        %s251 = sand.u32 %s90, 1
        %s252 = sand.u32 %s90, 1
        %s253 = smul.addr %s252, 64
        %s254 = scalar_lea.vmem [#allocation3], %s253
        %s255 = smul.u32 4, %s14
        %s256 = smul.u32 4, %s14
        %v257 = vld [vmem:[%s0] sm:$0xff]
        %v258 = vld [vmem:[%s0 + $0x8] sm:$0xf]
        %v259 = vld [vmem:[%s235] sm:$0xff]
        %v260 = vld [vmem:[%s235 + $0x8] sm:$0xff]
        %v261 = vld [vmem:[%s235 + $0x10] sm:$0xff]
        %v262 = vld [vmem:[%s235 + $0x18] sm:$0xff]
        %v263 = vld [vmem:[%s235 + $0x20] sm:$0xff]
        %v264 = vld [vmem:[%s235 + $0x28] sm:$0xff]
        %v265 = vld [vmem:[%s235 + $0x30] sm:$0xff]
        %v266 = vld [vmem:[%s235 + $0x38] sm:$0xff]
        %v267 = vld [vmem:[%s235 + $0x40] sm:$0xff]
        %v268 = vld [vmem:[%s235 + $0x48] sm:$0xff]
        %v269 = vld [vmem:[%s235 + $0x50] sm:$0xff]
        %v270 = vld [vmem:[%s235 + $0x58] sm:$0xff]
        %v271 = vld [vmem:[%s235 + $0x60] sm:$0xff]
        %v272 = vld [vmem:[%s235 + $0x68] sm:$0xff]
        %v273 = vld [vmem:[%s235 + $0x70] sm:$0xff]
        %v274 = vld [vmem:[%s235 + $0x78] sm:$0xff]
        %v275 = vld [vmem:[%s235 + $0x80] sm:$0xff]
        %v276 = vld [vmem:[%s235 + $0x88] sm:$0xff]
        %v277 = vld [vmem:[%s235 + $0x90] sm:$0xff]
        %v278 = vld [vmem:[%s235 + $0x98] sm:$0xff]
        %v279 = vld [vmem:[%s235 + $0xa0] sm:$0xff]
        %v280 = vld [vmem:[%s235 + $0xa8] sm:$0xff]
        %v281 = vld [vmem:[%s235 + $0xb0] sm:$0xff]
        %v282 = vld [vmem:[%s235 + $0xb8] sm:$0xff]
        %v283 = vld [vmem:[%s235 + $0xc0] sm:$0xff]
        %v284 = vld [vmem:[%s235 + $0xc8] sm:$0xff]
        %v285 = vld [vmem:[%s235 + $0xd0] sm:$0xff]
        %v286 = vld [vmem:[%s235 + $0xd8] sm:$0xff]
        %v287 = vld [vmem:[%s235 + $0xe0] sm:$0xff]
        %v288 = vld [vmem:[%s235 + $0xe8] sm:$0xff]
        %v289 = vld [vmem:[%s235 + $0xf0] sm:$0xff]
        %v290 = vld [vmem:[%s235 + $0xf8] sm:$0xff]
        %v291 = vld [vmem:[%s235 + $0x100] sm:$0xff]
        %v292 = vld [vmem:[%s235 + $0x108] sm:$0xff]
        %v293 = vld [vmem:[%s235 + $0x110] sm:$0xff]
        %v294 = vld [vmem:[%s235 + $0x118] sm:$0xff]
        %v295 = vld [vmem:[%s2] sm:$0xff]
        %v296 = vld [vmem:[%s2 + $0x8] sm:$0xf]
        %298 = vset.pattern.permute.xlu0 0
        %299 = vperm.xlu0 %298, %v295
        %v300 = vpop.permute.xlu0 %299
        %303 = vset.pattern.permute.xlu0 0
        %304 = vperm.xlu0 %303, %v296
        %v305 = vpop.permute.xlu0 %304
        %vm307 = vcmask 588800
        %v309 = vsel %vm307, %v257, 0
        %v312 = vsel %vm307, %v258, 0
        %314 = vmatprep.subr.mxu0 %v260
        %315 = vmatpush1.msra.mxu0 %v259
        %316 = vmatprep.subr.mxu0 %v264
        %317 = vmatpush1.msra.mxu0 %v263
        %318 = vmatprep.subr.mxu0 %v268
        %319 = vmatpush1.msra.mxu0 %v267
        %320 = vmatprep.subr.mxu0 %v272
        %321 = vmatpush1.msra.mxu0 %v271
        %322 = vmatprep.subr.mxu0 %v276
        %323 = vmatpush1.msra.mxu0 %v275
        %324 = vmatprep.subr.mxu0 %v280
        %325 = vmatpush1.msra.mxu0 %v279
        %326 = vmatprep.subr.mxu0 %v284
        %327 = vmatpush1.msra.mxu0 %v283
        %328 = vmatprep.subr.mxu0 %v288
        %329 = vmatpush1.msra.mxu0 %v287
        %330 = vmatprep.subr.mxu0 %v292
        %331 = vmatpush1.msra.mxu0 %v291
        %332 = vmatprep.subr.mxu0 0.0
        %333 = vmatpush1.msra.mxu0 0.0
        %334 = vmatprep.subr.mxu0 0.0
        %335 = vmatpush1.msra.mxu0 0.0
        %336 = vmatprep.subr.mxu0 0.0
        %337 = vmatpush1.msra.mxu0 0.0
        %338 = vmatprep.subr.mxu0 0.0
        %339 = vmatpush1.msra.mxu0 0.0
        %340 = vmatprep.subr.mxu0 0.0
        %341 = vmatpush1.msra.mxu0 0.0
        %342 = vmatprep.subr.mxu0 0.0
        %343 = vmatpush1.msra.mxu0 0.0
        %344 = vmatprep.subr.mxu0 0.0
        %345 = vmatpush1.msra.mxu0 0.0
        %346 = vmatprep.subr.mxu0 0.0
        %347 = vmatpush1.msra.mxu0 0.0
        %348 = vmatprep.subr.mxu0 0.0
        %349 = vmatpush1.msra.mxu0 0.0
        %350 = vmatprep.subr.mxu0 0.0
        %351 = vmatpush1.msra.mxu0 0.0
        %352 = vmatprep.subr.mxu0 0.0
        %353 = vmatpush1.msra.mxu0 0.0
        %354 = vmatprep.subr.mxu0 0.0
        %355 = vmatpush1.msra.mxu0 0.0
        %356 = vmatprep.subr.mxu0 0.0
        %357 = vmatpush1.msra.mxu0 0.0
        %358 = vmatprep.subr.mxu0 0.0
        %359 = vmatpush1.msra.mxu0 0.0
        %360 = vmatprep.subr.mxu0 0.0
        %361 = vmatpush1.msra.mxu0 0.0
        %362 = vmatprep.subr.mxu0 0.0
        %363 = vmatpush1.msra.mxu0 0.0
        %364 = vmatprep.subr.mxu0 0.0
        %365 = vmatpush1.msra.mxu0 0.0
        %366 = vmatprep.subr.mxu0 0.0
        %367 = vmatpush1.msra.mxu0 0.0
        %368 = vmatprep.subr.mxu0 0.0
        %369 = vmatpush1.msra.mxu0 0.0
        %370 = vmatprep.subr.mxu0 0.0
        %371 = vmatpush1.msra.mxu0 0.0
        %372 = vmatprep.subr.mxu0 0.0
        %373 = vmatpush1.msra.mxu0 0.0
        %374 = vmatprep.subr.mxu0 0.0
        %375 = vmatpush1.msra.mxu0 0.0
        %376 = vmatprep.subr.mxu0 0.0
        %377 = vmatpush1.msra.mxu0 0.0
        %378 = vmatprep.mubr.f32.mxu0 0.0
        %379 = vmatmul.mubr.f32.gmra.mrb[0].mxu0 %v309
        %v380 = vpop.f32.mrb[0].mxu0
        %v381 = vadd.f32 %v300, %v380
        %v382 = vpop.f32.mrb[0].mxu0
        %v383 = vadd.f32 %v300, %v382
        %384 = vmatprep.mubr.f32.mxu0 0.0
        %385 = vmatmul.mubr.f32.gmra.mrb[0].mxu0 %v312
        %v386 = vpop.f32.mrb[0].mxu0
        %v387 = vadd.f32 %v305, %v386
        %v388 = vpop.f32.mrb[0].mxu0
        %v389 = vadd.f32 %v305, %v388
        %390 = vdwg.mxu0
        %391 = vmatprep.subr.mxu0 %v262
        %392 = vmatpush1.msra.mxu0 %v261
        %393 = vmatprep.subr.mxu0 %v266
        %394 = vmatpush1.msra.mxu0 %v265
        %395 = vmatprep.subr.mxu0 %v270
        %396 = vmatpush1.msra.mxu0 %v269
        %397 = vmatprep.subr.mxu0 %v274
        %398 = vmatpush1.msra.mxu0 %v273
        %399 = vmatprep.subr.mxu0 %v278
        %400 = vmatpush1.msra.mxu0 %v277
        %401 = vmatprep.subr.mxu0 %v282
        %402 = vmatpush1.msra.mxu0 %v281
        %403 = vmatprep.subr.mxu0 %v286
        %404 = vmatpush1.msra.mxu0 %v285
        %405 = vmatprep.subr.mxu0 %v290
        %406 = vmatpush1.msra.mxu0 %v289
        %407 = vmatprep.subr.mxu0 %v294
        %408 = vmatpush1.msra.mxu0 %v293
        %409 = vmatprep.subr.mxu0 0.0
        %410 = vmatpush1.msra.mxu0 0.0
        %411 = vmatprep.subr.mxu0 0.0
        %412 = vmatpush1.msra.mxu0 0.0
        %413 = vmatprep.subr.mxu0 0.0
        %414 = vmatpush1.msra.mxu0 0.0
        %415 = vmatprep.subr.mxu0 0.0
        %416 = vmatpush1.msra.mxu0 0.0
        %417 = vmatprep.subr.mxu0 0.0
        %418 = vmatpush1.msra.mxu0 0.0
        %419 = vmatprep.subr.mxu0 0.0
        %420 = vmatpush1.msra.mxu0 0.0
        %421 = vmatprep.subr.mxu0 0.0
        %422 = vmatpush1.msra.mxu0 0.0
        %423 = vmatprep.subr.mxu0 0.0
        %424 = vmatpush1.msra.mxu0 0.0
        %425 = vmatprep.subr.mxu0 0.0
        %426 = vmatpush1.msra.mxu0 0.0
        %427 = vmatprep.subr.mxu0 0.0
        %428 = vmatpush1.msra.mxu0 0.0
        %429 = vmatprep.subr.mxu0 0.0
        %430 = vmatpush1.msra.mxu0 0.0
        %431 = vmatprep.subr.mxu0 0.0
        %432 = vmatpush1.msra.mxu0 0.0
        %433 = vmatprep.subr.mxu0 0.0
        %434 = vmatpush1.msra.mxu0 0.0
        %435 = vmatprep.subr.mxu0 0.0
        %436 = vmatpush1.msra.mxu0 0.0
        %437 = vmatprep.subr.mxu0 0.0
        %438 = vmatpush1.msra.mxu0 0.0
        %439 = vmatprep.subr.mxu0 0.0
        %440 = vmatpush1.msra.mxu0 0.0
        %441 = vmatprep.subr.mxu0 0.0
        %442 = vmatpush1.msra.mxu0 0.0
        %443 = vmatprep.subr.mxu0 0.0
        %444 = vmatpush1.msra.mxu0 0.0
        %445 = vmatprep.subr.mxu0 0.0
        %446 = vmatpush1.msra.mxu0 0.0
        %447 = vmatprep.subr.mxu0 0.0
        %448 = vmatpush1.msra.mxu0 0.0
        %449 = vmatprep.subr.mxu0 0.0
        %450 = vmatpush1.msra.mxu0 0.0
        %451 = vmatprep.subr.mxu0 0.0
        %452 = vmatpush1.msra.mxu0 0.0
        %453 = vmatprep.subr.mxu0 0.0
        %454 = vmatpush1.msra.mxu0 0.0
        %455 = vmatprep.mubr.f32.mxu0 0.0
        %456 = vmatmul.mubr.f32.gmra.mrb[0].mxu0 %v309
        %v457 = vpop.f32.mrb[0].mxu0
        %v458 = vadd.f32 %v300, %v457
        %v459 = vpop.f32.mrb[0].mxu0
        %v460 = vadd.f32 %v300, %v459
        %461 = vmatprep.mubr.f32.mxu0 0.0
        %462 = vmatmul.mubr.f32.gmra.mrb[0].mxu0 %v312
        %v463 = vpop.f32.mrb[0].mxu0
        %v464 = vadd.f32 %v305, %v463
        %v465 = vpop.f32.mrb[0].mxu0
        %v466 = vadd.f32 %v305, %v465
        %467 = vdwg.mxu0
        %v468 = vxor.u32 %v381, 2147483648
        %v469 = vxor.u32 %v383, 2147483648
        %v470 = vxor.u32 %v458, 2147483648
        %v471 = vxor.u32 %v460, 2147483648
        %v472 = vxor.u32 %v387, 2147483648
        %v473 = vxor.u32 %v389, 2147483648
        %v474 = vxor.u32 %v464, 2147483648
        %v475 = vxor.u32 %v466, 2147483648
        %v476 = vmul.f32 %v468, 1.442695
        %v477 = vpow.pop %v476
        %v478 = vmul.f32 %v469, 1.442695
        %v479 = vpow.pop %v478
        %v480 = vmul.f32 %v470, 1.442695
        %v481 = vpow.pop %v480
        %v482 = vmul.f32 %v471, 1.442695
        %v483 = vpow.pop %v482
        %v484 = vmul.f32 %v472, 1.442695
        %v485 = vpow.pop %v484
        %v486 = vmul.f32 %v473, 1.442695
        %v487 = vpow.pop %v486
        %v488 = vmul.f32 %v474, 1.442695
        %v489 = vpow.pop %v488
        %v490 = vmul.f32 %v475, 1.442695
        %v491 = vpow.pop %v490
        %v492 = vadd.f32 %v477, 1.0
        %v493 = vadd.f32 %v479, 1.0
        %v494 = vadd.f32 %v481, 1.0
        %v495 = vadd.f32 %v483, 1.0
        %v496 = vadd.f32 %v485, 1.0
        %v497 = vadd.f32 %v487, 1.0
        %v498 = vadd.f32 %v489, 1.0
        %v499 = vadd.f32 %v491, 1.0
        %v500 = vrcp.pop %v492
        %v501 = vmul.f32 1.0, %v500
        %v502 = vrcp.pop %v493
        %v503 = vmul.f32 1.0, %v502
        %v504 = vrcp.pop %v494
        %v505 = vmul.f32 1.0, %v504
        %v506 = vrcp.pop %v495
        %v507 = vmul.f32 1.0, %v506
        %v508 = vrcp.pop %v496
        %v509 = vmul.f32 1.0, %v508
        %v510 = vrcp.pop %v497
        %v511 = vmul.f32 1.0, %v510
        %v512 = vrcp.pop %v498
        %v513 = vmul.f32 1.0, %v512
        %v514 = vrcp.pop %v499
        %v515 = vmul.f32 1.0, %v514
        %516 = vst [vmem:[%s254] sm:$0xff] %v501
        %517 = vst [vmem:[%s254 + $0x8] sm:$0xff] %v503
        %518 = vst [vmem:[%s254 + $0x10] sm:$0xff] %v505
        %519 = vst [vmem:[%s254 + $0x18] sm:$0xff] %v507
        %520 = vst [vmem:[%s254 + $0x20] sm:$0xf] %v509
        %521 = vst [vmem:[%s254 + $0x28] sm:$0xf] %v511
        %522 = vst [vmem:[%s254 + $0x30] sm:$0xf] %v513
        %523 = vst [vmem:[%s254 + $0x38] sm:$0xf] %v515
        %s524 = sand.u32 %s90, 1
        %s525 = sand.u32 %s90, 1
        %s526 = smul.addr %s525, 64
        %s527 = scalar_lea.vmem [#allocation3], %s526
        // Predicated region
        $region56: #{pyramid2_forward.23} parent=50 // pred_check
          %p528 = pneg %p100
        $region57: #{pyramid2_forward.23} parent=50 // pred_check_branch
          %530 = sbr.rel (%p528) target = $region59
        $region58: #{pyramid2_forward.23} parent=50 // pred_region
          %s531 = smul.u32 4, %s14
          %s532 = smul.addr %s531, 8
          %s533 = scalar_lea.vmem %s3, %s532
          // Predicated region
          $region60: #{pyramid2_forward.23} parent=58 // pred_check
            _
          $region61: #{pyramid2_forward.23} parent=58 // pred_check_branch
            %535 = sbr.rel (0) target = $region63
          $region62: #{pyramid2_forward.23} parent=58 // pred_region
            // Predicated region
            $region64: #{pyramid2_forward.23} parent=62 // pred_check
              _
            $region65: #{pyramid2_forward.23} parent=62 // pred_check_branch
              %537 = sbr.rel (0) target = $region67
            $region66: #{pyramid2_forward.23} parent=62 // pred_region
              loop: start=0, step=1, limit=1
              $region68: #{pyramid2_forward.23} parent=66 // loop_pre_header
                _
              $region69: #{pyramid2_forward.23} parent=66 // loop_header
                %s539 = sphi 0, %s543
                %p540 = scmp.ge.s32.totalorder %s539, 1
                %s544 = sphi %s527, %s527
                %s545 = sphi %s533, %s533
              $region70: #{pyramid2_forward.23} parent=66 // loop_header_branch
                %542 = sbr.rel (%p540) target = $region74
              $region71: #{pyramid2_forward.23} parent=66 // loop_body
                %v546 = vld [vmem:[%s544] sm:$0xff]
                %547 = vst [vmem:[%s545] sm:$0xff] %v546
                %v548 = vld [vmem:[%s544 + $0x8] sm:$0xff]
                %549 = vst [vmem:[%s545 + $0x8] sm:$0xff] %v548
                %v550 = vld [vmem:[%s544 + $0x10] sm:$0xff]
                %551 = vst [vmem:[%s545 + $0x10] sm:$0xff] %v550
                %v552 = vld [vmem:[%s544 + $0x18] sm:$0xff]
                %553 = vst [vmem:[%s545 + $0x18] sm:$0xff] %v552
                %v554 = vld [vmem:[%s544 + $0x20] sm:$0xff]
                %555 = vst [vmem:[%s545 + $0x80] sm:$0xff] %v554
                %v556 = vld [vmem:[%s544 + $0x28] sm:$0xff]
                %557 = vst [vmem:[%s545 + $0x88] sm:$0xff] %v556
                %v558 = vld [vmem:[%s544 + $0x30] sm:$0xff]
                %559 = vst [vmem:[%s545 + $0x90] sm:$0xff] %v558
                %v560 = vld [vmem:[%s544 + $0x38] sm:$0xff]
                %561 = vst [vmem:[%s545 + $0x98] sm:$0xff] %v560
              $region72: #{pyramid2_forward.23} parent=66 // loop_footer
                %s543 = sadd.s32 1, %s539
              $region73: #{pyramid2_forward.23} parent=66 // loop_footer_branch
                %538 = sbr.rel target = $region69
              $region74: #{pyramid2_forward.23} parent=66 // loop_exit
                _
            $region67: #{pyramid2_forward.23} parent=62 // pred_fallthru
              _
            // Predicated region
            $region75: #{pyramid2_forward.23} parent=62 // pred_check
              _
            $region76: #{pyramid2_forward.23} parent=62 // pred_check_branch
              %563 = sbr.rel target = $region78
            $region77: #{pyramid2_forward.23} parent=62 // pred_region
              _
            $region78: #{pyramid2_forward.23} parent=62 // pred_fallthru
              _
          $region63: #{pyramid2_forward.23} parent=58 // pred_fallthru
            _
          %564 = vnop
        $region59: #{pyramid2_forward.23} parent=50 // pred_fallthru
          _
      $region51: #{pyramid2_forward.23} parent=5 // pred_fallthru
        _
      %p565 = scmp.le.s32.totalorder 2, %s9
      // Predicated region
      $region79: #{pyramid2_forward.23} parent=5 // pred_check
        %p566 = pneg %p565
      $region80: #{pyramid2_forward.23} parent=5 // pred_check_branch
        %568 = sbr.rel (%p566) target = $region82
      $region81: #{pyramid2_forward.23} parent=5 // pred_region
        %s569 = ssub.s32 %s9, 2
        // Predicated region
        $region83: #{pyramid2_forward.23} parent=81 // pred_check
          %p570 = pneg %p106
        $region84: #{pyramid2_forward.23} parent=81 // pred_check_branch
          %572 = sbr.rel (%p570) target = $region86
        $region85: #{pyramid2_forward.23} parent=81 // pred_region
          %s573 = sand.u32 %s91, 1
          %s574 = sand.u32 %s91, 1
          %s575 = smul.addr %s574, 64
          %s576 = scalar_lea.vmem [#allocation3], %s575
        $region86: #{pyramid2_forward.23} parent=81 // pred_fallthru
          _
      $region82: #{pyramid2_forward.23} parent=5 // pred_fallthru
        _
    $region6: #{pyramid2_forward.23} parent=1 // loop_footer
      %s13 = sadd.s32 1, %s9
    $region7: #{pyramid2_forward.23} parent=1 // loop_footer_branch
      %8 = sbr.rel target = $region3
    $region8: #{pyramid2_forward.23} parent=1 // loop_exit
      _

</llo_original>
